<compile_context>
chip_gen: v5e
topology: v5e:2x2
jax: 0.10.0
libtpu: 0.0.40
codegen_flags: <defaults>
</compile_context>

<pallas_src>
import jax
import jax.numpy as jnp
from jax.experimental import pallas as pl
from jax.experimental.pallas import tpu as pltpu

LATENT_DIM = 16
STYLE_DIM = 64
NUM_DOMAINS = 2
HIDDEN = 512
N_SHARED_HIDDEN = 3     # 3 x (Linear(512,512) + ReLU) after the first layer
N_UNSHARED_HIDDEN = 3   # 3 x (Linear(512,512) + ReLU) before final Linear(512,style)

WIDE = NUM_DOMAINS * STYLE_DIM  # 128 — lane-dense final/output width


def _round_up(x, m):
    return ((x + m - 1) // m) * m


def _mapping_kernel(z_ref, y_ref,
                    w0_ref, b0_ref,
                    wsh_ref, bsh_ref,
                    wun_ref, bun_ref,
                    wfin_ref, bfin_ref,
                    o_ref):
    bf16 = jnp.bfloat16

    # Shared trunk: Linear(latent, 512) + ReLU, then 3 x (Linear(512,512) + ReLU).
    h = jnp.dot(z_ref[...].astype(bf16), w0_ref[...],
                preferred_element_type=jnp.float32)
    h = jnp.maximum(h + b0_ref[...], 0.0)
    for i in range(N_SHARED_HIDDEN):
        h = jnp.dot(h.astype(bf16), wsh_ref[i], preferred_element_type=jnp.float32)
        h = jnp.maximum(h + bsh_ref[i], 0.0)

    # Unshared per-domain hidden branches; select each sample's domain branch.
    # TODO(synk): with scalar-prefetched y one could DMA/compute only the domain
    # branches actually present in the batch; here both are always evaluated.
    y = y_ref[...]  # [tile_b, 1] int32 (out-of-range y is assumed validated upstream)
    hd_sel = jnp.zeros_like(h)
    for d in range(NUM_DOMAINS):
        hd = h
        for i in range(N_UNSHARED_HIDDEN):
            hd = jnp.dot(hd.astype(bf16), wun_ref[d, i],
                         preferred_element_type=jnp.float32)
            hd = jnp.maximum(hd + bun_ref[d, i], 0.0)
        hd_sel = jnp.where(y == d, hd, hd_sel)

    # Single lane-dense final matmul over the concatenated heads -> [tile_b, 128].
    s_all = jnp.dot(hd_sel.astype(bf16), wfin_ref[...],
                    preferred_element_type=jnp.float32)
    o_ref[...] = (s_all + bfin_ref[...]).astype(o_ref.dtype)


def mapping_network(z, y, params):
    """z: [B, LATENT_DIM] f32, y: [B] int domain labels -> s: [B, STYLE_DIM] f32."""
    B = z.shape[0]
    tile_b = min(128, _round_up(B, 8))
    bp = _round_up(B, tile_b)
    if bp != B:
        z = jnp.pad(z, ((0, bp - B), (0, 0)))
        y_pad = jnp.pad(y.astype(jnp.int32), (0, bp - B))
    else:
        y_pad = y.astype(jnp.int32)
    y2 = y_pad.reshape(bp, 1)

    # Concatenate the per-domain final heads into one [512, 128] weight / [1, 128] bias.
    wfin_cat = jnp.transpose(params["wfin"], (1, 0, 2)).reshape(HIDDEN, WIDE)
    bfin_cat = jnp.transpose(params["bfin"], (1, 0, 2)).reshape(1, WIDE)

    const = lambda *dims: (lambda i: dims)  # weight blocks: same block every grid step
    in_specs = [
        pl.BlockSpec((tile_b, LATENT_DIM), lambda i: (i, 0)),
        pl.BlockSpec((tile_b, 1), lambda i: (i, 0)),
        pl.BlockSpec((LATENT_DIM, HIDDEN), const(0, 0)),
        pl.BlockSpec((1, HIDDEN), const(0, 0)),
        pl.BlockSpec((N_SHARED_HIDDEN, HIDDEN, HIDDEN), const(0, 0, 0)),
        pl.BlockSpec((N_SHARED_HIDDEN, 1, HIDDEN), const(0, 0, 0)),
        pl.BlockSpec((NUM_DOMAINS, N_UNSHARED_HIDDEN, HIDDEN, HIDDEN), const(0, 0, 0, 0)),
        pl.BlockSpec((NUM_DOMAINS, N_UNSHARED_HIDDEN, 1, HIDDEN), const(0, 0, 0, 0)),
        pl.BlockSpec((HIDDEN, WIDE), const(0, 0)),
        pl.BlockSpec((1, WIDE), const(0, 0)),
    ]
    out_spec = pl.BlockSpec((tile_b, WIDE), lambda i: (i, 0))

    s_all = pl.pallas_call(
        _mapping_kernel,
        out_shape=jax.ShapeDtypeStruct((bp, WIDE), jnp.float32),
        grid=(pl.cdiv(bp, tile_b),),
        in_specs=in_specs,
        out_specs=out_spec,
        compiler_params=pltpu.CompilerParams(
            dimension_semantics=("parallel",),
            vmem_limit_bytes=32 << 20,
        ),
    )(z, y2,
      params["w0"], params["b0"],
      params["wsh"], params["bsh"],
      params["wun"], params["bun"],
      wfin_cat, bfin_cat)

    # Per-sample 64-wide head selection: cheap gather in the wrapper keeps the
    # kernel's output store lane-dense at 128 lanes.
    s_all = s_all[:B].reshape(B, NUM_DOMAINS, STYLE_DIM)
    return s_all[jnp.arange(B), y]


def init_params(key):
    ks = jax.random.split(key, 8)
    scale = 0.05
    bf16 = jnp.bfloat16
    n = lambda k, shape: scale * jax.random.normal(k, shape, jnp.float32)
    return {
        # first shared layer: Linear(latent_dim, 512)
        "w0": n(ks[0], (LATENT_DIM, HIDDEN)).astype(bf16),
        "b0": n(ks[1], (1, HIDDEN)),
        # 3 shared hidden layers: Linear(512, 512)
        "wsh": n(ks[2], (N_SHARED_HIDDEN, HIDDEN, HIDDEN)).astype(bf16),
        "bsh": n(ks[3], (N_SHARED_HIDDEN, 1, HIDDEN)),
        # unshared per-domain hidden layers: 3 x Linear(512, 512)
        "wun": n(ks[4], (NUM_DOMAINS, N_UNSHARED_HIDDEN, HIDDEN, HIDDEN)).astype(bf16),
        "bun": n(ks[5], (NUM_DOMAINS, N_UNSHARED_HIDDEN, 1, HIDDEN)),
        # unshared final layer: Linear(512, style_dim), no ReLU
        "wfin": n(ks[6], (NUM_DOMAINS, HIDDEN, STYLE_DIM)).astype(bf16),
        "bfin": n(ks[7], (NUM_DOMAINS, 1, STYLE_DIM)),
    }


def mapping_network_ref(z, y, params):
    """Pure-JAX reference mirroring the PyTorch forward (bf16 weights, f32 accum)."""
    bf16 = jnp.bfloat16
    mm = lambda x, w: jnp.dot(x.astype(bf16), w, preferred_element_type=jnp.float32)
    h = jnp.maximum(mm(z, params["w0"]) + params["b0"], 0.0)
    for i in range(N_SHARED_HIDDEN):
        h = jnp.maximum(mm(h, params["wsh"][i]) + params["bsh"][i], 0.0)
    outs = []
    for d in range(NUM_DOMAINS):
        hd = h
        for i in range(N_UNSHARED_HIDDEN):
            hd = jnp.maximum(mm(hd, params["wun"][d, i]) + params["bun"][d, i], 0.0)
        outs.append(mm(hd, params["wfin"][d]) + params["bfin"][d])
    stacked = jnp.stack(outs, axis=1)  # [B, num_domains, style_dim]
    return stacked[jnp.arange(z.shape[0]), y]


if __name__ == "__main__":
    key = jax.random.PRNGKey(0)
    kp, kz, ky = jax.random.split(key, 3)

    B = 8
    params = init_params(kp)
    z = jax.random.normal(kz, (B, LATENT_DIM), jnp.float32)
    y = jax.random.randint(ky, (B,), 0, NUM_DOMAINS, jnp.int32)

    s = mapping_network(z, y, params)
    s = jax.block_until_ready(s)

    s_ref = mapping_network_ref(z, y, params)
    assert s.shape == (B, STYLE_DIM)
    assert jnp.allclose(s, s_ref, atol=1e-2, rtol=1e-2), "mismatch vs reference"

    print("KERNEL_OK")
</pallas_src>

<mosaic_0001>
module attributes {stable_mosaic.version = 11 : i64} {
  func.func @_mapping_kernel(%arg0: i32, %arg1: memref<8x16xf32, #tpu.memory_space<vmem>>, %arg2: memref<8x1xi32, #tpu.memory_space<vmem>>, %arg3: memref<16x512xbf16, #tpu.memory_space<vmem>>, %arg4: memref<1x512xf32, #tpu.memory_space<vmem>>, %arg5: memref<3x512x512xbf16, #tpu.memory_space<vmem>>, %arg6: memref<3x1x512xf32, #tpu.memory_space<vmem>>, %arg7: memref<2x3x512x512xbf16, #tpu.memory_space<vmem>>, %arg8: memref<2x3x1x512xf32, #tpu.memory_space<vmem>>, %arg9: memref<512x128xbf16, #tpu.memory_space<vmem>>, %arg10: memref<1x128xf32, #tpu.memory_space<vmem>>, %arg11: memref<8x128xf32, #tpu.memory_space<vmem>>) attributes {dimension_semantics = [#tpu.dimension_semantics<parallel>], iteration_bounds = array<i64: 1>, scalar_prefetch = 0 : i64, scratch_operands = 0 : i64, tpu.core_type = #tpu.core_type<tc>, window_params = [{transform_indices = @transform_0, window_bounds = array<i64: 8, 16>}, {transform_indices = @transform_1, window_bounds = array<i64: 8, 1>}, {pipeline_mode = #tpu.pipeline_mode<synchronous>, transform_indices = @transform_2, window_bounds = array<i64: 16, 512>}, {pipeline_mode = #tpu.pipeline_mode<synchronous>, transform_indices = @transform_3, window_bounds = array<i64: 1, 512>}, {pipeline_mode = #tpu.pipeline_mode<synchronous>, transform_indices = @transform_4, window_bounds = array<i64: 3, 512, 512>}, {pipeline_mode = #tpu.pipeline_mode<synchronous>, transform_indices = @transform_5, window_bounds = array<i64: 3, 1, 512>}, {pipeline_mode = #tpu.pipeline_mode<synchronous>, transform_indices = @transform_6, window_bounds = array<i64: 2, 3, 512, 512>}, {pipeline_mode = #tpu.pipeline_mode<synchronous>, transform_indices = @transform_7, window_bounds = array<i64: 2, 3, 1, 512>}, {pipeline_mode = #tpu.pipeline_mode<synchronous>, transform_indices = @transform_8, window_bounds = array<i64: 512, 128>}, {pipeline_mode = #tpu.pipeline_mode<synchronous>, transform_indices = @transform_9, window_bounds = array<i64: 1, 128>}, {transform_indices = @transform_10, window_bounds = array<i64: 8, 128>}]} {
    %c0 = arith.constant 0 : index
    %c0_0 = arith.constant 0 : index
    %0 = vector.load %arg1[%c0, %c0_0] : memref<8x16xf32, #tpu.memory_space<vmem>>, vector<8x16xf32>
    %1 = arith.truncf %0 : vector<8x16xf32> to vector<8x16xbf16>
    %c0_1 = arith.constant 0 : index
    %c0_2 = arith.constant 0 : index
    %2 = vector.load %arg3[%c0_1, %c0_2] : memref<16x512xbf16, #tpu.memory_space<vmem>>, vector<16x512xbf16>
    %cst = arith.constant dense<0.000000e+00> : vector<8x512xf32>
    %3 = tpu.matmul %1, %2, %cst {dimension_numbers = #tpu.dot_dimension_numbers<[1], [0], [0], [1], [0, 0, 1, 1], [], []>} : vector<8x16xbf16>, vector<16x512xbf16>, vector<8x512xf32> -> vector<8x512xf32>
    %c0_3 = arith.constant 0 : index
    %c0_4 = arith.constant 0 : index
    %4 = vector.load %arg4[%c0_3, %c0_4] : memref<1x512xf32, #tpu.memory_space<vmem>>, vector<1x512xf32>
    %5 = vector.broadcast %4 : vector<1x512xf32> to vector<8x512xf32>
    %6 = arith.addf %3, %5 : vector<8x512xf32>
    %cst_5 = arith.constant 0.000000e+00 : f32
    %7 = vector.broadcast %cst_5 : f32 to vector<8x512xf32>
    %8 = arith.maximumf %6, %7 : vector<8x512xf32>
    %9 = arith.truncf %8 : vector<8x512xf32> to vector<8x512xbf16>
    %c0_6 = arith.constant 0 : index
    %c0_7 = arith.constant 0 : index
    %c0_8 = arith.constant 0 : index
    %10 = vector.load %arg5[%c0_6, %c0_7, %c0_8] : memref<3x512x512xbf16, #tpu.memory_space<vmem>>, vector<1x512x512xbf16>
    %11 = vector.shape_cast %10 : vector<1x512x512xbf16> to vector<512x512xbf16>
    %cst_9 = arith.constant dense<0.000000e+00> : vector<8x512xf32>
    %12 = tpu.matmul %9, %11, %cst_9 {dimension_numbers = #tpu.dot_dimension_numbers<[1], [0], [0], [1], [0, 0, 1, 1], [], []>} : vector<8x512xbf16>, vector<512x512xbf16>, vector<8x512xf32> -> vector<8x512xf32>
    %c0_10 = arith.constant 0 : index
    %c0_11 = arith.constant 0 : index
    %c0_12 = arith.constant 0 : index
    %13 = vector.load %arg6[%c0_10, %c0_11, %c0_12] : memref<3x1x512xf32, #tpu.memory_space<vmem>>, vector<1x1x512xf32>
    %14 = vector.shape_cast %13 : vector<1x1x512xf32> to vector<1x512xf32>
    %15 = vector.broadcast %14 : vector<1x512xf32> to vector<8x512xf32>
    %16 = arith.addf %12, %15 : vector<8x512xf32>
    %cst_13 = arith.constant 0.000000e+00 : f32
    %17 = vector.broadcast %cst_13 : f32 to vector<8x512xf32>
    %18 = arith.maximumf %16, %17 : vector<8x512xf32>
    %19 = arith.truncf %18 : vector<8x512xf32> to vector<8x512xbf16>
    %c1 = arith.constant 1 : index
    %c0_14 = arith.constant 0 : index
    %c0_15 = arith.constant 0 : index
    %20 = vector.load %arg5[%c1, %c0_14, %c0_15] : memref<3x512x512xbf16, #tpu.memory_space<vmem>>, vector<1x512x512xbf16>
    %21 = vector.shape_cast %20 : vector<1x512x512xbf16> to vector<512x512xbf16>
    %cst_16 = arith.constant dense<0.000000e+00> : vector<8x512xf32>
    %22 = tpu.matmul %19, %21, %cst_16 {dimension_numbers = #tpu.dot_dimension_numbers<[1], [0], [0], [1], [0, 0, 1, 1], [], []>} : vector<8x512xbf16>, vector<512x512xbf16>, vector<8x512xf32> -> vector<8x512xf32>
    %c1_17 = arith.constant 1 : index
    %c0_18 = arith.constant 0 : index
    %c0_19 = arith.constant 0 : index
    %23 = vector.load %arg6[%c1_17, %c0_18, %c0_19] : memref<3x1x512xf32, #tpu.memory_space<vmem>>, vector<1x1x512xf32>
    %24 = vector.shape_cast %23 : vector<1x1x512xf32> to vector<1x512xf32>
    %25 = vector.broadcast %24 : vector<1x512xf32> to vector<8x512xf32>
    %26 = arith.addf %22, %25 : vector<8x512xf32>
    %cst_20 = arith.constant 0.000000e+00 : f32
    %27 = vector.broadcast %cst_20 : f32 to vector<8x512xf32>
    %28 = arith.maximumf %26, %27 : vector<8x512xf32>
    %29 = arith.truncf %28 : vector<8x512xf32> to vector<8x512xbf16>
    %c2 = arith.constant 2 : index
    %c0_21 = arith.constant 0 : index
    %c0_22 = arith.constant 0 : index
    %30 = vector.load %arg5[%c2, %c0_21, %c0_22] : memref<3x512x512xbf16, #tpu.memory_space<vmem>>, vector<1x512x512xbf16>
    %31 = vector.shape_cast %30 : vector<1x512x512xbf16> to vector<512x512xbf16>
    %cst_23 = arith.constant dense<0.000000e+00> : vector<8x512xf32>
    %32 = tpu.matmul %29, %31, %cst_23 {dimension_numbers = #tpu.dot_dimension_numbers<[1], [0], [0], [1], [0, 0, 1, 1], [], []>} : vector<8x512xbf16>, vector<512x512xbf16>, vector<8x512xf32> -> vector<8x512xf32>
    %c2_24 = arith.constant 2 : index
    %c0_25 = arith.constant 0 : index
    %c0_26 = arith.constant 0 : index
    %33 = vector.load %arg6[%c2_24, %c0_25, %c0_26] : memref<3x1x512xf32, #tpu.memory_space<vmem>>, vector<1x1x512xf32>
    %34 = vector.shape_cast %33 : vector<1x1x512xf32> to vector<1x512xf32>
    %35 = vector.broadcast %34 : vector<1x512xf32> to vector<8x512xf32>
    %36 = arith.addf %32, %35 : vector<8x512xf32>
    %cst_27 = arith.constant 0.000000e+00 : f32
    %37 = vector.broadcast %cst_27 : f32 to vector<8x512xf32>
    %38 = arith.maximumf %36, %37 : vector<8x512xf32>
    %c0_28 = arith.constant 0 : index
    %c0_29 = arith.constant 0 : index
    %39 = vector.load %arg2[%c0_28, %c0_29] : memref<8x1xi32, #tpu.memory_space<vmem>>, vector<8x1xi32>
    %cst_30 = arith.constant 0.000000e+00 : f32
    %40 = vector.broadcast %cst_30 : f32 to vector<8x512xf32>
    %41 = arith.truncf %38 : vector<8x512xf32> to vector<8x512xbf16>
    %c0_31 = arith.constant 0 : index
    %c0_32 = arith.constant 0 : index
    %c0_33 = arith.constant 0 : index
    %c0_34 = arith.constant 0 : index
    %42 = vector.load %arg7[%c0_31, %c0_32, %c0_33, %c0_34] : memref<2x3x512x512xbf16, #tpu.memory_space<vmem>>, vector<1x1x512x512xbf16>
    %43 = vector.shape_cast %42 : vector<1x1x512x512xbf16> to vector<512x512xbf16>
    %cst_35 = arith.constant dense<0.000000e+00> : vector<8x512xf32>
    %44 = tpu.matmul %41, %43, %cst_35 {dimension_numbers = #tpu.dot_dimension_numbers<[1], [0], [0], [1], [0, 0, 1, 1], [], []>} : vector<8x512xbf16>, vector<512x512xbf16>, vector<8x512xf32> -> vector<8x512xf32>
    %c0_36 = arith.constant 0 : index
    %c0_37 = arith.constant 0 : index
    %c0_38 = arith.constant 0 : index
    %c0_39 = arith.constant 0 : index
    %45 = vector.load %arg8[%c0_36, %c0_37, %c0_38, %c0_39] : memref<2x3x1x512xf32, #tpu.memory_space<vmem>>, vector<1x1x1x512xf32>
    %46 = vector.shape_cast %45 : vector<1x1x1x512xf32> to vector<1x512xf32>
    %47 = vector.broadcast %46 : vector<1x512xf32> to vector<8x512xf32>
    %48 = arith.addf %44, %47 : vector<8x512xf32>
    %cst_40 = arith.constant 0.000000e+00 : f32
    %49 = vector.broadcast %cst_40 : f32 to vector<8x512xf32>
    %50 = arith.maximumf %48, %49 : vector<8x512xf32>
    %51 = arith.truncf %50 : vector<8x512xf32> to vector<8x512xbf16>
    %c0_41 = arith.constant 0 : index
    %c1_42 = arith.constant 1 : index
    %c0_43 = arith.constant 0 : index
    %c0_44 = arith.constant 0 : index
    %52 = vector.load %arg7[%c0_41, %c1_42, %c0_43, %c0_44] : memref<2x3x512x512xbf16, #tpu.memory_space<vmem>>, vector<1x1x512x512xbf16>
    %53 = vector.shape_cast %52 : vector<1x1x512x512xbf16> to vector<512x512xbf16>
    %cst_45 = arith.constant dense<0.000000e+00> : vector<8x512xf32>
    %54 = tpu.matmul %51, %53, %cst_45 {dimension_numbers = #tpu.dot_dimension_numbers<[1], [0], [0], [1], [0, 0, 1, 1], [], []>} : vector<8x512xbf16>, vector<512x512xbf16>, vector<8x512xf32> -> vector<8x512xf32>
    %c0_46 = arith.constant 0 : index
    %c1_47 = arith.constant 1 : index
    %c0_48 = arith.constant 0 : index
    %c0_49 = arith.constant 0 : index
    %55 = vector.load %arg8[%c0_46, %c1_47, %c0_48, %c0_49] : memref<2x3x1x512xf32, #tpu.memory_space<vmem>>, vector<1x1x1x512xf32>
    %56 = vector.shape_cast %55 : vector<1x1x1x512xf32> to vector<1x512xf32>
    %57 = vector.broadcast %56 : vector<1x512xf32> to vector<8x512xf32>
    %58 = arith.addf %54, %57 : vector<8x512xf32>
    %cst_50 = arith.constant 0.000000e+00 : f32
    %59 = vector.broadcast %cst_50 : f32 to vector<8x512xf32>
    %60 = arith.maximumf %58, %59 : vector<8x512xf32>
    %61 = arith.truncf %60 : vector<8x512xf32> to vector<8x512xbf16>
    %c0_51 = arith.constant 0 : index
    %c2_52 = arith.constant 2 : index
    %c0_53 = arith.constant 0 : index
    %c0_54 = arith.constant 0 : index
    %62 = vector.load %arg7[%c0_51, %c2_52, %c0_53, %c0_54] : memref<2x3x512x512xbf16, #tpu.memory_space<vmem>>, vector<1x1x512x512xbf16>
    %63 = vector.shape_cast %62 : vector<1x1x512x512xbf16> to vector<512x512xbf16>
    %cst_55 = arith.constant dense<0.000000e+00> : vector<8x512xf32>
    %64 = tpu.matmul %61, %63, %cst_55 {dimension_numbers = #tpu.dot_dimension_numbers<[1], [0], [0], [1], [0, 0, 1, 1], [], []>} : vector<8x512xbf16>, vector<512x512xbf16>, vector<8x512xf32> -> vector<8x512xf32>
    %c0_56 = arith.constant 0 : index
    %c2_57 = arith.constant 2 : index
    %c0_58 = arith.constant 0 : index
    %c0_59 = arith.constant 0 : index
    %65 = vector.load %arg8[%c0_56, %c2_57, %c0_58, %c0_59] : memref<2x3x1x512xf32, #tpu.memory_space<vmem>>, vector<1x1x1x512xf32>
    %66 = vector.shape_cast %65 : vector<1x1x1x512xf32> to vector<1x512xf32>
    %67 = vector.broadcast %66 : vector<1x512xf32> to vector<8x512xf32>
    %68 = arith.addf %64, %67 : vector<8x512xf32>
    %cst_60 = arith.constant 0.000000e+00 : f32
    %69 = vector.broadcast %cst_60 : f32 to vector<8x512xf32>
    %70 = arith.maximumf %68, %69 : vector<8x512xf32>
    %c0_i32 = arith.constant 0 : i32
    %71 = vector.broadcast %c0_i32 : i32 to vector<8x1xi32>
    %72 = arith.cmpi eq, %39, %71 : vector<8x1xi32>
    %73 = vector.shape_cast %72 : vector<8x1xi1> to vector<8x1xi1>
    %74 = vector.broadcast %73 : vector<8x1xi1> to vector<8x512xi1>
    %75 = arith.select %74, %70, %40 : vector<8x512xi1>, vector<8x512xf32>
    %76 = arith.truncf %38 : vector<8x512xf32> to vector<8x512xbf16>
    %c1_61 = arith.constant 1 : index
    %c0_62 = arith.constant 0 : index
    %c0_63 = arith.constant 0 : index
    %c0_64 = arith.constant 0 : index
    %77 = vector.load %arg7[%c1_61, %c0_62, %c0_63, %c0_64] : memref<2x3x512x512xbf16, #tpu.memory_space<vmem>>, vector<1x1x512x512xbf16>
    %78 = vector.shape_cast %77 : vector<1x1x512x512xbf16> to vector<512x512xbf16>
    %cst_65 = arith.constant dense<0.000000e+00> : vector<8x512xf32>
    %79 = tpu.matmul %76, %78, %cst_65 {dimension_numbers = #tpu.dot_dimension_numbers<[1], [0], [0], [1], [0, 0, 1, 1], [], []>} : vector<8x512xbf16>, vector<512x512xbf16>, vector<8x512xf32> -> vector<8x512xf32>
    %c1_66 = arith.constant 1 : index
    %c0_67 = arith.constant 0 : index
    %c0_68 = arith.constant 0 : index
    %c0_69 = arith.constant 0 : index
    %80 = vector.load %arg8[%c1_66, %c0_67, %c0_68, %c0_69] : memref<2x3x1x512xf32, #tpu.memory_space<vmem>>, vector<1x1x1x512xf32>
    %81 = vector.shape_cast %80 : vector<1x1x1x512xf32> to vector<1x512xf32>
    %82 = vector.broadcast %81 : vector<1x512xf32> to vector<8x512xf32>
    %83 = arith.addf %79, %82 : vector<8x512xf32>
    %cst_70 = arith.constant 0.000000e+00 : f32
    %84 = vector.broadcast %cst_70 : f32 to vector<8x512xf32>
    %85 = arith.maximumf %83, %84 : vector<8x512xf32>
    %86 = arith.truncf %85 : vector<8x512xf32> to vector<8x512xbf16>
    %c1_71 = arith.constant 1 : index
    %c1_72 = arith.constant 1 : index
    %c0_73 = arith.constant 0 : index
    %c0_74 = arith.constant 0 : index
    %87 = vector.load %arg7[%c1_71, %c1_72, %c0_73, %c0_74] : memref<2x3x512x512xbf16, #tpu.memory_space<vmem>>, vector<1x1x512x512xbf16>
    %88 = vector.shape_cast %87 : vector<1x1x512x512xbf16> to vector<512x512xbf16>
    %cst_75 = arith.constant dense<0.000000e+00> : vector<8x512xf32>
    %89 = tpu.matmul %86, %88, %cst_75 {dimension_numbers = #tpu.dot_dimension_numbers<[1], [0], [0], [1], [0, 0, 1, 1], [], []>} : vector<8x512xbf16>, vector<512x512xbf16>, vector<8x512xf32> -> vector<8x512xf32>
    %c1_76 = arith.constant 1 : index
    %c1_77 = arith.constant 1 : index
    %c0_78 = arith.constant 0 : index
    %c0_79 = arith.constant 0 : index
    %90 = vector.load %arg8[%c1_76, %c1_77, %c0_78, %c0_79] : memref<2x3x1x512xf32, #tpu.memory_space<vmem>>, vector<1x1x1x512xf32>
    %91 = vector.shape_cast %90 : vector<1x1x1x512xf32> to vector<1x512xf32>
    %92 = vector.broadcast %91 : vector<1x512xf32> to vector<8x512xf32>
    %93 = arith.addf %89, %92 : vector<8x512xf32>
    %cst_80 = arith.constant 0.000000e+00 : f32
    %94 = vector.broadcast %cst_80 : f32 to vector<8x512xf32>
    %95 = arith.maximumf %93, %94 : vector<8x512xf32>
    %96 = arith.truncf %95 : vector<8x512xf32> to vector<8x512xbf16>
    %c1_81 = arith.constant 1 : index
    %c2_82 = arith.constant 2 : index
    %c0_83 = arith.constant 0 : index
    %c0_84 = arith.constant 0 : index
    %97 = vector.load %arg7[%c1_81, %c2_82, %c0_83, %c0_84] : memref<2x3x512x512xbf16, #tpu.memory_space<vmem>>, vector<1x1x512x512xbf16>
    %98 = vector.shape_cast %97 : vector<1x1x512x512xbf16> to vector<512x512xbf16>
    %cst_85 = arith.constant dense<0.000000e+00> : vector<8x512xf32>
    %99 = tpu.matmul %96, %98, %cst_85 {dimension_numbers = #tpu.dot_dimension_numbers<[1], [0], [0], [1], [0, 0, 1, 1], [], []>} : vector<8x512xbf16>, vector<512x512xbf16>, vector<8x512xf32> -> vector<8x512xf32>
    %c1_86 = arith.constant 1 : index
    %c2_87 = arith.constant 2 : index
    %c0_88 = arith.constant 0 : index
    %c0_89 = arith.constant 0 : index
    %100 = vector.load %arg8[%c1_86, %c2_87, %c0_88, %c0_89] : memref<2x3x1x512xf32, #tpu.memory_space<vmem>>, vector<1x1x1x512xf32>
    %101 = vector.shape_cast %100 : vector<1x1x1x512xf32> to vector<1x512xf32>
    %102 = vector.broadcast %101 : vector<1x512xf32> to vector<8x512xf32>
    %103 = arith.addf %99, %102 : vector<8x512xf32>
    %cst_90 = arith.constant 0.000000e+00 : f32
    %104 = vector.broadcast %cst_90 : f32 to vector<8x512xf32>
    %105 = arith.maximumf %103, %104 : vector<8x512xf32>
    %c1_i32 = arith.constant 1 : i32
    %106 = vector.broadcast %c1_i32 : i32 to vector<8x1xi32>
    %107 = arith.cmpi eq, %39, %106 : vector<8x1xi32>
    %108 = vector.shape_cast %107 : vector<8x1xi1> to vector<8x1xi1>
    %109 = vector.broadcast %108 : vector<8x1xi1> to vector<8x512xi1>
    %110 = arith.select %109, %105, %75 : vector<8x512xi1>, vector<8x512xf32>
    %111 = arith.truncf %110 : vector<8x512xf32> to vector<8x512xbf16>
    %c0_91 = arith.constant 0 : index
    %c0_92 = arith.constant 0 : index
    %112 = vector.load %arg9[%c0_91, %c0_92] : memref<512x128xbf16, #tpu.memory_space<vmem>>, vector<512x128xbf16>
    %cst_93 = arith.constant dense<0.000000e+00> : vector<8x128xf32>
    %113 = tpu.matmul %111, %112, %cst_93 {dimension_numbers = #tpu.dot_dimension_numbers<[1], [0], [0], [1], [0, 0, 1, 1], [], []>} : vector<8x512xbf16>, vector<512x128xbf16>, vector<8x128xf32> -> vector<8x128xf32>
    %c0_94 = arith.constant 0 : index
    %c0_95 = arith.constant 0 : index
    %114 = vector.load %arg10[%c0_94, %c0_95] : memref<1x128xf32, #tpu.memory_space<vmem>>, vector<1x128xf32>
    %115 = vector.broadcast %114 : vector<1x128xf32> to vector<8x128xf32>
    %116 = arith.addf %113, %115 : vector<8x128xf32>
    %c0_96 = arith.constant 0 : index
    %c0_97 = arith.constant 0 : index
    %117 = vector.load %arg11[%c0_96, %c0_97] : memref<8x128xf32, #tpu.memory_space<vmem>>, vector<8x128xf32>
    tpu.vector_store %arg11[%c0_96, %c0_97], %116 {strides = array<i32>} : memref<8x128xf32, #tpu.memory_space<vmem>>, vector<8x128xf32>,
    return
  }
  func.func @transform_0(%arg0: i32) -> (i32, i32) {
    %c0_i32 = arith.constant 0 : i32
    %c0_i32_0 = arith.constant 0 : i32
    return %arg0, %c0_i32 : i32, i32
  }
  func.func @transform_1(%arg0: i32) -> (i32, i32) {
    %c0_i32 = arith.constant 0 : i32
    %c0_i32_0 = arith.constant 0 : i32
    return %arg0, %c0_i32 : i32, i32
  }
  func.func @transform_2(%arg0: i32) -> (i32, i32) {
    %c0_i32 = arith.constant 0 : i32
    %c0_i32_0 = arith.constant 0 : i32
    %c0_i32_1 = arith.constant 0 : i32
    return %c0_i32, %c0_i32_0 : i32, i32
  }
  func.func @transform_3(%arg0: i32) -> (i32, i32) {
    %c0_i32 = arith.constant 0 : i32
    %c0_i32_0 = arith.constant 0 : i32
    %c0_i32_1 = arith.constant 0 : i32
    return %c0_i32, %c0_i32_0 : i32, i32
  }
  func.func @transform_4(%arg0: i32) -> (i32, i32, i32) {
    %c0_i32 = arith.constant 0 : i32
    %c0_i32_0 = arith.constant 0 : i32
    %c0_i32_1 = arith.constant 0 : i32
    %c0_i32_2 = arith.constant 0 : i32
    return %c0_i32, %c0_i32_0, %c0_i32_1 : i32, i32, i32
  }
  func.func @transform_5(%arg0: i32) -> (i32, i32, i32) {
    %c0_i32 = arith.constant 0 : i32
    %c0_i32_0 = arith.constant 0 : i32
    %c0_i32_1 = arith.constant 0 : i32
    %c0_i32_2 = arith.constant 0 : i32
    return %c0_i32, %c0_i32_0, %c0_i32_1 : i32, i32, i32
  }
  func.func @transform_6(%arg0: i32) -> (i32, i32, i32, i32) {
    %c0_i32 = arith.constant 0 : i32
    %c0_i32_0 = arith.constant 0 : i32
    %c0_i32_1 = arith.constant 0 : i32
    %c0_i32_2 = arith.constant 0 : i32
    %c0_i32_3 = arith.constant 0 : i32
    return %c0_i32, %c0_i32_0, %c0_i32_1, %c0_i32_2 : i32, i32, i32, i32
  }
  func.func @transform_7(%arg0: i32) -> (i32, i32, i32, i32) {
    %c0_i32 = arith.constant 0 : i32
    %c0_i32_0 = arith.constant 0 : i32
    %c0_i32_1 = arith.constant 0 : i32
    %c0_i32_2 = arith.constant 0 : i32
    %c0_i32_3 = arith.constant 0 : i32
    return %c0_i32, %c0_i32_0, %c0_i32_1, %c0_i32_2 : i32, i32, i32, i32
  }
  func.func @transform_8(%arg0: i32) -> (i32, i32) {
    %c0_i32 = arith.constant 0 : i32
    %c0_i32_0 = arith.constant 0 : i32
    %c0_i32_1 = arith.constant 0 : i32
    return %c0_i32, %c0_i32_0 : i32, i32
  }
  func.func @transform_9(%arg0: i32) -> (i32, i32) {
    %c0_i32 = arith.constant 0 : i32
    %c0_i32_0 = arith.constant 0 : i32
    %c0_i32_1 = arith.constant 0 : i32
    return %c0_i32, %c0_i32_0 : i32, i32
  }
  func.func @transform_10(%arg0: i32) -> (i32, i32) {
    %c0_i32 = arith.constant 0 : i32
    %c0_i32_0 = arith.constant 0 : i32
    return %arg0, %c0_i32 : i32, i32
  }
}

</mosaic_0001>

<llo_original>
// kernel: tpu_custom_call.1
$region0: #{tpu_custom_call.1}
  #allocation0 [shape = 'u32[]', space=smem, size = 0x4, offset = 0x4, fixed_abs, tag = 'smem constant byte address 0x4 - core index']
  #allocation1 [shape = 'u32[72,128]{1,0:T(1,128)}', space=vmem, size = 0x9000, scoped, tag = 'internal scratch']
  %s0 = inlined_call_operand.hbm [shape: f32[8,16], index: 0, kind: input, shape index: {}]
  %s1 = inlined_call_operand.vmem [shape: s32[8,1], index: 1, kind: input, shape index: {}]
  %s2 = inlined_call_operand.hbm [shape: bf16[16,512], index: 2, kind: input, shape index: {}]
  %s3 = inlined_call_operand.hbm [shape: f32[1,512], index: 3, kind: input, shape index: {}]
  %s4 = inlined_call_operand.hbm [shape: bf16[3,512,512], index: 4, kind: input, shape index: {}]
  %s5 = inlined_call_operand.hbm [shape: f32[3,1,512], index: 5, kind: input, shape index: {}]
  %s6 = inlined_call_operand.hbm [shape: bf16[2,3,512,512], index: 6, kind: input, shape index: {}]
  %s7 = inlined_call_operand.hbm [shape: f32[2,3,1,512], index: 7, kind: input, shape index: {}]
  %s8 = inlined_call_operand.hbm [shape: bf16[512,128], index: 8, kind: input, shape index: {}]
  %s9 = inlined_call_operand.hbm [shape: f32[1,128], index: 9, kind: input, shape index: {}]
  %s10 = inlined_call_operand.hbm [shape: f32[8,128], index: 10, kind: output, shape index: {}]
  %s11 = sld [smem:[#allocation0]]
  $region86: #{tpu_custom_call.1} parent=0
    _
  %s13 = ssub.s32 1, %s11
  %s14 = scalar_select 0, %s13, %s11
  $region1: #{tpu_custom_call.1} parent=0
    #allocation2 [shape = 'u8[4096]{0}', space=vmem, size = 0x1000, scoped, tag = 'input window, operand 0, single buffered']
    #allocation3 [shape = 's32[1]{0}', space=sflag, size = 0x4, scoped, tag = 'scoped memory for tpu_custom_call.1']
    #allocation4 [shape = 's32[1]{0}', space=sflag, size = 0x4, scoped, tag = 'scoped memory for tpu_custom_call.1']
    #allocation5 [shape = 'u8[16384]{0}', space=vmem, size = 0x4000, scoped, tag = 'input window, operand 2, single buffered']
    #allocation6 [shape = 's32[1]{0}', space=sflag, size = 0x4, scoped, tag = 'scoped memory for tpu_custom_call.1']
    #allocation7 [shape = 'u8[2048]{0}', space=vmem, size = 0x800, scoped, tag = 'input window, operand 3, single buffered']
    #allocation8 [shape = 'u8[1572864]{0}', space=vmem, size = 0x180000, scoped, tag = 'input window, operand 4, single buffered']
    #allocation9 [shape = 's32[1]{0}', space=sflag, size = 0x4, scoped, tag = 'scoped memory for tpu_custom_call.1']
    #allocation10 [shape = 'u8[6144]{0}', space=vmem, size = 0x1800, scoped, tag = 'input window, operand 5, single buffered']
    #allocation11 [shape = 'u8[3145728]{0}', space=vmem, size = 0x300000, scoped, tag = 'input window, operand 6, single buffered']
    #allocation12 [shape = 's32[1]{0}', space=sflag, size = 0x4, scoped, tag = 'scoped memory for tpu_custom_call.1']
    #allocation13 [shape = 'u8[12288]{0}', space=vmem, size = 0x3000, scoped, tag = 'input window, operand 7, single buffered']
    #allocation14 [shape = 'u8[131072]{0}', space=vmem, size = 0x20000, scoped, tag = 'input window, operand 8, single buffered']
    #allocation15 [shape = 's32[1]{0}', space=sflag, size = 0x4, scoped, tag = 'scoped memory for tpu_custom_call.1']
    #allocation16 [shape = 'u8[512]{0}', space=vmem, size = 0x400, scoped, tag = 'input window, operand 9, single buffered']
    #allocation17 [shape = 'u8[4096]{0}', space=vmem, size = 0x1000, scoped, tag = 'output window, operand 0, single buffered']
    %15 = vsyncpa [#allocation3], 0
    %16 = vsyncpa [#allocation6], 0
    %17 = vsyncpa [#allocation9], 0
    %18 = vsyncpa [#allocation12], 0
    %19 = vsyncpa [#allocation15], 0
    %20 = vsyncpa [#allocation4], 0
    // Predicated region
    $region2: #{tpu_custom_call.1} parent=1 // pred_check
      _
    $region3: #{tpu_custom_call.1} parent=1 // pred_check_branch
      %22 = sbr.rel (0) target = $region5
    $region4: #{tpu_custom_call.1} parent=1 // pred_region
      %24 = vsyncadd [#allocation3], 0
      %s26 = sshll.u32 %s0, 4
      %s27 = int_to_ptr.hbm [resolvable:$true] %s26
      %s28 = sshll.u32 [#allocation2], 4
      %s29 = int_to_ptr.vmem [resolvable:$true] %s28
      %31 = dma.hbm_to_vmem [thread:$0]  %s27, 128, %s29, [#allocation3]
    $region5: #{tpu_custom_call.1} parent=1 // pred_fallthru
      _
    // Predicated region
    $region6: #{tpu_custom_call.1} parent=1 // pred_check
      _
    $region7: #{tpu_custom_call.1} parent=1 // pred_check_branch
      %33 = sbr.rel (0) target = $region9
    $region8: #{tpu_custom_call.1} parent=1 // pred_region
      _
    $region9: #{tpu_custom_call.1} parent=1 // pred_fallthru
      _
    // Predicated region
    $region10: #{tpu_custom_call.1} parent=1 // pred_check
      _
    $region11: #{tpu_custom_call.1} parent=1 // pred_check_branch
      %35 = sbr.rel (0) target = $region13
    $region12: #{tpu_custom_call.1} parent=1 // pred_region
      %37 = vsyncadd [#allocation6], 0
      %s38 = sshll.u32 %s2, 4
      %s39 = int_to_ptr.hbm [resolvable:$true] %s38
      %s40 = sshll.u32 [#allocation5], 4
      %s41 = int_to_ptr.vmem [resolvable:$true] %s40
      %46 = dma.hbm_to_vmem [thread:$0]  %s39, 512, %s41, [#allocation6], 256, 256, 16
    $region13: #{tpu_custom_call.1} parent=1 // pred_fallthru
      _
    // Predicated region
    $region14: #{tpu_custom_call.1} parent=1 // pred_check
      _
    $region15: #{tpu_custom_call.1} parent=1 // pred_check_branch
      %48 = sbr.rel (0) target = $region17
    $region16: #{tpu_custom_call.1} parent=1 // pred_region
      %50 = vsyncadd [#allocation6], 0
      %s52 = sshll.u32 %s3, 4
      %s53 = int_to_ptr.hbm [resolvable:$true] %s52
      %s54 = sshll.u32 [#allocation7], 4
      %s55 = int_to_ptr.vmem [resolvable:$true] %s54
      %57 = dma.hbm_to_vmem [thread:$0]  %s53, 64, %s55, [#allocation6]
    $region17: #{tpu_custom_call.1} parent=1 // pred_fallthru
      _
    // Predicated region
    $region18: #{tpu_custom_call.1} parent=1 // pred_check
      _
    $region19: #{tpu_custom_call.1} parent=1 // pred_check_branch
      %59 = sbr.rel (0) target = $region21
    $region20: #{tpu_custom_call.1} parent=1 // pred_region
      %61 = vsyncadd [#allocation9], 0
      %s62 = sshll.u32 %s4, 4
      %s63 = int_to_ptr.hbm [resolvable:$true] %s62
      %s64 = sshll.u32 [#allocation8], 4
      %s65 = int_to_ptr.vmem [resolvable:$true] %s64
      %70 = dma.hbm_to_vmem [thread:$0]  %s63, 49152, %s65, [#allocation9], 256, 256, 16
    $region21: #{tpu_custom_call.1} parent=1 // pred_fallthru
      _
    // Predicated region
    $region22: #{tpu_custom_call.1} parent=1 // pred_check
      _
    $region23: #{tpu_custom_call.1} parent=1 // pred_check_branch
      %72 = sbr.rel (0) target = $region25
    $region24: #{tpu_custom_call.1} parent=1 // pred_region
      %74 = vsyncadd [#allocation9], 0
      %s75 = sshll.u32 %s5, 4
      %s76 = int_to_ptr.hbm [resolvable:$true] %s75
      %s77 = sshll.u32 [#allocation10], 4
      %s78 = int_to_ptr.vmem [resolvable:$true] %s77
      %83 = dma.hbm_to_vmem [thread:$0]  %s76, 192, %s78, [#allocation9], 64, 64, 4
    $region25: #{tpu_custom_call.1} parent=1 // pred_fallthru
      _
    // Predicated region
    $region26: #{tpu_custom_call.1} parent=1 // pred_check
      _
    $region27: #{tpu_custom_call.1} parent=1 // pred_check_branch
      %85 = sbr.rel (0) target = $region29
    $region28: #{tpu_custom_call.1} parent=1 // pred_region
      %87 = vsyncadd [#allocation12], 0
      %s88 = sshll.u32 %s6, 4
      %s89 = int_to_ptr.hbm [resolvable:$true] %s88
      %s90 = sshll.u32 [#allocation11], 4
      %s91 = int_to_ptr.vmem [resolvable:$true] %s90
      %96 = dma.hbm_to_vmem [thread:$0]  %s89, 98304, %s91, [#allocation12], 256, 256, 16
    $region29: #{tpu_custom_call.1} parent=1 // pred_fallthru
      _
    // Predicated region
    $region30: #{tpu_custom_call.1} parent=1 // pred_check
      _
    $region31: #{tpu_custom_call.1} parent=1 // pred_check_branch
      %98 = sbr.rel (0) target = $region33
    $region32: #{tpu_custom_call.1} parent=1 // pred_region
      %100 = vsyncadd [#allocation12], 0
      %s101 = sshll.u32 %s7, 4
      %s102 = int_to_ptr.hbm [resolvable:$true] %s101
      %s103 = sshll.u32 [#allocation13], 4
      %s104 = int_to_ptr.vmem [resolvable:$true] %s103
      %109 = dma.hbm_to_vmem [thread:$0]  %s102, 384, %s104, [#allocation12], 64, 64, 4
    $region33: #{tpu_custom_call.1} parent=1 // pred_fallthru
      _
    // Predicated region
    $region34: #{tpu_custom_call.1} parent=1 // pred_check
      _
    $region35: #{tpu_custom_call.1} parent=1 // pred_check_branch
      %111 = sbr.rel (0) target = $region37
    $region36: #{tpu_custom_call.1} parent=1 // pred_region
      %113 = vsyncadd [#allocation15], 0
      %s114 = sshll.u32 %s8, 4
      %s115 = int_to_ptr.hbm [resolvable:$true] %s114
      %s116 = sshll.u32 [#allocation14], 4
      %s117 = int_to_ptr.vmem [resolvable:$true] %s116
      %122 = dma.hbm_to_vmem [thread:$0]  %s115, 4096, %s117, [#allocation15], 64, 64, 4
    $region37: #{tpu_custom_call.1} parent=1 // pred_fallthru
      _
    // Predicated region
    $region38: #{tpu_custom_call.1} parent=1 // pred_check
      _
    $region39: #{tpu_custom_call.1} parent=1 // pred_check_branch
      %124 = sbr.rel (0) target = $region41
    $region40: #{tpu_custom_call.1} parent=1 // pred_region
      %126 = vsyncadd [#allocation15], 0
      %s128 = sshll.u32 %s9, 4
      %s129 = int_to_ptr.hbm [resolvable:$true] %s128
      %s130 = sshll.u32 [#allocation16], 4
      %s131 = int_to_ptr.vmem [resolvable:$true] %s130
      %133 = dma.hbm_to_vmem [thread:$0]  %s129, 16, %s131, [#allocation15]
    $region41: #{tpu_custom_call.1} parent=1 // pred_fallthru
      _
    // Predicated region
    $region42: #{tpu_custom_call.1} parent=1 // pred_check
      _
    $region43: #{tpu_custom_call.1} parent=1 // pred_check_branch
      %135 = sbr.rel (0) target = $region45
    $region44: #{tpu_custom_call.1} parent=1 // pred_region
      %137 = dma.done [#allocation3], 128
    $region45: #{tpu_custom_call.1} parent=1 // pred_fallthru
      _
    // Predicated region
    $region46: #{tpu_custom_call.1} parent=1 // pred_check
      _
    $region47: #{tpu_custom_call.1} parent=1 // pred_check_branch
      %139 = sbr.rel (0) target = $region49
    $region48: #{tpu_custom_call.1} parent=1 // pred_region
      %141 = dma.done [#allocation6], 512
    $region49: #{tpu_custom_call.1} parent=1 // pred_fallthru
      _
    // Predicated region
    $region50: #{tpu_custom_call.1} parent=1 // pred_check
      _
    $region51: #{tpu_custom_call.1} parent=1 // pred_check_branch
      %143 = sbr.rel (0) target = $region53
    $region52: #{tpu_custom_call.1} parent=1 // pred_region
      %145 = dma.done [#allocation6], 64
    $region53: #{tpu_custom_call.1} parent=1 // pred_fallthru
      _
    // Predicated region
    $region54: #{tpu_custom_call.1} parent=1 // pred_check
      _
    $region55: #{tpu_custom_call.1} parent=1 // pred_check_branch
      %147 = sbr.rel (0) target = $region57
    $region56: #{tpu_custom_call.1} parent=1 // pred_region
      %149 = dma.done [#allocation9], 49152
    $region57: #{tpu_custom_call.1} parent=1 // pred_fallthru
      _
    // Predicated region
    $region58: #{tpu_custom_call.1} parent=1 // pred_check
      _
    $region59: #{tpu_custom_call.1} parent=1 // pred_check_branch
      %151 = sbr.rel (0) target = $region61
    $region60: #{tpu_custom_call.1} parent=1 // pred_region
      %153 = dma.done [#allocation9], 192
    $region61: #{tpu_custom_call.1} parent=1 // pred_fallthru
      _
    // Predicated region
    $region62: #{tpu_custom_call.1} parent=1 // pred_check
      _
    $region63: #{tpu_custom_call.1} parent=1 // pred_check_branch
      %155 = sbr.rel (0) target = $region65
    $region64: #{tpu_custom_call.1} parent=1 // pred_region
      %157 = dma.done [#allocation12], 98304
    $region65: #{tpu_custom_call.1} parent=1 // pred_fallthru
      _
    // Predicated region
    $region66: #{tpu_custom_call.1} parent=1 // pred_check
      _
    $region67: #{tpu_custom_call.1} parent=1 // pred_check_branch
      %159 = sbr.rel (0) target = $region69
    $region68: #{tpu_custom_call.1} parent=1 // pred_region
      %161 = dma.done [#allocation12], 384
    $region69: #{tpu_custom_call.1} parent=1 // pred_fallthru
      _
    // Predicated region
    $region70: #{tpu_custom_call.1} parent=1 // pred_check
      _
    $region71: #{tpu_custom_call.1} parent=1 // pred_check_branch
      %163 = sbr.rel (0) target = $region73
    $region72: #{tpu_custom_call.1} parent=1 // pred_region
      %165 = dma.done [#allocation15], 4096
    $region73: #{tpu_custom_call.1} parent=1 // pred_fallthru
      _
    // Predicated region
    $region74: #{tpu_custom_call.1} parent=1 // pred_check
      _
    $region75: #{tpu_custom_call.1} parent=1 // pred_check_branch
      %167 = sbr.rel (0) target = $region77
    $region76: #{tpu_custom_call.1} parent=1 // pred_region
      %169 = dma.done [#allocation15], 16
    $region77: #{tpu_custom_call.1} parent=1 // pred_fallthru
      _
    %v171 = vld [vmem:[#allocation2] sm:$0xff]
    %v172 = vpack.c.bf16 %v171, %v171
    %v173 = vld [vmem:[#allocation5] sm:$0xff]
    %v174 = vld [vmem:[#allocation5 + $0x8] sm:$0xff]
    %v175 = vld [vmem:[#allocation5 + $0x10] sm:$0xff]
    %v176 = vld [vmem:[#allocation5 + $0x18] sm:$0xff]
    %v177 = vld [vmem:[#allocation7] sm:$0xf]
    %v179 = vperm.slane %v177, 0
    %v180 = vperm.slane %v177, 1
    %v181 = vperm.slane %v177, 2
    %v182 = vperm.slane %v177, 3
    %v191 = vunpack.c.l.b16 %v173
    %v192 = vunpack.c.h.b16 %v173
    %v193 = vunpack.c.l.b16 %v174
    %v194 = vunpack.c.h.b16 %v174
    %v195 = vunpack.c.l.b16 %v175
    %v196 = vunpack.c.h.b16 %v175
    %v197 = vunpack.c.l.b16 %v176
    %v198 = vunpack.c.h.b16 %v176
    %v199 = vpack.c.b16 %v195, %v191
    %v200 = vpack.c.b16 %v196, %v192
    %v201 = vpack.c.b16 %v197, %v193
    %v202 = vpack.c.b16 %v198, %v194
    %vm207 = vcmask 130048
    %v209 = vsel %vm207, %v172, 0
    %211 = vmatpush.bf16.msra.mxu0 0
    %212 = vmatpush.bf16.msra.mxu0 0
    %213 = vmatpush.bf16.msra.mxu0 0
    %214 = vmatpush.bf16.msra.mxu0 0
    %215 = vmatpush.bf16.msra.mxu0 0
    %216 = vmatpush.bf16.msra.mxu0 0
    %217 = vmatpush.bf16.msra.mxu0 0
    %218 = vmatpush.bf16.msra.mxu0 %v199
    %219 = vmatmul.bf16.gmra.mxu0 %v209
    %v220 = vpop.f32.mrf.mxu0
    %v221 = vadd.f32 %v179, %v220
    %v222 = vpop.f32.mrf.mxu0
    %223 = vdwg.mxu0
    %224 = vmatpush.bf16.msra.mxu0 0
    %225 = vmatpush.bf16.msra.mxu0 0
    %226 = vmatpush.bf16.msra.mxu0 0
    %227 = vmatpush.bf16.msra.mxu0 0
    %228 = vmatpush.bf16.msra.mxu0 0
    %229 = vmatpush.bf16.msra.mxu0 0
    %230 = vmatpush.bf16.msra.mxu0 0
    %231 = vmatpush.bf16.msra.mxu0 %v200
    %232 = vmatmul.bf16.gmra.mxu0 %v209
    %v233 = vpop.f32.mrf.mxu0
    %v234 = vadd.f32 %v180, %v233
    %v235 = vpop.f32.mrf.mxu0
    %236 = vdwg.mxu0
    %237 = vmatpush.bf16.msra.mxu0 0
    %238 = vmatpush.bf16.msra.mxu0 0
    %239 = vmatpush.bf16.msra.mxu0 0
    %240 = vmatpush.bf16.msra.mxu0 0
    %241 = vmatpush.bf16.msra.mxu0 0
    %242 = vmatpush.bf16.msra.mxu0 0
    %243 = vmatpush.bf16.msra.mxu0 0
    %244 = vmatpush.bf16.msra.mxu0 %v201
    %245 = vmatmul.bf16.gmra.mxu0 %v209
    %v246 = vpop.f32.mrf.mxu0
    %v247 = vadd.f32 %v181, %v246
    %v248 = vpop.f32.mrf.mxu0
    %249 = vdwg.mxu0
    %250 = vmatpush.bf16.msra.mxu0 0
    %251 = vmatpush.bf16.msra.mxu0 0
    %252 = vmatpush.bf16.msra.mxu0 0
    %253 = vmatpush.bf16.msra.mxu0 0
    %254 = vmatpush.bf16.msra.mxu0 0
    %255 = vmatpush.bf16.msra.mxu0 0
    %256 = vmatpush.bf16.msra.mxu0 0
    %257 = vmatpush.bf16.msra.mxu0 %v202
    %258 = vmatmul.bf16.gmra.mxu0 %v209
    %v259 = vpop.f32.mrf.mxu0
    %v260 = vadd.f32 %v182, %v259
    %v261 = vpop.f32.mrf.mxu0
    %262 = vdwg.mxu0
    %v263 = vmax.f32 %v221, 0.0
    %v264 = vmax.f32 %v234, 0.0
    %v265 = vmax.f32 %v247, 0.0
    %v266 = vmax.f32 %v260, 0.0
    %v267 = vpack.c.bf16 %v263, %v263
    %v268 = vpack.c.bf16 %v264, %v264
    %v269 = vpack.c.bf16 %v265, %v265
    %v270 = vpack.c.bf16 %v266, %v266
    %v271 = vld [vmem:[#allocation8] sm:$0xff]
    %v272 = vld [vmem:[#allocation8 + $0x8] sm:$0xff]
    %v273 = vld [vmem:[#allocation8 + $0x10] sm:$0xff]
    %v274 = vld [vmem:[#allocation8 + $0x18] sm:$0xff]
    %v275 = vld [vmem:[#allocation8 + $0x20] sm:$0xff]
    %v276 = vld [vmem:[#allocation8 + $0x28] sm:$0xff]
    %v277 = vld [vmem:[#allocation8 + $0x30] sm:$0xff]
    %v278 = vld [vmem:[#allocation8 + $0x38] sm:$0xff]
    %v279 = vld [vmem:[#allocation8 + $0x40] sm:$0xff]
    %v280 = vld [vmem:[#allocation8 + $0x48] sm:$0xff]
    %v281 = vld [vmem:[#allocation8 + $0x50] sm:$0xff]
    %v282 = vld [vmem:[#allocation8 + $0x58] sm:$0xff]
    %v283 = vld [vmem:[#allocation8 + $0x60] sm:$0xff]
    %v284 = vld [vmem:[#allocation8 + $0x68] sm:$0xff]
    %v285 = vld [vmem:[#allocation8 + $0x70] sm:$0xff]
    %v286 = vld [vmem:[#allocation8 + $0x78] sm:$0xff]
    %v287 = vld [vmem:[#allocation8 + $0x80] sm:$0xff]
    %v288 = vld [vmem:[#allocation8 + $0x88] sm:$0xff]
    %v289 = vld [vmem:[#allocation8 + $0x90] sm:$0xff]
    %v290 = vld [vmem:[#allocation8 + $0x98] sm:$0xff]
    %v291 = vld [vmem:[#allocation8 + $0xa0] sm:$0xff]
    %v292 = vld [vmem:[#allocation8 + $0xa8] sm:$0xff]
    %v293 = vld [vmem:[#allocation8 + $0xb0] sm:$0xff]
    %v294 = vld [vmem:[#allocation8 + $0xb8] sm:$0xff]
    %v295 = vld [vmem:[#allocation8 + $0xc0] sm:$0xff]
    %v296 = vld [vmem:[#allocation8 + $0xc8] sm:$0xff]
    %v297 = vld [vmem:[#allocation8 + $0xd0] sm:$0xff]
    %v298 = vld [vmem:[#allocation8 + $0xd8] sm:$0xff]
    %v299 = vld [vmem:[#allocation8 + $0xe0] sm:$0xff]
    %v300 = vld [vmem:[#allocation8 + $0xe8] sm:$0xff]
    %v301 = vld [vmem:[#allocation8 + $0xf0] sm:$0xff]
    %v302 = vld [vmem:[#allocation8 + $0xf8] sm:$0xff]
    %v303 = vld [vmem:[#allocation8 + $0x100] sm:$0xff]
    %v304 = vld [vmem:[#allocation8 + $0x108] sm:$0xff]
    %v305 = vld [vmem:[#allocation8 + $0x110] sm:$0xff]
    %v306 = vld [vmem:[#allocation8 + $0x118] sm:$0xff]
    %v307 = vld [vmem:[#allocation8 + $0x120] sm:$0xff]
    %v308 = vld [vmem:[#allocation8 + $0x128] sm:$0xff]
    %v309 = vld [vmem:[#allocation8 + $0x130] sm:$0xff]
    %v310 = vld [vmem:[#allocation8 + $0x138] sm:$0xff]
    %v311 = vld [vmem:[#allocation8 + $0x140] sm:$0xff]
    %v312 = vld [vmem:[#allocation8 + $0x148] sm:$0xff]
    %v313 = vld [vmem:[#allocation8 + $0x150] sm:$0xff]
    %v314 = vld [vmem:[#allocation8 + $0x158] sm:$0xff]
    %v315 = vld [vmem:[#allocation8 + $0x160] sm:$0xff]
    %v316 = vld [vmem:[#allocation8 + $0x168] sm:$0xff]
    %v317 = vld [vmem:[#allocation8 + $0x170] sm:$0xff]
    %v318 = vld [vmem:[#allocation8 + $0x178] sm:$0xff]
    %v319 = vld [vmem:[#allocation8 + $0x180] sm:$0xff]
    %v320 = vld [vmem:[#allocation8 + $0x188] sm:$0xff]
    %v321 = vld [vmem:[#allocation8 + $0x190] sm:$0xff]
    %v322 = vld [vmem:[#allocation8 + $0x198] sm:$0xff]
    %v323 = vld [vmem:[#allocation8 + $0x1a0] sm:$0xff]
    %v324 = vld [vmem:[#allocation8 + $0x1a8] sm:$0xff]
    %v325 = vld [vmem:[#allocation8 + $0x1b0] sm:$0xff]
    %v326 = vld [vmem:[#allocation8 + $0x1b8] sm:$0xff]
    %v327 = vld [vmem:[#allocation8 + $0x1c0] sm:$0xff]
    %v328 = vld [vmem:[#allocation8 + $0x1c8] sm:$0xff]
    %v329 = vld [vmem:[#allocation8 + $0x1d0] sm:$0xff]
    %v330 = vld [vmem:[#allocation8 + $0x1d8] sm:$0xff]
    %v331 = vld [vmem:[#allocation8 + $0x1e0] sm:$0xff]
    %v332 = vld [vmem:[#allocation8 + $0x1e8] sm:$0xff]
    %v333 = vld [vmem:[#allocation8 + $0x1f0] sm:$0xff]
    %v334 = vld [vmem:[#allocation8 + $0x1f8] sm:$0xff]
    %v335 = vld [vmem:[#allocation8 + $0x200] sm:$0xff]
    %v336 = vld [vmem:[#allocation8 + $0x208] sm:$0xff]
    %v337 = vld [vmem:[#allocation8 + $0x210] sm:$0xff]
    %v338 = vld [vmem:[#allocation8 + $0x218] sm:$0xff]
    %v339 = vld [vmem:[#allocation8 + $0x220] sm:$0xff]
    %v340 = vld [vmem:[#allocation8 + $0x228] sm:$0xff]
    %v341 = vld [vmem:[#allocation8 + $0x230] sm:$0xff]
    %v342 = vld [vmem:[#allocation8 + $0x238] sm:$0xff]
    %v343 = vld [vmem:[#allocation8 + $0x240] sm:$0xff]
    %v344 = vld [vmem:[#allocation8 + $0x248] sm:$0xff]
    %v345 = vld [vmem:[#allocation8 + $0x250] sm:$0xff]
    %v346 = vld [vmem:[#allocation8 + $0x258] sm:$0xff]
    %v347 = vld [vmem:[#allocation8 + $0x260] sm:$0xff]
    %v348 = vld [vmem:[#allocation8 + $0x268] sm:$0xff]
    %v349 = vld [vmem:[#allocation8 + $0x270] sm:$0xff]
    %v350 = vld [vmem:[#allocation8 + $0x278] sm:$0xff]
    %v351 = vld [vmem:[#allocation8 + $0x280] sm:$0xff]
    %v352 = vld [vmem:[#allocation8 + $0x288] sm:$0xff]
    %v353 = vld [vmem:[#allocation8 + $0x290] sm:$0xff]
    %v354 = vld [vmem:[#allocation8 + $0x298] sm:$0xff]
    %v355 = vld [vmem:[#allocation8 + $0x2a0] sm:$0xff]
    %v356 = vld [vmem:[#allocation8 + $0x2a8] sm:$0xff]
    %v357 = vld [vmem:[#allocation8 + $0x2b0] sm:$0xff]
    %v358 = vld [vmem:[#allocation8 + $0x2b8] sm:$0xff]
    %v359 = vld [vmem:[#allocation8 + $0x2c0] sm:$0xff]
    %v360 = vld [vmem:[#allocation8 + $0x2c8] sm:$0xff]
    %v361 = vld [vmem:[#allocation8 + $0x2d0] sm:$0xff]
    %v362 = vld [vmem:[#allocation8 + $0x2d8] sm:$0xff]
    %v363 = vld [vmem:[#allocation8 + $0x2e0] sm:$0xff]
    %v364 = vld [vmem:[#allocation8 + $0x2e8] sm:$0xff]
    %v365 = vld [vmem:[#allocation8 + $0x2f0] sm:$0xff]
    %v366 = vld [vmem:[#allocation8 + $0x2f8] sm:$0xff]
    %v367 = vld [vmem:[#allocation8 + $0x300] sm:$0xff]
    %v368 = vld [vmem:[#allocation8 + $0x308] sm:$0xff]
    %v369 = vld [vmem:[#allocation8 + $0x310] sm:$0xff]
    %v370 = vld [vmem:[#allocation8 + $0x318] sm:$0xff]
    %v371 = vld [vmem:[#allocation8 + $0x320] sm:$0xff]
    %v372 = vld [vmem:[#allocation8 + $0x328] sm:$0xff]
    %v373 = vld [vmem:[#allocation8 + $0x330] sm:$0xff]
    %v374 = vld [vmem:[#allocation8 + $0x338] sm:$0xff]
    %v375 = vld [vmem:[#allocation8 + $0x340] sm:$0xff]
    %v376 = vld [vmem:[#allocation8 + $0x348] sm:$0xff]
    %v377 = vld [vmem:[#allocation8 + $0x350] sm:$0xff]
    %v378 = vld [vmem:[#allocation8 + $0x358] sm:$0xff]
    %v379 = vld [vmem:[#allocation8 + $0x360] sm:$0xff]
    %v380 = vld [vmem:[#allocation8 + $0x368] sm:$0xff]
    %v381 = vld [vmem:[#allocation8 + $0x370] sm:$0xff]
    %v382 = vld [vmem:[#allocation8 + $0x378] sm:$0xff]
    %v383 = vld [vmem:[#allocation8 + $0x380] sm:$0xff]
    %v384 = vld [vmem:[#allocation8 + $0x388] sm:$0xff]
    %v385 = vld [vmem:[#allocation8 + $0x390] sm:$0xff]
    %v386 = vld [vmem:[#allocation8 + $0x398] sm:$0xff]
    %v387 = vld [vmem:[#allocation8 + $0x3a0] sm:$0xff]
    %v388 = vld [vmem:[#allocation8 + $0x3a8] sm:$0xff]
    %v389 = vld [vmem:[#allocation8 + $0x3b0] sm:$0xff]
    %v390 = vld [vmem:[#allocation8 + $0x3b8] sm:$0xff]
    %v391 = vld [vmem:[#allocation8 + $0x3c0] sm:$0xff]
    %v392 = vld [vmem:[#allocation8 + $0x3c8] sm:$0xff]
    %v393 = vld [vmem:[#allocation8 + $0x3d0] sm:$0xff]
    %v394 = vld [vmem:[#allocation8 + $0x3d8] sm:$0xff]
    %v395 = vld [vmem:[#allocation8 + $0x3e0] sm:$0xff]
    %v396 = vld [vmem:[#allocation8 + $0x3e8] sm:$0xff]
    %v397 = vld [vmem:[#allocation8 + $0x3f0] sm:$0xff]
    %v398 = vld [vmem:[#allocation8 + $0x3f8] sm:$0xff]
    %v399 = vld [vmem:[#allocation10] sm:$0xf]
    %v401 = vperm.slane %v399, 0
    %v402 = vperm.slane %v399, 1
    %v403 = vperm.slane %v399, 2
    %v404 = vperm.slane %v399, 3
    %v537 = vunpack.c.l.b16 %v271
    %v538 = vunpack.c.h.b16 %v271
    %v539 = vunpack.c.l.b16 %v272
    %v540 = vunpack.c.h.b16 %v272
    %v541 = vunpack.c.l.b16 %v273
    %v542 = vunpack.c.h.b16 %v273
    %v543 = vunpack.c.l.b16 %v274
    %v544 = vunpack.c.h.b16 %v274
    %v545 = vunpack.c.l.b16 %v275
    %v546 = vunpack.c.h.b16 %v275
    %v547 = vunpack.c.l.b16 %v276
    %v548 = vunpack.c.h.b16 %v276
    %v549 = vunpack.c.l.b16 %v277
    %v550 = vunpack.c.h.b16 %v277
    %v551 = vunpack.c.l.b16 %v278
    %v552 = vunpack.c.h.b16 %v278
    %v553 = vunpack.c.l.b16 %v279
    %v554 = vunpack.c.h.b16 %v279
    %v555 = vunpack.c.l.b16 %v280
    %v556 = vunpack.c.h.b16 %v280
    %v557 = vunpack.c.l.b16 %v281
    %v558 = vunpack.c.h.b16 %v281
    %v559 = vunpack.c.l.b16 %v282
    %v560 = vunpack.c.h.b16 %v282
    %v561 = vunpack.c.l.b16 %v283
    %v562 = vunpack.c.h.b16 %v283
    %v563 = vunpack.c.l.b16 %v284
    %v564 = vunpack.c.h.b16 %v284
    %v565 = vunpack.c.l.b16 %v285
    %v566 = vunpack.c.h.b16 %v285
    %v567 = vunpack.c.l.b16 %v286
    %v568 = vunpack.c.h.b16 %v286
    %v569 = vunpack.c.l.b16 %v287
    %v570 = vunpack.c.h.b16 %v287
    %v571 = vunpack.c.l.b16 %v288
    %v572 = vunpack.c.h.b16 %v288
    %v573 = vunpack.c.l.b16 %v289
    %v574 = vunpack.c.h.b16 %v289
    %v575 = vunpack.c.l.b16 %v290
    %v576 = vunpack.c.h.b16 %v290
    %v577 = vunpack.c.l.b16 %v291
    %v578 = vunpack.c.h.b16 %v291
    %v579 = vunpack.c.l.b16 %v292
    %v580 = vunpack.c.h.b16 %v292
    %v581 = vunpack.c.l.b16 %v293
    %v582 = vunpack.c.h.b16 %v293
    %v583 = vunpack.c.l.b16 %v294
    %v584 = vunpack.c.h.b16 %v294
    %v585 = vunpack.c.l.b16 %v295
    %v586 = vunpack.c.h.b16 %v295
    %v587 = vunpack.c.l.b16 %v296
    %v588 = vunpack.c.h.b16 %v296
    %v589 = vunpack.c.l.b16 %v297
    %v590 = vunpack.c.h.b16 %v297
    %v591 = vunpack.c.l.b16 %v298
    %v592 = vunpack.c.h.b16 %v298
    %v593 = vunpack.c.l.b16 %v299
    %v594 = vunpack.c.h.b16 %v299
    %v595 = vunpack.c.l.b16 %v300
    %v596 = vunpack.c.h.b16 %v300
    %v597 = vunpack.c.l.b16 %v301
    %v598 = vunpack.c.h.b16 %v301
    %v599 = vunpack.c.l.b16 %v302
    %v600 = vunpack.c.h.b16 %v302
    %v601 = vunpack.c.l.b16 %v303
    %v602 = vunpack.c.h.b16 %v303
    %v603 = vunpack.c.l.b16 %v304
    %v604 = vunpack.c.h.b16 %v304
    %v605 = vunpack.c.l.b16 %v305
    %v606 = vunpack.c.h.b16 %v305
    %v607 = vunpack.c.l.b16 %v306
    %v608 = vunpack.c.h.b16 %v306
    %v609 = vunpack.c.l.b16 %v307
    %v610 = vunpack.c.h.b16 %v307
    %v611 = vunpack.c.l.b16 %v308
    %v612 = vunpack.c.h.b16 %v308
    %v613 = vunpack.c.l.b16 %v309
    %v614 = vunpack.c.h.b16 %v309
    %v615 = vunpack.c.l.b16 %v310
    %v616 = vunpack.c.h.b16 %v310
    %v617 = vunpack.c.l.b16 %v311
    %v618 = vunpack.c.h.b16 %v311
    %v619 = vunpack.c.l.b16 %v312
    %v620 = vunpack.c.h.b16 %v312
    %v621 = vunpack.c.l.b16 %v313
    %v622 = vunpack.c.h.b16 %v313
    %v623 = vunpack.c.l.b16 %v314
    %v624 = vunpack.c.h.b16 %v314
    %v625 = vunpack.c.l.b16 %v315
    %v626 = vunpack.c.h.b16 %v315
    %v627 = vunpack.c.l.b16 %v316
    %v628 = vunpack.c.h.b16 %v316
    %v629 = vunpack.c.l.b16 %v317
    %v630 = vunpack.c.h.b16 %v317
    %v631 = vunpack.c.l.b16 %v318
    %v632 = vunpack.c.h.b16 %v318
    %v633 = vunpack.c.l.b16 %v319
    %v634 = vunpack.c.h.b16 %v319
    %v635 = vunpack.c.l.b16 %v320
    %v636 = vunpack.c.h.b16 %v320
    %v637 = vunpack.c.l.b16 %v321
    %v638 = vunpack.c.h.b16 %v321
    %v639 = vunpack.c.l.b16 %v322
    %v640 = vunpack.c.h.b16 %v322
    %v641 = vunpack.c.l.b16 %v323
    %v642 = vunpack.c.h.b16 %v323
    %v643 = vunpack.c.l.b16 %v324
    %v644 = vunpack.c.h.b16 %v324
    %v645 = vunpack.c.l.b16 %v325
    %v646 = vunpack.c.h.b16 %v325
    %v647 = vunpack.c.l.b16 %v326
    %v648 = vunpack.c.h.b16 %v326
    %v649 = vunpack.c.l.b16 %v327
    %v650 = vunpack.c.h.b16 %v327
    %v651 = vunpack.c.l.b16 %v328
    %v652 = vunpack.c.h.b16 %v328
    %v653 = vunpack.c.l.b16 %v329
    %v654 = vunpack.c.h.b16 %v329
    %v655 = vunpack.c.l.b16 %v330
    %v656 = vunpack.c.h.b16 %v330
    %v657 = vunpack.c.l.b16 %v331
    %v658 = vunpack.c.h.b16 %v331
    %v659 = vunpack.c.l.b16 %v332
    %v660 = vunpack.c.h.b16 %v332
    %v661 = vunpack.c.l.b16 %v333
    %v662 = vunpack.c.h.b16 %v333
    %v663 = vunpack.c.l.b16 %v334
    %v664 = vunpack.c.h.b16 %v334
    %v665 = vunpack.c.l.b16 %v335
    %v666 = vunpack.c.h.b16 %v335
    %v667 = vunpack.c.l.b16 %v336
    %v668 = vunpack.c.h.b16 %v336
    %v669 = vunpack.c.l.b16 %v337
    %v670 = vunpack.c.h.b16 %v337
    %v671 = vunpack.c.l.b16 %v338
    %v672 = vunpack.c.h.b16 %v338
    %v673 = vunpack.c.l.b16 %v339
    %v674 = vunpack.c.h.b16 %v339
    %v675 = vunpack.c.l.b16 %v340
    %v676 = vunpack.c.h.b16 %v340
    %v677 = vunpack.c.l.b16 %v341
    %v678 = vunpack.c.h.b16 %v341
    %v679 = vunpack.c.l.b16 %v342
    %v680 = vunpack.c.h.b16 %v342
    %v681 = vunpack.c.l.b16 %v343
    %v682 = vunpack.c.h.b16 %v343
    %v683 = vunpack.c.l.b16 %v344
    %v684 = vunpack.c.h.b16 %v344
    %v685 = vunpack.c.l.b16 %v345
    %v686 = vunpack.c.h.b16 %v345
    %v687 = vunpack.c.l.b16 %v346
    %v688 = vunpack.c.h.b16 %v346
    %v689 = vunpack.c.l.b16 %v347
    %v690 = vunpack.c.h.b16 %v347
    %v691 = vunpack.c.l.b16 %v348
    %v692 = vunpack.c.h.b16 %v348
    %v693 = vunpack.c.l.b16 %v349
    %v694 = vunpack.c.h.b16 %v349
    %v695 = vunpack.c.l.b16 %v350
    %v696 = vunpack.c.h.b16 %v350
    %v697 = vunpack.c.l.b16 %v351
    %v698 = vunpack.c.h.b16 %v351
    %v699 = vunpack.c.l.b16 %v352
    %v700 = vunpack.c.h.b16 %v352
    %v701 = vunpack.c.l.b16 %v353
    %v702 = vunpack.c.h.b16 %v353
    %v703 = vunpack.c.l.b16 %v354
    %v704 = vunpack.c.h.b16 %v354
    %v705 = vunpack.c.l.b16 %v355
    %v706 = vunpack.c.h.b16 %v355
    %v707 = vunpack.c.l.b16 %v356
    %v708 = vunpack.c.h.b16 %v356
    %v709 = vunpack.c.l.b16 %v357
    %v710 = vunpack.c.h.b16 %v357
    %v711 = vunpack.c.l.b16 %v358
    %v712 = vunpack.c.h.b16 %v358
    %v713 = vunpack.c.l.b16 %v359
    %v714 = vunpack.c.h.b16 %v359
    %v715 = vunpack.c.l.b16 %v360
    %v716 = vunpack.c.h.b16 %v360
    %v717 = vunpack.c.l.b16 %v361
    %v718 = vunpack.c.h.b16 %v361
    %v719 = vunpack.c.l.b16 %v362
    %v720 = vunpack.c.h.b16 %v362
    %v721 = vunpack.c.l.b16 %v363
    %v722 = vunpack.c.h.b16 %v363
    %v723 = vunpack.c.l.b16 %v364
    %v724 = vunpack.c.h.b16 %v364
    %v725 = vunpack.c.l.b16 %v365
    %v726 = vunpack.c.h.b16 %v365
    %v727 = vunpack.c.l.b16 %v366
    %v728 = vunpack.c.h.b16 %v366
    %v729 = vunpack.c.l.b16 %v367
    %v730 = vunpack.c.h.b16 %v367
    %v731 = vunpack.c.l.b16 %v368
    %v732 = vunpack.c.h.b16 %v368
    %v733 = vunpack.c.l.b16 %v369
    %v734 = vunpack.c.h.b16 %v369
    %v735 = vunpack.c.l.b16 %v370
    %v736 = vunpack.c.h.b16 %v370
    %v737 = vunpack.c.l.b16 %v371
    %v738 = vunpack.c.h.b16 %v371
    %v739 = vunpack.c.l.b16 %v372
    %v740 = vunpack.c.h.b16 %v372
    %v741 = vunpack.c.l.b16 %v373
    %v742 = vunpack.c.h.b16 %v373
    %v743 = vunpack.c.l.b16 %v374
    %v744 = vunpack.c.h.b16 %v374
    %v745 = vunpack.c.l.b16 %v375
    %v746 = vunpack.c.h.b16 %v375
    %v747 = vunpack.c.l.b16 %v376
    %v748 = vunpack.c.h.b16 %v376
    %v749 = vunpack.c.l.b16 %v377
    %v750 = vunpack.c.h.b16 %v377
    %v751 = vunpack.c.l.b16 %v378
    %v752 = vunpack.c.h.b16 %v378
    %v753 = vunpack.c.l.b16 %v379
    %v754 = vunpack.c.h.b16 %v379
    %v755 = vunpack.c.l.b16 %v380
    %v756 = vunpack.c.h.b16 %v380
    %v757 = vunpack.c.l.b16 %v381
    %v758 = vunpack.c.h.b16 %v381
    %v759 = vunpack.c.l.b16 %v382
    %v760 = vunpack.c.h.b16 %v382
    %v761 = vunpack.c.l.b16 %v383
    %v762 = vunpack.c.h.b16 %v383
    %v763 = vunpack.c.l.b16 %v384
    %v764 = vunpack.c.h.b16 %v384
    %v765 = vunpack.c.l.b16 %v385
    %v766 = vunpack.c.h.b16 %v385
    %v767 = vunpack.c.l.b16 %v386
    %v768 = vunpack.c.h.b16 %v386
    %v769 = vunpack.c.l.b16 %v387
    %v770 = vunpack.c.h.b16 %v387
    %v771 = vunpack.c.l.b16 %v388
    %v772 = vunpack.c.h.b16 %v388
    %v773 = vunpack.c.l.b16 %v389
    %v774 = vunpack.c.h.b16 %v389
    %v775 = vunpack.c.l.b16 %v390
    %v776 = vunpack.c.h.b16 %v390
    %v777 = vunpack.c.l.b16 %v391
    %v778 = vunpack.c.h.b16 %v391
    %v779 = vunpack.c.l.b16 %v392
    %v780 = vunpack.c.h.b16 %v392
    %v781 = vunpack.c.l.b16 %v393
    %v782 = vunpack.c.h.b16 %v393
    %v783 = vunpack.c.l.b16 %v394
    %v784 = vunpack.c.h.b16 %v394
    %v785 = vunpack.c.l.b16 %v395
    %v786 = vunpack.c.h.b16 %v395
    %v787 = vunpack.c.l.b16 %v396
    %v788 = vunpack.c.h.b16 %v396
    %v789 = vunpack.c.l.b16 %v397
    %v790 = vunpack.c.h.b16 %v397
    %v791 = vunpack.c.l.b16 %v398
    %v792 = vunpack.c.h.b16 %v398
    %v793 = vpack.c.b16 %v541, %v537
    %v794 = vpack.c.b16 %v542, %v538
    %v795 = vpack.c.b16 %v543, %v539
    %v796 = vpack.c.b16 %v544, %v540
    %v797 = vpack.c.b16 %v549, %v545
    %v798 = vpack.c.b16 %v550, %v546
    %v799 = vpack.c.b16 %v551, %v547
    %v800 = vpack.c.b16 %v552, %v548
    %v801 = vpack.c.b16 %v557, %v553
    %v802 = vpack.c.b16 %v558, %v554
    %v803 = vpack.c.b16 %v559, %v555
    %v804 = vpack.c.b16 %v560, %v556
    %v805 = vpack.c.b16 %v565, %v561
    %v806 = vpack.c.b16 %v566, %v562
    %v807 = vpack.c.b16 %v567, %v563
    %v808 = vpack.c.b16 %v568, %v564
    %v809 = vpack.c.b16 %v573, %v569
    %v810 = vpack.c.b16 %v574, %v570
    %v811 = vpack.c.b16 %v575, %v571
    %v812 = vpack.c.b16 %v576, %v572
    %v813 = vpack.c.b16 %v581, %v577
    %v814 = vpack.c.b16 %v582, %v578
    %v815 = vpack.c.b16 %v583, %v579
    %v816 = vpack.c.b16 %v584, %v580
    %v817 = vpack.c.b16 %v589, %v585
    %v818 = vpack.c.b16 %v590, %v586
    %v819 = vpack.c.b16 %v591, %v587
    %v820 = vpack.c.b16 %v592, %v588
    %v821 = vpack.c.b16 %v597, %v593
    %v822 = vpack.c.b16 %v598, %v594
    %v823 = vpack.c.b16 %v599, %v595
    %v824 = vpack.c.b16 %v600, %v596
    %v825 = vpack.c.b16 %v605, %v601
    %v826 = vpack.c.b16 %v606, %v602
    %v827 = vpack.c.b16 %v607, %v603
    %v828 = vpack.c.b16 %v608, %v604
    %v829 = vpack.c.b16 %v613, %v609
    %v830 = vpack.c.b16 %v614, %v610
    %v831 = vpack.c.b16 %v615, %v611
    %v832 = vpack.c.b16 %v616, %v612
    %v833 = vpack.c.b16 %v621, %v617
    %v834 = vpack.c.b16 %v622, %v618
    %v835 = vpack.c.b16 %v623, %v619
    %v836 = vpack.c.b16 %v624, %v620
    %v837 = vpack.c.b16 %v629, %v625
    %v838 = vpack.c.b16 %v630, %v626
    %v839 = vpack.c.b16 %v631, %v627
    %v840 = vpack.c.b16 %v632, %v628
    %v841 = vpack.c.b16 %v637, %v633
    %v842 = vpack.c.b16 %v638, %v634
    %v843 = vpack.c.b16 %v639, %v635
    %v844 = vpack.c.b16 %v640, %v636
    %v845 = vpack.c.b16 %v645, %v641
    %v846 = vpack.c.b16 %v646, %v642
    %v847 = vpack.c.b16 %v647, %v643
    %v848 = vpack.c.b16 %v648, %v644
    %v849 = vpack.c.b16 %v653, %v649
    %v850 = vpack.c.b16 %v654, %v650
    %v851 = vpack.c.b16 %v655, %v651
    %v852 = vpack.c.b16 %v656, %v652
    %v853 = vpack.c.b16 %v661, %v657
    %v854 = vpack.c.b16 %v662, %v658
    %v855 = vpack.c.b16 %v663, %v659
    %v856 = vpack.c.b16 %v664, %v660
    %v857 = vpack.c.b16 %v669, %v665
    %v858 = vpack.c.b16 %v670, %v666
    %v859 = vpack.c.b16 %v671, %v667
    %v860 = vpack.c.b16 %v672, %v668
    %v861 = vpack.c.b16 %v677, %v673
    %v862 = vpack.c.b16 %v678, %v674
    %v863 = vpack.c.b16 %v679, %v675
    %v864 = vpack.c.b16 %v680, %v676
    %v865 = vpack.c.b16 %v685, %v681
    %v866 = vpack.c.b16 %v686, %v682
    %v867 = vpack.c.b16 %v687, %v683
    %v868 = vpack.c.b16 %v688, %v684
    %v869 = vpack.c.b16 %v693, %v689
    %v870 = vpack.c.b16 %v694, %v690
    %v871 = vpack.c.b16 %v695, %v691
    %v872 = vpack.c.b16 %v696, %v692
    %v873 = vpack.c.b16 %v701, %v697
    %v874 = vpack.c.b16 %v702, %v698
    %v875 = vpack.c.b16 %v703, %v699
    %v876 = vpack.c.b16 %v704, %v700
    %v877 = vpack.c.b16 %v709, %v705
    %v878 = vpack.c.b16 %v710, %v706
    %v879 = vpack.c.b16 %v711, %v707
    %v880 = vpack.c.b16 %v712, %v708
    %v881 = vpack.c.b16 %v717, %v713
    %v882 = vpack.c.b16 %v718, %v714
    %v883 = vpack.c.b16 %v719, %v715
    %v884 = vpack.c.b16 %v720, %v716
    %v885 = vpack.c.b16 %v725, %v721
    %v886 = vpack.c.b16 %v726, %v722
    %v887 = vpack.c.b16 %v727, %v723
    %v888 = vpack.c.b16 %v728, %v724
    %v889 = vpack.c.b16 %v733, %v729
    %v890 = vpack.c.b16 %v734, %v730
    %v891 = vpack.c.b16 %v735, %v731
    %v892 = vpack.c.b16 %v736, %v732
    %v893 = vpack.c.b16 %v741, %v737
    %v894 = vpack.c.b16 %v742, %v738
    %v895 = vpack.c.b16 %v743, %v739
    %v896 = vpack.c.b16 %v744, %v740
    %v897 = vpack.c.b16 %v749, %v745
    %v898 = vpack.c.b16 %v750, %v746
    %v899 = vpack.c.b16 %v751, %v747
    %v900 = vpack.c.b16 %v752, %v748
    %v901 = vpack.c.b16 %v757, %v753
    %v902 = vpack.c.b16 %v758, %v754
    %v903 = vpack.c.b16 %v759, %v755
    %v904 = vpack.c.b16 %v760, %v756
    %v905 = vpack.c.b16 %v765, %v761
    %v906 = vpack.c.b16 %v766, %v762
    %v907 = vpack.c.b16 %v767, %v763
    %v908 = vpack.c.b16 %v768, %v764
    %v909 = vpack.c.b16 %v773, %v769
    %v910 = vpack.c.b16 %v774, %v770
    %v911 = vpack.c.b16 %v775, %v771
    %v912 = vpack.c.b16 %v776, %v772
    %v913 = vpack.c.b16 %v781, %v777
    %v914 = vpack.c.b16 %v782, %v778
    %v915 = vpack.c.b16 %v783, %v779
    %v916 = vpack.c.b16 %v784, %v780
    %v917 = vpack.c.b16 %v789, %v785
    %v918 = vpack.c.b16 %v790, %v786
    %v919 = vpack.c.b16 %v791, %v787
    %v920 = vpack.c.b16 %v792, %v788
    %1049 = vmatpush.bf16.msra.mxu0 %v821
    %1050 = vmatpush.bf16.msra.mxu0 %v817
    %1051 = vmatpush.bf16.msra.mxu0 %v813
    %1052 = vmatpush.bf16.msra.mxu0 %v809
    %1053 = vmatpush.bf16.msra.mxu0 %v805
    %1054 = vmatpush.bf16.msra.mxu0 %v801
    %1055 = vmatpush.bf16.msra.mxu0 %v797
    %1056 = vmatpush.bf16.msra.mxu0 %v793
    %1057 = vmatmul.bf16.gmra.mxu0 %v267
    %v1058 = vpop.f32.mrf.mxu0
    %v1059 = vadd.f32 %v401, %v1058
    %v1060 = vpop.f32.mrf.mxu0
    %1061 = vdwg.mxu0
    %1062 = vmatpush.bf16.msra.mxu0 %v853
    %1063 = vmatpush.bf16.msra.mxu0 %v849
    %1064 = vmatpush.bf16.msra.mxu0 %v845
    %1065 = vmatpush.bf16.msra.mxu0 %v841
    %1066 = vmatpush.bf16.msra.mxu0 %v837
    %1067 = vmatpush.bf16.msra.mxu0 %v833
    %1068 = vmatpush.bf16.msra.mxu0 %v829
    %1069 = vmatpush.bf16.msra.mxu0 %v825
    %1070 = vmatmul.bf16.gmra.mxu0 %v268
    %v1071 = vpop.f32.mrf.mxu0
    %v1072 = vadd.f32 %v1059, %v1071
    %v1073 = vpop.f32.mrf.mxu0
    %1074 = vdwg.mxu0
    %1075 = vmatpush.bf16.msra.mxu0 %v885
    %1076 = vmatpush.bf16.msra.mxu0 %v881
    %1077 = vmatpush.bf16.msra.mxu0 %v877
    %1078 = vmatpush.bf16.msra.mxu0 %v873
    %1079 = vmatpush.bf16.msra.mxu0 %v869
    %1080 = vmatpush.bf16.msra.mxu0 %v865
    %1081 = vmatpush.bf16.msra.mxu0 %v861
    %1082 = vmatpush.bf16.msra.mxu0 %v857
    %1083 = vmatmul.bf16.gmra.mxu0 %v269
    %v1084 = vpop.f32.mrf.mxu0
    %v1085 = vadd.f32 %v1072, %v1084
    %v1086 = vpop.f32.mrf.mxu0
    %1087 = vdwg.mxu0
    %1088 = vmatpush.bf16.msra.mxu0 %v917
    %1089 = vmatpush.bf16.msra.mxu0 %v913
    %1090 = vmatpush.bf16.msra.mxu0 %v909
    %1091 = vmatpush.bf16.msra.mxu0 %v905
    %1092 = vmatpush.bf16.msra.mxu0 %v901
    %1093 = vmatpush.bf16.msra.mxu0 %v897
    %1094 = vmatpush.bf16.msra.mxu0 %v893
    %1095 = vmatpush.bf16.msra.mxu0 %v889
    %1096 = vmatmul.bf16.gmra.mxu0 %v270
    %v1097 = vpop.f32.mrf.mxu0
    %v1098 = vadd.f32 %v1085, %v1097
    %v1099 = vpop.f32.mrf.mxu0
    %1100 = vdwg.mxu0
    %1101 = vmatpush.bf16.msra.mxu0 %v822
    %1102 = vmatpush.bf16.msra.mxu0 %v818
    %1103 = vmatpush.bf16.msra.mxu0 %v814
    %1104 = vmatpush.bf16.msra.mxu0 %v810
    %1105 = vmatpush.bf16.msra.mxu0 %v806
    %1106 = vmatpush.bf16.msra.mxu0 %v802
    %1107 = vmatpush.bf16.msra.mxu0 %v798
    %1108 = vmatpush.bf16.msra.mxu0 %v794
    %1109 = vmatmul.bf16.gmra.mxu0 %v267
    %v1110 = vpop.f32.mrf.mxu0
    %v1111 = vadd.f32 %v402, %v1110
    %v1112 = vpop.f32.mrf.mxu0
    %1113 = vdwg.mxu0
    %1114 = vmatpush.bf16.msra.mxu0 %v854
    %1115 = vmatpush.bf16.msra.mxu0 %v850
    %1116 = vmatpush.bf16.msra.mxu0 %v846
    %1117 = vmatpush.bf16.msra.mxu0 %v842
    %1118 = vmatpush.bf16.msra.mxu0 %v838
    %1119 = vmatpush.bf16.msra.mxu0 %v834
    %1120 = vmatpush.bf16.msra.mxu0 %v830
    %1121 = vmatpush.bf16.msra.mxu0 %v826
    %1122 = vmatmul.bf16.gmra.mxu0 %v268
    %v1123 = vpop.f32.mrf.mxu0
    %v1124 = vadd.f32 %v1111, %v1123
    %v1125 = vpop.f32.mrf.mxu0
    %1126 = vdwg.mxu0
    %1127 = vmatpush.bf16.msra.mxu0 %v886
    %1128 = vmatpush.bf16.msra.mxu0 %v882
    %1129 = vmatpush.bf16.msra.mxu0 %v878
    %1130 = vmatpush.bf16.msra.mxu0 %v874
    %1131 = vmatpush.bf16.msra.mxu0 %v870
    %1132 = vmatpush.bf16.msra.mxu0 %v866
    %1133 = vmatpush.bf16.msra.mxu0 %v862
    %1134 = vmatpush.bf16.msra.mxu0 %v858
    %1135 = vmatmul.bf16.gmra.mxu0 %v269
    %v1136 = vpop.f32.mrf.mxu0
    %v1137 = vadd.f32 %v1124, %v1136
    %v1138 = vpop.f32.mrf.mxu0
    %1139 = vdwg.mxu0
    %1140 = vmatpush.bf16.msra.mxu0 %v918
    %1141 = vmatpush.bf16.msra.mxu0 %v914
    %1142 = vmatpush.bf16.msra.mxu0 %v910
    %1143 = vmatpush.bf16.msra.mxu0 %v906
    %1144 = vmatpush.bf16.msra.mxu0 %v902
    %1145 = vmatpush.bf16.msra.mxu0 %v898
    %1146 = vmatpush.bf16.msra.mxu0 %v894
    %1147 = vmatpush.bf16.msra.mxu0 %v890
    %1148 = vmatmul.bf16.gmra.mxu0 %v270
    %v1149 = vpop.f32.mrf.mxu0
    %v1150 = vadd.f32 %v1137, %v1149
    %v1151 = vpop.f32.mrf.mxu0
    %1152 = vdwg.mxu0
    %1153 = vmatpush.bf16.msra.mxu0 %v823
    %1154 = vmatpush.bf16.msra.mxu0 %v819
    %1155 = vmatpush.bf16.msra.mxu0 %v815
    %1156 = vmatpush.bf16.msra.mxu0 %v811
    %1157 = vmatpush.bf16.msra.mxu0 %v807
    %1158 = vmatpush.bf16.msra.mxu0 %v803
    %1159 = vmatpush.bf16.msra.mxu0 %v799
    %1160 = vmatpush.bf16.msra.mxu0 %v795
    %1161 = vmatmul.bf16.gmra.mxu0 %v267
    %v1162 = vpop.f32.mrf.mxu0
    %v1163 = vadd.f32 %v403, %v1162
    %v1164 = vpop.f32.mrf.mxu0
    %1165 = vdwg.mxu0
    %1166 = vmatpush.bf16.msra.mxu0 %v855
    %1167 = vmatpush.bf16.msra.mxu0 %v851
    %1168 = vmatpush.bf16.msra.mxu0 %v847
    %1169 = vmatpush.bf16.msra.mxu0 %v843
    %1170 = vmatpush.bf16.msra.mxu0 %v839
    %1171 = vmatpush.bf16.msra.mxu0 %v835
    %1172 = vmatpush.bf16.msra.mxu0 %v831
    %1173 = vmatpush.bf16.msra.mxu0 %v827
    %1174 = vmatmul.bf16.gmra.mxu0 %v268
    %v1175 = vpop.f32.mrf.mxu0
    %v1176 = vadd.f32 %v1163, %v1175
    %v1177 = vpop.f32.mrf.mxu0
    %1178 = vdwg.mxu0
    %1179 = vmatpush.bf16.msra.mxu0 %v887
    %1180 = vmatpush.bf16.msra.mxu0 %v883
    %1181 = vmatpush.bf16.msra.mxu0 %v879
    %1182 = vmatpush.bf16.msra.mxu0 %v875
    %1183 = vmatpush.bf16.msra.mxu0 %v871
    %1184 = vmatpush.bf16.msra.mxu0 %v867
    %1185 = vmatpush.bf16.msra.mxu0 %v863
    %1186 = vmatpush.bf16.msra.mxu0 %v859
    %1187 = vmatmul.bf16.gmra.mxu0 %v269
    %v1188 = vpop.f32.mrf.mxu0
    %v1189 = vadd.f32 %v1176, %v1188
    %v1190 = vpop.f32.mrf.mxu0
    %1191 = vdwg.mxu0
    %1192 = vmatpush.bf16.msra.mxu0 %v919
    %1193 = vmatpush.bf16.msra.mxu0 %v915
    %1194 = vmatpush.bf16.msra.mxu0 %v911
    %1195 = vmatpush.bf16.msra.mxu0 %v907
    %1196 = vmatpush.bf16.msra.mxu0 %v903
    %1197 = vmatpush.bf16.msra.mxu0 %v899
    %1198 = vmatpush.bf16.msra.mxu0 %v895
    %1199 = vmatpush.bf16.msra.mxu0 %v891
    %1200 = vmatmul.bf16.gmra.mxu0 %v270
    %v1201 = vpop.f32.mrf.mxu0
    %v1202 = vadd.f32 %v1189, %v1201
    %v1203 = vpop.f32.mrf.mxu0
    %1204 = vdwg.mxu0
    %1205 = vmatpush.bf16.msra.mxu0 %v824
    %1206 = vmatpush.bf16.msra.mxu0 %v820
    %1207 = vmatpush.bf16.msra.mxu0 %v816
    %1208 = vmatpush.bf16.msra.mxu0 %v812
    %1209 = vmatpush.bf16.msra.mxu0 %v808
    %1210 = vmatpush.bf16.msra.mxu0 %v804
    %1211 = vmatpush.bf16.msra.mxu0 %v800
    %1212 = vmatpush.bf16.msra.mxu0 %v796
    %1213 = vmatmul.bf16.gmra.mxu0 %v267
    %v1214 = vpop.f32.mrf.mxu0
    %v1215 = vadd.f32 %v404, %v1214
    %v1216 = vpop.f32.mrf.mxu0
    %1217 = vdwg.mxu0
    %1218 = vmatpush.bf16.msra.mxu0 %v856
    %1219 = vmatpush.bf16.msra.mxu0 %v852
    %1220 = vmatpush.bf16.msra.mxu0 %v848
    %1221 = vmatpush.bf16.msra.mxu0 %v844
    %1222 = vmatpush.bf16.msra.mxu0 %v840
    %1223 = vmatpush.bf16.msra.mxu0 %v836
    %1224 = vmatpush.bf16.msra.mxu0 %v832
    %1225 = vmatpush.bf16.msra.mxu0 %v828
    %1226 = vmatmul.bf16.gmra.mxu0 %v268
    %v1227 = vpop.f32.mrf.mxu0
    %v1228 = vadd.f32 %v1215, %v1227
    %v1229 = vpop.f32.mrf.mxu0
    %1230 = vdwg.mxu0
    %1231 = vmatpush.bf16.msra.mxu0 %v888
    %1232 = vmatpush.bf16.msra.mxu0 %v884
    %1233 = vmatpush.bf16.msra.mxu0 %v880
    %1234 = vmatpush.bf16.msra.mxu0 %v876
    %1235 = vmatpush.bf16.msra.mxu0 %v872
    %1236 = vmatpush.bf16.msra.mxu0 %v868
    %1237 = vmatpush.bf16.msra.mxu0 %v864
    %1238 = vmatpush.bf16.msra.mxu0 %v860
    %1239 = vmatmul.bf16.gmra.mxu0 %v269
    %v1240 = vpop.f32.mrf.mxu0
    %v1241 = vadd.f32 %v1228, %v1240
    %v1242 = vpop.f32.mrf.mxu0
    %1243 = vdwg.mxu0
    %1244 = vmatpush.bf16.msra.mxu0 %v920
    %1245 = vmatpush.bf16.msra.mxu0 %v916
    %1246 = vmatpush.bf16.msra.mxu0 %v912
    %1247 = vmatpush.bf16.msra.mxu0 %v908
    %1248 = vmatpush.bf16.msra.mxu0 %v904
    %1249 = vmatpush.bf16.msra.mxu0 %v900
    %1250 = vmatpush.bf16.msra.mxu0 %v896
    %1251 = vmatpush.bf16.msra.mxu0 %v892
    %1252 = vmatmul.bf16.gmra.mxu0 %v270
    %v1253 = vpop.f32.mrf.mxu0
    %v1254 = vadd.f32 %v1241, %v1253
    %v1255 = vpop.f32.mrf.mxu0
    %1256 = vdwg.mxu0
    %v1257 = vmax.f32 %v1098, 0.0
    %v1258 = vmax.f32 %v1150, 0.0
    %v1259 = vmax.f32 %v1202, 0.0
    %v1260 = vmax.f32 %v1254, 0.0
    %v1261 = vpack.c.bf16 %v1257, %v1257
    %v1262 = vpack.c.bf16 %v1258, %v1258
    %v1263 = vpack.c.bf16 %v1259, %v1259
    %v1264 = vpack.c.bf16 %v1260, %v1260
    %s1265 = scalar_lea.vmem [#allocation8], 1024
    %v1266 = vld [vmem:[%s1265] sm:$0xff]
    %v1267 = vld [vmem:[%s1265 + $0x8] sm:$0xff]
    %v1268 = vld [vmem:[%s1265 + $0x10] sm:$0xff]
    %v1269 = vld [vmem:[%s1265 + $0x18] sm:$0xff]
    %v1270 = vld [vmem:[%s1265 + $0x20] sm:$0xff]
    %v1271 = vld [vmem:[%s1265 + $0x28] sm:$0xff]
    %v1272 = vld [vmem:[%s1265 + $0x30] sm:$0xff]
    %v1273 = vld [vmem:[%s1265 + $0x38] sm:$0xff]
    %v1274 = vld [vmem:[%s1265 + $0x40] sm:$0xff]
    %v1275 = vld [vmem:[%s1265 + $0x48] sm:$0xff]
    %v1276 = vld [vmem:[%s1265 + $0x50] sm:$0xff]
    %v1277 = vld [vmem:[%s1265 + $0x58] sm:$0xff]
    %v1278 = vld [vmem:[%s1265 + $0x60] sm:$0xff]
    %v1279 = vld [vmem:[%s1265 + $0x68] sm:$0xff]
    %v1280 = vld [vmem:[%s1265 + $0x70] sm:$0xff]
    %v1281 = vld [vmem:[%s1265 + $0x78] sm:$0xff]
    %v1282 = vld [vmem:[%s1265 + $0x80] sm:$0xff]
    %v1283 = vld [vmem:[%s1265 + $0x88] sm:$0xff]
    %v1284 = vld [vmem:[%s1265 + $0x90] sm:$0xff]
    %v1285 = vld [vmem:[%s1265 + $0x98] sm:$0xff]
    %v1286 = vld [vmem:[%s1265 + $0xa0] sm:$0xff]
    %v1287 = vld [vmem:[%s1265 + $0xa8] sm:$0xff]
    %v1288 = vld [vmem:[%s1265 + $0xb0] sm:$0xff]
    %v1289 = vld [vmem:[%s1265 + $0xb8] sm:$0xff]
    %v1290 = vld [vmem:[%s1265 + $0xc0] sm:$0xff]
    %v1291 = vld [vmem:[%s1265 + $0xc8] sm:$0xff]
    %v1292 = vld [vmem:[%s1265 + $0xd0] sm:$0xff]
    %v1293 = vld [vmem:[%s1265 + $0xd8] sm:$0xff]
    %v1294 = vld [vmem:[%s1265 + $0xe0] sm:$0xff]
    %v1295 = vld [vmem:[%s1265 + $0xe8] sm:$0xff]
    %v1296 = vld [vmem:[%s1265 + $0xf0] sm:$0xff]
    %v1297 = vld [vmem:[%s1265 + $0xf8] sm:$0xff]
    %v1298 = vld [vmem:[%s1265 + $0x100] sm:$0xff]
    %v1299 = vld [vmem:[%s1265 + $0x108] sm:$0xff]
    %v1300 = vld [vmem:[%s1265 + $0x110] sm:$0xff]
    %v1301 = vld [vmem:[%s1265 + $0x118] sm:$0xff]
    %v1302 = vld [vmem:[%s1265 + $0x120] sm:$0xff]
    %v1303 = vld [vmem:[%s1265 + $0x128] sm:$0xff]
    %v1304 = vld [vmem:[%s1265 + $0x130] sm:$0xff]
    %v1305 = vld [vmem:[%s1265 + $0x138] sm:$0xff]
    %v1306 = vld [vmem:[%s1265 + $0x140] sm:$0xff]
    %v1307 = vld [vmem:[%s1265 + $0x148] sm:$0xff]
    %v1308 = vld [vmem:[%s1265 + $0x150] sm:$0xff]
    %v1309 = vld [vmem:[%s1265 + $0x158] sm:$0xff]
    %v1310 = vld [vmem:[%s1265 + $0x160] sm:$0xff]
    %v1311 = vld [vmem:[%s1265 + $0x168] sm:$0xff]
    %v1312 = vld [vmem:[%s1265 + $0x170] sm:$0xff]
    %v1313 = vld [vmem:[%s1265 + $0x178] sm:$0xff]
    %v1314 = vld [vmem:[%s1265 + $0x180] sm:$0xff]
    %v1315 = vld [vmem:[%s1265 + $0x188] sm:$0xff]
    %v1316 = vld [vmem:[%s1265 + $0x190] sm:$0xff]
    %v1317 = vld [vmem:[%s1265 + $0x198] sm:$0xff]
    %v1318 = vld [vmem:[%s1265 + $0x1a0] sm:$0xff]
    %v1319 = vld [vmem:[%s1265 + $0x1a8] sm:$0xff]
    %v1320 = vld [vmem:[%s1265 + $0x1b0] sm:$0xff]
    %v1321 = vld [vmem:[%s1265 + $0x1b8] sm:$0xff]
    %v1322 = vld [vmem:[%s1265 + $0x1c0] sm:$0xff]
    %v1323 = vld [vmem:[%s1265 + $0x1c8] sm:$0xff]
    %v1324 = vld [vmem:[%s1265 + $0x1d0] sm:$0xff]
    %v1325 = vld [vmem:[%s1265 + $0x1d8] sm:$0xff]
    %v1326 = vld [vmem:[%s1265 + $0x1e0] sm:$0xff]
    %v1327 = vld [vmem:[%s1265 + $0x1e8] sm:$0xff]
    %v1328 = vld [vmem:[%s1265 + $0x1f0] sm:$0xff]
    %v1329 = vld [vmem:[%s1265 + $0x1f8] sm:$0xff]
    %v1330 = vld [vmem:[%s1265 + $0x200] sm:$0xff]
    %v1331 = vld [vmem:[%s1265 + $0x208] sm:$0xff]
    %v1332 = vld [vmem:[%s1265 + $0x210] sm:$0xff]
    %v1333 = vld [vmem:[%s1265 + $0x218] sm:$0xff]
    %v1334 = vld [vmem:[%s1265 + $0x220] sm:$0xff]
    %v1335 = vld [vmem:[%s1265 + $0x228] sm:$0xff]
    %v1336 = vld [vmem:[%s1265 + $0x230] sm:$0xff]
    %v1337 = vld [vmem:[%s1265 + $0x238] sm:$0xff]
    %v1338 = vld [vmem:[%s1265 + $0x240] sm:$0xff]
    %v1339 = vld [vmem:[%s1265 + $0x248] sm:$0xff]
    %v1340 = vld [vmem:[%s1265 + $0x250] sm:$0xff]
    %v1341 = vld [vmem:[%s1265 + $0x258] sm:$0xff]
    %v1342 = vld [vmem:[%s1265 + $0x260] sm:$0xff]
    %v1343 = vld [vmem:[%s1265 + $0x268] sm:$0xff]
    %v1344 = vld [vmem:[%s1265 + $0x270] sm:$0xff]
    %v1345 = vld [vmem:[%s1265 + $0x278] sm:$0xff]
    %v1346 = vld [vmem:[%s1265 + $0x280] sm:$0xff]
    %v1347 = vld [vmem:[%s1265 + $0x288] sm:$0xff]
    %v1348 = vld [vmem:[%s1265 + $0x290] sm:$0xff]
    %v1349 = vld [vmem:[%s1265 + $0x298] sm:$0xff]
    %v1350 = vld [vmem:[%s1265 + $0x2a0] sm:$0xff]
    %v1351 = vld [vmem:[%s1265 + $0x2a8] sm:$0xff]
    %v1352 = vld [vmem:[%s1265 + $0x2b0] sm:$0xff]
    %v1353 = vld [vmem:[%s1265 + $0x2b8] sm:$0xff]
    %v1354 = vld [vmem:[%s1265 + $0x2c0] sm:$0xff]
    %v1355 = vld [vmem:[%s1265 + $0x2c8] sm:$0xff]
    %v1356 = vld [vmem:[%s1265 + $0x2d0] sm:$0xff]
    %v1357 = vld [vmem:[%s1265 + $0x2d8] sm:$0xff]
    %v1358 = vld [vmem:[%s1265 + $0x2e0] sm:$0xff]
    %v1359 = vld [vmem:[%s1265 + $0x2e8] sm:$0xff]
    %v1360 = vld [vmem:[%s1265 + $0x2f0] sm:$0xff]
    %v1361 = vld [vmem:[%s1265 + $0x2f8] sm:$0xff]
    %v1362 = vld [vmem:[%s1265 + $0x300] sm:$0xff]
    %v1363 = vld [vmem:[%s1265 + $0x308] sm:$0xff]
    %v1364 = vld [vmem:[%s1265 + $0x310] sm:$0xff]
    %v1365 = vld [vmem:[%s1265 + $0x318] sm:$0xff]
    %v1366 = vld [vmem:[%s1265 + $0x320] sm:$0xff]
    %v1367 = vld [vmem:[%s1265 + $0x328] sm:$0xff]
    %v1368 = vld [vmem:[%s1265 + $0x330] sm:$0xff]
    %v1369 = vld [vmem:[%s1265 + $0x338] sm:$0xff]
    %v1370 = vld [vmem:[%s1265 + $0x340] sm:$0xff]
    %v1371 = vld [vmem:[%s1265 + $0x348] sm:$0xff]
    %v1372 = vld [vmem:[%s1265 + $0x350] sm:$0xff]
    %v1373 = vld [vmem:[%s1265 + $0x358] sm:$0xff]
    %v1374 = vld [vmem:[%s1265 + $0x360] sm:$0xff]
    %v1375 = vld [vmem:[%s1265 + $0x368] sm:$0xff]
    %v1376 = vld [vmem:[%s1265 + $0x370] sm:$0xff]
    %v1377 = vld [vmem:[%s1265 + $0x378] sm:$0xff]
    %v1378 = vld [vmem:[%s1265 + $0x380] sm:$0xff]
    %v1379 = vld [vmem:[%s1265 + $0x388] sm:$0xff]
    %v1380 = vld [vmem:[%s1265 + $0x390] sm:$0xff]
    %v1381 = vld [vmem:[%s1265 + $0x398] sm:$0xff]
    %v1382 = vld [vmem:[%s1265 + $0x3a0] sm:$0xff]
    %v1383 = vld [vmem:[%s1265 + $0x3a8] sm:$0xff]
    %v1384 = vld [vmem:[%s1265 + $0x3b0] sm:$0xff]
    %v1385 = vld [vmem:[%s1265 + $0x3b8] sm:$0xff]
    %v1386 = vld [vmem:[%s1265 + $0x3c0] sm:$0xff]
    %v1387 = vld [vmem:[%s1265 + $0x3c8] sm:$0xff]
    %v1388 = vld [vmem:[%s1265 + $0x3d0] sm:$0xff]
    %v1389 = vld [vmem:[%s1265 + $0x3d8] sm:$0xff]
    %v1390 = vld [vmem:[%s1265 + $0x3e0] sm:$0xff]
    %v1391 = vld [vmem:[%s1265 + $0x3e8] sm:$0xff]
    %v1392 = vld [vmem:[%s1265 + $0x3f0] sm:$0xff]
    %v1393 = vld [vmem:[%s1265 + $0x3f8] sm:$0xff]
    %s1394 = scalar_lea.vmem [#allocation10], 4
    %v1395 = vld [vmem:[%s1394] sm:$0xf]
    %v1397 = vperm.slane %v1395, 0
    %v1398 = vperm.slane %v1395, 1
    %v1399 = vperm.slane %v1395, 2
    %v1400 = vperm.slane %v1395, 3
    %v1533 = vunpack.c.l.b16 %v1266
    %v1534 = vunpack.c.h.b16 %v1266
    %v1535 = vunpack.c.l.b16 %v1267
    %v1536 = vunpack.c.h.b16 %v1267
    %v1537 = vunpack.c.l.b16 %v1268
    %v1538 = vunpack.c.h.b16 %v1268
    %v1539 = vunpack.c.l.b16 %v1269
    %v1540 = vunpack.c.h.b16 %v1269
    %v1541 = vunpack.c.l.b16 %v1270
    %v1542 = vunpack.c.h.b16 %v1270
    %v1543 = vunpack.c.l.b16 %v1271
    %v1544 = vunpack.c.h.b16 %v1271
    %v1545 = vunpack.c.l.b16 %v1272
    %v1546 = vunpack.c.h.b16 %v1272
    %v1547 = vunpack.c.l.b16 %v1273
    %v1548 = vunpack.c.h.b16 %v1273
    %v1549 = vunpack.c.l.b16 %v1274
    %v1550 = vunpack.c.h.b16 %v1274
    %v1551 = vunpack.c.l.b16 %v1275
    %v1552 = vunpack.c.h.b16 %v1275
    %v1553 = vunpack.c.l.b16 %v1276
    %v1554 = vunpack.c.h.b16 %v1276
    %v1555 = vunpack.c.l.b16 %v1277
    %v1556 = vunpack.c.h.b16 %v1277
    %v1557 = vunpack.c.l.b16 %v1278
    %v1558 = vunpack.c.h.b16 %v1278
    %v1559 = vunpack.c.l.b16 %v1279
    %v1560 = vunpack.c.h.b16 %v1279
    %v1561 = vunpack.c.l.b16 %v1280
    %v1562 = vunpack.c.h.b16 %v1280
    %v1563 = vunpack.c.l.b16 %v1281
    %v1564 = vunpack.c.h.b16 %v1281
    %v1565 = vunpack.c.l.b16 %v1282
    %v1566 = vunpack.c.h.b16 %v1282
    %v1567 = vunpack.c.l.b16 %v1283
    %v1568 = vunpack.c.h.b16 %v1283
    %v1569 = vunpack.c.l.b16 %v1284
    %v1570 = vunpack.c.h.b16 %v1284
    %v1571 = vunpack.c.l.b16 %v1285
    %v1572 = vunpack.c.h.b16 %v1285
    %v1573 = vunpack.c.l.b16 %v1286
    %v1574 = vunpack.c.h.b16 %v1286
    %v1575 = vunpack.c.l.b16 %v1287
    %v1576 = vunpack.c.h.b16 %v1287
    %v1577 = vunpack.c.l.b16 %v1288
    %v1578 = vunpack.c.h.b16 %v1288
    %v1579 = vunpack.c.l.b16 %v1289
    %v1580 = vunpack.c.h.b16 %v1289
    %v1581 = vunpack.c.l.b16 %v1290
    %v1582 = vunpack.c.h.b16 %v1290
    %v1583 = vunpack.c.l.b16 %v1291
    %v1584 = vunpack.c.h.b16 %v1291
    %v1585 = vunpack.c.l.b16 %v1292
    %v1586 = vunpack.c.h.b16 %v1292
    %v1587 = vunpack.c.l.b16 %v1293
    %v1588 = vunpack.c.h.b16 %v1293
    %v1589 = vunpack.c.l.b16 %v1294
    %v1590 = vunpack.c.h.b16 %v1294
    %v1591 = vunpack.c.l.b16 %v1295
    %v1592 = vunpack.c.h.b16 %v1295
    %v1593 = vunpack.c.l.b16 %v1296
    %v1594 = vunpack.c.h.b16 %v1296
    %v1595 = vunpack.c.l.b16 %v1297
    %v1596 = vunpack.c.h.b16 %v1297
    %v1597 = vunpack.c.l.b16 %v1298
    %v1598 = vunpack.c.h.b16 %v1298
    %v1599 = vunpack.c.l.b16 %v1299
    %v1600 = vunpack.c.h.b16 %v1299
    %v1601 = vunpack.c.l.b16 %v1300
    %v1602 = vunpack.c.h.b16 %v1300
    %v1603 = vunpack.c.l.b16 %v1301
    %v1604 = vunpack.c.h.b16 %v1301
    %v1605 = vunpack.c.l.b16 %v1302
    %v1606 = vunpack.c.h.b16 %v1302
    %v1607 = vunpack.c.l.b16 %v1303
    %v1608 = vunpack.c.h.b16 %v1303
    %v1609 = vunpack.c.l.b16 %v1304
    %v1610 = vunpack.c.h.b16 %v1304
    %v1611 = vunpack.c.l.b16 %v1305
    %v1612 = vunpack.c.h.b16 %v1305
    %v1613 = vunpack.c.l.b16 %v1306
    %v1614 = vunpack.c.h.b16 %v1306
    %v1615 = vunpack.c.l.b16 %v1307
    %v1616 = vunpack.c.h.b16 %v1307
    %v1617 = vunpack.c.l.b16 %v1308
    %v1618 = vunpack.c.h.b16 %v1308
    %v1619 = vunpack.c.l.b16 %v1309
    %v1620 = vunpack.c.h.b16 %v1309
    %v1621 = vunpack.c.l.b16 %v1310
    %v1622 = vunpack.c.h.b16 %v1310
    %v1623 = vunpack.c.l.b16 %v1311
    %v1624 = vunpack.c.h.b16 %v1311
    %v1625 = vunpack.c.l.b16 %v1312
    %v1626 = vunpack.c.h.b16 %v1312
    %v1627 = vunpack.c.l.b16 %v1313
    %v1628 = vunpack.c.h.b16 %v1313
    %v1629 = vunpack.c.l.b16 %v1314
    %v1630 = vunpack.c.h.b16 %v1314
    %v1631 = vunpack.c.l.b16 %v1315
    %v1632 = vunpack.c.h.b16 %v1315
    %v1633 = vunpack.c.l.b16 %v1316
    %v1634 = vunpack.c.h.b16 %v1316
    %v1635 = vunpack.c.l.b16 %v1317
    %v1636 = vunpack.c.h.b16 %v1317
    %v1637 = vunpack.c.l.b16 %v1318
    %v1638 = vunpack.c.h.b16 %v1318
    %v1639 = vunpack.c.l.b16 %v1319
    %v1640 = vunpack.c.h.b16 %v1319
    %v1641 = vunpack.c.l.b16 %v1320
    %v1642 = vunpack.c.h.b16 %v1320
    %v1643 = vunpack.c.l.b16 %v1321
    %v1644 = vunpack.c.h.b16 %v1321
    %v1645 = vunpack.c.l.b16 %v1322
    %v1646 = vunpack.c.h.b16 %v1322
    %v1647 = vunpack.c.l.b16 %v1323
    %v1648 = vunpack.c.h.b16 %v1323
    %v1649 = vunpack.c.l.b16 %v1324
    %v1650 = vunpack.c.h.b16 %v1324
    %v1651 = vunpack.c.l.b16 %v1325
    %v1652 = vunpack.c.h.b16 %v1325
    %v1653 = vunpack.c.l.b16 %v1326
    %v1654 = vunpack.c.h.b16 %v1326
    %v1655 = vunpack.c.l.b16 %v1327
    %v1656 = vunpack.c.h.b16 %v1327
    %v1657 = vunpack.c.l.b16 %v1328
    %v1658 = vunpack.c.h.b16 %v1328
    %v1659 = vunpack.c.l.b16 %v1329
    %v1660 = vunpack.c.h.b16 %v1329
    %v1661 = vunpack.c.l.b16 %v1330
    %v1662 = vunpack.c.h.b16 %v1330
    %v1663 = vunpack.c.l.b16 %v1331
    %v1664 = vunpack.c.h.b16 %v1331
    %v1665 = vunpack.c.l.b16 %v1332
    %v1666 = vunpack.c.h.b16 %v1332
    %v1667 = vunpack.c.l.b16 %v1333
    %v1668 = vunpack.c.h.b16 %v1333
    %v1669 = vunpack.c.l.b16 %v1334
    %v1670 = vunpack.c.h.b16 %v1334
    %v1671 = vunpack.c.l.b16 %v1335
    %v1672 = vunpack.c.h.b16 %v1335
    %v1673 = vunpack.c.l.b16 %v1336
    %v1674 = vunpack.c.h.b16 %v1336
    %v1675 = vunpack.c.l.b16 %v1337
    %v1676 = vunpack.c.h.b16 %v1337
    %v1677 = vunpack.c.l.b16 %v1338
    %v1678 = vunpack.c.h.b16 %v1338
    %v1679 = vunpack.c.l.b16 %v1339
    %v1680 = vunpack.c.h.b16 %v1339
    %v1681 = vunpack.c.l.b16 %v1340
    %v1682 = vunpack.c.h.b16 %v1340
    %v1683 = vunpack.c.l.b16 %v1341
    %v1684 = vunpack.c.h.b16 %v1341
    %v1685 = vunpack.c.l.b16 %v1342
    %v1686 = vunpack.c.h.b16 %v1342
    %v1687 = vunpack.c.l.b16 %v1343
    %v1688 = vunpack.c.h.b16 %v1343
    %v1689 = vunpack.c.l.b16 %v1344
    %v1690 = vunpack.c.h.b16 %v1344
    %v1691 = vunpack.c.l.b16 %v1345
    %v1692 = vunpack.c.h.b16 %v1345
    %v1693 = vunpack.c.l.b16 %v1346
    %v1694 = vunpack.c.h.b16 %v1346
    %v1695 = vunpack.c.l.b16 %v1347
    %v1696 = vunpack.c.h.b16 %v1347
    %v1697 = vunpack.c.l.b16 %v1348
    %v1698 = vunpack.c.h.b16 %v1348
    %v1699 = vunpack.c.l.b16 %v1349
    %v1700 = vunpack.c.h.b16 %v1349
    %v1701 = vunpack.c.l.b16 %v1350
    %v1702 = vunpack.c.h.b16 %v1350
    %v1703 = vunpack.c.l.b16 %v1351
    %v1704 = vunpack.c.h.b16 %v1351
    %v1705 = vunpack.c.l.b16 %v1352
    %v1706 = vunpack.c.h.b16 %v1352
    %v1707 = vunpack.c.l.b16 %v1353
    %v1708 = vunpack.c.h.b16 %v1353
    %v1709 = vunpack.c.l.b16 %v1354
    %v1710 = vunpack.c.h.b16 %v1354
    %v1711 = vunpack.c.l.b16 %v1355
    %v1712 = vunpack.c.h.b16 %v1355
    %v1713 = vunpack.c.l.b16 %v1356
    %v1714 = vunpack.c.h.b16 %v1356
    %v1715 = vunpack.c.l.b16 %v1357
    %v1716 = vunpack.c.h.b16 %v1357
    %v1717 = vunpack.c.l.b16 %v1358
    %v1718 = vunpack.c.h.b16 %v1358
    %v1719 = vunpack.c.l.b16 %v1359
    %v1720 = vunpack.c.h.b16 %v1359
    %v1721 = vunpack.c.l.b16 %v1360
    %v1722 = vunpack.c.h.b16 %v1360
    %v1723 = vunpack.c.l.b16 %v1361
    %v1724 = vunpack.c.h.b16 %v1361
    %v1725 = vunpack.c.l.b16 %v1362
    %v1726 = vunpack.c.h.b16 %v1362
    %v1727 = vunpack.c.l.b16 %v1363
    %v1728 = vunpack.c.h.b16 %v1363
    %v1729 = vunpack.c.l.b16 %v1364
    %v1730 = vunpack.c.h.b16 %v1364
    %v1731 = vunpack.c.l.b16 %v1365
    %v1732 = vunpack.c.h.b16 %v1365
    %v1733 = vunpack.c.l.b16 %v1366
    %v1734 = vunpack.c.h.b16 %v1366
    %v1735 = vunpack.c.l.b16 %v1367
    %v1736 = vunpack.c.h.b16 %v1367
    %v1737 = vunpack.c.l.b16 %v1368
    %v1738 = vunpack.c.h.b16 %v1368
    %v1739 = vunpack.c.l.b16 %v1369
    %v1740 = vunpack.c.h.b16 %v1369
    %v1741 = vunpack.c.l.b16 %v1370
    %v1742 = vunpack.c.h.b16 %v1370
    %v1743 = vunpack.c.l.b16 %v1371
    %v1744 = vunpack.c.h.b16 %v1371
    %v1745 = vunpack.c.l.b16 %v1372
    %v1746 = vunpack.c.h.b16 %v1372
    %v1747 = vunpack.c.l.b16 %v1373
    %v1748 = vunpack.c.h.b16 %v1373
    %v1749 = vunpack.c.l.b16 %v1374
    %v1750 = vunpack.c.h.b16 %v1374
    %v1751 = vunpack.c.l.b16 %v1375
    %v1752 = vunpack.c.h.b16 %v1375
    %v1753 = vunpack.c.l.b16 %v1376
    %v1754 = vunpack.c.h.b16 %v1376
    %v1755 = vunpack.c.l.b16 %v1377
    %v1756 = vunpack.c.h.b16 %v1377
    %v1757 = vunpack.c.l.b16 %v1378
    %v1758 = vunpack.c.h.b16 %v1378
    %v1759 = vunpack.c.l.b16 %v1379
    %v1760 = vunpack.c.h.b16 %v1379
    %v1761 = vunpack.c.l.b16 %v1380
    %v1762 = vunpack.c.h.b16 %v1380
    %v1763 = vunpack.c.l.b16 %v1381
    %v1764 = vunpack.c.h.b16 %v1381
    %v1765 = vunpack.c.l.b16 %v1382
    %v1766 = vunpack.c.h.b16 %v1382
    %v1767 = vunpack.c.l.b16 %v1383
    %v1768 = vunpack.c.h.b16 %v1383
    %v1769 = vunpack.c.l.b16 %v1384
    %v1770 = vunpack.c.h.b16 %v1384
    %v1771 = vunpack.c.l.b16 %v1385
    %v1772 = vunpack.c.h.b16 %v1385
    %v1773 = vunpack.c.l.b16 %v1386
    %v1774 = vunpack.c.h.b16 %v1386
    %v1775 = vunpack.c.l.b16 %v1387
    %v1776 = vunpack.c.h.b16 %v1387
    %v1777 = vunpack.c.l.b16 %v1388
    %v1778 = vunpack.c.h.b16 %v1388
    %v1779 = vunpack.c.l.b16 %v1389
    %v1780 = vunpack.c.h.b16 %v1389
    %v1781 = vunpack.c.l.b16 %v1390
    %v1782 = vunpack.c.h.b16 %v1390
    %v1783 = vunpack.c.l.b16 %v1391
    %v1784 = vunpack.c.h.b16 %v1391
    %v1785 = vunpack.c.l.b16 %v1392
    %v1786 = vunpack.c.h.b16 %v1392
    %v1787 = vunpack.c.l.b16 %v1393
    %v1788 = vunpack.c.h.b16 %v1393
    %v1789 = vpack.c.b16 %v1537, %v1533
    %v1790 = vpack.c.b16 %v1538, %v1534
    %v1791 = vpack.c.b16 %v1539, %v1535
    %v1792 = vpack.c.b16 %v1540, %v1536
    %v1793 = vpack.c.b16 %v1545, %v1541
    %v1794 = vpack.c.b16 %v1546, %v1542
    %v1795 = vpack.c.b16 %v1547, %v1543
    %v1796 = vpack.c.b16 %v1548, %v1544
    %v1797 = vpack.c.b16 %v1553, %v1549
    %v1798 = vpack.c.b16 %v1554, %v1550
    %v1799 = vpack.c.b16 %v1555, %v1551
    %v1800 = vpack.c.b16 %v1556, %v1552
    %v1801 = vpack.c.b16 %v1561, %v1557
    %v1802 = vpack.c.b16 %v1562, %v1558
    %v1803 = vpack.c.b16 %v1563, %v1559
    %v1804 = vpack.c.b16 %v1564, %v1560
    %v1805 = vpack.c.b16 %v1569, %v1565
    %v1806 = vpack.c.b16 %v1570, %v1566
    %v1807 = vpack.c.b16 %v1571, %v1567
    %v1808 = vpack.c.b16 %v1572, %v1568
    %v1809 = vpack.c.b16 %v1577, %v1573
    %v1810 = vpack.c.b16 %v1578, %v1574
    %v1811 = vpack.c.b16 %v1579, %v1575
    %v1812 = vpack.c.b16 %v1580, %v1576
    %v1813 = vpack.c.b16 %v1585, %v1581
    %v1814 = vpack.c.b16 %v1586, %v1582
    %v1815 = vpack.c.b16 %v1587, %v1583
    %v1816 = vpack.c.b16 %v1588, %v1584
    %v1817 = vpack.c.b16 %v1593, %v1589
    %v1818 = vpack.c.b16 %v1594, %v1590
    %v1819 = vpack.c.b16 %v1595, %v1591
    %v1820 = vpack.c.b16 %v1596, %v1592
    %v1821 = vpack.c.b16 %v1601, %v1597
    %v1822 = vpack.c.b16 %v1602, %v1598
    %v1823 = vpack.c.b16 %v1603, %v1599
    %v1824 = vpack.c.b16 %v1604, %v1600
    %v1825 = vpack.c.b16 %v1609, %v1605
    %v1826 = vpack.c.b16 %v1610, %v1606
    %v1827 = vpack.c.b16 %v1611, %v1607
    %v1828 = vpack.c.b16 %v1612, %v1608
    %v1829 = vpack.c.b16 %v1617, %v1613
    %v1830 = vpack.c.b16 %v1618, %v1614
    %v1831 = vpack.c.b16 %v1619, %v1615
    %v1832 = vpack.c.b16 %v1620, %v1616
    %v1833 = vpack.c.b16 %v1625, %v1621
    %v1834 = vpack.c.b16 %v1626, %v1622
    %v1835 = vpack.c.b16 %v1627, %v1623
    %v1836 = vpack.c.b16 %v1628, %v1624
    %v1837 = vpack.c.b16 %v1633, %v1629
    %v1838 = vpack.c.b16 %v1634, %v1630
    %v1839 = vpack.c.b16 %v1635, %v1631
    %v1840 = vpack.c.b16 %v1636, %v1632
    %v1841 = vpack.c.b16 %v1641, %v1637
    %v1842 = vpack.c.b16 %v1642, %v1638
    %v1843 = vpack.c.b16 %v1643, %v1639
    %v1844 = vpack.c.b16 %v1644, %v1640
    %v1845 = vpack.c.b16 %v1649, %v1645
    %v1846 = vpack.c.b16 %v1650, %v1646
    %v1847 = vpack.c.b16 %v1651, %v1647
    %v1848 = vpack.c.b16 %v1652, %v1648
    %v1849 = vpack.c.b16 %v1657, %v1653
    %v1850 = vpack.c.b16 %v1658, %v1654
    %v1851 = vpack.c.b16 %v1659, %v1655
    %v1852 = vpack.c.b16 %v1660, %v1656
    %v1853 = vpack.c.b16 %v1665, %v1661
    %v1854 = vpack.c.b16 %v1666, %v1662
    %v1855 = vpack.c.b16 %v1667, %v1663
    %v1856 = vpack.c.b16 %v1668, %v1664
    %v1857 = vpack.c.b16 %v1673, %v1669
    %v1858 = vpack.c.b16 %v1674, %v1670
    %v1859 = vpack.c.b16 %v1675, %v1671
    %v1860 = vpack.c.b16 %v1676, %v1672
    %v1861 = vpack.c.b16 %v1681, %v1677
    %v1862 = vpack.c.b16 %v1682, %v1678
    %v1863 = vpack.c.b16 %v1683, %v1679
    %v1864 = vpack.c.b16 %v1684, %v1680
    %v1865 = vpack.c.b16 %v1689, %v1685
    %v1866 = vpack.c.b16 %v1690, %v1686
    %v1867 = vpack.c.b16 %v1691, %v1687
    %v1868 = vpack.c.b16 %v1692, %v1688
    %v1869 = vpack.c.b16 %v1697, %v1693
    %v1870 = vpack.c.b16 %v1698, %v1694
    %v1871 = vpack.c.b16 %v1699, %v1695
    %v1872 = vpack.c.b16 %v1700, %v1696
    %v1873 = vpack.c.b16 %v1705, %v1701
    %v1874 = vpack.c.b16 %v1706, %v1702
    %v1875 = vpack.c.b16 %v1707, %v1703
    %v1876 = vpack.c.b16 %v1708, %v1704
    %v1877 = vpack.c.b16 %v1713, %v1709
    %v1878 = vpack.c.b16 %v1714, %v1710
    %v1879 = vpack.c.b16 %v1715, %v1711
    %v1880 = vpack.c.b16 %v1716, %v1712
    %v1881 = vpack.c.b16 %v1721, %v1717
    %v1882 = vpack.c.b16 %v1722, %v1718
    %v1883 = vpack.c.b16 %v1723, %v1719
    %v1884 = vpack.c.b16 %v1724, %v1720
    %v1885 = vpack.c.b16 %v1729, %v1725
    %v1886 = vpack.c.b16 %v1730, %v1726
    %v1887 = vpack.c.b16 %v1731, %v1727
    %v1888 = vpack.c.b16 %v1732, %v1728
    %v1889 = vpack.c.b16 %v1737, %v1733
    %v1890 = vpack.c.b16 %v1738, %v1734
    %v1891 = vpack.c.b16 %v1739, %v1735
    %v1892 = vpack.c.b16 %v1740, %v1736
    %v1893 = vpack.c.b16 %v1745, %v1741
    %v1894 = vpack.c.b16 %v1746, %v1742
    %v1895 = vpack.c.b16 %v1747, %v1743
    %v1896 = vpack.c.b16 %v1748, %v1744
    %v1897 = vpack.c.b16 %v1753, %v1749
    %v1898 = vpack.c.b16 %v1754, %v1750
    %v1899 = vpack.c.b16 %v1755, %v1751
    %v1900 = vpack.c.b16 %v1756, %v1752
    %v1901 = vpack.c.b16 %v1761, %v1757
    %v1902 = vpack.c.b16 %v1762, %v1758
    %v1903 = vpack.c.b16 %v1763, %v1759
    %v1904 = vpack.c.b16 %v1764, %v1760
    %v1905 = vpack.c.b16 %v1769, %v1765
    %v1906 = vpack.c.b16 %v1770, %v1766
    %v1907 = vpack.c.b16 %v1771, %v1767
    %v1908 = vpack.c.b16 %v1772, %v1768
    %v1909 = vpack.c.b16 %v1777, %v1773
    %v1910 = vpack.c.b16 %v1778, %v1774
    %v1911 = vpack.c.b16 %v1779, %v1775
    %v1912 = vpack.c.b16 %v1780, %v1776
    %v1913 = vpack.c.b16 %v1785, %v1781
    %v1914 = vpack.c.b16 %v1786, %v1782
    %v1915 = vpack.c.b16 %v1787, %v1783
    %v1916 = vpack.c.b16 %v1788, %v1784
    %2045 = vmatpush.bf16.msra.mxu0 %v1817
    %2046 = vmatpush.bf16.msra.mxu0 %v1813
    %2047 = vmatpush.bf16.msra.mxu0 %v1809
    %2048 = vmatpush.bf16.msra.mxu0 %v1805
    %2049 = vmatpush.bf16.msra.mxu0 %v1801
    %2050 = vmatpush.bf16.msra.mxu0 %v1797
    %2051 = vmatpush.bf16.msra.mxu0 %v1793
    %2052 = vmatpush.bf16.msra.mxu0 %v1789
    %2053 = vmatmul.bf16.gmra.mxu0 %v1261
    %v2054 = vpop.f32.mrf.mxu0
    %v2055 = vadd.f32 %v1397, %v2054
    %v2056 = vpop.f32.mrf.mxu0
    %2057 = vdwg.mxu0
    %2058 = vmatpush.bf16.msra.mxu0 %v1849
    %2059 = vmatpush.bf16.msra.mxu0 %v1845
    %2060 = vmatpush.bf16.msra.mxu0 %v1841
    %2061 = vmatpush.bf16.msra.mxu0 %v1837
    %2062 = vmatpush.bf16.msra.mxu0 %v1833
    %2063 = vmatpush.bf16.msra.mxu0 %v1829
    %2064 = vmatpush.bf16.msra.mxu0 %v1825
    %2065 = vmatpush.bf16.msra.mxu0 %v1821
    %2066 = vmatmul.bf16.gmra.mxu0 %v1262
    %v2067 = vpop.f32.mrf.mxu0
    %v2068 = vadd.f32 %v2055, %v2067
    %v2069 = vpop.f32.mrf.mxu0
    %2070 = vdwg.mxu0
    %2071 = vmatpush.bf16.msra.mxu0 %v1881
    %2072 = vmatpush.bf16.msra.mxu0 %v1877
    %2073 = vmatpush.bf16.msra.mxu0 %v1873
    %2074 = vmatpush.bf16.msra.mxu0 %v1869
    %2075 = vmatpush.bf16.msra.mxu0 %v1865
    %2076 = vmatpush.bf16.msra.mxu0 %v1861
    %2077 = vmatpush.bf16.msra.mxu0 %v1857
    %2078 = vmatpush.bf16.msra.mxu0 %v1853
    %2079 = vmatmul.bf16.gmra.mxu0 %v1263
    %v2080 = vpop.f32.mrf.mxu0
    %v2081 = vadd.f32 %v2068, %v2080
    %v2082 = vpop.f32.mrf.mxu0
    %2083 = vdwg.mxu0
    %2084 = vmatpush.bf16.msra.mxu0 %v1913
    %2085 = vmatpush.bf16.msra.mxu0 %v1909
    %2086 = vmatpush.bf16.msra.mxu0 %v1905
    %2087 = vmatpush.bf16.msra.mxu0 %v1901
    %2088 = vmatpush.bf16.msra.mxu0 %v1897
    %2089 = vmatpush.bf16.msra.mxu0 %v1893
    %2090 = vmatpush.bf16.msra.mxu0 %v1889
    %2091 = vmatpush.bf16.msra.mxu0 %v1885
    %2092 = vmatmul.bf16.gmra.mxu0 %v1264
    %v2093 = vpop.f32.mrf.mxu0
    %v2094 = vadd.f32 %v2081, %v2093
    %v2095 = vpop.f32.mrf.mxu0
    %2096 = vdwg.mxu0
    %2097 = vmatpush.bf16.msra.mxu0 %v1818
    %2098 = vmatpush.bf16.msra.mxu0 %v1814
    %2099 = vmatpush.bf16.msra.mxu0 %v1810
    %2100 = vmatpush.bf16.msra.mxu0 %v1806
    %2101 = vmatpush.bf16.msra.mxu0 %v1802
    %2102 = vmatpush.bf16.msra.mxu0 %v1798
    %2103 = vmatpush.bf16.msra.mxu0 %v1794
    %2104 = vmatpush.bf16.msra.mxu0 %v1790
    %2105 = vmatmul.bf16.gmra.mxu0 %v1261
    %v2106 = vpop.f32.mrf.mxu0
    %v2107 = vadd.f32 %v1398, %v2106
    %v2108 = vpop.f32.mrf.mxu0
    %2109 = vdwg.mxu0
    %2110 = vmatpush.bf16.msra.mxu0 %v1850
    %2111 = vmatpush.bf16.msra.mxu0 %v1846
    %2112 = vmatpush.bf16.msra.mxu0 %v1842
    %2113 = vmatpush.bf16.msra.mxu0 %v1838
    %2114 = vmatpush.bf16.msra.mxu0 %v1834
    %2115 = vmatpush.bf16.msra.mxu0 %v1830
    %2116 = vmatpush.bf16.msra.mxu0 %v1826
    %2117 = vmatpush.bf16.msra.mxu0 %v1822
    %2118 = vmatmul.bf16.gmra.mxu0 %v1262
    %v2119 = vpop.f32.mrf.mxu0
    %v2120 = vadd.f32 %v2107, %v2119
    %v2121 = vpop.f32.mrf.mxu0
    %2122 = vdwg.mxu0
    %2123 = vmatpush.bf16.msra.mxu0 %v1882
    %2124 = vmatpush.bf16.msra.mxu0 %v1878
    %2125 = vmatpush.bf16.msra.mxu0 %v1874
    %2126 = vmatpush.bf16.msra.mxu0 %v1870
    %2127 = vmatpush.bf16.msra.mxu0 %v1866
    %2128 = vmatpush.bf16.msra.mxu0 %v1862
    %2129 = vmatpush.bf16.msra.mxu0 %v1858
    %2130 = vmatpush.bf16.msra.mxu0 %v1854
    %2131 = vmatmul.bf16.gmra.mxu0 %v1263
    %v2132 = vpop.f32.mrf.mxu0
    %v2133 = vadd.f32 %v2120, %v2132
    %v2134 = vpop.f32.mrf.mxu0
    %2135 = vdwg.mxu0
    %2136 = vmatpush.bf16.msra.mxu0 %v1914
    %2137 = vmatpush.bf16.msra.mxu0 %v1910
    %2138 = vmatpush.bf16.msra.mxu0 %v1906
    %2139 = vmatpush.bf16.msra.mxu0 %v1902
    %2140 = vmatpush.bf16.msra.mxu0 %v1898
    %2141 = vmatpush.bf16.msra.mxu0 %v1894
    %2142 = vmatpush.bf16.msra.mxu0 %v1890
    %2143 = vmatpush.bf16.msra.mxu0 %v1886
    %2144 = vmatmul.bf16.gmra.mxu0 %v1264
    %v2145 = vpop.f32.mrf.mxu0
    %v2146 = vadd.f32 %v2133, %v2145
    %v2147 = vpop.f32.mrf.mxu0
    %2148 = vdwg.mxu0
    %2149 = vmatpush.bf16.msra.mxu0 %v1819
    %2150 = vmatpush.bf16.msra.mxu0 %v1815
    %2151 = vmatpush.bf16.msra.mxu0 %v1811
    %2152 = vmatpush.bf16.msra.mxu0 %v1807
    %2153 = vmatpush.bf16.msra.mxu0 %v1803
    %2154 = vmatpush.bf16.msra.mxu0 %v1799
    %2155 = vmatpush.bf16.msra.mxu0 %v1795
    %2156 = vmatpush.bf16.msra.mxu0 %v1791
    %2157 = vmatmul.bf16.gmra.mxu0 %v1261
    %v2158 = vpop.f32.mrf.mxu0
    %v2159 = vadd.f32 %v1399, %v2158
    %v2160 = vpop.f32.mrf.mxu0
    %2161 = vdwg.mxu0
    %2162 = vmatpush.bf16.msra.mxu0 %v1851
    %2163 = vmatpush.bf16.msra.mxu0 %v1847
    %2164 = vmatpush.bf16.msra.mxu0 %v1843
    %2165 = vmatpush.bf16.msra.mxu0 %v1839
    %2166 = vmatpush.bf16.msra.mxu0 %v1835
    %2167 = vmatpush.bf16.msra.mxu0 %v1831
    %2168 = vmatpush.bf16.msra.mxu0 %v1827
    %2169 = vmatpush.bf16.msra.mxu0 %v1823
    %2170 = vmatmul.bf16.gmra.mxu0 %v1262
    %v2171 = vpop.f32.mrf.mxu0
    %v2172 = vadd.f32 %v2159, %v2171
    %v2173 = vpop.f32.mrf.mxu0
    %2174 = vdwg.mxu0
    %2175 = vmatpush.bf16.msra.mxu0 %v1883
    %2176 = vmatpush.bf16.msra.mxu0 %v1879
    %2177 = vmatpush.bf16.msra.mxu0 %v1875
    %2178 = vmatpush.bf16.msra.mxu0 %v1871
    %2179 = vmatpush.bf16.msra.mxu0 %v1867
    %2180 = vmatpush.bf16.msra.mxu0 %v1863
    %2181 = vmatpush.bf16.msra.mxu0 %v1859
    %2182 = vmatpush.bf16.msra.mxu0 %v1855
    %2183 = vmatmul.bf16.gmra.mxu0 %v1263
    %v2184 = vpop.f32.mrf.mxu0
    %v2185 = vadd.f32 %v2172, %v2184
    %v2186 = vpop.f32.mrf.mxu0
    %2187 = vdwg.mxu0
    %2188 = vmatpush.bf16.msra.mxu0 %v1915
    %2189 = vmatpush.bf16.msra.mxu0 %v1911
    %2190 = vmatpush.bf16.msra.mxu0 %v1907
    %2191 = vmatpush.bf16.msra.mxu0 %v1903
    %2192 = vmatpush.bf16.msra.mxu0 %v1899
    %2193 = vmatpush.bf16.msra.mxu0 %v1895
    %2194 = vmatpush.bf16.msra.mxu0 %v1891
    %2195 = vmatpush.bf16.msra.mxu0 %v1887
    %2196 = vmatmul.bf16.gmra.mxu0 %v1264
    %v2197 = vpop.f32.mrf.mxu0
    %v2198 = vadd.f32 %v2185, %v2197
    %v2199 = vpop.f32.mrf.mxu0
    %2200 = vdwg.mxu0
    %2201 = vmatpush.bf16.msra.mxu0 %v1820
    %2202 = vmatpush.bf16.msra.mxu0 %v1816
    %2203 = vmatpush.bf16.msra.mxu0 %v1812
    %2204 = vmatpush.bf16.msra.mxu0 %v1808
    %2205 = vmatpush.bf16.msra.mxu0 %v1804
    %2206 = vmatpush.bf16.msra.mxu0 %v1800
    %2207 = vmatpush.bf16.msra.mxu0 %v1796
    %2208 = vmatpush.bf16.msra.mxu0 %v1792
    %2209 = vmatmul.bf16.gmra.mxu0 %v1261
    %v2210 = vpop.f32.mrf.mxu0
    %v2211 = vadd.f32 %v1400, %v2210
    %v2212 = vpop.f32.mrf.mxu0
    %2213 = vdwg.mxu0
    %2214 = vmatpush.bf16.msra.mxu0 %v1852
    %2215 = vmatpush.bf16.msra.mxu0 %v1848
    %2216 = vmatpush.bf16.msra.mxu0 %v1844
    %2217 = vmatpush.bf16.msra.mxu0 %v1840
    %2218 = vmatpush.bf16.msra.mxu0 %v1836
    %2219 = vmatpush.bf16.msra.mxu0 %v1832
    %2220 = vmatpush.bf16.msra.mxu0 %v1828
    %2221 = vmatpush.bf16.msra.mxu0 %v1824
    %2222 = vmatmul.bf16.gmra.mxu0 %v1262
    %v2223 = vpop.f32.mrf.mxu0
    %v2224 = vadd.f32 %v2211, %v2223
    %v2225 = vpop.f32.mrf.mxu0
    %2226 = vdwg.mxu0
    %2227 = vmatpush.bf16.msra.mxu0 %v1884
    %2228 = vmatpush.bf16.msra.mxu0 %v1880
    %2229 = vmatpush.bf16.msra.mxu0 %v1876
    %2230 = vmatpush.bf16.msra.mxu0 %v1872
    %2231 = vmatpush.bf16.msra.mxu0 %v1868
    %2232 = vmatpush.bf16.msra.mxu0 %v1864
    %2233 = vmatpush.bf16.msra.mxu0 %v1860
    %2234 = vmatpush.bf16.msra.mxu0 %v1856
    %2235 = vmatmul.bf16.gmra.mxu0 %v1263
    %v2236 = vpop.f32.mrf.mxu0
    %v2237 = vadd.f32 %v2224, %v2236
    %v2238 = vpop.f32.mrf.mxu0
    %2239 = vdwg.mxu0
    %2240 = vmatpush.bf16.msra.mxu0 %v1916
    %2241 = vmatpush.bf16.msra.mxu0 %v1912
    %2242 = vmatpush.bf16.msra.mxu0 %v1908
    %2243 = vmatpush.bf16.msra.mxu0 %v1904
    %2244 = vmatpush.bf16.msra.mxu0 %v1900
    %2245 = vmatpush.bf16.msra.mxu0 %v1896
    %2246 = vmatpush.bf16.msra.mxu0 %v1892
    %2247 = vmatpush.bf16.msra.mxu0 %v1888
    %2248 = vmatmul.bf16.gmra.mxu0 %v1264
    %v2249 = vpop.f32.mrf.mxu0
    %v2250 = vadd.f32 %v2237, %v2249
    %v2251 = vpop.f32.mrf.mxu0
    %2252 = vdwg.mxu0
    %v2253 = vmax.f32 %v2094, 0.0
    %v2254 = vmax.f32 %v2146, 0.0
    %v2255 = vmax.f32 %v2198, 0.0
    %v2256 = vmax.f32 %v2250, 0.0
    %v2257 = vpack.c.bf16 %v2253, %v2253
    %v2258 = vpack.c.bf16 %v2254, %v2254
    %v2259 = vpack.c.bf16 %v2255, %v2255
    %v2260 = vpack.c.bf16 %v2256, %v2256
    %s2261 = scalar_lea.vmem [#allocation8], 2048
    %v2262 = vld [vmem:[%s2261] sm:$0xff]
    %v2263 = vld [vmem:[%s2261 + $0x8] sm:$0xff]
    %v2264 = vld [vmem:[%s2261 + $0x10] sm:$0xff]
    %v2265 = vld [vmem:[%s2261 + $0x18] sm:$0xff]
    %v2266 = vld [vmem:[%s2261 + $0x20] sm:$0xff]
    %v2267 = vld [vmem:[%s2261 + $0x28] sm:$0xff]
    %v2268 = vld [vmem:[%s2261 + $0x30] sm:$0xff]
    %v2269 = vld [vmem:[%s2261 + $0x38] sm:$0xff]
    %v2270 = vld [vmem:[%s2261 + $0x40] sm:$0xff]
    %v2271 = vld [vmem:[%s2261 + $0x48] sm:$0xff]
    %v2272 = vld [vmem:[%s2261 + $0x50] sm:$0xff]
    %v2273 = vld [vmem:[%s2261 + $0x58] sm:$0xff]
    %v2274 = vld [vmem:[%s2261 + $0x60] sm:$0xff]
    %v2275 = vld [vmem:[%s2261 + $0x68] sm:$0xff]
    %v2276 = vld [vmem:[%s2261 + $0x70] sm:$0xff]
    %v2277 = vld [vmem:[%s2261 + $0x78] sm:$0xff]
    %v2278 = vld [vmem:[%s2261 + $0x80] sm:$0xff]
    %v2279 = vld [vmem:[%s2261 + $0x88] sm:$0xff]
    %v2280 = vld [vmem:[%s2261 + $0x90] sm:$0xff]
    %v2281 = vld [vmem:[%s2261 + $0x98] sm:$0xff]
    %v2282 = vld [vmem:[%s2261 + $0xa0] sm:$0xff]
    %v2283 = vld [vmem:[%s2261 + $0xa8] sm:$0xff]
    %v2284 = vld [vmem:[%s2261 + $0xb0] sm:$0xff]
    %v2285 = vld [vmem:[%s2261 + $0xb8] sm:$0xff]
    %v2286 = vld [vmem:[%s2261 + $0xc0] sm:$0xff]
    %v2287 = vld [vmem:[%s2261 + $0xc8] sm:$0xff]
    %v2288 = vld [vmem:[%s2261 + $0xd0] sm:$0xff]
    %v2289 = vld [vmem:[%s2261 + $0xd8] sm:$0xff]
    %v2290 = vld [vmem:[%s2261 + $0xe0] sm:$0xff]
    %v2291 = vld [vmem:[%s2261 + $0xe8] sm:$0xff]
    %v2292 = vld [vmem:[%s2261 + $0xf0] sm:$0xff]
    %v2293 = vld [vmem:[%s2261 + $0xf8] sm:$0xff]
    %v2294 = vld [vmem:[%s2261 + $0x100] sm:$0xff]
    %v2295 = vld [vmem:[%s2261 + $0x108] sm:$0xff]
    %v2296 = vld [vmem:[%s2261 + $0x110] sm:$0xff]
    %v2297 = vld [vmem:[%s2261 + $0x118] sm:$0xff]
    %v2298 = vld [vmem:[%s2261 + $0x120] sm:$0xff]
    %v2299 = vld [vmem:[%s2261 + $0x128] sm:$0xff]
    %v2300 = vld [vmem:[%s2261 + $0x130] sm:$0xff]
    %v2301 = vld [vmem:[%s2261 + $0x138] sm:$0xff]
    %v2302 = vld [vmem:[%s2261 + $0x140] sm:$0xff]
    %v2303 = vld [vmem:[%s2261 + $0x148] sm:$0xff]
    %v2304 = vld [vmem:[%s2261 + $0x150] sm:$0xff]
    %v2305 = vld [vmem:[%s2261 + $0x158] sm:$0xff]
    %v2306 = vld [vmem:[%s2261 + $0x160] sm:$0xff]
    %v2307 = vld [vmem:[%s2261 + $0x168] sm:$0xff]
    %v2308 = vld [vmem:[%s2261 + $0x170] sm:$0xff]
    %v2309 = vld [vmem:[%s2261 + $0x178] sm:$0xff]
    %v2310 = vld [vmem:[%s2261 + $0x180] sm:$0xff]
    %v2311 = vld [vmem:[%s2261 + $0x188] sm:$0xff]
    %v2312 = vld [vmem:[%s2261 + $0x190] sm:$0xff]
    %v2313 = vld [vmem:[%s2261 + $0x198] sm:$0xff]
    %v2314 = vld [vmem:[%s2261 + $0x1a0] sm:$0xff]
    %v2315 = vld [vmem:[%s2261 + $0x1a8] sm:$0xff]
    %v2316 = vld [vmem:[%s2261 + $0x1b0] sm:$0xff]
    %v2317 = vld [vmem:[%s2261 + $0x1b8] sm:$0xff]
    %v2318 = vld [vmem:[%s2261 + $0x1c0] sm:$0xff]
    %v2319 = vld [vmem:[%s2261 + $0x1c8] sm:$0xff]
    %v2320 = vld [vmem:[%s2261 + $0x1d0] sm:$0xff]
    %v2321 = vld [vmem:[%s2261 + $0x1d8] sm:$0xff]
    %v2322 = vld [vmem:[%s2261 + $0x1e0] sm:$0xff]
    %v2323 = vld [vmem:[%s2261 + $0x1e8] sm:$0xff]
    %v2324 = vld [vmem:[%s2261 + $0x1f0] sm:$0xff]
    %v2325 = vld [vmem:[%s2261 + $0x1f8] sm:$0xff]
    %v2326 = vld [vmem:[%s2261 + $0x200] sm:$0xff]
    %v2327 = vld [vmem:[%s2261 + $0x208] sm:$0xff]
    %v2328 = vld [vmem:[%s2261 + $0x210] sm:$0xff]
    %v2329 = vld [vmem:[%s2261 + $0x218] sm:$0xff]
    %v2330 = vld [vmem:[%s2261 + $0x220] sm:$0xff]
    %v2331 = vld [vmem:[%s2261 + $0x228] sm:$0xff]
    %v2332 = vld [vmem:[%s2261 + $0x230] sm:$0xff]
    %v2333 = vld [vmem:[%s2261 + $0x238] sm:$0xff]
    %v2334 = vld [vmem:[%s2261 + $0x240] sm:$0xff]
    %v2335 = vld [vmem:[%s2261 + $0x248] sm:$0xff]
    %v2336 = vld [vmem:[%s2261 + $0x250] sm:$0xff]
    %v2337 = vld [vmem:[%s2261 + $0x258] sm:$0xff]
    %v2338 = vld [vmem:[%s2261 + $0x260] sm:$0xff]
    %v2339 = vld [vmem:[%s2261 + $0x268] sm:$0xff]
    %v2340 = vld [vmem:[%s2261 + $0x270] sm:$0xff]
    %v2341 = vld [vmem:[%s2261 + $0x278] sm:$0xff]
    %v2342 = vld [vmem:[%s2261 + $0x280] sm:$0xff]
    %v2343 = vld [vmem:[%s2261 + $0x288] sm:$0xff]
    %v2344 = vld [vmem:[%s2261 + $0x290] sm:$0xff]
    %v2345 = vld [vmem:[%s2261 + $0x298] sm:$0xff]
    %v2346 = vld [vmem:[%s2261 + $0x2a0] sm:$0xff]
    %v2347 = vld [vmem:[%s2261 + $0x2a8] sm:$0xff]
    %v2348 = vld [vmem:[%s2261 + $0x2b0] sm:$0xff]
    %v2349 = vld [vmem:[%s2261 + $0x2b8] sm:$0xff]
    %v2350 = vld [vmem:[%s2261 + $0x2c0] sm:$0xff]
    %v2351 = vld [vmem:[%s2261 + $0x2c8] sm:$0xff]
    %v2352 = vld [vmem:[%s2261 + $0x2d0] sm:$0xff]
    %v2353 = vld [vmem:[%s2261 + $0x2d8] sm:$0xff]
    %v2354 = vld [vmem:[%s2261 + $0x2e0] sm:$0xff]
    %v2355 = vld [vmem:[%s2261 + $0x2e8] sm:$0xff]
    %v2356 = vld [vmem:[%s2261 + $0x2f0] sm:$0xff]
    %v2357 = vld [vmem:[%s2261 + $0x2f8] sm:$0xff]
    %v2358 = vld [vmem:[%s2261 + $0x300] sm:$0xff]
    %v2359 = vld [vmem:[%s2261 + $0x308] sm:$0xff]
    %v2360 = vld [vmem:[%s2261 + $0x310] sm:$0xff]
    %v2361 = vld [vmem:[%s2261 + $0x318] sm:$0xff]
    %v2362 = vld [vmem:[%s2261 + $0x320] sm:$0xff]
    %v2363 = vld [vmem:[%s2261 + $0x328] sm:$0xff]
    %v2364 = vld [vmem:[%s2261 + $0x330] sm:$0xff]
    %v2365 = vld [vmem:[%s2261 + $0x338] sm:$0xff]
    %v2366 = vld [vmem:[%s2261 + $0x340] sm:$0xff]
    %v2367 = vld [vmem:[%s2261 + $0x348] sm:$0xff]
    %v2368 = vld [vmem:[%s2261 + $0x350] sm:$0xff]
    %v2369 = vld [vmem:[%s2261 + $0x358] sm:$0xff]
    %v2370 = vld [vmem:[%s2261 + $0x360] sm:$0xff]
    %v2371 = vld [vmem:[%s2261 + $0x368] sm:$0xff]
    %v2372 = vld [vmem:[%s2261 + $0x370] sm:$0xff]
    %v2373 = vld [vmem:[%s2261 + $0x378] sm:$0xff]
    %v2374 = vld [vmem:[%s2261 + $0x380] sm:$0xff]
    %v2375 = vld [vmem:[%s2261 + $0x388] sm:$0xff]
    %v2376 = vld [vmem:[%s2261 + $0x390] sm:$0xff]
    %v2377 = vld [vmem:[%s2261 + $0x398] sm:$0xff]
    %v2378 = vld [vmem:[%s2261 + $0x3a0] sm:$0xff]
    %v2379 = vld [vmem:[%s2261 + $0x3a8] sm:$0xff]
    %v2380 = vld [vmem:[%s2261 + $0x3b0] sm:$0xff]
    %v2381 = vld [vmem:[%s2261 + $0x3b8] sm:$0xff]
    %v2382 = vld [vmem:[%s2261 + $0x3c0] sm:$0xff]
    %v2383 = vld [vmem:[%s2261 + $0x3c8] sm:$0xff]
    %v2384 = vld [vmem:[%s2261 + $0x3d0] sm:$0xff]
    %v2385 = vld [vmem:[%s2261 + $0x3d8] sm:$0xff]
    %v2386 = vld [vmem:[%s2261 + $0x3e0] sm:$0xff]
    %v2387 = vld [vmem:[%s2261 + $0x3e8] sm:$0xff]
    %v2388 = vld [vmem:[%s2261 + $0x3f0] sm:$0xff]
    %v2389 = vld [vmem:[%s2261 + $0x3f8] sm:$0xff]
    %s2390 = scalar_lea.vmem [#allocation10], 8
    %v2391 = vld [vmem:[%s2390] sm:$0xf]
    %v2393 = vperm.slane %v2391, 0
    %v2394 = vperm.slane %v2391, 1
    %v2395 = vperm.slane %v2391, 2
    %v2396 = vperm.slane %v2391, 3
    %v2529 = vunpack.c.l.b16 %v2262
    %v2530 = vunpack.c.h.b16 %v2262
    %v2531 = vunpack.c.l.b16 %v2263
    %v2532 = vunpack.c.h.b16 %v2263
    %v2533 = vunpack.c.l.b16 %v2264
    %v2534 = vunpack.c.h.b16 %v2264
    %v2535 = vunpack.c.l.b16 %v2265
    %v2536 = vunpack.c.h.b16 %v2265
    %v2537 = vunpack.c.l.b16 %v2266
    %v2538 = vunpack.c.h.b16 %v2266
    %v2539 = vunpack.c.l.b16 %v2267
    %v2540 = vunpack.c.h.b16 %v2267
    %v2541 = vunpack.c.l.b16 %v2268
    %v2542 = vunpack.c.h.b16 %v2268
    %v2543 = vunpack.c.l.b16 %v2269
    %v2544 = vunpack.c.h.b16 %v2269
    %v2545 = vunpack.c.l.b16 %v2270
    %v2546 = vunpack.c.h.b16 %v2270
    %v2547 = vunpack.c.l.b16 %v2271
    %v2548 = vunpack.c.h.b16 %v2271
    %v2549 = vunpack.c.l.b16 %v2272
    %v2550 = vunpack.c.h.b16 %v2272
    %v2551 = vunpack.c.l.b16 %v2273
    %v2552 = vunpack.c.h.b16 %v2273
    %v2553 = vunpack.c.l.b16 %v2274
    %v2554 = vunpack.c.h.b16 %v2274
    %v2555 = vunpack.c.l.b16 %v2275
    %v2556 = vunpack.c.h.b16 %v2275
    %v2557 = vunpack.c.l.b16 %v2276
    %v2558 = vunpack.c.h.b16 %v2276
    %v2559 = vunpack.c.l.b16 %v2277
    %v2560 = vunpack.c.h.b16 %v2277
    %v2561 = vunpack.c.l.b16 %v2278
    %v2562 = vunpack.c.h.b16 %v2278
    %v2563 = vunpack.c.l.b16 %v2279
    %v2564 = vunpack.c.h.b16 %v2279
    %v2565 = vunpack.c.l.b16 %v2280
    %v2566 = vunpack.c.h.b16 %v2280
    %v2567 = vunpack.c.l.b16 %v2281
    %v2568 = vunpack.c.h.b16 %v2281
    %v2569 = vunpack.c.l.b16 %v2282
    %v2570 = vunpack.c.h.b16 %v2282
    %v2571 = vunpack.c.l.b16 %v2283
    %v2572 = vunpack.c.h.b16 %v2283
    %v2573 = vunpack.c.l.b16 %v2284
    %v2574 = vunpack.c.h.b16 %v2284
    %v2575 = vunpack.c.l.b16 %v2285
    %v2576 = vunpack.c.h.b16 %v2285
    %v2577 = vunpack.c.l.b16 %v2286
    %v2578 = vunpack.c.h.b16 %v2286
    %v2579 = vunpack.c.l.b16 %v2287
    %v2580 = vunpack.c.h.b16 %v2287
    %v2581 = vunpack.c.l.b16 %v2288
    %v2582 = vunpack.c.h.b16 %v2288
    %v2583 = vunpack.c.l.b16 %v2289
    %v2584 = vunpack.c.h.b16 %v2289
    %v2585 = vunpack.c.l.b16 %v2290
    %v2586 = vunpack.c.h.b16 %v2290
    %v2587 = vunpack.c.l.b16 %v2291
    %v2588 = vunpack.c.h.b16 %v2291
    %v2589 = vunpack.c.l.b16 %v2292
    %v2590 = vunpack.c.h.b16 %v2292
    %v2591 = vunpack.c.l.b16 %v2293
    %v2592 = vunpack.c.h.b16 %v2293
    %v2593 = vunpack.c.l.b16 %v2294
    %v2594 = vunpack.c.h.b16 %v2294
    %v2595 = vunpack.c.l.b16 %v2295
    %v2596 = vunpack.c.h.b16 %v2295
    %v2597 = vunpack.c.l.b16 %v2296
    %v2598 = vunpack.c.h.b16 %v2296
    %v2599 = vunpack.c.l.b16 %v2297
    %v2600 = vunpack.c.h.b16 %v2297
    %v2601 = vunpack.c.l.b16 %v2298
    %v2602 = vunpack.c.h.b16 %v2298
    %v2603 = vunpack.c.l.b16 %v2299
    %v2604 = vunpack.c.h.b16 %v2299
    %v2605 = vunpack.c.l.b16 %v2300
    %v2606 = vunpack.c.h.b16 %v2300
    %v2607 = vunpack.c.l.b16 %v2301
    %v2608 = vunpack.c.h.b16 %v2301
    %v2609 = vunpack.c.l.b16 %v2302
    %v2610 = vunpack.c.h.b16 %v2302
    %v2611 = vunpack.c.l.b16 %v2303
    %v2612 = vunpack.c.h.b16 %v2303
    %v2613 = vunpack.c.l.b16 %v2304
    %v2614 = vunpack.c.h.b16 %v2304
    %v2615 = vunpack.c.l.b16 %v2305
    %v2616 = vunpack.c.h.b16 %v2305
    %v2617 = vunpack.c.l.b16 %v2306
    %v2618 = vunpack.c.h.b16 %v2306
    %v2619 = vunpack.c.l.b16 %v2307
    %v2620 = vunpack.c.h.b16 %v2307
    %v2621 = vunpack.c.l.b16 %v2308
    %v2622 = vunpack.c.h.b16 %v2308
    %v2623 = vunpack.c.l.b16 %v2309
    %v2624 = vunpack.c.h.b16 %v2309
    %v2625 = vunpack.c.l.b16 %v2310
    %v2626 = vunpack.c.h.b16 %v2310
    %v2627 = vunpack.c.l.b16 %v2311
    %v2628 = vunpack.c.h.b16 %v2311
    %v2629 = vunpack.c.l.b16 %v2312
    %v2630 = vunpack.c.h.b16 %v2312
    %v2631 = vunpack.c.l.b16 %v2313
    %v2632 = vunpack.c.h.b16 %v2313
    %v2633 = vunpack.c.l.b16 %v2314
    %v2634 = vunpack.c.h.b16 %v2314
    %v2635 = vunpack.c.l.b16 %v2315
    %v2636 = vunpack.c.h.b16 %v2315
    %v2637 = vunpack.c.l.b16 %v2316
    %v2638 = vunpack.c.h.b16 %v2316
    %v2639 = vunpack.c.l.b16 %v2317
    %v2640 = vunpack.c.h.b16 %v2317
    %v2641 = vunpack.c.l.b16 %v2318
    %v2642 = vunpack.c.h.b16 %v2318
    %v2643 = vunpack.c.l.b16 %v2319
    %v2644 = vunpack.c.h.b16 %v2319
    %v2645 = vunpack.c.l.b16 %v2320
    %v2646 = vunpack.c.h.b16 %v2320
    %v2647 = vunpack.c.l.b16 %v2321
    %v2648 = vunpack.c.h.b16 %v2321
    %v2649 = vunpack.c.l.b16 %v2322
    %v2650 = vunpack.c.h.b16 %v2322
    %v2651 = vunpack.c.l.b16 %v2323
    %v2652 = vunpack.c.h.b16 %v2323
    %v2653 = vunpack.c.l.b16 %v2324
    %v2654 = vunpack.c.h.b16 %v2324
    %v2655 = vunpack.c.l.b16 %v2325
    %v2656 = vunpack.c.h.b16 %v2325
    %v2657 = vunpack.c.l.b16 %v2326
    %v2658 = vunpack.c.h.b16 %v2326
    %v2659 = vunpack.c.l.b16 %v2327
    %v2660 = vunpack.c.h.b16 %v2327
    %v2661 = vunpack.c.l.b16 %v2328
    %v2662 = vunpack.c.h.b16 %v2328
    %v2663 = vunpack.c.l.b16 %v2329
    %v2664 = vunpack.c.h.b16 %v2329
    %v2665 = vunpack.c.l.b16 %v2330
    %v2666 = vunpack.c.h.b16 %v2330
    %v2667 = vunpack.c.l.b16 %v2331
    %v2668 = vunpack.c.h.b16 %v2331
    %v2669 = vunpack.c.l.b16 %v2332
    %v2670 = vunpack.c.h.b16 %v2332
    %v2671 = vunpack.c.l.b16 %v2333
    %v2672 = vunpack.c.h.b16 %v2333
    %v2673 = vunpack.c.l.b16 %v2334
    %v2674 = vunpack.c.h.b16 %v2334
    %v2675 = vunpack.c.l.b16 %v2335
    %v2676 = vunpack.c.h.b16 %v2335
    %v2677 = vunpack.c.l.b16 %v2336
    %v2678 = vunpack.c.h.b16 %v2336
    %v2679 = vunpack.c.l.b16 %v2337
    %v2680 = vunpack.c.h.b16 %v2337
    %v2681 = vunpack.c.l.b16 %v2338
    %v2682 = vunpack.c.h.b16 %v2338
    %v2683 = vunpack.c.l.b16 %v2339
    %v2684 = vunpack.c.h.b16 %v2339
    %v2685 = vunpack.c.l.b16 %v2340
    %v2686 = vunpack.c.h.b16 %v2340
    %v2687 = vunpack.c.l.b16 %v2341
    %v2688 = vunpack.c.h.b16 %v2341
    %v2689 = vunpack.c.l.b16 %v2342
    %v2690 = vunpack.c.h.b16 %v2342
    %v2691 = vunpack.c.l.b16 %v2343
    %v2692 = vunpack.c.h.b16 %v2343
    %v2693 = vunpack.c.l.b16 %v2344
    %v2694 = vunpack.c.h.b16 %v2344
    %v2695 = vunpack.c.l.b16 %v2345
    %v2696 = vunpack.c.h.b16 %v2345
    %v2697 = vunpack.c.l.b16 %v2346
    %v2698 = vunpack.c.h.b16 %v2346
    %v2699 = vunpack.c.l.b16 %v2347
    %v2700 = vunpack.c.h.b16 %v2347
    %v2701 = vunpack.c.l.b16 %v2348
    %v2702 = vunpack.c.h.b16 %v2348
    %v2703 = vunpack.c.l.b16 %v2349
    %v2704 = vunpack.c.h.b16 %v2349
    %v2705 = vunpack.c.l.b16 %v2350
    %v2706 = vunpack.c.h.b16 %v2350
    %v2707 = vunpack.c.l.b16 %v2351
    %v2708 = vunpack.c.h.b16 %v2351
    %v2709 = vunpack.c.l.b16 %v2352
    %v2710 = vunpack.c.h.b16 %v2352
    %v2711 = vunpack.c.l.b16 %v2353
    %v2712 = vunpack.c.h.b16 %v2353
    %v2713 = vunpack.c.l.b16 %v2354
    %v2714 = vunpack.c.h.b16 %v2354
    %v2715 = vunpack.c.l.b16 %v2355
    %v2716 = vunpack.c.h.b16 %v2355
    %v2717 = vunpack.c.l.b16 %v2356
    %v2718 = vunpack.c.h.b16 %v2356
    %v2719 = vunpack.c.l.b16 %v2357
    %v2720 = vunpack.c.h.b16 %v2357
    %v2721 = vunpack.c.l.b16 %v2358
    %v2722 = vunpack.c.h.b16 %v2358
    %v2723 = vunpack.c.l.b16 %v2359
    %v2724 = vunpack.c.h.b16 %v2359
    %v2725 = vunpack.c.l.b16 %v2360
    %v2726 = vunpack.c.h.b16 %v2360
    %v2727 = vunpack.c.l.b16 %v2361
    %v2728 = vunpack.c.h.b16 %v2361
    %v2729 = vunpack.c.l.b16 %v2362
    %v2730 = vunpack.c.h.b16 %v2362
    %v2731 = vunpack.c.l.b16 %v2363
    %v2732 = vunpack.c.h.b16 %v2363
    %v2733 = vunpack.c.l.b16 %v2364
    %v2734 = vunpack.c.h.b16 %v2364
    %v2735 = vunpack.c.l.b16 %v2365
    %v2736 = vunpack.c.h.b16 %v2365
    %v2737 = vunpack.c.l.b16 %v2366
    %v2738 = vunpack.c.h.b16 %v2366
    %v2739 = vunpack.c.l.b16 %v2367
    %v2740 = vunpack.c.h.b16 %v2367
    %v2741 = vunpack.c.l.b16 %v2368
    %v2742 = vunpack.c.h.b16 %v2368
    %v2743 = vunpack.c.l.b16 %v2369
    %v2744 = vunpack.c.h.b16 %v2369
    %v2745 = vunpack.c.l.b16 %v2370
    %v2746 = vunpack.c.h.b16 %v2370
    %v2747 = vunpack.c.l.b16 %v2371
    %v2748 = vunpack.c.h.b16 %v2371
    %v2749 = vunpack.c.l.b16 %v2372
    %v2750 = vunpack.c.h.b16 %v2372
    %v2751 = vunpack.c.l.b16 %v2373
    %v2752 = vunpack.c.h.b16 %v2373
    %v2753 = vunpack.c.l.b16 %v2374
    %v2754 = vunpack.c.h.b16 %v2374
    %v2755 = vunpack.c.l.b16 %v2375
    %v2756 = vunpack.c.h.b16 %v2375
    %v2757 = vunpack.c.l.b16 %v2376
    %v2758 = vunpack.c.h.b16 %v2376
    %v2759 = vunpack.c.l.b16 %v2377
    %v2760 = vunpack.c.h.b16 %v2377
    %v2761 = vunpack.c.l.b16 %v2378
    %v2762 = vunpack.c.h.b16 %v2378
    %v2763 = vunpack.c.l.b16 %v2379
    %v2764 = vunpack.c.h.b16 %v2379
    %v2765 = vunpack.c.l.b16 %v2380
    %v2766 = vunpack.c.h.b16 %v2380
    %v2767 = vunpack.c.l.b16 %v2381
    %v2768 = vunpack.c.h.b16 %v2381
    %v2769 = vunpack.c.l.b16 %v2382
    %v2770 = vunpack.c.h.b16 %v2382
    %v2771 = vunpack.c.l.b16 %v2383
    %v2772 = vunpack.c.h.b16 %v2383
    %v2773 = vunpack.c.l.b16 %v2384
    %v2774 = vunpack.c.h.b16 %v2384
    %v2775 = vunpack.c.l.b16 %v2385
    %v2776 = vunpack.c.h.b16 %v2385
    %v2777 = vunpack.c.l.b16 %v2386
    %v2778 = vunpack.c.h.b16 %v2386
    %v2779 = vunpack.c.l.b16 %v2387
    %v2780 = vunpack.c.h.b16 %v2387
    %v2781 = vunpack.c.l.b16 %v2388
    %v2782 = vunpack.c.h.b16 %v2388
    %v2783 = vunpack.c.l.b16 %v2389
    %v2784 = vunpack.c.h.b16 %v2389
    %v2785 = vpack.c.b16 %v2533, %v2529
    %v2786 = vpack.c.b16 %v2534, %v2530
    %v2787 = vpack.c.b16 %v2535, %v2531
    %v2788 = vpack.c.b16 %v2536, %v2532
    %v2789 = vpack.c.b16 %v2541, %v2537
    %v2790 = vpack.c.b16 %v2542, %v2538
    %v2791 = vpack.c.b16 %v2543, %v2539
    %v2792 = vpack.c.b16 %v2544, %v2540
    %v2793 = vpack.c.b16 %v2549, %v2545
    %v2794 = vpack.c.b16 %v2550, %v2546
    %v2795 = vpack.c.b16 %v2551, %v2547
    %v2796 = vpack.c.b16 %v2552, %v2548
    %v2797 = vpack.c.b16 %v2557, %v2553
    %v2798 = vpack.c.b16 %v2558, %v2554
    %v2799 = vpack.c.b16 %v2559, %v2555
    %v2800 = vpack.c.b16 %v2560, %v2556
    %v2801 = vpack.c.b16 %v2565, %v2561
    %v2802 = vpack.c.b16 %v2566, %v2562
    %v2803 = vpack.c.b16 %v2567, %v2563
    %v2804 = vpack.c.b16 %v2568, %v2564
    %v2805 = vpack.c.b16 %v2573, %v2569
    %v2806 = vpack.c.b16 %v2574, %v2570
    %v2807 = vpack.c.b16 %v2575, %v2571
    %v2808 = vpack.c.b16 %v2576, %v2572
    %v2809 = vpack.c.b16 %v2581, %v2577
    %v2810 = vpack.c.b16 %v2582, %v2578
    %v2811 = vpack.c.b16 %v2583, %v2579
    %v2812 = vpack.c.b16 %v2584, %v2580
    %v2813 = vpack.c.b16 %v2589, %v2585
    %v2814 = vpack.c.b16 %v2590, %v2586
    %v2815 = vpack.c.b16 %v2591, %v2587
    %v2816 = vpack.c.b16 %v2592, %v2588
    %v2817 = vpack.c.b16 %v2597, %v2593
    %v2818 = vpack.c.b16 %v2598, %v2594
    %v2819 = vpack.c.b16 %v2599, %v2595
    %v2820 = vpack.c.b16 %v2600, %v2596
    %v2821 = vpack.c.b16 %v2605, %v2601
    %v2822 = vpack.c.b16 %v2606, %v2602
    %v2823 = vpack.c.b16 %v2607, %v2603
    %v2824 = vpack.c.b16 %v2608, %v2604
    %v2825 = vpack.c.b16 %v2613, %v2609
    %v2826 = vpack.c.b16 %v2614, %v2610
    %v2827 = vpack.c.b16 %v2615, %v2611
    %v2828 = vpack.c.b16 %v2616, %v2612
    %v2829 = vpack.c.b16 %v2621, %v2617
    %v2830 = vpack.c.b16 %v2622, %v2618
    %v2831 = vpack.c.b16 %v2623, %v2619
    %v2832 = vpack.c.b16 %v2624, %v2620
    %v2833 = vpack.c.b16 %v2629, %v2625
    %v2834 = vpack.c.b16 %v2630, %v2626
    %v2835 = vpack.c.b16 %v2631, %v2627
    %v2836 = vpack.c.b16 %v2632, %v2628
    %v2837 = vpack.c.b16 %v2637, %v2633
    %v2838 = vpack.c.b16 %v2638, %v2634
    %v2839 = vpack.c.b16 %v2639, %v2635
    %v2840 = vpack.c.b16 %v2640, %v2636
    %v2841 = vpack.c.b16 %v2645, %v2641
    %v2842 = vpack.c.b16 %v2646, %v2642
    %v2843 = vpack.c.b16 %v2647, %v2643
    %v2844 = vpack.c.b16 %v2648, %v2644
    %v2845 = vpack.c.b16 %v2653, %v2649
    %v2846 = vpack.c.b16 %v2654, %v2650
    %v2847 = vpack.c.b16 %v2655, %v2651
    %v2848 = vpack.c.b16 %v2656, %v2652
    %v2849 = vpack.c.b16 %v2661, %v2657
    %v2850 = vpack.c.b16 %v2662, %v2658
    %v2851 = vpack.c.b16 %v2663, %v2659
    %v2852 = vpack.c.b16 %v2664, %v2660
    %v2853 = vpack.c.b16 %v2669, %v2665
    %v2854 = vpack.c.b16 %v2670, %v2666
    %v2855 = vpack.c.b16 %v2671, %v2667
    %v2856 = vpack.c.b16 %v2672, %v2668
    %v2857 = vpack.c.b16 %v2677, %v2673
    %v2858 = vpack.c.b16 %v2678, %v2674
    %v2859 = vpack.c.b16 %v2679, %v2675
    %v2860 = vpack.c.b16 %v2680, %v2676
    %v2861 = vpack.c.b16 %v2685, %v2681
    %v2862 = vpack.c.b16 %v2686, %v2682
    %v2863 = vpack.c.b16 %v2687, %v2683
    %v2864 = vpack.c.b16 %v2688, %v2684
    %v2865 = vpack.c.b16 %v2693, %v2689
    %v2866 = vpack.c.b16 %v2694, %v2690
    %v2867 = vpack.c.b16 %v2695, %v2691
    %v2868 = vpack.c.b16 %v2696, %v2692
    %v2869 = vpack.c.b16 %v2701, %v2697
    %v2870 = vpack.c.b16 %v2702, %v2698
    %v2871 = vpack.c.b16 %v2703, %v2699
    %v2872 = vpack.c.b16 %v2704, %v2700
    %v2873 = vpack.c.b16 %v2709, %v2705
    %v2874 = vpack.c.b16 %v2710, %v2706
    %v2875 = vpack.c.b16 %v2711, %v2707
    %v2876 = vpack.c.b16 %v2712, %v2708
    %v2877 = vpack.c.b16 %v2717, %v2713
    %v2878 = vpack.c.b16 %v2718, %v2714
    %v2879 = vpack.c.b16 %v2719, %v2715
    %v2880 = vpack.c.b16 %v2720, %v2716
    %v2881 = vpack.c.b16 %v2725, %v2721
    %v2882 = vpack.c.b16 %v2726, %v2722
    %v2883 = vpack.c.b16 %v2727, %v2723
    %v2884 = vpack.c.b16 %v2728, %v2724
    %v2885 = vpack.c.b16 %v2733, %v2729
    %v2886 = vpack.c.b16 %v2734, %v2730
    %v2887 = vpack.c.b16 %v2735, %v2731
    %v2888 = vpack.c.b16 %v2736, %v2732
    %v2889 = vpack.c.b16 %v2741, %v2737
    %v2890 = vpack.c.b16 %v2742, %v2738
    %v2891 = vpack.c.b16 %v2743, %v2739
    %v2892 = vpack.c.b16 %v2744, %v2740
    %v2893 = vpack.c.b16 %v2749, %v2745
    %v2894 = vpack.c.b16 %v2750, %v2746
    %v2895 = vpack.c.b16 %v2751, %v2747
    %v2896 = vpack.c.b16 %v2752, %v2748
    %v2897 = vpack.c.b16 %v2757, %v2753
    %v2898 = vpack.c.b16 %v2758, %v2754
    %v2899 = vpack.c.b16 %v2759, %v2755
    %v2900 = vpack.c.b16 %v2760, %v2756
    %v2901 = vpack.c.b16 %v2765, %v2761
    %v2902 = vpack.c.b16 %v2766, %v2762
    %v2903 = vpack.c.b16 %v2767, %v2763
    %v2904 = vpack.c.b16 %v2768, %v2764
    %v2905 = vpack.c.b16 %v2773, %v2769
    %v2906 = vpack.c.b16 %v2774, %v2770
    %v2907 = vpack.c.b16 %v2775, %v2771
    %v2908 = vpack.c.b16 %v2776, %v2772
    %v2909 = vpack.c.b16 %v2781, %v2777
    %v2910 = vpack.c.b16 %v2782, %v2778
    %v2911 = vpack.c.b16 %v2783, %v2779
    %v2912 = vpack.c.b16 %v2784, %v2780
    %3041 = vmatpush.bf16.msra.mxu0 %v2813
    %3042 = vmatpush.bf16.msra.mxu0 %v2809
    %3043 = vmatpush.bf16.msra.mxu0 %v2805
    %3044 = vmatpush.bf16.msra.mxu0 %v2801
    %3045 = vmatpush.bf16.msra.mxu0 %v2797
    %3046 = vmatpush.bf16.msra.mxu0 %v2793
    %3047 = vmatpush.bf16.msra.mxu0 %v2789
    %3048 = vmatpush.bf16.msra.mxu0 %v2785
    %3049 = vmatmul.bf16.gmra.mxu0 %v2257
    %v3050 = vpop.f32.mrf.mxu0
    %v3051 = vadd.f32 %v2393, %v3050
    %v3052 = vpop.f32.mrf.mxu0
    %3053 = vdwg.mxu0
    %3054 = vmatpush.bf16.msra.mxu0 %v2845
    %3055 = vmatpush.bf16.msra.mxu0 %v2841
    %3056 = vmatpush.bf16.msra.mxu0 %v2837
    %3057 = vmatpush.bf16.msra.mxu0 %v2833
    %3058 = vmatpush.bf16.msra.mxu0 %v2829
    %3059 = vmatpush.bf16.msra.mxu0 %v2825
    %3060 = vmatpush.bf16.msra.mxu0 %v2821
    %3061 = vmatpush.bf16.msra.mxu0 %v2817
    %3062 = vmatmul.bf16.gmra.mxu0 %v2258
    %v3063 = vpop.f32.mrf.mxu0
    %v3064 = vadd.f32 %v3051, %v3063
    %v3065 = vpop.f32.mrf.mxu0
    %3066 = vdwg.mxu0
    %3067 = vmatpush.bf16.msra.mxu0 %v2877
    %3068 = vmatpush.bf16.msra.mxu0 %v2873
    %3069 = vmatpush.bf16.msra.mxu0 %v2869
    %3070 = vmatpush.bf16.msra.mxu0 %v2865
    %3071 = vmatpush.bf16.msra.mxu0 %v2861
    %3072 = vmatpush.bf16.msra.mxu0 %v2857
    %3073 = vmatpush.bf16.msra.mxu0 %v2853
    %3074 = vmatpush.bf16.msra.mxu0 %v2849
    %3075 = vmatmul.bf16.gmra.mxu0 %v2259
    %v3076 = vpop.f32.mrf.mxu0
    %v3077 = vadd.f32 %v3064, %v3076
    %v3078 = vpop.f32.mrf.mxu0
    %3079 = vdwg.mxu0
    %3080 = vmatpush.bf16.msra.mxu0 %v2909
    %3081 = vmatpush.bf16.msra.mxu0 %v2905
    %3082 = vmatpush.bf16.msra.mxu0 %v2901
    %3083 = vmatpush.bf16.msra.mxu0 %v2897
    %3084 = vmatpush.bf16.msra.mxu0 %v2893
    %3085 = vmatpush.bf16.msra.mxu0 %v2889
    %3086 = vmatpush.bf16.msra.mxu0 %v2885
    %3087 = vmatpush.bf16.msra.mxu0 %v2881
    %3088 = vmatmul.bf16.gmra.mxu0 %v2260
    %v3089 = vpop.f32.mrf.mxu0
    %v3090 = vadd.f32 %v3077, %v3089
    %v3091 = vpop.f32.mrf.mxu0
    %3092 = vdwg.mxu0
    %3093 = vmatpush.bf16.msra.mxu0 %v2814
    %3094 = vmatpush.bf16.msra.mxu0 %v2810
    %3095 = vmatpush.bf16.msra.mxu0 %v2806
    %3096 = vmatpush.bf16.msra.mxu0 %v2802
    %3097 = vmatpush.bf16.msra.mxu0 %v2798
    %3098 = vmatpush.bf16.msra.mxu0 %v2794
    %3099 = vmatpush.bf16.msra.mxu0 %v2790
    %3100 = vmatpush.bf16.msra.mxu0 %v2786
    %3101 = vmatmul.bf16.gmra.mxu0 %v2257
    %v3102 = vpop.f32.mrf.mxu0
    %v3103 = vadd.f32 %v2394, %v3102
    %v3104 = vpop.f32.mrf.mxu0
    %3105 = vdwg.mxu0
    %3106 = vmatpush.bf16.msra.mxu0 %v2846
    %3107 = vmatpush.bf16.msra.mxu0 %v2842
    %3108 = vmatpush.bf16.msra.mxu0 %v2838
    %3109 = vmatpush.bf16.msra.mxu0 %v2834
    %3110 = vmatpush.bf16.msra.mxu0 %v2830
    %3111 = vmatpush.bf16.msra.mxu0 %v2826
    %3112 = vmatpush.bf16.msra.mxu0 %v2822
    %3113 = vmatpush.bf16.msra.mxu0 %v2818
    %3114 = vmatmul.bf16.gmra.mxu0 %v2258
    %v3115 = vpop.f32.mrf.mxu0
    %v3116 = vadd.f32 %v3103, %v3115
    %v3117 = vpop.f32.mrf.mxu0
    %3118 = vdwg.mxu0
    %3119 = vmatpush.bf16.msra.mxu0 %v2878
    %3120 = vmatpush.bf16.msra.mxu0 %v2874
    %3121 = vmatpush.bf16.msra.mxu0 %v2870
    %3122 = vmatpush.bf16.msra.mxu0 %v2866
    %3123 = vmatpush.bf16.msra.mxu0 %v2862
    %3124 = vmatpush.bf16.msra.mxu0 %v2858
    %3125 = vmatpush.bf16.msra.mxu0 %v2854
    %3126 = vmatpush.bf16.msra.mxu0 %v2850
    %3127 = vmatmul.bf16.gmra.mxu0 %v2259
    %v3128 = vpop.f32.mrf.mxu0
    %v3129 = vadd.f32 %v3116, %v3128
    %v3130 = vpop.f32.mrf.mxu0
    %3131 = vdwg.mxu0
    %3132 = vmatpush.bf16.msra.mxu0 %v2910
    %3133 = vmatpush.bf16.msra.mxu0 %v2906
    %3134 = vmatpush.bf16.msra.mxu0 %v2902
    %3135 = vmatpush.bf16.msra.mxu0 %v2898
    %3136 = vmatpush.bf16.msra.mxu0 %v2894
    %3137 = vmatpush.bf16.msra.mxu0 %v2890
    %3138 = vmatpush.bf16.msra.mxu0 %v2886
    %3139 = vmatpush.bf16.msra.mxu0 %v2882
    %3140 = vmatmul.bf16.gmra.mxu0 %v2260
    %v3141 = vpop.f32.mrf.mxu0
    %v3142 = vadd.f32 %v3129, %v3141
    %v3143 = vpop.f32.mrf.mxu0
    %3144 = vdwg.mxu0
    %3145 = vmatpush.bf16.msra.mxu0 %v2815
    %3146 = vmatpush.bf16.msra.mxu0 %v2811
    %3147 = vmatpush.bf16.msra.mxu0 %v2807
    %3148 = vmatpush.bf16.msra.mxu0 %v2803
    %3149 = vmatpush.bf16.msra.mxu0 %v2799
    %3150 = vmatpush.bf16.msra.mxu0 %v2795
    %3151 = vmatpush.bf16.msra.mxu0 %v2791
    %3152 = vmatpush.bf16.msra.mxu0 %v2787
    %3153 = vmatmul.bf16.gmra.mxu0 %v2257
    %v3154 = vpop.f32.mrf.mxu0
    %v3155 = vadd.f32 %v2395, %v3154
    %v3156 = vpop.f32.mrf.mxu0
    %3157 = vdwg.mxu0
    %3158 = vmatpush.bf16.msra.mxu0 %v2847
    %3159 = vmatpush.bf16.msra.mxu0 %v2843
    %3160 = vmatpush.bf16.msra.mxu0 %v2839
    %3161 = vmatpush.bf16.msra.mxu0 %v2835
    %3162 = vmatpush.bf16.msra.mxu0 %v2831
    %3163 = vmatpush.bf16.msra.mxu0 %v2827
    %3164 = vmatpush.bf16.msra.mxu0 %v2823
    %3165 = vmatpush.bf16.msra.mxu0 %v2819
    %3166 = vmatmul.bf16.gmra.mxu0 %v2258
    %v3167 = vpop.f32.mrf.mxu0
    %v3168 = vadd.f32 %v3155, %v3167
    %v3169 = vpop.f32.mrf.mxu0
    %3170 = vdwg.mxu0
    %3171 = vmatpush.bf16.msra.mxu0 %v2879
    %3172 = vmatpush.bf16.msra.mxu0 %v2875
    %3173 = vmatpush.bf16.msra.mxu0 %v2871
    %3174 = vmatpush.bf16.msra.mxu0 %v2867
    %3175 = vmatpush.bf16.msra.mxu0 %v2863
    %3176 = vmatpush.bf16.msra.mxu0 %v2859
    %3177 = vmatpush.bf16.msra.mxu0 %v2855
    %3178 = vmatpush.bf16.msra.mxu0 %v2851
    %3179 = vmatmul.bf16.gmra.mxu0 %v2259
    %v3180 = vpop.f32.mrf.mxu0
    %v3181 = vadd.f32 %v3168, %v3180
    %v3182 = vpop.f32.mrf.mxu0
    %3183 = vdwg.mxu0
    %3184 = vmatpush.bf16.msra.mxu0 %v2911
    %3185 = vmatpush.bf16.msra.mxu0 %v2907
    %3186 = vmatpush.bf16.msra.mxu0 %v2903
    %3187 = vmatpush.bf16.msra.mxu0 %v2899
    %3188 = vmatpush.bf16.msra.mxu0 %v2895
    %3189 = vmatpush.bf16.msra.mxu0 %v2891
    %3190 = vmatpush.bf16.msra.mxu0 %v2887
    %3191 = vmatpush.bf16.msra.mxu0 %v2883
    %3192 = vmatmul.bf16.gmra.mxu0 %v2260
    %v3193 = vpop.f32.mrf.mxu0
    %v3194 = vadd.f32 %v3181, %v3193
    %v3195 = vpop.f32.mrf.mxu0
    %3196 = vdwg.mxu0
    %3197 = vmatpush.bf16.msra.mxu0 %v2816
    %3198 = vmatpush.bf16.msra.mxu0 %v2812
    %3199 = vmatpush.bf16.msra.mxu0 %v2808
    %3200 = vmatpush.bf16.msra.mxu0 %v2804
    %3201 = vmatpush.bf16.msra.mxu0 %v2800
    %3202 = vmatpush.bf16.msra.mxu0 %v2796
    %3203 = vmatpush.bf16.msra.mxu0 %v2792
    %3204 = vmatpush.bf16.msra.mxu0 %v2788
    %3205 = vmatmul.bf16.gmra.mxu0 %v2257
    %v3206 = vpop.f32.mrf.mxu0
    %v3207 = vadd.f32 %v2396, %v3206
    %v3208 = vpop.f32.mrf.mxu0
    %3209 = vdwg.mxu0
    %3210 = vmatpush.bf16.msra.mxu0 %v2848
    %3211 = vmatpush.bf16.msra.mxu0 %v2844
    %3212 = vmatpush.bf16.msra.mxu0 %v2840
    %3213 = vmatpush.bf16.msra.mxu0 %v2836
    %3214 = vmatpush.bf16.msra.mxu0 %v2832
    %3215 = vmatpush.bf16.msra.mxu0 %v2828
    %3216 = vmatpush.bf16.msra.mxu0 %v2824
    %3217 = vmatpush.bf16.msra.mxu0 %v2820
    %3218 = vmatmul.bf16.gmra.mxu0 %v2258
    %v3219 = vpop.f32.mrf.mxu0
    %v3220 = vadd.f32 %v3207, %v3219
    %v3221 = vpop.f32.mrf.mxu0
    %3222 = vdwg.mxu0
    %3223 = vmatpush.bf16.msra.mxu0 %v2880
    %3224 = vmatpush.bf16.msra.mxu0 %v2876
    %3225 = vmatpush.bf16.msra.mxu0 %v2872
    %3226 = vmatpush.bf16.msra.mxu0 %v2868
    %3227 = vmatpush.bf16.msra.mxu0 %v2864
    %3228 = vmatpush.bf16.msra.mxu0 %v2860
    %3229 = vmatpush.bf16.msra.mxu0 %v2856
    %3230 = vmatpush.bf16.msra.mxu0 %v2852
    %3231 = vmatmul.bf16.gmra.mxu0 %v2259
    %v3232 = vpop.f32.mrf.mxu0
    %v3233 = vadd.f32 %v3220, %v3232
    %v3234 = vpop.f32.mrf.mxu0
    %3235 = vdwg.mxu0
    %3236 = vmatpush.bf16.msra.mxu0 %v2912
    %3237 = vmatpush.bf16.msra.mxu0 %v2908
    %3238 = vmatpush.bf16.msra.mxu0 %v2904
    %3239 = vmatpush.bf16.msra.mxu0 %v2900
    %3240 = vmatpush.bf16.msra.mxu0 %v2896
    %3241 = vmatpush.bf16.msra.mxu0 %v2892
    %3242 = vmatpush.bf16.msra.mxu0 %v2888
    %3243 = vmatpush.bf16.msra.mxu0 %v2884
    %3244 = vmatmul.bf16.gmra.mxu0 %v2260
    %v3245 = vpop.f32.mrf.mxu0
    %v3246 = vadd.f32 %v3233, %v3245
    %v3247 = vpop.f32.mrf.mxu0
    %3248 = vdwg.mxu0
    %v3249 = vmax.f32 %v3090, 0.0
    %v3250 = vmax.f32 %v3142, 0.0
    %v3251 = vmax.f32 %v3194, 0.0
    %v3252 = vmax.f32 %v3246, 0.0
    %v3253 = vld [vmem:[%s1] sm:$0xff]
    %v3254 = vpack.c.bf16 %v3249, %v3249
    %v3255 = vpack.c.bf16 %v3250, %v3250
    %v3256 = vpack.c.bf16 %v3251, %v3251
    %v3257 = vpack.c.bf16 %v3252, %v3252
    %v3258 = vld [vmem:[#allocation11] sm:$0xff]
    %v3259 = vld [vmem:[#allocation11 + $0x8] sm:$0xff]
    %v3260 = vld [vmem:[#allocation11 + $0x10] sm:$0xff]
    %v3261 = vld [vmem:[#allocation11 + $0x18] sm:$0xff]
    %v3262 = vld [vmem:[#allocation11 + $0x20] sm:$0xff]
    %v3263 = vld [vmem:[#allocation11 + $0x28] sm:$0xff]
    %v3264 = vld [vmem:[#allocation11 + $0x30] sm:$0xff]
    %v3265 = vld [vmem:[#allocation11 + $0x38] sm:$0xff]
    %v3266 = vld [vmem:[#allocation11 + $0x40] sm:$0xff]
    %v3267 = vld [vmem:[#allocation11 + $0x48] sm:$0xff]
    %v3268 = vld [vmem:[#allocation11 + $0x50] sm:$0xff]
    %v3269 = vld [vmem:[#allocation11 + $0x58] sm:$0xff]
    %v3270 = vld [vmem:[#allocation11 + $0x60] sm:$0xff]
    %v3271 = vld [vmem:[#allocation11 + $0x68] sm:$0xff]
    %v3272 = vld [vmem:[#allocation11 + $0x70] sm:$0xff]
    %v3273 = vld [vmem:[#allocation11 + $0x78] sm:$0xff]
    %v3274 = vld [vmem:[#allocation11 + $0x80] sm:$0xff]
    %v3275 = vld [vmem:[#allocation11 + $0x88] sm:$0xff]
    %v3276 = vld [vmem:[#allocation11 + $0x90] sm:$0xff]
    %v3277 = vld [vmem:[#allocation11 + $0x98] sm:$0xff]
    %v3278 = vld [vmem:[#allocation11 + $0xa0] sm:$0xff]
    %v3279 = vld [vmem:[#allocation11 + $0xa8] sm:$0xff]
    %v3280 = vld [vmem:[#allocation11 + $0xb0] sm:$0xff]
    %v3281 = vld [vmem:[#allocation11 + $0xb8] sm:$0xff]
    %v3282 = vld [vmem:[#allocation11 + $0xc0] sm:$0xff]
    %v3283 = vld [vmem:[#allocation11 + $0xc8] sm:$0xff]
    %v3284 = vld [vmem:[#allocation11 + $0xd0] sm:$0xff]
    %v3285 = vld [vmem:[#allocation11 + $0xd8] sm:$0xff]
    %v3286 = vld [vmem:[#allocation11 + $0xe0] sm:$0xff]
    %v3287 = vld [vmem:[#allocation11 + $0xe8] sm:$0xff]
    %v3288 = vld [vmem:[#allocation11 + $0xf0] sm:$0xff]
    %v3289 = vld [vmem:[#allocation11 + $0xf8] sm:$0xff]
    %v3290 = vld [vmem:[#allocation11 + $0x100] sm:$0xff]
    %v3291 = vld [vmem:[#allocation11 + $0x108] sm:$0xff]
    %v3292 = vld [vmem:[#allocation11 + $0x110] sm:$0xff]
    %v3293 = vld [vmem:[#allocation11 + $0x118] sm:$0xff]
    %v3294 = vld [vmem:[#allocation11 + $0x120] sm:$0xff]
    %v3295 = vld [vmem:[#allocation11 + $0x128] sm:$0xff]
    %v3296 = vld [vmem:[#allocation11 + $0x130] sm:$0xff]
    %v3297 = vld [vmem:[#allocation11 + $0x138] sm:$0xff]
    %v3298 = vld [vmem:[#allocation11 + $0x140] sm:$0xff]
    %v3299 = vld [vmem:[#allocation11 + $0x148] sm:$0xff]
    %v3300 = vld [vmem:[#allocation11 + $0x150] sm:$0xff]
    %v3301 = vld [vmem:[#allocation11 + $0x158] sm:$0xff]
    %v3302 = vld [vmem:[#allocation11 + $0x160] sm:$0xff]
    %v3303 = vld [vmem:[#allocation11 + $0x168] sm:$0xff]
    %v3304 = vld [vmem:[#allocation11 + $0x170] sm:$0xff]
    %v3305 = vld [vmem:[#allocation11 + $0x178] sm:$0xff]
    %v3306 = vld [vmem:[#allocation11 + $0x180] sm:$0xff]
    %v3307 = vld [vmem:[#allocation11 + $0x188] sm:$0xff]
    %v3308 = vld [vmem:[#allocation11 + $0x190] sm:$0xff]
    %v3309 = vld [vmem:[#allocation11 + $0x198] sm:$0xff]
    %v3310 = vld [vmem:[#allocation11 + $0x1a0] sm:$0xff]
    %v3311 = vld [vmem:[#allocation11 + $0x1a8] sm:$0xff]
    %v3312 = vld [vmem:[#allocation11 + $0x1b0] sm:$0xff]
    %v3313 = vld [vmem:[#allocation11 + $0x1b8] sm:$0xff]
    %v3314 = vld [vmem:[#allocation11 + $0x1c0] sm:$0xff]
    %v3315 = vld [vmem:[#allocation11 + $0x1c8] sm:$0xff]
    %v3316 = vld [vmem:[#allocation11 + $0x1d0] sm:$0xff]
    %v3317 = vld [vmem:[#allocation11 + $0x1d8] sm:$0xff]
    %v3318 = vld [vmem:[#allocation11 + $0x1e0] sm:$0xff]
    %v3319 = vld [vmem:[#allocation11 + $0x1e8] sm:$0xff]
    %v3320 = vld [vmem:[#allocation11 + $0x1f0] sm:$0xff]
    %v3321 = vld [vmem:[#allocation11 + $0x1f8] sm:$0xff]
    %v3322 = vld [vmem:[#allocation11 + $0x200] sm:$0xff]
    %v3323 = vld [vmem:[#allocation11 + $0x208] sm:$0xff]
    %v3324 = vld [vmem:[#allocation11 + $0x210] sm:$0xff]
    %v3325 = vld [vmem:[#allocation11 + $0x218] sm:$0xff]
    %v3326 = vld [vmem:[#allocation11 + $0x220] sm:$0xff]
    %v3327 = vld [vmem:[#allocation11 + $0x228] sm:$0xff]
    %v3328 = vld [vmem:[#allocation11 + $0x230] sm:$0xff]
    %v3329 = vld [vmem:[#allocation11 + $0x238] sm:$0xff]
    %v3330 = vld [vmem:[#allocation11 + $0x240] sm:$0xff]
    %v3331 = vld [vmem:[#allocation11 + $0x248] sm:$0xff]
    %v3332 = vld [vmem:[#allocation11 + $0x250] sm:$0xff]
    %v3333 = vld [vmem:[#allocation11 + $0x258] sm:$0xff]
    %v3334 = vld [vmem:[#allocation11 + $0x260] sm:$0xff]
    %v3335 = vld [vmem:[#allocation11 + $0x268] sm:$0xff]
    %v3336 = vld [vmem:[#allocation11 + $0x270] sm:$0xff]
    %v3337 = vld [vmem:[#allocation11 + $0x278] sm:$0xff]
    %v3338 = vld [vmem:[#allocation11 + $0x280] sm:$0xff]
    %v3339 = vld [vmem:[#allocation11 + $0x288] sm:$0xff]
    %v3340 = vld [vmem:[#allocation11 + $0x290] sm:$0xff]
    %v3341 = vld [vmem:[#allocation11 + $0x298] sm:$0xff]
    %v3342 = vld [vmem:[#allocation11 + $0x2a0] sm:$0xff]
    %v3343 = vld [vmem:[#allocation11 + $0x2a8] sm:$0xff]
    %v3344 = vld [vmem:[#allocation11 + $0x2b0] sm:$0xff]
    %v3345 = vld [vmem:[#allocation11 + $0x2b8] sm:$0xff]
    %v3346 = vld [vmem:[#allocation11 + $0x2c0] sm:$0xff]
    %v3347 = vld [vmem:[#allocation11 + $0x2c8] sm:$0xff]
    %v3348 = vld [vmem:[#allocation11 + $0x2d0] sm:$0xff]
    %v3349 = vld [vmem:[#allocation11 + $0x2d8] sm:$0xff]
    %v3350 = vld [vmem:[#allocation11 + $0x2e0] sm:$0xff]
    %v3351 = vld [vmem:[#allocation11 + $0x2e8] sm:$0xff]
    %v3352 = vld [vmem:[#allocation11 + $0x2f0] sm:$0xff]
    %v3353 = vld [vmem:[#allocation11 + $0x2f8] sm:$0xff]
    %v3354 = vld [vmem:[#allocation11 + $0x300] sm:$0xff]
    %v3355 = vld [vmem:[#allocation11 + $0x308] sm:$0xff]
    %v3356 = vld [vmem:[#allocation11 + $0x310] sm:$0xff]
    %v3357 = vld [vmem:[#allocation11 + $0x318] sm:$0xff]
    %v3358 = vld [vmem:[#allocation11 + $0x320] sm:$0xff]
    %v3359 = vld [vmem:[#allocation11 + $0x328] sm:$0xff]
    %v3360 = vld [vmem:[#allocation11 + $0x330] sm:$0xff]
    %v3361 = vld [vmem:[#allocation11 + $0x338] sm:$0xff]
    %v3362 = vld [vmem:[#allocation11 + $0x340] sm:$0xff]
    %v3363 = vld [vmem:[#allocation11 + $0x348] sm:$0xff]
    %v3364 = vld [vmem:[#allocation11 + $0x350] sm:$0xff]
    %v3365 = vld [vmem:[#allocation11 + $0x358] sm:$0xff]
    %v3366 = vld [vmem:[#allocation11 + $0x360] sm:$0xff]
    %v3367 = vld [vmem:[#allocation11 + $0x368] sm:$0xff]
    %v3368 = vld [vmem:[#allocation11 + $0x370] sm:$0xff]
    %v3369 = vld [vmem:[#allocation11 + $0x378] sm:$0xff]
    %v3370 = vld [vmem:[#allocation11 + $0x380] sm:$0xff]
    %v3371 = vld [vmem:[#allocation11 + $0x388] sm:$0xff]
    %v3372 = vld [vmem:[#allocation11 + $0x390] sm:$0xff]
    %v3373 = vld [vmem:[#allocation11 + $0x398] sm:$0xff]
    %v3374 = vld [vmem:[#allocation11 + $0x3a0] sm:$0xff]
    %v3375 = vld [vmem:[#allocation11 + $0x3a8] sm:$0xff]
    %v3376 = vld [vmem:[#allocation11 + $0x3b0] sm:$0xff]
    %v3377 = vld [vmem:[#allocation11 + $0x3b8] sm:$0xff]
    %v3378 = vld [vmem:[#allocation11 + $0x3c0] sm:$0xff]
    %v3379 = vld [vmem:[#allocation11 + $0x3c8] sm:$0xff]
    %v3380 = vld [vmem:[#allocation11 + $0x3d0] sm:$0xff]
    %v3381 = vld [vmem:[#allocation11 + $0x3d8] sm:$0xff]
    %v3382 = vld [vmem:[#allocation11 + $0x3e0] sm:$0xff]
    %v3383 = vld [vmem:[#allocation11 + $0x3e8] sm:$0xff]
    %v3384 = vld [vmem:[#allocation11 + $0x3f0] sm:$0xff]
    %v3385 = vld [vmem:[#allocation11 + $0x3f8] sm:$0xff]
    %v3386 = vld [vmem:[#allocation13] sm:$0xf]
    %v3388 = vperm.slane %v3386, 0
    %v3389 = vperm.slane %v3386, 1
    %v3390 = vperm.slane %v3386, 2
    %v3391 = vperm.slane %v3386, 3
    %v3524 = vunpack.c.l.b16 %v3258
    %v3525 = vunpack.c.h.b16 %v3258
    %v3526 = vunpack.c.l.b16 %v3259
    %v3527 = vunpack.c.h.b16 %v3259
    %v3528 = vunpack.c.l.b16 %v3260
    %v3529 = vunpack.c.h.b16 %v3260
    %v3530 = vunpack.c.l.b16 %v3261
    %v3531 = vunpack.c.h.b16 %v3261
    %v3532 = vunpack.c.l.b16 %v3262
    %v3533 = vunpack.c.h.b16 %v3262
    %v3534 = vunpack.c.l.b16 %v3263
    %v3535 = vunpack.c.h.b16 %v3263
    %v3536 = vunpack.c.l.b16 %v3264
    %v3537 = vunpack.c.h.b16 %v3264
    %v3538 = vunpack.c.l.b16 %v3265
    %v3539 = vunpack.c.h.b16 %v3265
    %v3540 = vunpack.c.l.b16 %v3266
    %v3541 = vunpack.c.h.b16 %v3266
    %v3542 = vunpack.c.l.b16 %v3267
    %v3543 = vunpack.c.h.b16 %v3267
    %v3544 = vunpack.c.l.b16 %v3268
    %v3545 = vunpack.c.h.b16 %v3268
    %v3546 = vunpack.c.l.b16 %v3269
    %v3547 = vunpack.c.h.b16 %v3269
    %v3548 = vunpack.c.l.b16 %v3270
    %v3549 = vunpack.c.h.b16 %v3270
    %v3550 = vunpack.c.l.b16 %v3271
    %v3551 = vunpack.c.h.b16 %v3271
    %v3552 = vunpack.c.l.b16 %v3272
    %v3553 = vunpack.c.h.b16 %v3272
    %v3554 = vunpack.c.l.b16 %v3273
    %v3555 = vunpack.c.h.b16 %v3273
    %v3556 = vunpack.c.l.b16 %v3274
    %v3557 = vunpack.c.h.b16 %v3274
    %v3558 = vunpack.c.l.b16 %v3275
    %v3559 = vunpack.c.h.b16 %v3275
    %v3560 = vunpack.c.l.b16 %v3276
    %v3561 = vunpack.c.h.b16 %v3276
    %v3562 = vunpack.c.l.b16 %v3277
    %v3563 = vunpack.c.h.b16 %v3277
    %v3564 = vunpack.c.l.b16 %v3278
    %v3565 = vunpack.c.h.b16 %v3278
    %v3566 = vunpack.c.l.b16 %v3279
    %v3567 = vunpack.c.h.b16 %v3279
    %v3568 = vunpack.c.l.b16 %v3280
    %v3569 = vunpack.c.h.b16 %v3280
    %v3570 = vunpack.c.l.b16 %v3281
    %v3571 = vunpack.c.h.b16 %v3281
    %v3572 = vunpack.c.l.b16 %v3282
    %v3573 = vunpack.c.h.b16 %v3282
    %v3574 = vunpack.c.l.b16 %v3283
    %v3575 = vunpack.c.h.b16 %v3283
    %v3576 = vunpack.c.l.b16 %v3284
    %v3577 = vunpack.c.h.b16 %v3284
    %v3578 = vunpack.c.l.b16 %v3285
    %v3579 = vunpack.c.h.b16 %v3285
    %v3580 = vunpack.c.l.b16 %v3286
    %v3581 = vunpack.c.h.b16 %v3286
    %v3582 = vunpack.c.l.b16 %v3287
    %v3583 = vunpack.c.h.b16 %v3287
    %v3584 = vunpack.c.l.b16 %v3288
    %v3585 = vunpack.c.h.b16 %v3288
    %v3586 = vunpack.c.l.b16 %v3289
    %v3587 = vunpack.c.h.b16 %v3289
    %v3588 = vunpack.c.l.b16 %v3290
    %v3589 = vunpack.c.h.b16 %v3290
    %v3590 = vunpack.c.l.b16 %v3291
    %v3591 = vunpack.c.h.b16 %v3291
    %v3592 = vunpack.c.l.b16 %v3292
    %v3593 = vunpack.c.h.b16 %v3292
    %v3594 = vunpack.c.l.b16 %v3293
    %v3595 = vunpack.c.h.b16 %v3293
    %v3596 = vunpack.c.l.b16 %v3294
    %v3597 = vunpack.c.h.b16 %v3294
    %v3598 = vunpack.c.l.b16 %v3295
    %v3599 = vunpack.c.h.b16 %v3295
    %v3600 = vunpack.c.l.b16 %v3296
    %v3601 = vunpack.c.h.b16 %v3296
    %v3602 = vunpack.c.l.b16 %v3297
    %v3603 = vunpack.c.h.b16 %v3297
    %v3604 = vunpack.c.l.b16 %v3298
    %v3605 = vunpack.c.h.b16 %v3298
    %v3606 = vunpack.c.l.b16 %v3299
    %v3607 = vunpack.c.h.b16 %v3299
    %v3608 = vunpack.c.l.b16 %v3300
    %v3609 = vunpack.c.h.b16 %v3300
    %v3610 = vunpack.c.l.b16 %v3301
    %v3611 = vunpack.c.h.b16 %v3301
    %v3612 = vunpack.c.l.b16 %v3302
    %v3613 = vunpack.c.h.b16 %v3302
    %v3614 = vunpack.c.l.b16 %v3303
    %v3615 = vunpack.c.h.b16 %v3303
    %v3616 = vunpack.c.l.b16 %v3304
    %v3617 = vunpack.c.h.b16 %v3304
    %v3618 = vunpack.c.l.b16 %v3305
    %v3619 = vunpack.c.h.b16 %v3305
    %v3620 = vunpack.c.l.b16 %v3306
    %v3621 = vunpack.c.h.b16 %v3306
    %v3622 = vunpack.c.l.b16 %v3307
    %v3623 = vunpack.c.h.b16 %v3307
    %v3624 = vunpack.c.l.b16 %v3308
    %v3625 = vunpack.c.h.b16 %v3308
    %v3626 = vunpack.c.l.b16 %v3309
    %v3627 = vunpack.c.h.b16 %v3309
    %v3628 = vunpack.c.l.b16 %v3310
    %v3629 = vunpack.c.h.b16 %v3310
    %v3630 = vunpack.c.l.b16 %v3311
    %v3631 = vunpack.c.h.b16 %v3311
    %v3632 = vunpack.c.l.b16 %v3312
    %v3633 = vunpack.c.h.b16 %v3312
    %v3634 = vunpack.c.l.b16 %v3313
    %v3635 = vunpack.c.h.b16 %v3313
    %v3636 = vunpack.c.l.b16 %v3314
    %v3637 = vunpack.c.h.b16 %v3314
    %v3638 = vunpack.c.l.b16 %v3315
    %v3639 = vunpack.c.h.b16 %v3315
    %v3640 = vunpack.c.l.b16 %v3316
    %v3641 = vunpack.c.h.b16 %v3316
    %v3642 = vunpack.c.l.b16 %v3317
    %v3643 = vunpack.c.h.b16 %v3317
    %v3644 = vunpack.c.l.b16 %v3318
    %v3645 = vunpack.c.h.b16 %v3318
    %v3646 = vunpack.c.l.b16 %v3319
    %v3647 = vunpack.c.h.b16 %v3319
    %v3648 = vunpack.c.l.b16 %v3320
    %v3649 = vunpack.c.h.b16 %v3320
    %v3650 = vunpack.c.l.b16 %v3321
    %v3651 = vunpack.c.h.b16 %v3321
    %v3652 = vunpack.c.l.b16 %v3322
    %v3653 = vunpack.c.h.b16 %v3322
    %v3654 = vunpack.c.l.b16 %v3323
    %v3655 = vunpack.c.h.b16 %v3323
    %v3656 = vunpack.c.l.b16 %v3324
    %v3657 = vunpack.c.h.b16 %v3324
    %v3658 = vunpack.c.l.b16 %v3325
    %v3659 = vunpack.c.h.b16 %v3325
    %v3660 = vunpack.c.l.b16 %v3326
    %v3661 = vunpack.c.h.b16 %v3326
    %v3662 = vunpack.c.l.b16 %v3327
    %v3663 = vunpack.c.h.b16 %v3327
    %v3664 = vunpack.c.l.b16 %v3328
    %v3665 = vunpack.c.h.b16 %v3328
    %v3666 = vunpack.c.l.b16 %v3329
    %v3667 = vunpack.c.h.b16 %v3329
    %v3668 = vunpack.c.l.b16 %v3330
    %v3669 = vunpack.c.h.b16 %v3330
    %v3670 = vunpack.c.l.b16 %v3331
    %v3671 = vunpack.c.h.b16 %v3331
    %v3672 = vunpack.c.l.b16 %v3332
    %v3673 = vunpack.c.h.b16 %v3332
    %v3674 = vunpack.c.l.b16 %v3333
    %v3675 = vunpack.c.h.b16 %v3333
    %v3676 = vunpack.c.l.b16 %v3334
    %v3677 = vunpack.c.h.b16 %v3334
    %v3678 = vunpack.c.l.b16 %v3335
    %v3679 = vunpack.c.h.b16 %v3335
    %v3680 = vunpack.c.l.b16 %v3336
    %v3681 = vunpack.c.h.b16 %v3336
    %v3682 = vunpack.c.l.b16 %v3337
    %v3683 = vunpack.c.h.b16 %v3337
    %v3684 = vunpack.c.l.b16 %v3338
    %v3685 = vunpack.c.h.b16 %v3338
    %v3686 = vunpack.c.l.b16 %v3339
    %v3687 = vunpack.c.h.b16 %v3339
    %v3688 = vunpack.c.l.b16 %v3340
    %v3689 = vunpack.c.h.b16 %v3340
    %v3690 = vunpack.c.l.b16 %v3341
    %v3691 = vunpack.c.h.b16 %v3341
    %v3692 = vunpack.c.l.b16 %v3342
    %v3693 = vunpack.c.h.b16 %v3342
    %v3694 = vunpack.c.l.b16 %v3343
    %v3695 = vunpack.c.h.b16 %v3343
    %v3696 = vunpack.c.l.b16 %v3344
    %v3697 = vunpack.c.h.b16 %v3344
    %v3698 = vunpack.c.l.b16 %v3345
    %v3699 = vunpack.c.h.b16 %v3345
    %v3700 = vunpack.c.l.b16 %v3346
    %v3701 = vunpack.c.h.b16 %v3346
    %v3702 = vunpack.c.l.b16 %v3347
    %v3703 = vunpack.c.h.b16 %v3347
    %v3704 = vunpack.c.l.b16 %v3348
    %v3705 = vunpack.c.h.b16 %v3348
    %v3706 = vunpack.c.l.b16 %v3349
    %v3707 = vunpack.c.h.b16 %v3349
    %v3708 = vunpack.c.l.b16 %v3350
    %v3709 = vunpack.c.h.b16 %v3350
    %v3710 = vunpack.c.l.b16 %v3351
    %v3711 = vunpack.c.h.b16 %v3351
    %v3712 = vunpack.c.l.b16 %v3352
    %v3713 = vunpack.c.h.b16 %v3352
    %v3714 = vunpack.c.l.b16 %v3353
    %v3715 = vunpack.c.h.b16 %v3353
    %v3716 = vunpack.c.l.b16 %v3354
    %v3717 = vunpack.c.h.b16 %v3354
    %v3718 = vunpack.c.l.b16 %v3355
    %v3719 = vunpack.c.h.b16 %v3355
    %v3720 = vunpack.c.l.b16 %v3356
    %v3721 = vunpack.c.h.b16 %v3356
    %v3722 = vunpack.c.l.b16 %v3357
    %v3723 = vunpack.c.h.b16 %v3357
    %v3724 = vunpack.c.l.b16 %v3358
    %v3725 = vunpack.c.h.b16 %v3358
    %v3726 = vunpack.c.l.b16 %v3359
    %v3727 = vunpack.c.h.b16 %v3359
    %v3728 = vunpack.c.l.b16 %v3360
    %v3729 = vunpack.c.h.b16 %v3360
    %v3730 = vunpack.c.l.b16 %v3361
    %v3731 = vunpack.c.h.b16 %v3361
    %v3732 = vunpack.c.l.b16 %v3362
    %v3733 = vunpack.c.h.b16 %v3362
    %v3734 = vunpack.c.l.b16 %v3363
    %v3735 = vunpack.c.h.b16 %v3363
    %v3736 = vunpack.c.l.b16 %v3364
    %v3737 = vunpack.c.h.b16 %v3364
    %v3738 = vunpack.c.l.b16 %v3365
    %v3739 = vunpack.c.h.b16 %v3365
    %v3740 = vunpack.c.l.b16 %v3366
    %v3741 = vunpack.c.h.b16 %v3366
    %v3742 = vunpack.c.l.b16 %v3367
    %v3743 = vunpack.c.h.b16 %v3367
    %v3744 = vunpack.c.l.b16 %v3368
    %v3745 = vunpack.c.h.b16 %v3368
    %v3746 = vunpack.c.l.b16 %v3369
    %v3747 = vunpack.c.h.b16 %v3369
    %v3748 = vunpack.c.l.b16 %v3370
    %v3749 = vunpack.c.h.b16 %v3370
    %v3750 = vunpack.c.l.b16 %v3371
    %v3751 = vunpack.c.h.b16 %v3371
    %v3752 = vunpack.c.l.b16 %v3372
    %v3753 = vunpack.c.h.b16 %v3372
    %v3754 = vunpack.c.l.b16 %v3373
    %v3755 = vunpack.c.h.b16 %v3373
    %v3756 = vunpack.c.l.b16 %v3374
    %v3757 = vunpack.c.h.b16 %v3374
    %v3758 = vunpack.c.l.b16 %v3375
    %v3759 = vunpack.c.h.b16 %v3375
    %v3760 = vunpack.c.l.b16 %v3376
    %v3761 = vunpack.c.h.b16 %v3376
    %v3762 = vunpack.c.l.b16 %v3377
    %v3763 = vunpack.c.h.b16 %v3377
    %v3764 = vunpack.c.l.b16 %v3378
    %v3765 = vunpack.c.h.b16 %v3378
    %v3766 = vunpack.c.l.b16 %v3379
    %v3767 = vunpack.c.h.b16 %v3379
    %v3768 = vunpack.c.l.b16 %v3380
    %v3769 = vunpack.c.h.b16 %v3380
    %v3770 = vunpack.c.l.b16 %v3381
    %v3771 = vunpack.c.h.b16 %v3381
    %v3772 = vunpack.c.l.b16 %v3382
    %v3773 = vunpack.c.h.b16 %v3382
    %v3774 = vunpack.c.l.b16 %v3383
    %v3775 = vunpack.c.h.b16 %v3383
    %v3776 = vunpack.c.l.b16 %v3384
    %v3777 = vunpack.c.h.b16 %v3384
    %v3778 = vunpack.c.l.b16 %v3385
    %v3779 = vunpack.c.h.b16 %v3385
    %v3780 = vpack.c.b16 %v3528, %v3524
    %v3781 = vpack.c.b16 %v3529, %v3525
    %v3782 = vpack.c.b16 %v3530, %v3526
    %v3783 = vpack.c.b16 %v3531, %v3527
    %v3784 = vpack.c.b16 %v3536, %v3532
    %v3785 = vpack.c.b16 %v3537, %v3533
    %v3786 = vpack.c.b16 %v3538, %v3534
    %v3787 = vpack.c.b16 %v3539, %v3535
    %v3788 = vpack.c.b16 %v3544, %v3540
    %v3789 = vpack.c.b16 %v3545, %v3541
    %v3790 = vpack.c.b16 %v3546, %v3542
    %v3791 = vpack.c.b16 %v3547, %v3543
    %v3792 = vpack.c.b16 %v3552, %v3548
    %v3793 = vpack.c.b16 %v3553, %v3549
    %v3794 = vpack.c.b16 %v3554, %v3550
    %v3795 = vpack.c.b16 %v3555, %v3551
    %v3796 = vpack.c.b16 %v3560, %v3556
    %v3797 = vpack.c.b16 %v3561, %v3557
    %v3798 = vpack.c.b16 %v3562, %v3558
    %v3799 = vpack.c.b16 %v3563, %v3559
    %v3800 = vpack.c.b16 %v3568, %v3564
    %v3801 = vpack.c.b16 %v3569, %v3565
    %v3802 = vpack.c.b16 %v3570, %v3566
    %v3803 = vpack.c.b16 %v3571, %v3567
    %v3804 = vpack.c.b16 %v3576, %v3572
    %v3805 = vpack.c.b16 %v3577, %v3573
    %v3806 = vpack.c.b16 %v3578, %v3574
    %v3807 = vpack.c.b16 %v3579, %v3575
    %v3808 = vpack.c.b16 %v3584, %v3580
    %v3809 = vpack.c.b16 %v3585, %v3581
    %v3810 = vpack.c.b16 %v3586, %v3582
    %v3811 = vpack.c.b16 %v3587, %v3583
    %v3812 = vpack.c.b16 %v3592, %v3588
    %v3813 = vpack.c.b16 %v3593, %v3589
    %v3814 = vpack.c.b16 %v3594, %v3590
    %v3815 = vpack.c.b16 %v3595, %v3591
    %v3816 = vpack.c.b16 %v3600, %v3596
    %v3817 = vpack.c.b16 %v3601, %v3597
    %v3818 = vpack.c.b16 %v3602, %v3598
    %v3819 = vpack.c.b16 %v3603, %v3599
    %v3820 = vpack.c.b16 %v3608, %v3604
    %v3821 = vpack.c.b16 %v3609, %v3605
    %v3822 = vpack.c.b16 %v3610, %v3606
    %v3823 = vpack.c.b16 %v3611, %v3607
    %v3824 = vpack.c.b16 %v3616, %v3612
    %v3825 = vpack.c.b16 %v3617, %v3613
    %v3826 = vpack.c.b16 %v3618, %v3614
    %v3827 = vpack.c.b16 %v3619, %v3615
    %v3828 = vpack.c.b16 %v3624, %v3620
    %v3829 = vpack.c.b16 %v3625, %v3621
    %v3830 = vpack.c.b16 %v3626, %v3622
    %v3831 = vpack.c.b16 %v3627, %v3623
    %v3832 = vpack.c.b16 %v3632, %v3628
    %v3833 = vpack.c.b16 %v3633, %v3629
    %v3834 = vpack.c.b16 %v3634, %v3630
    %v3835 = vpack.c.b16 %v3635, %v3631
    %v3836 = vpack.c.b16 %v3640, %v3636
    %v3837 = vpack.c.b16 %v3641, %v3637
    %v3838 = vpack.c.b16 %v3642, %v3638
    %v3839 = vpack.c.b16 %v3643, %v3639
    %v3840 = vpack.c.b16 %v3648, %v3644
    %v3841 = vpack.c.b16 %v3649, %v3645
    %v3842 = vpack.c.b16 %v3650, %v3646
    %v3843 = vpack.c.b16 %v3651, %v3647
    %v3844 = vpack.c.b16 %v3656, %v3652
    %v3845 = vpack.c.b16 %v3657, %v3653
    %v3846 = vpack.c.b16 %v3658, %v3654
    %v3847 = vpack.c.b16 %v3659, %v3655
    %v3848 = vpack.c.b16 %v3664, %v3660
    %v3849 = vpack.c.b16 %v3665, %v3661
    %v3850 = vpack.c.b16 %v3666, %v3662
    %v3851 = vpack.c.b16 %v3667, %v3663
    %v3852 = vpack.c.b16 %v3672, %v3668
    %v3853 = vpack.c.b16 %v3673, %v3669
    %v3854 = vpack.c.b16 %v3674, %v3670
    %v3855 = vpack.c.b16 %v3675, %v3671
    %v3856 = vpack.c.b16 %v3680, %v3676
    %v3857 = vpack.c.b16 %v3681, %v3677
    %v3858 = vpack.c.b16 %v3682, %v3678
    %v3859 = vpack.c.b16 %v3683, %v3679
    %v3860 = vpack.c.b16 %v3688, %v3684
    %v3861 = vpack.c.b16 %v3689, %v3685
    %v3862 = vpack.c.b16 %v3690, %v3686
    %v3863 = vpack.c.b16 %v3691, %v3687
    %v3864 = vpack.c.b16 %v3696, %v3692
    %v3865 = vpack.c.b16 %v3697, %v3693
    %v3866 = vpack.c.b16 %v3698, %v3694
    %v3867 = vpack.c.b16 %v3699, %v3695
    %v3868 = vpack.c.b16 %v3704, %v3700
    %v3869 = vpack.c.b16 %v3705, %v3701
    %v3870 = vpack.c.b16 %v3706, %v3702
    %v3871 = vpack.c.b16 %v3707, %v3703
    %v3872 = vpack.c.b16 %v3712, %v3708
    %v3873 = vpack.c.b16 %v3713, %v3709
    %v3874 = vpack.c.b16 %v3714, %v3710
    %v3875 = vpack.c.b16 %v3715, %v3711
    %v3876 = vpack.c.b16 %v3720, %v3716
    %v3877 = vpack.c.b16 %v3721, %v3717
    %v3878 = vpack.c.b16 %v3722, %v3718
    %v3879 = vpack.c.b16 %v3723, %v3719
    %v3880 = vpack.c.b16 %v3728, %v3724
    %v3881 = vpack.c.b16 %v3729, %v3725
    %v3882 = vpack.c.b16 %v3730, %v3726
    %v3883 = vpack.c.b16 %v3731, %v3727
    %v3884 = vpack.c.b16 %v3736, %v3732
    %v3885 = vpack.c.b16 %v3737, %v3733
    %v3886 = vpack.c.b16 %v3738, %v3734
    %v3887 = vpack.c.b16 %v3739, %v3735
    %v3888 = vpack.c.b16 %v3744, %v3740
    %v3889 = vpack.c.b16 %v3745, %v3741
    %v3890 = vpack.c.b16 %v3746, %v3742
    %v3891 = vpack.c.b16 %v3747, %v3743
    %v3892 = vpack.c.b16 %v3752, %v3748
    %v3893 = vpack.c.b16 %v3753, %v3749
    %v3894 = vpack.c.b16 %v3754, %v3750
    %v3895 = vpack.c.b16 %v3755, %v3751
    %v3896 = vpack.c.b16 %v3760, %v3756
    %v3897 = vpack.c.b16 %v3761, %v3757
    %v3898 = vpack.c.b16 %v3762, %v3758
    %v3899 = vpack.c.b16 %v3763, %v3759
    %v3900 = vpack.c.b16 %v3768, %v3764
    %v3901 = vpack.c.b16 %v3769, %v3765
    %v3902 = vpack.c.b16 %v3770, %v3766
    %v3903 = vpack.c.b16 %v3771, %v3767
    %v3904 = vpack.c.b16 %v3776, %v3772
    %v3905 = vpack.c.b16 %v3777, %v3773
    %v3906 = vpack.c.b16 %v3778, %v3774
    %v3907 = vpack.c.b16 %v3779, %v3775
    %4036 = vmatpush.bf16.msra.mxu0 %v3808
    %4037 = vmatpush.bf16.msra.mxu0 %v3804
    %4038 = vmatpush.bf16.msra.mxu0 %v3800
    %4039 = vmatpush.bf16.msra.mxu0 %v3796
    %4040 = vmatpush.bf16.msra.mxu0 %v3792
    %4041 = vmatpush.bf16.msra.mxu0 %v3788
    %4042 = vmatpush.bf16.msra.mxu0 %v3784
    %4043 = vmatpush.bf16.msra.mxu0 %v3780
    %4044 = vmatmul.bf16.gmra.mxu0 %v3254
    %v4045 = vpop.f32.mrf.mxu0
    %v4046 = vadd.f32 %v3388, %v4045
    %v4047 = vpop.f32.mrf.mxu0
    %4048 = vdwg.mxu0
    %4049 = vmatpush.bf16.msra.mxu0 %v3840
    %4050 = vmatpush.bf16.msra.mxu0 %v3836
    %4051 = vmatpush.bf16.msra.mxu0 %v3832
    %4052 = vmatpush.bf16.msra.mxu0 %v3828
    %4053 = vmatpush.bf16.msra.mxu0 %v3824
    %4054 = vmatpush.bf16.msra.mxu0 %v3820
    %4055 = vmatpush.bf16.msra.mxu0 %v3816
    %4056 = vmatpush.bf16.msra.mxu0 %v3812
    %4057 = vmatmul.bf16.gmra.mxu0 %v3255
    %v4058 = vpop.f32.mrf.mxu0
    %v4059 = vadd.f32 %v4046, %v4058
    %v4060 = vpop.f32.mrf.mxu0
    %4061 = vdwg.mxu0
    %4062 = vmatpush.bf16.msra.mxu0 %v3872
    %4063 = vmatpush.bf16.msra.mxu0 %v3868
    %4064 = vmatpush.bf16.msra.mxu0 %v3864
    %4065 = vmatpush.bf16.msra.mxu0 %v3860
    %4066 = vmatpush.bf16.msra.mxu0 %v3856
    %4067 = vmatpush.bf16.msra.mxu0 %v3852
    %4068 = vmatpush.bf16.msra.mxu0 %v3848
    %4069 = vmatpush.bf16.msra.mxu0 %v3844
    %4070 = vmatmul.bf16.gmra.mxu0 %v3256
    %v4071 = vpop.f32.mrf.mxu0
    %v4072 = vadd.f32 %v4059, %v4071
    %v4073 = vpop.f32.mrf.mxu0
    %4074 = vdwg.mxu0
    %4075 = vmatpush.bf16.msra.mxu0 %v3904
    %4076 = vmatpush.bf16.msra.mxu0 %v3900
    %4077 = vmatpush.bf16.msra.mxu0 %v3896
    %4078 = vmatpush.bf16.msra.mxu0 %v3892
    %4079 = vmatpush.bf16.msra.mxu0 %v3888
    %4080 = vmatpush.bf16.msra.mxu0 %v3884
    %4081 = vmatpush.bf16.msra.mxu0 %v3880
    %4082 = vmatpush.bf16.msra.mxu0 %v3876
    %4083 = vmatmul.bf16.gmra.mxu0 %v3257
    %v4084 = vpop.f32.mrf.mxu0
    %v4085 = vadd.f32 %v4072, %v4084
    %v4086 = vpop.f32.mrf.mxu0
    %4087 = vdwg.mxu0
    %4088 = vmatpush.bf16.msra.mxu0 %v3809
    %4089 = vmatpush.bf16.msra.mxu0 %v3805
    %4090 = vmatpush.bf16.msra.mxu0 %v3801
    %4091 = vmatpush.bf16.msra.mxu0 %v3797
    %4092 = vmatpush.bf16.msra.mxu0 %v3793
    %4093 = vmatpush.bf16.msra.mxu0 %v3789
    %4094 = vmatpush.bf16.msra.mxu0 %v3785
    %4095 = vmatpush.bf16.msra.mxu0 %v3781
    %4096 = vmatmul.bf16.gmra.mxu0 %v3254
    %v4097 = vpop.f32.mrf.mxu0
    %v4098 = vadd.f32 %v3389, %v4097
    %v4099 = vpop.f32.mrf.mxu0
    %4100 = vdwg.mxu0
    %4101 = vmatpush.bf16.msra.mxu0 %v3841
    %4102 = vmatpush.bf16.msra.mxu0 %v3837
    %4103 = vmatpush.bf16.msra.mxu0 %v3833
    %4104 = vmatpush.bf16.msra.mxu0 %v3829
    %4105 = vmatpush.bf16.msra.mxu0 %v3825
    %4106 = vmatpush.bf16.msra.mxu0 %v3821
    %4107 = vmatpush.bf16.msra.mxu0 %v3817
    %4108 = vmatpush.bf16.msra.mxu0 %v3813
    %4109 = vmatmul.bf16.gmra.mxu0 %v3255
    %v4110 = vpop.f32.mrf.mxu0
    %v4111 = vadd.f32 %v4098, %v4110
    %v4112 = vpop.f32.mrf.mxu0
    %4113 = vdwg.mxu0
    %4114 = vmatpush.bf16.msra.mxu0 %v3873
    %4115 = vmatpush.bf16.msra.mxu0 %v3869
    %4116 = vmatpush.bf16.msra.mxu0 %v3865
    %4117 = vmatpush.bf16.msra.mxu0 %v3861
    %4118 = vmatpush.bf16.msra.mxu0 %v3857
    %4119 = vmatpush.bf16.msra.mxu0 %v3853
    %4120 = vmatpush.bf16.msra.mxu0 %v3849
    %4121 = vmatpush.bf16.msra.mxu0 %v3845
    %4122 = vmatmul.bf16.gmra.mxu0 %v3256
    %v4123 = vpop.f32.mrf.mxu0
    %v4124 = vadd.f32 %v4111, %v4123
    %v4125 = vpop.f32.mrf.mxu0
    %4126 = vdwg.mxu0
    %4127 = vmatpush.bf16.msra.mxu0 %v3905
    %4128 = vmatpush.bf16.msra.mxu0 %v3901
    %4129 = vmatpush.bf16.msra.mxu0 %v3897
    %4130 = vmatpush.bf16.msra.mxu0 %v3893
    %4131 = vmatpush.bf16.msra.mxu0 %v3889
    %4132 = vmatpush.bf16.msra.mxu0 %v3885
    %4133 = vmatpush.bf16.msra.mxu0 %v3881
    %4134 = vmatpush.bf16.msra.mxu0 %v3877
    %4135 = vmatmul.bf16.gmra.mxu0 %v3257
    %v4136 = vpop.f32.mrf.mxu0
    %v4137 = vadd.f32 %v4124, %v4136
    %v4138 = vpop.f32.mrf.mxu0
    %4139 = vdwg.mxu0
    %4140 = vmatpush.bf16.msra.mxu0 %v3810
    %4141 = vmatpush.bf16.msra.mxu0 %v3806
    %4142 = vmatpush.bf16.msra.mxu0 %v3802
    %4143 = vmatpush.bf16.msra.mxu0 %v3798
    %4144 = vmatpush.bf16.msra.mxu0 %v3794
    %4145 = vmatpush.bf16.msra.mxu0 %v3790
    %4146 = vmatpush.bf16.msra.mxu0 %v3786
    %4147 = vmatpush.bf16.msra.mxu0 %v3782
    %4148 = vmatmul.bf16.gmra.mxu0 %v3254
    %v4149 = vpop.f32.mrf.mxu0
    %v4150 = vadd.f32 %v3390, %v4149
    %v4151 = vpop.f32.mrf.mxu0
    %4152 = vdwg.mxu0
    %4153 = vmatpush.bf16.msra.mxu0 %v3842
    %4154 = vmatpush.bf16.msra.mxu0 %v3838
    %4155 = vmatpush.bf16.msra.mxu0 %v3834
    %4156 = vmatpush.bf16.msra.mxu0 %v3830
    %4157 = vmatpush.bf16.msra.mxu0 %v3826
    %4158 = vmatpush.bf16.msra.mxu0 %v3822
    %4159 = vmatpush.bf16.msra.mxu0 %v3818
    %4160 = vmatpush.bf16.msra.mxu0 %v3814
    %4161 = vmatmul.bf16.gmra.mxu0 %v3255
    %v4162 = vpop.f32.mrf.mxu0
    %v4163 = vadd.f32 %v4150, %v4162
    %v4164 = vpop.f32.mrf.mxu0
    %4165 = vdwg.mxu0
    %4166 = vmatpush.bf16.msra.mxu0 %v3874
    %4167 = vmatpush.bf16.msra.mxu0 %v3870
    %4168 = vmatpush.bf16.msra.mxu0 %v3866
    %4169 = vmatpush.bf16.msra.mxu0 %v3862
    %4170 = vmatpush.bf16.msra.mxu0 %v3858
    %4171 = vmatpush.bf16.msra.mxu0 %v3854
    %4172 = vmatpush.bf16.msra.mxu0 %v3850
    %4173 = vmatpush.bf16.msra.mxu0 %v3846
    %4174 = vmatmul.bf16.gmra.mxu0 %v3256
    %v4175 = vpop.f32.mrf.mxu0
    %v4176 = vadd.f32 %v4163, %v4175
    %v4177 = vpop.f32.mrf.mxu0
    %4178 = vdwg.mxu0
    %4179 = vmatpush.bf16.msra.mxu0 %v3906
    %4180 = vmatpush.bf16.msra.mxu0 %v3902
    %4181 = vmatpush.bf16.msra.mxu0 %v3898
    %4182 = vmatpush.bf16.msra.mxu0 %v3894
    %4183 = vmatpush.bf16.msra.mxu0 %v3890
    %4184 = vmatpush.bf16.msra.mxu0 %v3886
    %4185 = vmatpush.bf16.msra.mxu0 %v3882
    %4186 = vmatpush.bf16.msra.mxu0 %v3878
    %4187 = vmatmul.bf16.gmra.mxu0 %v3257
    %v4188 = vpop.f32.mrf.mxu0
    %v4189 = vadd.f32 %v4176, %v4188
    %v4190 = vpop.f32.mrf.mxu0
    %4191 = vdwg.mxu0
    %4192 = vmatpush.bf16.msra.mxu0 %v3811
    %4193 = vmatpush.bf16.msra.mxu0 %v3807
    %4194 = vmatpush.bf16.msra.mxu0 %v3803
    %4195 = vmatpush.bf16.msra.mxu0 %v3799
    %4196 = vmatpush.bf16.msra.mxu0 %v3795
    %4197 = vmatpush.bf16.msra.mxu0 %v3791
    %4198 = vmatpush.bf16.msra.mxu0 %v3787
    %4199 = vmatpush.bf16.msra.mxu0 %v3783
    %4200 = vmatmul.bf16.gmra.mxu0 %v3254
    %v4201 = vpop.f32.mrf.mxu0
    %v4202 = vadd.f32 %v3391, %v4201
    %v4203 = vpop.f32.mrf.mxu0
    %4204 = vdwg.mxu0
    %4205 = vmatpush.bf16.msra.mxu0 %v3843
    %4206 = vmatpush.bf16.msra.mxu0 %v3839
    %4207 = vmatpush.bf16.msra.mxu0 %v3835
    %4208 = vmatpush.bf16.msra.mxu0 %v3831
    %4209 = vmatpush.bf16.msra.mxu0 %v3827
    %4210 = vmatpush.bf16.msra.mxu0 %v3823
    %4211 = vmatpush.bf16.msra.mxu0 %v3819
    %4212 = vmatpush.bf16.msra.mxu0 %v3815
    %4213 = vmatmul.bf16.gmra.mxu0 %v3255
    %v4214 = vpop.f32.mrf.mxu0
    %v4215 = vadd.f32 %v4202, %v4214
    %v4216 = vpop.f32.mrf.mxu0
    %4217 = vdwg.mxu0
    %4218 = vmatpush.bf16.msra.mxu0 %v3875
    %4219 = vmatpush.bf16.msra.mxu0 %v3871
    %4220 = vmatpush.bf16.msra.mxu0 %v3867
    %4221 = vmatpush.bf16.msra.mxu0 %v3863
    %4222 = vmatpush.bf16.msra.mxu0 %v3859
    %4223 = vmatpush.bf16.msra.mxu0 %v3855
    %4224 = vmatpush.bf16.msra.mxu0 %v3851
    %4225 = vmatpush.bf16.msra.mxu0 %v3847
    %4226 = vmatmul.bf16.gmra.mxu0 %v3256
    %v4227 = vpop.f32.mrf.mxu0
    %v4228 = vadd.f32 %v4215, %v4227
    %v4229 = vpop.f32.mrf.mxu0
    %4230 = vdwg.mxu0
    %4231 = vmatpush.bf16.msra.mxu0 %v3907
    %4232 = vmatpush.bf16.msra.mxu0 %v3903
    %4233 = vmatpush.bf16.msra.mxu0 %v3899
    %4234 = vmatpush.bf16.msra.mxu0 %v3895
    %4235 = vmatpush.bf16.msra.mxu0 %v3891
    %4236 = vmatpush.bf16.msra.mxu0 %v3887
    %4237 = vmatpush.bf16.msra.mxu0 %v3883
    %4238 = vmatpush.bf16.msra.mxu0 %v3879
    %4239 = vmatmul.bf16.gmra.mxu0 %v3257
    %v4240 = vpop.f32.mrf.mxu0
    %v4241 = vadd.f32 %v4228, %v4240
    %v4242 = vpop.f32.mrf.mxu0
    %4243 = vdwg.mxu0
    %v4244 = vmax.f32 %v4085, 0.0
    %v4245 = vmax.f32 %v4137, 0.0
    %v4246 = vmax.f32 %v4189, 0.0
    %v4247 = vmax.f32 %v4241, 0.0
    %v4248 = vpack.c.bf16 %v4244, %v4244
    %v4249 = vpack.c.bf16 %v4245, %v4245
    %v4250 = vpack.c.bf16 %v4246, %v4246
    %v4251 = vpack.c.bf16 %v4247, %v4247
    %s4252 = scalar_lea.vmem [#allocation11], 1024
    %v4253 = vld [vmem:[%s4252] sm:$0xff]
    %v4254 = vld [vmem:[%s4252 + $0x8] sm:$0xff]
    %v4255 = vld [vmem:[%s4252 + $0x10] sm:$0xff]
    %v4256 = vld [vmem:[%s4252 + $0x18] sm:$0xff]
    %v4257 = vld [vmem:[%s4252 + $0x20] sm:$0xff]
    %v4258 = vld [vmem:[%s4252 + $0x28] sm:$0xff]
    %v4259 = vld [vmem:[%s4252 + $0x30] sm:$0xff]
    %v4260 = vld [vmem:[%s4252 + $0x38] sm:$0xff]
    %v4261 = vld [vmem:[%s4252 + $0x40] sm:$0xff]
    %v4262 = vld [vmem:[%s4252 + $0x48] sm:$0xff]
    %v4263 = vld [vmem:[%s4252 + $0x50] sm:$0xff]
    %v4264 = vld [vmem:[%s4252 + $0x58] sm:$0xff]
    %v4265 = vld [vmem:[%s4252 + $0x60] sm:$0xff]
    %v4266 = vld [vmem:[%s4252 + $0x68] sm:$0xff]
    %v4267 = vld [vmem:[%s4252 + $0x70] sm:$0xff]
    %v4268 = vld [vmem:[%s4252 + $0x78] sm:$0xff]
    %v4269 = vld [vmem:[%s4252 + $0x80] sm:$0xff]
    %v4270 = vld [vmem:[%s4252 + $0x88] sm:$0xff]
    %v4271 = vld [vmem:[%s4252 + $0x90] sm:$0xff]
    %v4272 = vld [vmem:[%s4252 + $0x98] sm:$0xff]
    %v4273 = vld [vmem:[%s4252 + $0xa0] sm:$0xff]
    %v4274 = vld [vmem:[%s4252 + $0xa8] sm:$0xff]
    %v4275 = vld [vmem:[%s4252 + $0xb0] sm:$0xff]
    %v4276 = vld [vmem:[%s4252 + $0xb8] sm:$0xff]
    %v4277 = vld [vmem:[%s4252 + $0xc0] sm:$0xff]
    %v4278 = vld [vmem:[%s4252 + $0xc8] sm:$0xff]
    %v4279 = vld [vmem:[%s4252 + $0xd0] sm:$0xff]
    %v4280 = vld [vmem:[%s4252 + $0xd8] sm:$0xff]
    %v4281 = vld [vmem:[%s4252 + $0xe0] sm:$0xff]
    %v4282 = vld [vmem:[%s4252 + $0xe8] sm:$0xff]
    %v4283 = vld [vmem:[%s4252 + $0xf0] sm:$0xff]
    %v4284 = vld [vmem:[%s4252 + $0xf8] sm:$0xff]
    %v4285 = vld [vmem:[%s4252 + $0x100] sm:$0xff]
    %v4286 = vld [vmem:[%s4252 + $0x108] sm:$0xff]
    %v4287 = vld [vmem:[%s4252 + $0x110] sm:$0xff]
    %v4288 = vld [vmem:[%s4252 + $0x118] sm:$0xff]
    %v4289 = vld [vmem:[%s4252 + $0x120] sm:$0xff]
    %v4290 = vld [vmem:[%s4252 + $0x128] sm:$0xff]
    %v4291 = vld [vmem:[%s4252 + $0x130] sm:$0xff]
    %v4292 = vld [vmem:[%s4252 + $0x138] sm:$0xff]
    %v4293 = vld [vmem:[%s4252 + $0x140] sm:$0xff]
    %v4294 = vld [vmem:[%s4252 + $0x148] sm:$0xff]
    %v4295 = vld [vmem:[%s4252 + $0x150] sm:$0xff]
    %v4296 = vld [vmem:[%s4252 + $0x158] sm:$0xff]
    %v4297 = vld [vmem:[%s4252 + $0x160] sm:$0xff]
    %v4298 = vld [vmem:[%s4252 + $0x168] sm:$0xff]
    %v4299 = vld [vmem:[%s4252 + $0x170] sm:$0xff]
    %v4300 = vld [vmem:[%s4252 + $0x178] sm:$0xff]
    %v4301 = vld [vmem:[%s4252 + $0x180] sm:$0xff]
    %v4302 = vld [vmem:[%s4252 + $0x188] sm:$0xff]
    %v4303 = vld [vmem:[%s4252 + $0x190] sm:$0xff]
    %v4304 = vld [vmem:[%s4252 + $0x198] sm:$0xff]
    %v4305 = vld [vmem:[%s4252 + $0x1a0] sm:$0xff]
    %v4306 = vld [vmem:[%s4252 + $0x1a8] sm:$0xff]
    %v4307 = vld [vmem:[%s4252 + $0x1b0] sm:$0xff]
    %v4308 = vld [vmem:[%s4252 + $0x1b8] sm:$0xff]
    %v4309 = vld [vmem:[%s4252 + $0x1c0] sm:$0xff]
    %v4310 = vld [vmem:[%s4252 + $0x1c8] sm:$0xff]
    %v4311 = vld [vmem:[%s4252 + $0x1d0] sm:$0xff]
    %v4312 = vld [vmem:[%s4252 + $0x1d8] sm:$0xff]
    %v4313 = vld [vmem:[%s4252 + $0x1e0] sm:$0xff]
    %v4314 = vld [vmem:[%s4252 + $0x1e8] sm:$0xff]
    %v4315 = vld [vmem:[%s4252 + $0x1f0] sm:$0xff]
    %v4316 = vld [vmem:[%s4252 + $0x1f8] sm:$0xff]
    %v4317 = vld [vmem:[%s4252 + $0x200] sm:$0xff]
    %v4318 = vld [vmem:[%s4252 + $0x208] sm:$0xff]
    %v4319 = vld [vmem:[%s4252 + $0x210] sm:$0xff]
    %v4320 = vld [vmem:[%s4252 + $0x218] sm:$0xff]
    %v4321 = vld [vmem:[%s4252 + $0x220] sm:$0xff]
    %v4322 = vld [vmem:[%s4252 + $0x228] sm:$0xff]
    %v4323 = vld [vmem:[%s4252 + $0x230] sm:$0xff]
    %v4324 = vld [vmem:[%s4252 + $0x238] sm:$0xff]
    %v4325 = vld [vmem:[%s4252 + $0x240] sm:$0xff]
    %v4326 = vld [vmem:[%s4252 + $0x248] sm:$0xff]
    %v4327 = vld [vmem:[%s4252 + $0x250] sm:$0xff]
    %v4328 = vld [vmem:[%s4252 + $0x258] sm:$0xff]
    %v4329 = vld [vmem:[%s4252 + $0x260] sm:$0xff]
    %v4330 = vld [vmem:[%s4252 + $0x268] sm:$0xff]
    %v4331 = vld [vmem:[%s4252 + $0x270] sm:$0xff]
    %v4332 = vld [vmem:[%s4252 + $0x278] sm:$0xff]
    %v4333 = vld [vmem:[%s4252 + $0x280] sm:$0xff]
    %v4334 = vld [vmem:[%s4252 + $0x288] sm:$0xff]
    %v4335 = vld [vmem:[%s4252 + $0x290] sm:$0xff]
    %v4336 = vld [vmem:[%s4252 + $0x298] sm:$0xff]
    %v4337 = vld [vmem:[%s4252 + $0x2a0] sm:$0xff]
    %v4338 = vld [vmem:[%s4252 + $0x2a8] sm:$0xff]
    %v4339 = vld [vmem:[%s4252 + $0x2b0] sm:$0xff]
    %v4340 = vld [vmem:[%s4252 + $0x2b8] sm:$0xff]
    %v4341 = vld [vmem:[%s4252 + $0x2c0] sm:$0xff]
    %v4342 = vld [vmem:[%s4252 + $0x2c8] sm:$0xff]
    %v4343 = vld [vmem:[%s4252 + $0x2d0] sm:$0xff]
    %v4344 = vld [vmem:[%s4252 + $0x2d8] sm:$0xff]
    %v4345 = vld [vmem:[%s4252 + $0x2e0] sm:$0xff]
    %v4346 = vld [vmem:[%s4252 + $0x2e8] sm:$0xff]
    %v4347 = vld [vmem:[%s4252 + $0x2f0] sm:$0xff]
    %v4348 = vld [vmem:[%s4252 + $0x2f8] sm:$0xff]
    %v4349 = vld [vmem:[%s4252 + $0x300] sm:$0xff]
    %v4350 = vld [vmem:[%s4252 + $0x308] sm:$0xff]
    %v4351 = vld [vmem:[%s4252 + $0x310] sm:$0xff]
    %v4352 = vld [vmem:[%s4252 + $0x318] sm:$0xff]
    %v4353 = vld [vmem:[%s4252 + $0x320] sm:$0xff]
    %v4354 = vld [vmem:[%s4252 + $0x328] sm:$0xff]
    %v4355 = vld [vmem:[%s4252 + $0x330] sm:$0xff]
    %v4356 = vld [vmem:[%s4252 + $0x338] sm:$0xff]
    %v4357 = vld [vmem:[%s4252 + $0x340] sm:$0xff]
    %v4358 = vld [vmem:[%s4252 + $0x348] sm:$0xff]
    %v4359 = vld [vmem:[%s4252 + $0x350] sm:$0xff]
    %v4360 = vld [vmem:[%s4252 + $0x358] sm:$0xff]
    %v4361 = vld [vmem:[%s4252 + $0x360] sm:$0xff]
    %v4362 = vld [vmem:[%s4252 + $0x368] sm:$0xff]
    %v4363 = vld [vmem:[%s4252 + $0x370] sm:$0xff]
    %v4364 = vld [vmem:[%s4252 + $0x378] sm:$0xff]
    %v4365 = vld [vmem:[%s4252 + $0x380] sm:$0xff]
    %v4366 = vld [vmem:[%s4252 + $0x388] sm:$0xff]
    %v4367 = vld [vmem:[%s4252 + $0x390] sm:$0xff]
    %v4368 = vld [vmem:[%s4252 + $0x398] sm:$0xff]
    %v4369 = vld [vmem:[%s4252 + $0x3a0] sm:$0xff]
    %v4370 = vld [vmem:[%s4252 + $0x3a8] sm:$0xff]
    %v4371 = vld [vmem:[%s4252 + $0x3b0] sm:$0xff]
    %v4372 = vld [vmem:[%s4252 + $0x3b8] sm:$0xff]
    %v4373 = vld [vmem:[%s4252 + $0x3c0] sm:$0xff]
    %v4374 = vld [vmem:[%s4252 + $0x3c8] sm:$0xff]
    %v4375 = vld [vmem:[%s4252 + $0x3d0] sm:$0xff]
    %v4376 = vld [vmem:[%s4252 + $0x3d8] sm:$0xff]
    %v4377 = vld [vmem:[%s4252 + $0x3e0] sm:$0xff]
    %v4378 = vld [vmem:[%s4252 + $0x3e8] sm:$0xff]
    %v4379 = vld [vmem:[%s4252 + $0x3f0] sm:$0xff]
    %v4380 = vld [vmem:[%s4252 + $0x3f8] sm:$0xff]
    %s4381 = scalar_lea.vmem [#allocation13], 4
    %v4382 = vld [vmem:[%s4381] sm:$0xf]
    %v4384 = vperm.slane %v4382, 0
    %v4385 = vperm.slane %v4382, 1
    %v4386 = vperm.slane %v4382, 2
    %v4387 = vperm.slane %v4382, 3
    %v4520 = vunpack.c.l.b16 %v4253
    %v4521 = vunpack.c.h.b16 %v4253
    %v4522 = vunpack.c.l.b16 %v4254
    %v4523 = vunpack.c.h.b16 %v4254
    %v4524 = vunpack.c.l.b16 %v4255
    %v4525 = vunpack.c.h.b16 %v4255
    %v4526 = vunpack.c.l.b16 %v4256
    %v4527 = vunpack.c.h.b16 %v4256
    %v4528 = vunpack.c.l.b16 %v4257
    %v4529 = vunpack.c.h.b16 %v4257
    %v4530 = vunpack.c.l.b16 %v4258
    %v4531 = vunpack.c.h.b16 %v4258
    %v4532 = vunpack.c.l.b16 %v4259
    %v4533 = vunpack.c.h.b16 %v4259
    %v4534 = vunpack.c.l.b16 %v4260
    %v4535 = vunpack.c.h.b16 %v4260
    %v4536 = vunpack.c.l.b16 %v4261
    %v4537 = vunpack.c.h.b16 %v4261
    %v4538 = vunpack.c.l.b16 %v4262
    %v4539 = vunpack.c.h.b16 %v4262
    %v4540 = vunpack.c.l.b16 %v4263
    %v4541 = vunpack.c.h.b16 %v4263
    %v4542 = vunpack.c.l.b16 %v4264
    %v4543 = vunpack.c.h.b16 %v4264
    %v4544 = vunpack.c.l.b16 %v4265
    %v4545 = vunpack.c.h.b16 %v4265
    %v4546 = vunpack.c.l.b16 %v4266
    %v4547 = vunpack.c.h.b16 %v4266
    %v4548 = vunpack.c.l.b16 %v4267
    %v4549 = vunpack.c.h.b16 %v4267
    %v4550 = vunpack.c.l.b16 %v4268
    %v4551 = vunpack.c.h.b16 %v4268
    %v4552 = vunpack.c.l.b16 %v4269
    %v4553 = vunpack.c.h.b16 %v4269
    %v4554 = vunpack.c.l.b16 %v4270
    %v4555 = vunpack.c.h.b16 %v4270
    %v4556 = vunpack.c.l.b16 %v4271
    %v4557 = vunpack.c.h.b16 %v4271
    %v4558 = vunpack.c.l.b16 %v4272
    %v4559 = vunpack.c.h.b16 %v4272
    %v4560 = vunpack.c.l.b16 %v4273
    %v4561 = vunpack.c.h.b16 %v4273
    %v4562 = vunpack.c.l.b16 %v4274
    %v4563 = vunpack.c.h.b16 %v4274
    %v4564 = vunpack.c.l.b16 %v4275
    %v4565 = vunpack.c.h.b16 %v4275
    %v4566 = vunpack.c.l.b16 %v4276
    %v4567 = vunpack.c.h.b16 %v4276
    %v4568 = vunpack.c.l.b16 %v4277
    %v4569 = vunpack.c.h.b16 %v4277
    %v4570 = vunpack.c.l.b16 %v4278
    %v4571 = vunpack.c.h.b16 %v4278
    %v4572 = vunpack.c.l.b16 %v4279
    %v4573 = vunpack.c.h.b16 %v4279
    %v4574 = vunpack.c.l.b16 %v4280
    %v4575 = vunpack.c.h.b16 %v4280
    %v4576 = vunpack.c.l.b16 %v4281
    %v4577 = vunpack.c.h.b16 %v4281
    %v4578 = vunpack.c.l.b16 %v4282
    %v4579 = vunpack.c.h.b16 %v4282
    %v4580 = vunpack.c.l.b16 %v4283
    %v4581 = vunpack.c.h.b16 %v4283
    %v4582 = vunpack.c.l.b16 %v4284
    %v4583 = vunpack.c.h.b16 %v4284
    %v4584 = vunpack.c.l.b16 %v4285
    %v4585 = vunpack.c.h.b16 %v4285
    %v4586 = vunpack.c.l.b16 %v4286
    %v4587 = vunpack.c.h.b16 %v4286
    %v4588 = vunpack.c.l.b16 %v4287
    %v4589 = vunpack.c.h.b16 %v4287
    %v4590 = vunpack.c.l.b16 %v4288
    %v4591 = vunpack.c.h.b16 %v4288
    %v4592 = vunpack.c.l.b16 %v4289
    %v4593 = vunpack.c.h.b16 %v4289
    %v4594 = vunpack.c.l.b16 %v4290
    %v4595 = vunpack.c.h.b16 %v4290
    %v4596 = vunpack.c.l.b16 %v4291
    %v4597 = vunpack.c.h.b16 %v4291
    %v4598 = vunpack.c.l.b16 %v4292
    %v4599 = vunpack.c.h.b16 %v4292
    %v4600 = vunpack.c.l.b16 %v4293
    %v4601 = vunpack.c.h.b16 %v4293
    %v4602 = vunpack.c.l.b16 %v4294
    %v4603 = vunpack.c.h.b16 %v4294
    %v4604 = vunpack.c.l.b16 %v4295
    %v4605 = vunpack.c.h.b16 %v4295
    %v4606 = vunpack.c.l.b16 %v4296
    %v4607 = vunpack.c.h.b16 %v4296
    %v4608 = vunpack.c.l.b16 %v4297
    %v4609 = vunpack.c.h.b16 %v4297
    %v4610 = vunpack.c.l.b16 %v4298
    %v4611 = vunpack.c.h.b16 %v4298
    %v4612 = vunpack.c.l.b16 %v4299
    %v4613 = vunpack.c.h.b16 %v4299
    %v4614 = vunpack.c.l.b16 %v4300
    %v4615 = vunpack.c.h.b16 %v4300
    %v4616 = vunpack.c.l.b16 %v4301
    %v4617 = vunpack.c.h.b16 %v4301
    %v4618 = vunpack.c.l.b16 %v4302
    %v4619 = vunpack.c.h.b16 %v4302
    %v4620 = vunpack.c.l.b16 %v4303
    %v4621 = vunpack.c.h.b16 %v4303
    %v4622 = vunpack.c.l.b16 %v4304
    %v4623 = vunpack.c.h.b16 %v4304
    %v4624 = vunpack.c.l.b16 %v4305
    %v4625 = vunpack.c.h.b16 %v4305
    %v4626 = vunpack.c.l.b16 %v4306
    %v4627 = vunpack.c.h.b16 %v4306
    %v4628 = vunpack.c.l.b16 %v4307
    %v4629 = vunpack.c.h.b16 %v4307
    %v4630 = vunpack.c.l.b16 %v4308
    %v4631 = vunpack.c.h.b16 %v4308
    %v4632 = vunpack.c.l.b16 %v4309
    %v4633 = vunpack.c.h.b16 %v4309
    %v4634 = vunpack.c.l.b16 %v4310
    %v4635 = vunpack.c.h.b16 %v4310
    %v4636 = vunpack.c.l.b16 %v4311
    %v4637 = vunpack.c.h.b16 %v4311
    %v4638 = vunpack.c.l.b16 %v4312
    %v4639 = vunpack.c.h.b16 %v4312
    %v4640 = vunpack.c.l.b16 %v4313
    %v4641 = vunpack.c.h.b16 %v4313
    %v4642 = vunpack.c.l.b16 %v4314
    %v4643 = vunpack.c.h.b16 %v4314
    %v4644 = vunpack.c.l.b16 %v4315
    %v4645 = vunpack.c.h.b16 %v4315
    %v4646 = vunpack.c.l.b16 %v4316
    %v4647 = vunpack.c.h.b16 %v4316
    %v4648 = vunpack.c.l.b16 %v4317
    %v4649 = vunpack.c.h.b16 %v4317
    %v4650 = vunpack.c.l.b16 %v4318
    %v4651 = vunpack.c.h.b16 %v4318
    %v4652 = vunpack.c.l.b16 %v4319
    %v4653 = vunpack.c.h.b16 %v4319
    %v4654 = vunpack.c.l.b16 %v4320
    %v4655 = vunpack.c.h.b16 %v4320
    %v4656 = vunpack.c.l.b16 %v4321
    %v4657 = vunpack.c.h.b16 %v4321
    %v4658 = vunpack.c.l.b16 %v4322
    %v4659 = vunpack.c.h.b16 %v4322
    %v4660 = vunpack.c.l.b16 %v4323
    %v4661 = vunpack.c.h.b16 %v4323
    %v4662 = vunpack.c.l.b16 %v4324
    %v4663 = vunpack.c.h.b16 %v4324
    %v4664 = vunpack.c.l.b16 %v4325
    %v4665 = vunpack.c.h.b16 %v4325
    %v4666 = vunpack.c.l.b16 %v4326
    %v4667 = vunpack.c.h.b16 %v4326
    %v4668 = vunpack.c.l.b16 %v4327
    %v4669 = vunpack.c.h.b16 %v4327
    %v4670 = vunpack.c.l.b16 %v4328
    %v4671 = vunpack.c.h.b16 %v4328
    %v4672 = vunpack.c.l.b16 %v4329
    %v4673 = vunpack.c.h.b16 %v4329
    %v4674 = vunpack.c.l.b16 %v4330
    %v4675 = vunpack.c.h.b16 %v4330
    %v4676 = vunpack.c.l.b16 %v4331
    %v4677 = vunpack.c.h.b16 %v4331
    %v4678 = vunpack.c.l.b16 %v4332
    %v4679 = vunpack.c.h.b16 %v4332
    %v4680 = vunpack.c.l.b16 %v4333
    %v4681 = vunpack.c.h.b16 %v4333
    %v4682 = vunpack.c.l.b16 %v4334
    %v4683 = vunpack.c.h.b16 %v4334
    %v4684 = vunpack.c.l.b16 %v4335
    %v4685 = vunpack.c.h.b16 %v4335
    %v4686 = vunpack.c.l.b16 %v4336
    %v4687 = vunpack.c.h.b16 %v4336
    %v4688 = vunpack.c.l.b16 %v4337
    %v4689 = vunpack.c.h.b16 %v4337
    %v4690 = vunpack.c.l.b16 %v4338
    %v4691 = vunpack.c.h.b16 %v4338
    %v4692 = vunpack.c.l.b16 %v4339
    %v4693 = vunpack.c.h.b16 %v4339
    %v4694 = vunpack.c.l.b16 %v4340
    %v4695 = vunpack.c.h.b16 %v4340
    %v4696 = vunpack.c.l.b16 %v4341
    %v4697 = vunpack.c.h.b16 %v4341
    %v4698 = vunpack.c.l.b16 %v4342
    %v4699 = vunpack.c.h.b16 %v4342
    %v4700 = vunpack.c.l.b16 %v4343
    %v4701 = vunpack.c.h.b16 %v4343
    %v4702 = vunpack.c.l.b16 %v4344
    %v4703 = vunpack.c.h.b16 %v4344
    %v4704 = vunpack.c.l.b16 %v4345
    %v4705 = vunpack.c.h.b16 %v4345
    %v4706 = vunpack.c.l.b16 %v4346
    %v4707 = vunpack.c.h.b16 %v4346
    %v4708 = vunpack.c.l.b16 %v4347
    %v4709 = vunpack.c.h.b16 %v4347
    %v4710 = vunpack.c.l.b16 %v4348
    %v4711 = vunpack.c.h.b16 %v4348
    %v4712 = vunpack.c.l.b16 %v4349
    %v4713 = vunpack.c.h.b16 %v4349
    %v4714 = vunpack.c.l.b16 %v4350
    %v4715 = vunpack.c.h.b16 %v4350
    %v4716 = vunpack.c.l.b16 %v4351
    %v4717 = vunpack.c.h.b16 %v4351
    %v4718 = vunpack.c.l.b16 %v4352
    %v4719 = vunpack.c.h.b16 %v4352
    %v4720 = vunpack.c.l.b16 %v4353
    %v4721 = vunpack.c.h.b16 %v4353
    %v4722 = vunpack.c.l.b16 %v4354
    %v4723 = vunpack.c.h.b16 %v4354
    %v4724 = vunpack.c.l.b16 %v4355
    %v4725 = vunpack.c.h.b16 %v4355
    %v4726 = vunpack.c.l.b16 %v4356
    %v4727 = vunpack.c.h.b16 %v4356
    %v4728 = vunpack.c.l.b16 %v4357
    %v4729 = vunpack.c.h.b16 %v4357
    %v4730 = vunpack.c.l.b16 %v4358
    %v4731 = vunpack.c.h.b16 %v4358
    %v4732 = vunpack.c.l.b16 %v4359
    %v4733 = vunpack.c.h.b16 %v4359
    %v4734 = vunpack.c.l.b16 %v4360
    %v4735 = vunpack.c.h.b16 %v4360
    %v4736 = vunpack.c.l.b16 %v4361
    %v4737 = vunpack.c.h.b16 %v4361
    %v4738 = vunpack.c.l.b16 %v4362
    %v4739 = vunpack.c.h.b16 %v4362
    %v4740 = vunpack.c.l.b16 %v4363
    %v4741 = vunpack.c.h.b16 %v4363
    %v4742 = vunpack.c.l.b16 %v4364
    %v4743 = vunpack.c.h.b16 %v4364
    %v4744 = vunpack.c.l.b16 %v4365
    %v4745 = vunpack.c.h.b16 %v4365
    %v4746 = vunpack.c.l.b16 %v4366
    %v4747 = vunpack.c.h.b16 %v4366
    %v4748 = vunpack.c.l.b16 %v4367
    %v4749 = vunpack.c.h.b16 %v4367
    %v4750 = vunpack.c.l.b16 %v4368
    %v4751 = vunpack.c.h.b16 %v4368
    %v4752 = vunpack.c.l.b16 %v4369
    %v4753 = vunpack.c.h.b16 %v4369
    %v4754 = vunpack.c.l.b16 %v4370
    %v4755 = vunpack.c.h.b16 %v4370
    %v4756 = vunpack.c.l.b16 %v4371
    %v4757 = vunpack.c.h.b16 %v4371
    %v4758 = vunpack.c.l.b16 %v4372
    %v4759 = vunpack.c.h.b16 %v4372
    %v4760 = vunpack.c.l.b16 %v4373
    %v4761 = vunpack.c.h.b16 %v4373
    %v4762 = vunpack.c.l.b16 %v4374
    %v4763 = vunpack.c.h.b16 %v4374
    %v4764 = vunpack.c.l.b16 %v4375
    %v4765 = vunpack.c.h.b16 %v4375
    %v4766 = vunpack.c.l.b16 %v4376
    %v4767 = vunpack.c.h.b16 %v4376
    %v4768 = vunpack.c.l.b16 %v4377
    %v4769 = vunpack.c.h.b16 %v4377
    %v4770 = vunpack.c.l.b16 %v4378
    %v4771 = vunpack.c.h.b16 %v4378
    %v4772 = vunpack.c.l.b16 %v4379
    %v4773 = vunpack.c.h.b16 %v4379
    %v4774 = vunpack.c.l.b16 %v4380
    %v4775 = vunpack.c.h.b16 %v4380
    %v4776 = vpack.c.b16 %v4524, %v4520
    %v4777 = vpack.c.b16 %v4525, %v4521
    %v4778 = vpack.c.b16 %v4526, %v4522
    %v4779 = vpack.c.b16 %v4527, %v4523
    %v4780 = vpack.c.b16 %v4532, %v4528
    %v4781 = vpack.c.b16 %v4533, %v4529
    %v4782 = vpack.c.b16 %v4534, %v4530
    %v4783 = vpack.c.b16 %v4535, %v4531
    %v4784 = vpack.c.b16 %v4540, %v4536
    %v4785 = vpack.c.b16 %v4541, %v4537
    %v4786 = vpack.c.b16 %v4542, %v4538
    %v4787 = vpack.c.b16 %v4543, %v4539
    %v4788 = vpack.c.b16 %v4548, %v4544
    %v4789 = vpack.c.b16 %v4549, %v4545
    %v4790 = vpack.c.b16 %v4550, %v4546
    %v4791 = vpack.c.b16 %v4551, %v4547
    %v4792 = vpack.c.b16 %v4556, %v4552
    %v4793 = vpack.c.b16 %v4557, %v4553
    %v4794 = vpack.c.b16 %v4558, %v4554
    %v4795 = vpack.c.b16 %v4559, %v4555
    %v4796 = vpack.c.b16 %v4564, %v4560
    %v4797 = vpack.c.b16 %v4565, %v4561
    %v4798 = vpack.c.b16 %v4566, %v4562
    %v4799 = vpack.c.b16 %v4567, %v4563
    %v4800 = vpack.c.b16 %v4572, %v4568
    %v4801 = vpack.c.b16 %v4573, %v4569
    %v4802 = vpack.c.b16 %v4574, %v4570
    %v4803 = vpack.c.b16 %v4575, %v4571
    %v4804 = vpack.c.b16 %v4580, %v4576
    %v4805 = vpack.c.b16 %v4581, %v4577
    %v4806 = vpack.c.b16 %v4582, %v4578
    %v4807 = vpack.c.b16 %v4583, %v4579
    %v4808 = vpack.c.b16 %v4588, %v4584
    %v4809 = vpack.c.b16 %v4589, %v4585
    %v4810 = vpack.c.b16 %v4590, %v4586
    %v4811 = vpack.c.b16 %v4591, %v4587
    %v4812 = vpack.c.b16 %v4596, %v4592
    %v4813 = vpack.c.b16 %v4597, %v4593
    %v4814 = vpack.c.b16 %v4598, %v4594
    %v4815 = vpack.c.b16 %v4599, %v4595
    %v4816 = vpack.c.b16 %v4604, %v4600
    %v4817 = vpack.c.b16 %v4605, %v4601
    %v4818 = vpack.c.b16 %v4606, %v4602
    %v4819 = vpack.c.b16 %v4607, %v4603
    %v4820 = vpack.c.b16 %v4612, %v4608
    %v4821 = vpack.c.b16 %v4613, %v4609
    %v4822 = vpack.c.b16 %v4614, %v4610
    %v4823 = vpack.c.b16 %v4615, %v4611
    %v4824 = vpack.c.b16 %v4620, %v4616
    %v4825 = vpack.c.b16 %v4621, %v4617
    %v4826 = vpack.c.b16 %v4622, %v4618
    %v4827 = vpack.c.b16 %v4623, %v4619
    %v4828 = vpack.c.b16 %v4628, %v4624
    %v4829 = vpack.c.b16 %v4629, %v4625
    %v4830 = vpack.c.b16 %v4630, %v4626
    %v4831 = vpack.c.b16 %v4631, %v4627
    %v4832 = vpack.c.b16 %v4636, %v4632
    %v4833 = vpack.c.b16 %v4637, %v4633
    %v4834 = vpack.c.b16 %v4638, %v4634
    %v4835 = vpack.c.b16 %v4639, %v4635
    %v4836 = vpack.c.b16 %v4644, %v4640
    %v4837 = vpack.c.b16 %v4645, %v4641
    %v4838 = vpack.c.b16 %v4646, %v4642
    %v4839 = vpack.c.b16 %v4647, %v4643
    %v4840 = vpack.c.b16 %v4652, %v4648
    %v4841 = vpack.c.b16 %v4653, %v4649
    %v4842 = vpack.c.b16 %v4654, %v4650
    %v4843 = vpack.c.b16 %v4655, %v4651
    %v4844 = vpack.c.b16 %v4660, %v4656
    %v4845 = vpack.c.b16 %v4661, %v4657
    %v4846 = vpack.c.b16 %v4662, %v4658
    %v4847 = vpack.c.b16 %v4663, %v4659
    %v4848 = vpack.c.b16 %v4668, %v4664
    %v4849 = vpack.c.b16 %v4669, %v4665
    %v4850 = vpack.c.b16 %v4670, %v4666
    %v4851 = vpack.c.b16 %v4671, %v4667
    %v4852 = vpack.c.b16 %v4676, %v4672
    %v4853 = vpack.c.b16 %v4677, %v4673
    %v4854 = vpack.c.b16 %v4678, %v4674
    %v4855 = vpack.c.b16 %v4679, %v4675
    %v4856 = vpack.c.b16 %v4684, %v4680
    %v4857 = vpack.c.b16 %v4685, %v4681
    %v4858 = vpack.c.b16 %v4686, %v4682
    %v4859 = vpack.c.b16 %v4687, %v4683
    %v4860 = vpack.c.b16 %v4692, %v4688
    %v4861 = vpack.c.b16 %v4693, %v4689
    %v4862 = vpack.c.b16 %v4694, %v4690
    %v4863 = vpack.c.b16 %v4695, %v4691
    %v4864 = vpack.c.b16 %v4700, %v4696
    %v4865 = vpack.c.b16 %v4701, %v4697
    %v4866 = vpack.c.b16 %v4702, %v4698
    %v4867 = vpack.c.b16 %v4703, %v4699
    %v4868 = vpack.c.b16 %v4708, %v4704
    %v4869 = vpack.c.b16 %v4709, %v4705
    %v4870 = vpack.c.b16 %v4710, %v4706
    %v4871 = vpack.c.b16 %v4711, %v4707
    %v4872 = vpack.c.b16 %v4716, %v4712
    %v4873 = vpack.c.b16 %v4717, %v4713
    %v4874 = vpack.c.b16 %v4718, %v4714
    %v4875 = vpack.c.b16 %v4719, %v4715
    %v4876 = vpack.c.b16 %v4724, %v4720
    %v4877 = vpack.c.b16 %v4725, %v4721
    %v4878 = vpack.c.b16 %v4726, %v4722
    %v4879 = vpack.c.b16 %v4727, %v4723
    %v4880 = vpack.c.b16 %v4732, %v4728
    %v4881 = vpack.c.b16 %v4733, %v4729
    %v4882 = vpack.c.b16 %v4734, %v4730
    %v4883 = vpack.c.b16 %v4735, %v4731
    %v4884 = vpack.c.b16 %v4740, %v4736
    %v4885 = vpack.c.b16 %v4741, %v4737
    %v4886 = vpack.c.b16 %v4742, %v4738
    %v4887 = vpack.c.b16 %v4743, %v4739
    %v4888 = vpack.c.b16 %v4748, %v4744
    %v4889 = vpack.c.b16 %v4749, %v4745
    %v4890 = vpack.c.b16 %v4750, %v4746
    %v4891 = vpack.c.b16 %v4751, %v4747
    %v4892 = vpack.c.b16 %v4756, %v4752
    %v4893 = vpack.c.b16 %v4757, %v4753
    %v4894 = vpack.c.b16 %v4758, %v4754
    %v4895 = vpack.c.b16 %v4759, %v4755
    %v4896 = vpack.c.b16 %v4764, %v4760
    %v4897 = vpack.c.b16 %v4765, %v4761
    %v4898 = vpack.c.b16 %v4766, %v4762
    %v4899 = vpack.c.b16 %v4767, %v4763
    %v4900 = vpack.c.b16 %v4772, %v4768
    %v4901 = vpack.c.b16 %v4773, %v4769
    %v4902 = vpack.c.b16 %v4774, %v4770
    %v4903 = vpack.c.b16 %v4775, %v4771
    %5032 = vmatpush.bf16.msra.mxu0 %v4804
    %5033 = vmatpush.bf16.msra.mxu0 %v4800
    %5034 = vmatpush.bf16.msra.mxu0 %v4796
    %5035 = vmatpush.bf16.msra.mxu0 %v4792
    %5036 = vmatpush.bf16.msra.mxu0 %v4788
    %5037 = vmatpush.bf16.msra.mxu0 %v4784
    %5038 = vmatpush.bf16.msra.mxu0 %v4780
    %5039 = vmatpush.bf16.msra.mxu0 %v4776
    %5040 = vmatmul.bf16.gmra.mxu0 %v4248
    %v5041 = vpop.f32.mrf.mxu0
    %v5042 = vadd.f32 %v4384, %v5041
    %v5043 = vpop.f32.mrf.mxu0
    %5044 = vdwg.mxu0
    %5045 = vmatpush.bf16.msra.mxu0 %v4836
    %5046 = vmatpush.bf16.msra.mxu0 %v4832
    %5047 = vmatpush.bf16.msra.mxu0 %v4828
    %5048 = vmatpush.bf16.msra.mxu0 %v4824
    %5049 = vmatpush.bf16.msra.mxu0 %v4820
    %5050 = vmatpush.bf16.msra.mxu0 %v4816
    %5051 = vmatpush.bf16.msra.mxu0 %v4812
    %5052 = vmatpush.bf16.msra.mxu0 %v4808
    %5053 = vmatmul.bf16.gmra.mxu0 %v4249
    %v5054 = vpop.f32.mrf.mxu0
    %v5055 = vadd.f32 %v5042, %v5054
    %v5056 = vpop.f32.mrf.mxu0
    %5057 = vdwg.mxu0
    %5058 = vmatpush.bf16.msra.mxu0 %v4868
    %5059 = vmatpush.bf16.msra.mxu0 %v4864
    %5060 = vmatpush.bf16.msra.mxu0 %v4860
    %5061 = vmatpush.bf16.msra.mxu0 %v4856
    %5062 = vmatpush.bf16.msra.mxu0 %v4852
    %5063 = vmatpush.bf16.msra.mxu0 %v4848
    %5064 = vmatpush.bf16.msra.mxu0 %v4844
    %5065 = vmatpush.bf16.msra.mxu0 %v4840
    %5066 = vmatmul.bf16.gmra.mxu0 %v4250
    %v5067 = vpop.f32.mrf.mxu0
    %v5068 = vadd.f32 %v5055, %v5067
    %v5069 = vpop.f32.mrf.mxu0
    %5070 = vdwg.mxu0
    %5071 = vmatpush.bf16.msra.mxu0 %v4900
    %5072 = vmatpush.bf16.msra.mxu0 %v4896
    %5073 = vmatpush.bf16.msra.mxu0 %v4892
    %5074 = vmatpush.bf16.msra.mxu0 %v4888
    %5075 = vmatpush.bf16.msra.mxu0 %v4884
    %5076 = vmatpush.bf16.msra.mxu0 %v4880
    %5077 = vmatpush.bf16.msra.mxu0 %v4876
    %5078 = vmatpush.bf16.msra.mxu0 %v4872
    %5079 = vmatmul.bf16.gmra.mxu0 %v4251
    %v5080 = vpop.f32.mrf.mxu0
    %v5081 = vadd.f32 %v5068, %v5080
    %v5082 = vpop.f32.mrf.mxu0
    %5083 = vdwg.mxu0
    %5084 = vmatpush.bf16.msra.mxu0 %v4805
    %5085 = vmatpush.bf16.msra.mxu0 %v4801
    %5086 = vmatpush.bf16.msra.mxu0 %v4797
    %5087 = vmatpush.bf16.msra.mxu0 %v4793
    %5088 = vmatpush.bf16.msra.mxu0 %v4789
    %5089 = vmatpush.bf16.msra.mxu0 %v4785
    %5090 = vmatpush.bf16.msra.mxu0 %v4781
    %5091 = vmatpush.bf16.msra.mxu0 %v4777
    %5092 = vmatmul.bf16.gmra.mxu0 %v4248
    %v5093 = vpop.f32.mrf.mxu0
    %v5094 = vadd.f32 %v4385, %v5093
    %v5095 = vpop.f32.mrf.mxu0
    %5096 = vdwg.mxu0
    %5097 = vmatpush.bf16.msra.mxu0 %v4837
    %5098 = vmatpush.bf16.msra.mxu0 %v4833
    %5099 = vmatpush.bf16.msra.mxu0 %v4829
    %5100 = vmatpush.bf16.msra.mxu0 %v4825
    %5101 = vmatpush.bf16.msra.mxu0 %v4821
    %5102 = vmatpush.bf16.msra.mxu0 %v4817
    %5103 = vmatpush.bf16.msra.mxu0 %v4813
    %5104 = vmatpush.bf16.msra.mxu0 %v4809
    %5105 = vmatmul.bf16.gmra.mxu0 %v4249
    %v5106 = vpop.f32.mrf.mxu0
    %v5107 = vadd.f32 %v5094, %v5106
    %v5108 = vpop.f32.mrf.mxu0
    %5109 = vdwg.mxu0
    %5110 = vmatpush.bf16.msra.mxu0 %v4869
    %5111 = vmatpush.bf16.msra.mxu0 %v4865
    %5112 = vmatpush.bf16.msra.mxu0 %v4861
    %5113 = vmatpush.bf16.msra.mxu0 %v4857
    %5114 = vmatpush.bf16.msra.mxu0 %v4853
    %5115 = vmatpush.bf16.msra.mxu0 %v4849
    %5116 = vmatpush.bf16.msra.mxu0 %v4845
    %5117 = vmatpush.bf16.msra.mxu0 %v4841
    %5118 = vmatmul.bf16.gmra.mxu0 %v4250
    %v5119 = vpop.f32.mrf.mxu0
    %v5120 = vadd.f32 %v5107, %v5119
    %v5121 = vpop.f32.mrf.mxu0
    %5122 = vdwg.mxu0
    %5123 = vmatpush.bf16.msra.mxu0 %v4901
    %5124 = vmatpush.bf16.msra.mxu0 %v4897
    %5125 = vmatpush.bf16.msra.mxu0 %v4893
    %5126 = vmatpush.bf16.msra.mxu0 %v4889
    %5127 = vmatpush.bf16.msra.mxu0 %v4885
    %5128 = vmatpush.bf16.msra.mxu0 %v4881
    %5129 = vmatpush.bf16.msra.mxu0 %v4877
    %5130 = vmatpush.bf16.msra.mxu0 %v4873
    %5131 = vmatmul.bf16.gmra.mxu0 %v4251
    %v5132 = vpop.f32.mrf.mxu0
    %v5133 = vadd.f32 %v5120, %v5132
    %v5134 = vpop.f32.mrf.mxu0
    %5135 = vdwg.mxu0
    %5136 = vmatpush.bf16.msra.mxu0 %v4806
    %5137 = vmatpush.bf16.msra.mxu0 %v4802
    %5138 = vmatpush.bf16.msra.mxu0 %v4798
    %5139 = vmatpush.bf16.msra.mxu0 %v4794
    %5140 = vmatpush.bf16.msra.mxu0 %v4790
    %5141 = vmatpush.bf16.msra.mxu0 %v4786
    %5142 = vmatpush.bf16.msra.mxu0 %v4782
    %5143 = vmatpush.bf16.msra.mxu0 %v4778
    %5144 = vmatmul.bf16.gmra.mxu0 %v4248
    %v5145 = vpop.f32.mrf.mxu0
    %v5146 = vadd.f32 %v4386, %v5145
    %v5147 = vpop.f32.mrf.mxu0
    %5148 = vdwg.mxu0
    %5149 = vmatpush.bf16.msra.mxu0 %v4838
    %5150 = vmatpush.bf16.msra.mxu0 %v4834
    %5151 = vmatpush.bf16.msra.mxu0 %v4830
    %5152 = vmatpush.bf16.msra.mxu0 %v4826
    %5153 = vmatpush.bf16.msra.mxu0 %v4822
    %5154 = vmatpush.bf16.msra.mxu0 %v4818
    %5155 = vmatpush.bf16.msra.mxu0 %v4814
    %5156 = vmatpush.bf16.msra.mxu0 %v4810
    %5157 = vmatmul.bf16.gmra.mxu0 %v4249
    %v5158 = vpop.f32.mrf.mxu0
    %v5159 = vadd.f32 %v5146, %v5158
    %v5160 = vpop.f32.mrf.mxu0
    %5161 = vdwg.mxu0
    %5162 = vmatpush.bf16.msra.mxu0 %v4870
    %5163 = vmatpush.bf16.msra.mxu0 %v4866
    %5164 = vmatpush.bf16.msra.mxu0 %v4862
    %5165 = vmatpush.bf16.msra.mxu0 %v4858
    %5166 = vmatpush.bf16.msra.mxu0 %v4854
    %5167 = vmatpush.bf16.msra.mxu0 %v4850
    %5168 = vmatpush.bf16.msra.mxu0 %v4846
    %5169 = vmatpush.bf16.msra.mxu0 %v4842
    %5170 = vmatmul.bf16.gmra.mxu0 %v4250
    %v5171 = vpop.f32.mrf.mxu0
    %v5172 = vadd.f32 %v5159, %v5171
    %v5173 = vpop.f32.mrf.mxu0
    %5174 = vdwg.mxu0
    %5175 = vmatpush.bf16.msra.mxu0 %v4902
    %5176 = vmatpush.bf16.msra.mxu0 %v4898
    %5177 = vmatpush.bf16.msra.mxu0 %v4894
    %5178 = vmatpush.bf16.msra.mxu0 %v4890
    %5179 = vmatpush.bf16.msra.mxu0 %v4886
    %5180 = vmatpush.bf16.msra.mxu0 %v4882
    %5181 = vmatpush.bf16.msra.mxu0 %v4878
    %5182 = vmatpush.bf16.msra.mxu0 %v4874
    %5183 = vmatmul.bf16.gmra.mxu0 %v4251
    %v5184 = vpop.f32.mrf.mxu0
    %v5185 = vadd.f32 %v5172, %v5184
    %v5186 = vpop.f32.mrf.mxu0
    %5187 = vdwg.mxu0
    %5188 = vmatpush.bf16.msra.mxu0 %v4807
    %5189 = vmatpush.bf16.msra.mxu0 %v4803
    %5190 = vmatpush.bf16.msra.mxu0 %v4799
    %5191 = vmatpush.bf16.msra.mxu0 %v4795
    %5192 = vmatpush.bf16.msra.mxu0 %v4791
    %5193 = vmatpush.bf16.msra.mxu0 %v4787
    %5194 = vmatpush.bf16.msra.mxu0 %v4783
    %5195 = vmatpush.bf16.msra.mxu0 %v4779
    %5196 = vmatmul.bf16.gmra.mxu0 %v4248
    %v5197 = vpop.f32.mrf.mxu0
    %v5198 = vadd.f32 %v4387, %v5197
    %v5199 = vpop.f32.mrf.mxu0
    %5200 = vdwg.mxu0
    %5201 = vmatpush.bf16.msra.mxu0 %v4839
    %5202 = vmatpush.bf16.msra.mxu0 %v4835
    %5203 = vmatpush.bf16.msra.mxu0 %v4831
    %5204 = vmatpush.bf16.msra.mxu0 %v4827
    %5205 = vmatpush.bf16.msra.mxu0 %v4823
    %5206 = vmatpush.bf16.msra.mxu0 %v4819
    %5207 = vmatpush.bf16.msra.mxu0 %v4815
    %5208 = vmatpush.bf16.msra.mxu0 %v4811
    %5209 = vmatmul.bf16.gmra.mxu0 %v4249
    %v5210 = vpop.f32.mrf.mxu0
    %v5211 = vadd.f32 %v5198, %v5210
    %v5212 = vpop.f32.mrf.mxu0
    %5213 = vdwg.mxu0
    %5214 = vmatpush.bf16.msra.mxu0 %v4871
    %5215 = vmatpush.bf16.msra.mxu0 %v4867
    %5216 = vmatpush.bf16.msra.mxu0 %v4863
    %5217 = vmatpush.bf16.msra.mxu0 %v4859
    %5218 = vmatpush.bf16.msra.mxu0 %v4855
    %5219 = vmatpush.bf16.msra.mxu0 %v4851
    %5220 = vmatpush.bf16.msra.mxu0 %v4847
    %5221 = vmatpush.bf16.msra.mxu0 %v4843
    %5222 = vmatmul.bf16.gmra.mxu0 %v4250
    %v5223 = vpop.f32.mrf.mxu0
    %v5224 = vadd.f32 %v5211, %v5223
    %v5225 = vpop.f32.mrf.mxu0
    %5226 = vdwg.mxu0
    %5227 = vmatpush.bf16.msra.mxu0 %v4903
    %5228 = vmatpush.bf16.msra.mxu0 %v4899
    %5229 = vmatpush.bf16.msra.mxu0 %v4895
    %5230 = vmatpush.bf16.msra.mxu0 %v4891
    %5231 = vmatpush.bf16.msra.mxu0 %v4887
    %5232 = vmatpush.bf16.msra.mxu0 %v4883
    %5233 = vmatpush.bf16.msra.mxu0 %v4879
    %5234 = vmatpush.bf16.msra.mxu0 %v4875
    %5235 = vmatmul.bf16.gmra.mxu0 %v4251
    %v5236 = vpop.f32.mrf.mxu0
    %v5237 = vadd.f32 %v5224, %v5236
    %v5238 = vpop.f32.mrf.mxu0
    %5239 = vdwg.mxu0
    %v5240 = vmax.f32 %v5081, 0.0
    %v5241 = vmax.f32 %v5133, 0.0
    %v5242 = vmax.f32 %v5185, 0.0
    %v5243 = vmax.f32 %v5237, 0.0
    %v5244 = vpack.c.bf16 %v5240, %v5240
    %v5245 = vpack.c.bf16 %v5241, %v5241
    %v5246 = vpack.c.bf16 %v5242, %v5242
    %v5247 = vpack.c.bf16 %v5243, %v5243
    %s5248 = scalar_lea.vmem [#allocation11], 2048
    %v5249 = vld [vmem:[%s5248] sm:$0xff]
    %v5250 = vld [vmem:[%s5248 + $0x8] sm:$0xff]
    %v5251 = vld [vmem:[%s5248 + $0x10] sm:$0xff]
    %v5252 = vld [vmem:[%s5248 + $0x18] sm:$0xff]
    %v5253 = vld [vmem:[%s5248 + $0x20] sm:$0xff]
    %v5254 = vld [vmem:[%s5248 + $0x28] sm:$0xff]
    %v5255 = vld [vmem:[%s5248 + $0x30] sm:$0xff]
    %v5256 = vld [vmem:[%s5248 + $0x38] sm:$0xff]
    %v5257 = vld [vmem:[%s5248 + $0x40] sm:$0xff]
    %v5258 = vld [vmem:[%s5248 + $0x48] sm:$0xff]
    %v5259 = vld [vmem:[%s5248 + $0x50] sm:$0xff]
    %v5260 = vld [vmem:[%s5248 + $0x58] sm:$0xff]
    %v5261 = vld [vmem:[%s5248 + $0x60] sm:$0xff]
    %v5262 = vld [vmem:[%s5248 + $0x68] sm:$0xff]
    %v5263 = vld [vmem:[%s5248 + $0x70] sm:$0xff]
    %v5264 = vld [vmem:[%s5248 + $0x78] sm:$0xff]
    %v5265 = vld [vmem:[%s5248 + $0x80] sm:$0xff]
    %v5266 = vld [vmem:[%s5248 + $0x88] sm:$0xff]
    %v5267 = vld [vmem:[%s5248 + $0x90] sm:$0xff]
    %v5268 = vld [vmem:[%s5248 + $0x98] sm:$0xff]
    %v5269 = vld [vmem:[%s5248 + $0xa0] sm:$0xff]
    %v5270 = vld [vmem:[%s5248 + $0xa8] sm:$0xff]
    %v5271 = vld [vmem:[%s5248 + $0xb0] sm:$0xff]
    %v5272 = vld [vmem:[%s5248 + $0xb8] sm:$0xff]
    %v5273 = vld [vmem:[%s5248 + $0xc0] sm:$0xff]
    %v5274 = vld [vmem:[%s5248 + $0xc8] sm:$0xff]
    %v5275 = vld [vmem:[%s5248 + $0xd0] sm:$0xff]
    %v5276 = vld [vmem:[%s5248 + $0xd8] sm:$0xff]
    %v5277 = vld [vmem:[%s5248 + $0xe0] sm:$0xff]
    %v5278 = vld [vmem:[%s5248 + $0xe8] sm:$0xff]
    %v5279 = vld [vmem:[%s5248 + $0xf0] sm:$0xff]
    %v5280 = vld [vmem:[%s5248 + $0xf8] sm:$0xff]
    %v5281 = vld [vmem:[%s5248 + $0x100] sm:$0xff]
    %v5282 = vld [vmem:[%s5248 + $0x108] sm:$0xff]
    %v5283 = vld [vmem:[%s5248 + $0x110] sm:$0xff]
    %v5284 = vld [vmem:[%s5248 + $0x118] sm:$0xff]
    %v5285 = vld [vmem:[%s5248 + $0x120] sm:$0xff]
    %v5286 = vld [vmem:[%s5248 + $0x128] sm:$0xff]
    %v5287 = vld [vmem:[%s5248 + $0x130] sm:$0xff]
    %v5288 = vld [vmem:[%s5248 + $0x138] sm:$0xff]
    %v5289 = vld [vmem:[%s5248 + $0x140] sm:$0xff]
    %v5290 = vld [vmem:[%s5248 + $0x148] sm:$0xff]
    %v5291 = vld [vmem:[%s5248 + $0x150] sm:$0xff]
    %v5292 = vld [vmem:[%s5248 + $0x158] sm:$0xff]
    %v5293 = vld [vmem:[%s5248 + $0x160] sm:$0xff]
    %v5294 = vld [vmem:[%s5248 + $0x168] sm:$0xff]
    %v5295 = vld [vmem:[%s5248 + $0x170] sm:$0xff]
    %v5296 = vld [vmem:[%s5248 + $0x178] sm:$0xff]
    %v5297 = vld [vmem:[%s5248 + $0x180] sm:$0xff]
    %v5298 = vld [vmem:[%s5248 + $0x188] sm:$0xff]
    %v5299 = vld [vmem:[%s5248 + $0x190] sm:$0xff]
    %v5300 = vld [vmem:[%s5248 + $0x198] sm:$0xff]
    %v5301 = vld [vmem:[%s5248 + $0x1a0] sm:$0xff]
    %v5302 = vld [vmem:[%s5248 + $0x1a8] sm:$0xff]
    %v5303 = vld [vmem:[%s5248 + $0x1b0] sm:$0xff]
    %v5304 = vld [vmem:[%s5248 + $0x1b8] sm:$0xff]
    %v5305 = vld [vmem:[%s5248 + $0x1c0] sm:$0xff]
    %v5306 = vld [vmem:[%s5248 + $0x1c8] sm:$0xff]
    %v5307 = vld [vmem:[%s5248 + $0x1d0] sm:$0xff]
    %v5308 = vld [vmem:[%s5248 + $0x1d8] sm:$0xff]
    %v5309 = vld [vmem:[%s5248 + $0x1e0] sm:$0xff]
    %v5310 = vld [vmem:[%s5248 + $0x1e8] sm:$0xff]
    %v5311 = vld [vmem:[%s5248 + $0x1f0] sm:$0xff]
    %v5312 = vld [vmem:[%s5248 + $0x1f8] sm:$0xff]
    %v5313 = vld [vmem:[%s5248 + $0x200] sm:$0xff]
    %v5314 = vld [vmem:[%s5248 + $0x208] sm:$0xff]
    %v5315 = vld [vmem:[%s5248 + $0x210] sm:$0xff]
    %v5316 = vld [vmem:[%s5248 + $0x218] sm:$0xff]
    %v5317 = vld [vmem:[%s5248 + $0x220] sm:$0xff]
    %v5318 = vld [vmem:[%s5248 + $0x228] sm:$0xff]
    %v5319 = vld [vmem:[%s5248 + $0x230] sm:$0xff]
    %v5320 = vld [vmem:[%s5248 + $0x238] sm:$0xff]
    %v5321 = vld [vmem:[%s5248 + $0x240] sm:$0xff]
    %v5322 = vld [vmem:[%s5248 + $0x248] sm:$0xff]
    %v5323 = vld [vmem:[%s5248 + $0x250] sm:$0xff]
    %v5324 = vld [vmem:[%s5248 + $0x258] sm:$0xff]
    %v5325 = vld [vmem:[%s5248 + $0x260] sm:$0xff]
    %v5326 = vld [vmem:[%s5248 + $0x268] sm:$0xff]
    %v5327 = vld [vmem:[%s5248 + $0x270] sm:$0xff]
    %v5328 = vld [vmem:[%s5248 + $0x278] sm:$0xff]
    %v5329 = vld [vmem:[%s5248 + $0x280] sm:$0xff]
    %v5330 = vld [vmem:[%s5248 + $0x288] sm:$0xff]
    %v5331 = vld [vmem:[%s5248 + $0x290] sm:$0xff]
    %v5332 = vld [vmem:[%s5248 + $0x298] sm:$0xff]
    %v5333 = vld [vmem:[%s5248 + $0x2a0] sm:$0xff]
    %v5334 = vld [vmem:[%s5248 + $0x2a8] sm:$0xff]
    %v5335 = vld [vmem:[%s5248 + $0x2b0] sm:$0xff]
    %v5336 = vld [vmem:[%s5248 + $0x2b8] sm:$0xff]
    %v5337 = vld [vmem:[%s5248 + $0x2c0] sm:$0xff]
    %v5338 = vld [vmem:[%s5248 + $0x2c8] sm:$0xff]
    %v5339 = vld [vmem:[%s5248 + $0x2d0] sm:$0xff]
    %v5340 = vld [vmem:[%s5248 + $0x2d8] sm:$0xff]
    %v5341 = vld [vmem:[%s5248 + $0x2e0] sm:$0xff]
    %v5342 = vld [vmem:[%s5248 + $0x2e8] sm:$0xff]
    %v5343 = vld [vmem:[%s5248 + $0x2f0] sm:$0xff]
    %v5344 = vld [vmem:[%s5248 + $0x2f8] sm:$0xff]
    %v5345 = vld [vmem:[%s5248 + $0x300] sm:$0xff]
    %v5346 = vld [vmem:[%s5248 + $0x308] sm:$0xff]
    %v5347 = vld [vmem:[%s5248 + $0x310] sm:$0xff]
    %v5348 = vld [vmem:[%s5248 + $0x318] sm:$0xff]
    %v5349 = vld [vmem:[%s5248 + $0x320] sm:$0xff]
    %v5350 = vld [vmem:[%s5248 + $0x328] sm:$0xff]
    %v5351 = vld [vmem:[%s5248 + $0x330] sm:$0xff]
    %v5352 = vld [vmem:[%s5248 + $0x338] sm:$0xff]
    %v5353 = vld [vmem:[%s5248 + $0x340] sm:$0xff]
    %v5354 = vld [vmem:[%s5248 + $0x348] sm:$0xff]
    %v5355 = vld [vmem:[%s5248 + $0x350] sm:$0xff]
    %v5356 = vld [vmem:[%s5248 + $0x358] sm:$0xff]
    %v5357 = vld [vmem:[%s5248 + $0x360] sm:$0xff]
    %v5358 = vld [vmem:[%s5248 + $0x368] sm:$0xff]
    %v5359 = vld [vmem:[%s5248 + $0x370] sm:$0xff]
    %v5360 = vld [vmem:[%s5248 + $0x378] sm:$0xff]
    %v5361 = vld [vmem:[%s5248 + $0x380] sm:$0xff]
    %v5362 = vld [vmem:[%s5248 + $0x388] sm:$0xff]
    %v5363 = vld [vmem:[%s5248 + $0x390] sm:$0xff]
    %v5364 = vld [vmem:[%s5248 + $0x398] sm:$0xff]
    %v5365 = vld [vmem:[%s5248 + $0x3a0] sm:$0xff]
    %v5366 = vld [vmem:[%s5248 + $0x3a8] sm:$0xff]
    %v5367 = vld [vmem:[%s5248 + $0x3b0] sm:$0xff]
    %v5368 = vld [vmem:[%s5248 + $0x3b8] sm:$0xff]
    %v5369 = vld [vmem:[%s5248 + $0x3c0] sm:$0xff]
    %v5370 = vld [vmem:[%s5248 + $0x3c8] sm:$0xff]
    %v5371 = vld [vmem:[%s5248 + $0x3d0] sm:$0xff]
    %v5372 = vld [vmem:[%s5248 + $0x3d8] sm:$0xff]
    %v5373 = vld [vmem:[%s5248 + $0x3e0] sm:$0xff]
    %v5374 = vld [vmem:[%s5248 + $0x3e8] sm:$0xff]
    %v5375 = vld [vmem:[%s5248 + $0x3f0] sm:$0xff]
    %v5376 = vld [vmem:[%s5248 + $0x3f8] sm:$0xff]
    %s5377 = scalar_lea.vmem [#allocation13], 8
    %v5378 = vld [vmem:[%s5377] sm:$0xf]
    %v5380 = vperm.slane %v5378, 0
    %v5381 = vperm.slane %v5378, 1
    %v5382 = vperm.slane %v5378, 2
    %v5383 = vperm.slane %v5378, 3
    %v5516 = vunpack.c.l.b16 %v5249
    %v5517 = vunpack.c.h.b16 %v5249
    %v5518 = vunpack.c.l.b16 %v5250
    %v5519 = vunpack.c.h.b16 %v5250
    %v5520 = vunpack.c.l.b16 %v5251
    %v5521 = vunpack.c.h.b16 %v5251
    %v5522 = vunpack.c.l.b16 %v5252
    %v5523 = vunpack.c.h.b16 %v5252
    %v5524 = vunpack.c.l.b16 %v5253
    %v5525 = vunpack.c.h.b16 %v5253
    %v5526 = vunpack.c.l.b16 %v5254
    %v5527 = vunpack.c.h.b16 %v5254
    %v5528 = vunpack.c.l.b16 %v5255
    %v5529 = vunpack.c.h.b16 %v5255
    %v5530 = vunpack.c.l.b16 %v5256
    %v5531 = vunpack.c.h.b16 %v5256
    %v5532 = vunpack.c.l.b16 %v5257
    %v5533 = vunpack.c.h.b16 %v5257
    %v5534 = vunpack.c.l.b16 %v5258
    %v5535 = vunpack.c.h.b16 %v5258
    %v5536 = vunpack.c.l.b16 %v5259
    %v5537 = vunpack.c.h.b16 %v5259
    %v5538 = vunpack.c.l.b16 %v5260
    %v5539 = vunpack.c.h.b16 %v5260
    %v5540 = vunpack.c.l.b16 %v5261
    %v5541 = vunpack.c.h.b16 %v5261
    %v5542 = vunpack.c.l.b16 %v5262
    %v5543 = vunpack.c.h.b16 %v5262
    %v5544 = vunpack.c.l.b16 %v5263
    %v5545 = vunpack.c.h.b16 %v5263
    %v5546 = vunpack.c.l.b16 %v5264
    %v5547 = vunpack.c.h.b16 %v5264
    %v5548 = vunpack.c.l.b16 %v5265
    %v5549 = vunpack.c.h.b16 %v5265
    %v5550 = vunpack.c.l.b16 %v5266
    %v5551 = vunpack.c.h.b16 %v5266
    %v5552 = vunpack.c.l.b16 %v5267
    %v5553 = vunpack.c.h.b16 %v5267
    %v5554 = vunpack.c.l.b16 %v5268
    %v5555 = vunpack.c.h.b16 %v5268
    %v5556 = vunpack.c.l.b16 %v5269
    %v5557 = vunpack.c.h.b16 %v5269
    %v5558 = vunpack.c.l.b16 %v5270
    %v5559 = vunpack.c.h.b16 %v5270
    %v5560 = vunpack.c.l.b16 %v5271
    %v5561 = vunpack.c.h.b16 %v5271
    %v5562 = vunpack.c.l.b16 %v5272
    %v5563 = vunpack.c.h.b16 %v5272
    %v5564 = vunpack.c.l.b16 %v5273
    %v5565 = vunpack.c.h.b16 %v5273
    %v5566 = vunpack.c.l.b16 %v5274
    %v5567 = vunpack.c.h.b16 %v5274
    %v5568 = vunpack.c.l.b16 %v5275
    %v5569 = vunpack.c.h.b16 %v5275
    %v5570 = vunpack.c.l.b16 %v5276
    %v5571 = vunpack.c.h.b16 %v5276
    %v5572 = vunpack.c.l.b16 %v5277
    %v5573 = vunpack.c.h.b16 %v5277
    %v5574 = vunpack.c.l.b16 %v5278
    %v5575 = vunpack.c.h.b16 %v5278
    %v5576 = vunpack.c.l.b16 %v5279
    %v5577 = vunpack.c.h.b16 %v5279
    %v5578 = vunpack.c.l.b16 %v5280
    %v5579 = vunpack.c.h.b16 %v5280
    %v5580 = vunpack.c.l.b16 %v5281
    %v5581 = vunpack.c.h.b16 %v5281
    %v5582 = vunpack.c.l.b16 %v5282
    %v5583 = vunpack.c.h.b16 %v5282
    %v5584 = vunpack.c.l.b16 %v5283
    %v5585 = vunpack.c.h.b16 %v5283
    %v5586 = vunpack.c.l.b16 %v5284
    %v5587 = vunpack.c.h.b16 %v5284
    %v5588 = vunpack.c.l.b16 %v5285
    %v5589 = vunpack.c.h.b16 %v5285
    %v5590 = vunpack.c.l.b16 %v5286
    %v5591 = vunpack.c.h.b16 %v5286
    %v5592 = vunpack.c.l.b16 %v5287
    %v5593 = vunpack.c.h.b16 %v5287
    %v5594 = vunpack.c.l.b16 %v5288
    %v5595 = vunpack.c.h.b16 %v5288
    %v5596 = vunpack.c.l.b16 %v5289
    %v5597 = vunpack.c.h.b16 %v5289
    %v5598 = vunpack.c.l.b16 %v5290
    %v5599 = vunpack.c.h.b16 %v5290
    %v5600 = vunpack.c.l.b16 %v5291
    %v5601 = vunpack.c.h.b16 %v5291
    %v5602 = vunpack.c.l.b16 %v5292
    %v5603 = vunpack.c.h.b16 %v5292
    %v5604 = vunpack.c.l.b16 %v5293
    %v5605 = vunpack.c.h.b16 %v5293
    %v5606 = vunpack.c.l.b16 %v5294
    %v5607 = vunpack.c.h.b16 %v5294
    %v5608 = vunpack.c.l.b16 %v5295
    %v5609 = vunpack.c.h.b16 %v5295
    %v5610 = vunpack.c.l.b16 %v5296
    %v5611 = vunpack.c.h.b16 %v5296
    %v5612 = vunpack.c.l.b16 %v5297
    %v5613 = vunpack.c.h.b16 %v5297
    %v5614 = vunpack.c.l.b16 %v5298
    %v5615 = vunpack.c.h.b16 %v5298
    %v5616 = vunpack.c.l.b16 %v5299
    %v5617 = vunpack.c.h.b16 %v5299
    %v5618 = vunpack.c.l.b16 %v5300
    %v5619 = vunpack.c.h.b16 %v5300
    %v5620 = vunpack.c.l.b16 %v5301
    %v5621 = vunpack.c.h.b16 %v5301
    %v5622 = vunpack.c.l.b16 %v5302
    %v5623 = vunpack.c.h.b16 %v5302
    %v5624 = vunpack.c.l.b16 %v5303
    %v5625 = vunpack.c.h.b16 %v5303
    %v5626 = vunpack.c.l.b16 %v5304
    %v5627 = vunpack.c.h.b16 %v5304
    %v5628 = vunpack.c.l.b16 %v5305
    %v5629 = vunpack.c.h.b16 %v5305
    %v5630 = vunpack.c.l.b16 %v5306
    %v5631 = vunpack.c.h.b16 %v5306
    %v5632 = vunpack.c.l.b16 %v5307
    %v5633 = vunpack.c.h.b16 %v5307
    %v5634 = vunpack.c.l.b16 %v5308
    %v5635 = vunpack.c.h.b16 %v5308
    %v5636 = vunpack.c.l.b16 %v5309
    %v5637 = vunpack.c.h.b16 %v5309
    %v5638 = vunpack.c.l.b16 %v5310
    %v5639 = vunpack.c.h.b16 %v5310
    %v5640 = vunpack.c.l.b16 %v5311
    %v5641 = vunpack.c.h.b16 %v5311
    %v5642 = vunpack.c.l.b16 %v5312
    %v5643 = vunpack.c.h.b16 %v5312
    %v5644 = vunpack.c.l.b16 %v5313
    %v5645 = vunpack.c.h.b16 %v5313
    %v5646 = vunpack.c.l.b16 %v5314
    %v5647 = vunpack.c.h.b16 %v5314
    %v5648 = vunpack.c.l.b16 %v5315
    %v5649 = vunpack.c.h.b16 %v5315
    %v5650 = vunpack.c.l.b16 %v5316
    %v5651 = vunpack.c.h.b16 %v5316
    %v5652 = vunpack.c.l.b16 %v5317
    %v5653 = vunpack.c.h.b16 %v5317
    %v5654 = vunpack.c.l.b16 %v5318
    %v5655 = vunpack.c.h.b16 %v5318
    %v5656 = vunpack.c.l.b16 %v5319
    %v5657 = vunpack.c.h.b16 %v5319
    %v5658 = vunpack.c.l.b16 %v5320
    %v5659 = vunpack.c.h.b16 %v5320
    %v5660 = vunpack.c.l.b16 %v5321
    %v5661 = vunpack.c.h.b16 %v5321
    %v5662 = vunpack.c.l.b16 %v5322
    %v5663 = vunpack.c.h.b16 %v5322
    %v5664 = vunpack.c.l.b16 %v5323
    %v5665 = vunpack.c.h.b16 %v5323
    %v5666 = vunpack.c.l.b16 %v5324
    %v5667 = vunpack.c.h.b16 %v5324
    %v5668 = vunpack.c.l.b16 %v5325
    %v5669 = vunpack.c.h.b16 %v5325
    %v5670 = vunpack.c.l.b16 %v5326
    %v5671 = vunpack.c.h.b16 %v5326
    %v5672 = vunpack.c.l.b16 %v5327
    %v5673 = vunpack.c.h.b16 %v5327
    %v5674 = vunpack.c.l.b16 %v5328
    %v5675 = vunpack.c.h.b16 %v5328
    %v5676 = vunpack.c.l.b16 %v5329
    %v5677 = vunpack.c.h.b16 %v5329
    %v5678 = vunpack.c.l.b16 %v5330
    %v5679 = vunpack.c.h.b16 %v5330
    %v5680 = vunpack.c.l.b16 %v5331
    %v5681 = vunpack.c.h.b16 %v5331
    %v5682 = vunpack.c.l.b16 %v5332
    %v5683 = vunpack.c.h.b16 %v5332
    %v5684 = vunpack.c.l.b16 %v5333
    %v5685 = vunpack.c.h.b16 %v5333
    %v5686 = vunpack.c.l.b16 %v5334
    %v5687 = vunpack.c.h.b16 %v5334
    %v5688 = vunpack.c.l.b16 %v5335
    %v5689 = vunpack.c.h.b16 %v5335
    %v5690 = vunpack.c.l.b16 %v5336
    %v5691 = vunpack.c.h.b16 %v5336
    %v5692 = vunpack.c.l.b16 %v5337
    %v5693 = vunpack.c.h.b16 %v5337
    %v5694 = vunpack.c.l.b16 %v5338
    %v5695 = vunpack.c.h.b16 %v5338
    %v5696 = vunpack.c.l.b16 %v5339
    %v5697 = vunpack.c.h.b16 %v5339
    %v5698 = vunpack.c.l.b16 %v5340
    %v5699 = vunpack.c.h.b16 %v5340
    %v5700 = vunpack.c.l.b16 %v5341
    %v5701 = vunpack.c.h.b16 %v5341
    %v5702 = vunpack.c.l.b16 %v5342
    %v5703 = vunpack.c.h.b16 %v5342
    %v5704 = vunpack.c.l.b16 %v5343
    %v5705 = vunpack.c.h.b16 %v5343
    %v5706 = vunpack.c.l.b16 %v5344
    %v5707 = vunpack.c.h.b16 %v5344
    %v5708 = vunpack.c.l.b16 %v5345
    %v5709 = vunpack.c.h.b16 %v5345
    %v5710 = vunpack.c.l.b16 %v5346
    %v5711 = vunpack.c.h.b16 %v5346
    %v5712 = vunpack.c.l.b16 %v5347
    %v5713 = vunpack.c.h.b16 %v5347
    %v5714 = vunpack.c.l.b16 %v5348
    %v5715 = vunpack.c.h.b16 %v5348
    %v5716 = vunpack.c.l.b16 %v5349
    %v5717 = vunpack.c.h.b16 %v5349
    %v5718 = vunpack.c.l.b16 %v5350
    %v5719 = vunpack.c.h.b16 %v5350
    %v5720 = vunpack.c.l.b16 %v5351
    %v5721 = vunpack.c.h.b16 %v5351
    %v5722 = vunpack.c.l.b16 %v5352
    %v5723 = vunpack.c.h.b16 %v5352
    %v5724 = vunpack.c.l.b16 %v5353
    %v5725 = vunpack.c.h.b16 %v5353
    %v5726 = vunpack.c.l.b16 %v5354
    %v5727 = vunpack.c.h.b16 %v5354
    %v5728 = vunpack.c.l.b16 %v5355
    %v5729 = vunpack.c.h.b16 %v5355
    %v5730 = vunpack.c.l.b16 %v5356
    %v5731 = vunpack.c.h.b16 %v5356
    %v5732 = vunpack.c.l.b16 %v5357
    %v5733 = vunpack.c.h.b16 %v5357
    %v5734 = vunpack.c.l.b16 %v5358
    %v5735 = vunpack.c.h.b16 %v5358
    %v5736 = vunpack.c.l.b16 %v5359
    %v5737 = vunpack.c.h.b16 %v5359
    %v5738 = vunpack.c.l.b16 %v5360
    %v5739 = vunpack.c.h.b16 %v5360
    %v5740 = vunpack.c.l.b16 %v5361
    %v5741 = vunpack.c.h.b16 %v5361
    %v5742 = vunpack.c.l.b16 %v5362
    %v5743 = vunpack.c.h.b16 %v5362
    %v5744 = vunpack.c.l.b16 %v5363
    %v5745 = vunpack.c.h.b16 %v5363
    %v5746 = vunpack.c.l.b16 %v5364
    %v5747 = vunpack.c.h.b16 %v5364
    %v5748 = vunpack.c.l.b16 %v5365
    %v5749 = vunpack.c.h.b16 %v5365
    %v5750 = vunpack.c.l.b16 %v5366
    %v5751 = vunpack.c.h.b16 %v5366
    %v5752 = vunpack.c.l.b16 %v5367
    %v5753 = vunpack.c.h.b16 %v5367
    %v5754 = vunpack.c.l.b16 %v5368
    %v5755 = vunpack.c.h.b16 %v5368
    %v5756 = vunpack.c.l.b16 %v5369
    %v5757 = vunpack.c.h.b16 %v5369
    %v5758 = vunpack.c.l.b16 %v5370
    %v5759 = vunpack.c.h.b16 %v5370
    %v5760 = vunpack.c.l.b16 %v5371
    %v5761 = vunpack.c.h.b16 %v5371
    %v5762 = vunpack.c.l.b16 %v5372
    %v5763 = vunpack.c.h.b16 %v5372
    %v5764 = vunpack.c.l.b16 %v5373
    %v5765 = vunpack.c.h.b16 %v5373
    %v5766 = vunpack.c.l.b16 %v5374
    %v5767 = vunpack.c.h.b16 %v5374
    %v5768 = vunpack.c.l.b16 %v5375
    %v5769 = vunpack.c.h.b16 %v5375
    %v5770 = vunpack.c.l.b16 %v5376
    %v5771 = vunpack.c.h.b16 %v5376
    %v5772 = vpack.c.b16 %v5520, %v5516
    %v5773 = vpack.c.b16 %v5521, %v5517
    %v5774 = vpack.c.b16 %v5522, %v5518
    %v5775 = vpack.c.b16 %v5523, %v5519
    %v5776 = vpack.c.b16 %v5528, %v5524
    %v5777 = vpack.c.b16 %v5529, %v5525
    %v5778 = vpack.c.b16 %v5530, %v5526
    %v5779 = vpack.c.b16 %v5531, %v5527
    %v5780 = vpack.c.b16 %v5536, %v5532
    %v5781 = vpack.c.b16 %v5537, %v5533
    %v5782 = vpack.c.b16 %v5538, %v5534
    %v5783 = vpack.c.b16 %v5539, %v5535
    %v5784 = vpack.c.b16 %v5544, %v5540
    %v5785 = vpack.c.b16 %v5545, %v5541
    %v5786 = vpack.c.b16 %v5546, %v5542
    %v5787 = vpack.c.b16 %v5547, %v5543
    %v5788 = vpack.c.b16 %v5552, %v5548
    %v5789 = vpack.c.b16 %v5553, %v5549
    %v5790 = vpack.c.b16 %v5554, %v5550
    %v5791 = vpack.c.b16 %v5555, %v5551
    %v5792 = vpack.c.b16 %v5560, %v5556
    %v5793 = vpack.c.b16 %v5561, %v5557
    %v5794 = vpack.c.b16 %v5562, %v5558
    %v5795 = vpack.c.b16 %v5563, %v5559
    %v5796 = vpack.c.b16 %v5568, %v5564
    %v5797 = vpack.c.b16 %v5569, %v5565
    %v5798 = vpack.c.b16 %v5570, %v5566
    %v5799 = vpack.c.b16 %v5571, %v5567
    %v5800 = vpack.c.b16 %v5576, %v5572
    %v5801 = vpack.c.b16 %v5577, %v5573
    %v5802 = vpack.c.b16 %v5578, %v5574
    %v5803 = vpack.c.b16 %v5579, %v5575
    %v5804 = vpack.c.b16 %v5584, %v5580
    %v5805 = vpack.c.b16 %v5585, %v5581
    %v5806 = vpack.c.b16 %v5586, %v5582
    %v5807 = vpack.c.b16 %v5587, %v5583
    %v5808 = vpack.c.b16 %v5592, %v5588
    %v5809 = vpack.c.b16 %v5593, %v5589
    %v5810 = vpack.c.b16 %v5594, %v5590
    %v5811 = vpack.c.b16 %v5595, %v5591
    %v5812 = vpack.c.b16 %v5600, %v5596
    %v5813 = vpack.c.b16 %v5601, %v5597
    %v5814 = vpack.c.b16 %v5602, %v5598
    %v5815 = vpack.c.b16 %v5603, %v5599
    %v5816 = vpack.c.b16 %v5608, %v5604
    %v5817 = vpack.c.b16 %v5609, %v5605
    %v5818 = vpack.c.b16 %v5610, %v5606
    %v5819 = vpack.c.b16 %v5611, %v5607
    %v5820 = vpack.c.b16 %v5616, %v5612
    %v5821 = vpack.c.b16 %v5617, %v5613
    %v5822 = vpack.c.b16 %v5618, %v5614
    %v5823 = vpack.c.b16 %v5619, %v5615
    %v5824 = vpack.c.b16 %v5624, %v5620
    %v5825 = vpack.c.b16 %v5625, %v5621
    %v5826 = vpack.c.b16 %v5626, %v5622
    %v5827 = vpack.c.b16 %v5627, %v5623
    %v5828 = vpack.c.b16 %v5632, %v5628
    %v5829 = vpack.c.b16 %v5633, %v5629
    %v5830 = vpack.c.b16 %v5634, %v5630
    %v5831 = vpack.c.b16 %v5635, %v5631
    %v5832 = vpack.c.b16 %v5640, %v5636
    %v5833 = vpack.c.b16 %v5641, %v5637
    %v5834 = vpack.c.b16 %v5642, %v5638
    %v5835 = vpack.c.b16 %v5643, %v5639
    %v5836 = vpack.c.b16 %v5648, %v5644
    %v5837 = vpack.c.b16 %v5649, %v5645
    %v5838 = vpack.c.b16 %v5650, %v5646
    %v5839 = vpack.c.b16 %v5651, %v5647
    %v5840 = vpack.c.b16 %v5656, %v5652
    %v5841 = vpack.c.b16 %v5657, %v5653
    %v5842 = vpack.c.b16 %v5658, %v5654
    %v5843 = vpack.c.b16 %v5659, %v5655
    %v5844 = vpack.c.b16 %v5664, %v5660
    %v5845 = vpack.c.b16 %v5665, %v5661
    %v5846 = vpack.c.b16 %v5666, %v5662
    %v5847 = vpack.c.b16 %v5667, %v5663
    %v5848 = vpack.c.b16 %v5672, %v5668
    %v5849 = vpack.c.b16 %v5673, %v5669
    %v5850 = vpack.c.b16 %v5674, %v5670
    %v5851 = vpack.c.b16 %v5675, %v5671
    %v5852 = vpack.c.b16 %v5680, %v5676
    %v5853 = vpack.c.b16 %v5681, %v5677
    %v5854 = vpack.c.b16 %v5682, %v5678
    %v5855 = vpack.c.b16 %v5683, %v5679
    %v5856 = vpack.c.b16 %v5688, %v5684
    %v5857 = vpack.c.b16 %v5689, %v5685
    %v5858 = vpack.c.b16 %v5690, %v5686
    %v5859 = vpack.c.b16 %v5691, %v5687
    %v5860 = vpack.c.b16 %v5696, %v5692
    %v5861 = vpack.c.b16 %v5697, %v5693
    %v5862 = vpack.c.b16 %v5698, %v5694
    %v5863 = vpack.c.b16 %v5699, %v5695
    %v5864 = vpack.c.b16 %v5704, %v5700
    %v5865 = vpack.c.b16 %v5705, %v5701
    %v5866 = vpack.c.b16 %v5706, %v5702
    %v5867 = vpack.c.b16 %v5707, %v5703
    %v5868 = vpack.c.b16 %v5712, %v5708
    %v5869 = vpack.c.b16 %v5713, %v5709
    %v5870 = vpack.c.b16 %v5714, %v5710
    %v5871 = vpack.c.b16 %v5715, %v5711
    %v5872 = vpack.c.b16 %v5720, %v5716
    %v5873 = vpack.c.b16 %v5721, %v5717
    %v5874 = vpack.c.b16 %v5722, %v5718
    %v5875 = vpack.c.b16 %v5723, %v5719
    %v5876 = vpack.c.b16 %v5728, %v5724
    %v5877 = vpack.c.b16 %v5729, %v5725
    %v5878 = vpack.c.b16 %v5730, %v5726
    %v5879 = vpack.c.b16 %v5731, %v5727
    %v5880 = vpack.c.b16 %v5736, %v5732
    %v5881 = vpack.c.b16 %v5737, %v5733
    %v5882 = vpack.c.b16 %v5738, %v5734
    %v5883 = vpack.c.b16 %v5739, %v5735
    %v5884 = vpack.c.b16 %v5744, %v5740
    %v5885 = vpack.c.b16 %v5745, %v5741
    %v5886 = vpack.c.b16 %v5746, %v5742
    %v5887 = vpack.c.b16 %v5747, %v5743
    %v5888 = vpack.c.b16 %v5752, %v5748
    %v5889 = vpack.c.b16 %v5753, %v5749
    %v5890 = vpack.c.b16 %v5754, %v5750
    %v5891 = vpack.c.b16 %v5755, %v5751
    %v5892 = vpack.c.b16 %v5760, %v5756
    %v5893 = vpack.c.b16 %v5761, %v5757
    %v5894 = vpack.c.b16 %v5762, %v5758
    %v5895 = vpack.c.b16 %v5763, %v5759
    %v5896 = vpack.c.b16 %v5768, %v5764
    %v5897 = vpack.c.b16 %v5769, %v5765
    %v5898 = vpack.c.b16 %v5770, %v5766
    %v5899 = vpack.c.b16 %v5771, %v5767
    %6028 = vmatpush.bf16.msra.mxu0 %v5800
    %6029 = vmatpush.bf16.msra.mxu0 %v5796
    %6030 = vmatpush.bf16.msra.mxu0 %v5792
    %6031 = vmatpush.bf16.msra.mxu0 %v5788
    %6032 = vmatpush.bf16.msra.mxu0 %v5784
    %6033 = vmatpush.bf16.msra.mxu0 %v5780
    %6034 = vmatpush.bf16.msra.mxu0 %v5776
    %6035 = vmatpush.bf16.msra.mxu0 %v5772
    %6036 = vmatmul.bf16.gmra.mxu0 %v5244
    %v6037 = vpop.f32.mrf.mxu0
    %v6038 = vadd.f32 %v5380, %v6037
    %v6039 = vpop.f32.mrf.mxu0
    %6040 = vdwg.mxu0
    %6041 = vmatpush.bf16.msra.mxu0 %v5832
    %6042 = vmatpush.bf16.msra.mxu0 %v5828
    %6043 = vmatpush.bf16.msra.mxu0 %v5824
    %6044 = vmatpush.bf16.msra.mxu0 %v5820
    %6045 = vmatpush.bf16.msra.mxu0 %v5816
    %6046 = vmatpush.bf16.msra.mxu0 %v5812
    %6047 = vmatpush.bf16.msra.mxu0 %v5808
    %6048 = vmatpush.bf16.msra.mxu0 %v5804
    %6049 = vmatmul.bf16.gmra.mxu0 %v5245
    %v6050 = vpop.f32.mrf.mxu0
    %v6051 = vadd.f32 %v6038, %v6050
    %v6052 = vpop.f32.mrf.mxu0
    %6053 = vdwg.mxu0
    %6054 = vmatpush.bf16.msra.mxu0 %v5864
    %6055 = vmatpush.bf16.msra.mxu0 %v5860
    %6056 = vmatpush.bf16.msra.mxu0 %v5856
    %6057 = vmatpush.bf16.msra.mxu0 %v5852
    %6058 = vmatpush.bf16.msra.mxu0 %v5848
    %6059 = vmatpush.bf16.msra.mxu0 %v5844
    %6060 = vmatpush.bf16.msra.mxu0 %v5840
    %6061 = vmatpush.bf16.msra.mxu0 %v5836
    %6062 = vmatmul.bf16.gmra.mxu0 %v5246
    %v6063 = vpop.f32.mrf.mxu0
    %v6064 = vadd.f32 %v6051, %v6063
    %v6065 = vpop.f32.mrf.mxu0
    %6066 = vdwg.mxu0
    %6067 = vmatpush.bf16.msra.mxu0 %v5896
    %6068 = vmatpush.bf16.msra.mxu0 %v5892
    %6069 = vmatpush.bf16.msra.mxu0 %v5888
    %6070 = vmatpush.bf16.msra.mxu0 %v5884
    %6071 = vmatpush.bf16.msra.mxu0 %v5880
    %6072 = vmatpush.bf16.msra.mxu0 %v5876
    %6073 = vmatpush.bf16.msra.mxu0 %v5872
    %6074 = vmatpush.bf16.msra.mxu0 %v5868
    %6075 = vmatmul.bf16.gmra.mxu0 %v5247
    %v6076 = vpop.f32.mrf.mxu0
    %v6077 = vadd.f32 %v6064, %v6076
    %v6078 = vpop.f32.mrf.mxu0
    %6079 = vdwg.mxu0
    %6080 = vmatpush.bf16.msra.mxu0 %v5801
    %6081 = vmatpush.bf16.msra.mxu0 %v5797
    %6082 = vmatpush.bf16.msra.mxu0 %v5793
    %6083 = vmatpush.bf16.msra.mxu0 %v5789
    %6084 = vmatpush.bf16.msra.mxu0 %v5785
    %6085 = vmatpush.bf16.msra.mxu0 %v5781
    %6086 = vmatpush.bf16.msra.mxu0 %v5777
    %6087 = vmatpush.bf16.msra.mxu0 %v5773
    %6088 = vmatmul.bf16.gmra.mxu0 %v5244
    %v6089 = vpop.f32.mrf.mxu0
    %v6090 = vadd.f32 %v5381, %v6089
    %v6091 = vpop.f32.mrf.mxu0
    %6092 = vdwg.mxu0
    %6093 = vmatpush.bf16.msra.mxu0 %v5833
    %6094 = vmatpush.bf16.msra.mxu0 %v5829
    %6095 = vmatpush.bf16.msra.mxu0 %v5825
    %6096 = vmatpush.bf16.msra.mxu0 %v5821
    %6097 = vmatpush.bf16.msra.mxu0 %v5817
    %6098 = vmatpush.bf16.msra.mxu0 %v5813
    %6099 = vmatpush.bf16.msra.mxu0 %v5809
    %6100 = vmatpush.bf16.msra.mxu0 %v5805
    %6101 = vmatmul.bf16.gmra.mxu0 %v5245
    %v6102 = vpop.f32.mrf.mxu0
    %v6103 = vadd.f32 %v6090, %v6102
    %v6104 = vpop.f32.mrf.mxu0
    %6105 = vdwg.mxu0
    %6106 = vmatpush.bf16.msra.mxu0 %v5865
    %6107 = vmatpush.bf16.msra.mxu0 %v5861
    %6108 = vmatpush.bf16.msra.mxu0 %v5857
    %6109 = vmatpush.bf16.msra.mxu0 %v5853
    %6110 = vmatpush.bf16.msra.mxu0 %v5849
    %6111 = vmatpush.bf16.msra.mxu0 %v5845
    %6112 = vmatpush.bf16.msra.mxu0 %v5841
    %6113 = vmatpush.bf16.msra.mxu0 %v5837
    %6114 = vmatmul.bf16.gmra.mxu0 %v5246
    %v6115 = vpop.f32.mrf.mxu0
    %v6116 = vadd.f32 %v6103, %v6115
    %v6117 = vpop.f32.mrf.mxu0
    %6118 = vdwg.mxu0
    %6119 = vmatpush.bf16.msra.mxu0 %v5897
    %6120 = vmatpush.bf16.msra.mxu0 %v5893
    %6121 = vmatpush.bf16.msra.mxu0 %v5889
    %6122 = vmatpush.bf16.msra.mxu0 %v5885
    %6123 = vmatpush.bf16.msra.mxu0 %v5881
    %6124 = vmatpush.bf16.msra.mxu0 %v5877
    %6125 = vmatpush.bf16.msra.mxu0 %v5873
    %6126 = vmatpush.bf16.msra.mxu0 %v5869
    %6127 = vmatmul.bf16.gmra.mxu0 %v5247
    %v6128 = vpop.f32.mrf.mxu0
    %v6129 = vadd.f32 %v6116, %v6128
    %v6130 = vpop.f32.mrf.mxu0
    %6131 = vdwg.mxu0
    %6132 = vmatpush.bf16.msra.mxu0 %v5802
    %6133 = vmatpush.bf16.msra.mxu0 %v5798
    %6134 = vmatpush.bf16.msra.mxu0 %v5794
    %6135 = vmatpush.bf16.msra.mxu0 %v5790
    %6136 = vmatpush.bf16.msra.mxu0 %v5786
    %6137 = vmatpush.bf16.msra.mxu0 %v5782
    %6138 = vmatpush.bf16.msra.mxu0 %v5778
    %6139 = vmatpush.bf16.msra.mxu0 %v5774
    %6140 = vmatmul.bf16.gmra.mxu0 %v5244
    %v6141 = vpop.f32.mrf.mxu0
    %v6142 = vadd.f32 %v5382, %v6141
    %v6143 = vpop.f32.mrf.mxu0
    %6144 = vdwg.mxu0
    %6145 = vmatpush.bf16.msra.mxu0 %v5834
    %6146 = vmatpush.bf16.msra.mxu0 %v5830
    %6147 = vmatpush.bf16.msra.mxu0 %v5826
    %6148 = vmatpush.bf16.msra.mxu0 %v5822
    %6149 = vmatpush.bf16.msra.mxu0 %v5818
    %6150 = vmatpush.bf16.msra.mxu0 %v5814
    %6151 = vmatpush.bf16.msra.mxu0 %v5810
    %6152 = vmatpush.bf16.msra.mxu0 %v5806
    %6153 = vmatmul.bf16.gmra.mxu0 %v5245
    %v6154 = vpop.f32.mrf.mxu0
    %v6155 = vadd.f32 %v6142, %v6154
    %v6156 = vpop.f32.mrf.mxu0
    %6157 = vdwg.mxu0
    %6158 = vmatpush.bf16.msra.mxu0 %v5866
    %6159 = vmatpush.bf16.msra.mxu0 %v5862
    %6160 = vmatpush.bf16.msra.mxu0 %v5858
    %6161 = vmatpush.bf16.msra.mxu0 %v5854
    %6162 = vmatpush.bf16.msra.mxu0 %v5850
    %6163 = vmatpush.bf16.msra.mxu0 %v5846
    %6164 = vmatpush.bf16.msra.mxu0 %v5842
    %6165 = vmatpush.bf16.msra.mxu0 %v5838
    %6166 = vmatmul.bf16.gmra.mxu0 %v5246
    %v6167 = vpop.f32.mrf.mxu0
    %v6168 = vadd.f32 %v6155, %v6167
    %v6169 = vpop.f32.mrf.mxu0
    %6170 = vdwg.mxu0
    %6171 = vmatpush.bf16.msra.mxu0 %v5898
    %6172 = vmatpush.bf16.msra.mxu0 %v5894
    %6173 = vmatpush.bf16.msra.mxu0 %v5890
    %6174 = vmatpush.bf16.msra.mxu0 %v5886
    %6175 = vmatpush.bf16.msra.mxu0 %v5882
    %6176 = vmatpush.bf16.msra.mxu0 %v5878
    %6177 = vmatpush.bf16.msra.mxu0 %v5874
    %6178 = vmatpush.bf16.msra.mxu0 %v5870
    %6179 = vmatmul.bf16.gmra.mxu0 %v5247
    %v6180 = vpop.f32.mrf.mxu0
    %v6181 = vadd.f32 %v6168, %v6180
    %v6182 = vpop.f32.mrf.mxu0
    %6183 = vdwg.mxu0
    %6184 = vmatpush.bf16.msra.mxu0 %v5803
    %6185 = vmatpush.bf16.msra.mxu0 %v5799
    %6186 = vmatpush.bf16.msra.mxu0 %v5795
    %6187 = vmatpush.bf16.msra.mxu0 %v5791
    %6188 = vmatpush.bf16.msra.mxu0 %v5787
    %6189 = vmatpush.bf16.msra.mxu0 %v5783
    %6190 = vmatpush.bf16.msra.mxu0 %v5779
    %6191 = vmatpush.bf16.msra.mxu0 %v5775
    %6192 = vmatmul.bf16.gmra.mxu0 %v5244
    %v6193 = vpop.f32.mrf.mxu0
    %v6194 = vadd.f32 %v5383, %v6193
    %v6195 = vpop.f32.mrf.mxu0
    %6196 = vdwg.mxu0
    %6197 = vmatpush.bf16.msra.mxu0 %v5835
    %6198 = vmatpush.bf16.msra.mxu0 %v5831
    %6199 = vmatpush.bf16.msra.mxu0 %v5827
    %6200 = vmatpush.bf16.msra.mxu0 %v5823
    %6201 = vmatpush.bf16.msra.mxu0 %v5819
    %6202 = vmatpush.bf16.msra.mxu0 %v5815
    %6203 = vmatpush.bf16.msra.mxu0 %v5811
    %6204 = vmatpush.bf16.msra.mxu0 %v5807
    %6205 = vmatmul.bf16.gmra.mxu0 %v5245
    %v6206 = vpop.f32.mrf.mxu0
    %v6207 = vadd.f32 %v6194, %v6206
    %v6208 = vpop.f32.mrf.mxu0
    %6209 = vdwg.mxu0
    %6210 = vmatpush.bf16.msra.mxu0 %v5867
    %6211 = vmatpush.bf16.msra.mxu0 %v5863
    %6212 = vmatpush.bf16.msra.mxu0 %v5859
    %6213 = vmatpush.bf16.msra.mxu0 %v5855
    %6214 = vmatpush.bf16.msra.mxu0 %v5851
    %6215 = vmatpush.bf16.msra.mxu0 %v5847
    %6216 = vmatpush.bf16.msra.mxu0 %v5843
    %6217 = vmatpush.bf16.msra.mxu0 %v5839
    %6218 = vmatmul.bf16.gmra.mxu0 %v5246
    %v6219 = vpop.f32.mrf.mxu0
    %v6220 = vadd.f32 %v6207, %v6219
    %v6221 = vpop.f32.mrf.mxu0
    %6222 = vdwg.mxu0
    %6223 = vmatpush.bf16.msra.mxu0 %v5899
    %6224 = vmatpush.bf16.msra.mxu0 %v5895
    %6225 = vmatpush.bf16.msra.mxu0 %v5891
    %6226 = vmatpush.bf16.msra.mxu0 %v5887
    %6227 = vmatpush.bf16.msra.mxu0 %v5883
    %6228 = vmatpush.bf16.msra.mxu0 %v5879
    %6229 = vmatpush.bf16.msra.mxu0 %v5875
    %6230 = vmatpush.bf16.msra.mxu0 %v5871
    %6231 = vmatmul.bf16.gmra.mxu0 %v5247
    %v6232 = vpop.f32.mrf.mxu0
    %v6233 = vadd.f32 %v6220, %v6232
    %v6234 = vpop.f32.mrf.mxu0
    %6235 = vdwg.mxu0
    %v6236 = vmax.f32 %v6077, 0.0
    %v6237 = vmax.f32 %v6129, 0.0
    %v6238 = vmax.f32 %v6181, 0.0
    %v6239 = vmax.f32 %v6233, 0.0
    %vm6240 = vcmp.eq.s32.totalorder %v3253, 0
    %v6241 = vsel %vm6240, 1, 0
    %6242 = vset.pattern.permute.xlu0 0
    %6243 = vperm.xlu0 %6242, %v6241
    %v6244 = vpop.permute.xlu0 %6243
    %vm6245 = vcmp.eq.s32.totalorder %v6244, 1
    %v6246 = vsel %vm6245, %v6236, 0.0
    %v6247 = vsel %vm6245, %v6237, 0.0
    %v6248 = vsel %vm6245, %v6238, 0.0
    %v6249 = vsel %vm6245, %v6239, 0.0
    %s6250 = scalar_lea.vmem [#allocation11], 3072
    %v6251 = vld [vmem:[%s6250] sm:$0xff]
    %v6252 = vld [vmem:[%s6250 + $0x8] sm:$0xff]
    %v6253 = vld [vmem:[%s6250 + $0x10] sm:$0xff]
    %v6254 = vld [vmem:[%s6250 + $0x18] sm:$0xff]
    %v6255 = vld [vmem:[%s6250 + $0x20] sm:$0xff]
    %v6256 = vld [vmem:[%s6250 + $0x28] sm:$0xff]
    %v6257 = vld [vmem:[%s6250 + $0x30] sm:$0xff]
    %v6258 = vld [vmem:[%s6250 + $0x38] sm:$0xff]
    %v6259 = vld [vmem:[%s6250 + $0x40] sm:$0xff]
    %v6260 = vld [vmem:[%s6250 + $0x48] sm:$0xff]
    %v6261 = vld [vmem:[%s6250 + $0x50] sm:$0xff]
    %v6262 = vld [vmem:[%s6250 + $0x58] sm:$0xff]
    %v6263 = vld [vmem:[%s6250 + $0x60] sm:$0xff]
    %v6264 = vld [vmem:[%s6250 + $0x68] sm:$0xff]
    %v6265 = vld [vmem:[%s6250 + $0x70] sm:$0xff]
    %v6266 = vld [vmem:[%s6250 + $0x78] sm:$0xff]
    %v6267 = vld [vmem:[%s6250 + $0x80] sm:$0xff]
    %v6268 = vld [vmem:[%s6250 + $0x88] sm:$0xff]
    %v6269 = vld [vmem:[%s6250 + $0x90] sm:$0xff]
    %v6270 = vld [vmem:[%s6250 + $0x98] sm:$0xff]
    %v6271 = vld [vmem:[%s6250 + $0xa0] sm:$0xff]
    %v6272 = vld [vmem:[%s6250 + $0xa8] sm:$0xff]
    %v6273 = vld [vmem:[%s6250 + $0xb0] sm:$0xff]
    %v6274 = vld [vmem:[%s6250 + $0xb8] sm:$0xff]
    %v6275 = vld [vmem:[%s6250 + $0xc0] sm:$0xff]
    %v6276 = vld [vmem:[%s6250 + $0xc8] sm:$0xff]
    %v6277 = vld [vmem:[%s6250 + $0xd0] sm:$0xff]
    %v6278 = vld [vmem:[%s6250 + $0xd8] sm:$0xff]
    %v6279 = vld [vmem:[%s6250 + $0xe0] sm:$0xff]
    %v6280 = vld [vmem:[%s6250 + $0xe8] sm:$0xff]
    %v6281 = vld [vmem:[%s6250 + $0xf0] sm:$0xff]
    %v6282 = vld [vmem:[%s6250 + $0xf8] sm:$0xff]
    %v6283 = vld [vmem:[%s6250 + $0x100] sm:$0xff]
    %v6284 = vld [vmem:[%s6250 + $0x108] sm:$0xff]
    %v6285 = vld [vmem:[%s6250 + $0x110] sm:$0xff]
    %v6286 = vld [vmem:[%s6250 + $0x118] sm:$0xff]
    %v6287 = vld [vmem:[%s6250 + $0x120] sm:$0xff]
    %v6288 = vld [vmem:[%s6250 + $0x128] sm:$0xff]
    %v6289 = vld [vmem:[%s6250 + $0x130] sm:$0xff]
    %v6290 = vld [vmem:[%s6250 + $0x138] sm:$0xff]
    %v6291 = vld [vmem:[%s6250 + $0x140] sm:$0xff]
    %v6292 = vld [vmem:[%s6250 + $0x148] sm:$0xff]
    %v6293 = vld [vmem:[%s6250 + $0x150] sm:$0xff]
    %v6294 = vld [vmem:[%s6250 + $0x158] sm:$0xff]
    %v6295 = vld [vmem:[%s6250 + $0x160] sm:$0xff]
    %v6296 = vld [vmem:[%s6250 + $0x168] sm:$0xff]
    %v6297 = vld [vmem:[%s6250 + $0x170] sm:$0xff]
    %v6298 = vld [vmem:[%s6250 + $0x178] sm:$0xff]
    %v6299 = vld [vmem:[%s6250 + $0x180] sm:$0xff]
    %v6300 = vld [vmem:[%s6250 + $0x188] sm:$0xff]
    %v6301 = vld [vmem:[%s6250 + $0x190] sm:$0xff]
    %v6302 = vld [vmem:[%s6250 + $0x198] sm:$0xff]
    %v6303 = vld [vmem:[%s6250 + $0x1a0] sm:$0xff]
    %v6304 = vld [vmem:[%s6250 + $0x1a8] sm:$0xff]
    %v6305 = vld [vmem:[%s6250 + $0x1b0] sm:$0xff]
    %v6306 = vld [vmem:[%s6250 + $0x1b8] sm:$0xff]
    %v6307 = vld [vmem:[%s6250 + $0x1c0] sm:$0xff]
    %v6308 = vld [vmem:[%s6250 + $0x1c8] sm:$0xff]
    %v6309 = vld [vmem:[%s6250 + $0x1d0] sm:$0xff]
    %v6310 = vld [vmem:[%s6250 + $0x1d8] sm:$0xff]
    %v6311 = vld [vmem:[%s6250 + $0x1e0] sm:$0xff]
    %v6312 = vld [vmem:[%s6250 + $0x1e8] sm:$0xff]
    %v6313 = vld [vmem:[%s6250 + $0x1f0] sm:$0xff]
    %v6314 = vld [vmem:[%s6250 + $0x1f8] sm:$0xff]
    %v6315 = vld [vmem:[%s6250 + $0x200] sm:$0xff]
    %v6316 = vld [vmem:[%s6250 + $0x208] sm:$0xff]
    %v6317 = vld [vmem:[%s6250 + $0x210] sm:$0xff]
    %v6318 = vld [vmem:[%s6250 + $0x218] sm:$0xff]
    %v6319 = vld [vmem:[%s6250 + $0x220] sm:$0xff]
    %v6320 = vld [vmem:[%s6250 + $0x228] sm:$0xff]
    %v6321 = vld [vmem:[%s6250 + $0x230] sm:$0xff]
    %v6322 = vld [vmem:[%s6250 + $0x238] sm:$0xff]
    %v6323 = vld [vmem:[%s6250 + $0x240] sm:$0xff]
    %v6324 = vld [vmem:[%s6250 + $0x248] sm:$0xff]
    %v6325 = vld [vmem:[%s6250 + $0x250] sm:$0xff]
    %v6326 = vld [vmem:[%s6250 + $0x258] sm:$0xff]
    %v6327 = vld [vmem:[%s6250 + $0x260] sm:$0xff]
    %v6328 = vld [vmem:[%s6250 + $0x268] sm:$0xff]
    %v6329 = vld [vmem:[%s6250 + $0x270] sm:$0xff]
    %v6330 = vld [vmem:[%s6250 + $0x278] sm:$0xff]
    %v6331 = vld [vmem:[%s6250 + $0x280] sm:$0xff]
    %v6332 = vld [vmem:[%s6250 + $0x288] sm:$0xff]
    %v6333 = vld [vmem:[%s6250 + $0x290] sm:$0xff]
    %v6334 = vld [vmem:[%s6250 + $0x298] sm:$0xff]
    %v6335 = vld [vmem:[%s6250 + $0x2a0] sm:$0xff]
    %v6336 = vld [vmem:[%s6250 + $0x2a8] sm:$0xff]
    %v6337 = vld [vmem:[%s6250 + $0x2b0] sm:$0xff]
    %v6338 = vld [vmem:[%s6250 + $0x2b8] sm:$0xff]
    %v6339 = vld [vmem:[%s6250 + $0x2c0] sm:$0xff]
    %v6340 = vld [vmem:[%s6250 + $0x2c8] sm:$0xff]
    %v6341 = vld [vmem:[%s6250 + $0x2d0] sm:$0xff]
    %v6342 = vld [vmem:[%s6250 + $0x2d8] sm:$0xff]
    %v6343 = vld [vmem:[%s6250 + $0x2e0] sm:$0xff]
    %v6344 = vld [vmem:[%s6250 + $0x2e8] sm:$0xff]
    %v6345 = vld [vmem:[%s6250 + $0x2f0] sm:$0xff]
    %v6346 = vld [vmem:[%s6250 + $0x2f8] sm:$0xff]
    %v6347 = vld [vmem:[%s6250 + $0x300] sm:$0xff]
    %v6348 = vld [vmem:[%s6250 + $0x308] sm:$0xff]
    %v6349 = vld [vmem:[%s6250 + $0x310] sm:$0xff]
    %v6350 = vld [vmem:[%s6250 + $0x318] sm:$0xff]
    %v6351 = vld [vmem:[%s6250 + $0x320] sm:$0xff]
    %v6352 = vld [vmem:[%s6250 + $0x328] sm:$0xff]
    %v6353 = vld [vmem:[%s6250 + $0x330] sm:$0xff]
    %v6354 = vld [vmem:[%s6250 + $0x338] sm:$0xff]
    %v6355 = vld [vmem:[%s6250 + $0x340] sm:$0xff]
    %v6356 = vld [vmem:[%s6250 + $0x348] sm:$0xff]
    %v6357 = vld [vmem:[%s6250 + $0x350] sm:$0xff]
    %v6358 = vld [vmem:[%s6250 + $0x358] sm:$0xff]
    %v6359 = vld [vmem:[%s6250 + $0x360] sm:$0xff]
    %v6360 = vld [vmem:[%s6250 + $0x368] sm:$0xff]
    %v6361 = vld [vmem:[%s6250 + $0x370] sm:$0xff]
    %v6362 = vld [vmem:[%s6250 + $0x378] sm:$0xff]
    %v6363 = vld [vmem:[%s6250 + $0x380] sm:$0xff]
    %v6364 = vld [vmem:[%s6250 + $0x388] sm:$0xff]
    %v6365 = vld [vmem:[%s6250 + $0x390] sm:$0xff]
    %v6366 = vld [vmem:[%s6250 + $0x398] sm:$0xff]
    %v6367 = vld [vmem:[%s6250 + $0x3a0] sm:$0xff]
    %v6368 = vld [vmem:[%s6250 + $0x3a8] sm:$0xff]
    %v6369 = vld [vmem:[%s6250 + $0x3b0] sm:$0xff]
    %v6370 = vld [vmem:[%s6250 + $0x3b8] sm:$0xff]
    %v6371 = vld [vmem:[%s6250 + $0x3c0] sm:$0xff]
    %v6372 = vld [vmem:[%s6250 + $0x3c8] sm:$0xff]
    %v6373 = vld [vmem:[%s6250 + $0x3d0] sm:$0xff]
    %v6374 = vld [vmem:[%s6250 + $0x3d8] sm:$0xff]
    %v6375 = vld [vmem:[%s6250 + $0x3e0] sm:$0xff]
    %v6376 = vld [vmem:[%s6250 + $0x3e8] sm:$0xff]
    %v6377 = vld [vmem:[%s6250 + $0x3f0] sm:$0xff]
    %v6378 = vld [vmem:[%s6250 + $0x3f8] sm:$0xff]
    %s6379 = scalar_lea.vmem [#allocation13], 12
    %v6380 = vld [vmem:[%s6379] sm:$0xf]
    %v6382 = vperm.slane %v6380, 0
    %v6383 = vperm.slane %v6380, 1
    %v6384 = vperm.slane %v6380, 2
    %v6385 = vperm.slane %v6380, 3
    %v6518 = vunpack.c.l.b16 %v6251
    %v6519 = vunpack.c.h.b16 %v6251
    %v6520 = vunpack.c.l.b16 %v6252
    %v6521 = vunpack.c.h.b16 %v6252
    %v6522 = vunpack.c.l.b16 %v6253
    %v6523 = vunpack.c.h.b16 %v6253
    %v6524 = vunpack.c.l.b16 %v6254
    %v6525 = vunpack.c.h.b16 %v6254
    %v6526 = vunpack.c.l.b16 %v6255
    %v6527 = vunpack.c.h.b16 %v6255
    %v6528 = vunpack.c.l.b16 %v6256
    %v6529 = vunpack.c.h.b16 %v6256
    %v6530 = vunpack.c.l.b16 %v6257
    %v6531 = vunpack.c.h.b16 %v6257
    %v6532 = vunpack.c.l.b16 %v6258
    %v6533 = vunpack.c.h.b16 %v6258
    %v6534 = vunpack.c.l.b16 %v6259
    %v6535 = vunpack.c.h.b16 %v6259
    %v6536 = vunpack.c.l.b16 %v6260
    %v6537 = vunpack.c.h.b16 %v6260
    %v6538 = vunpack.c.l.b16 %v6261
    %v6539 = vunpack.c.h.b16 %v6261
    %v6540 = vunpack.c.l.b16 %v6262
    %v6541 = vunpack.c.h.b16 %v6262
    %v6542 = vunpack.c.l.b16 %v6263
    %v6543 = vunpack.c.h.b16 %v6263
    %v6544 = vunpack.c.l.b16 %v6264
    %v6545 = vunpack.c.h.b16 %v6264
    %v6546 = vunpack.c.l.b16 %v6265
    %v6547 = vunpack.c.h.b16 %v6265
    %v6548 = vunpack.c.l.b16 %v6266
    %v6549 = vunpack.c.h.b16 %v6266
    %v6550 = vunpack.c.l.b16 %v6267
    %v6551 = vunpack.c.h.b16 %v6267
    %v6552 = vunpack.c.l.b16 %v6268
    %v6553 = vunpack.c.h.b16 %v6268
    %v6554 = vunpack.c.l.b16 %v6269
    %v6555 = vunpack.c.h.b16 %v6269
    %v6556 = vunpack.c.l.b16 %v6270
    %v6557 = vunpack.c.h.b16 %v6270
    %v6558 = vunpack.c.l.b16 %v6271
    %v6559 = vunpack.c.h.b16 %v6271
    %v6560 = vunpack.c.l.b16 %v6272
    %v6561 = vunpack.c.h.b16 %v6272
    %v6562 = vunpack.c.l.b16 %v6273
    %v6563 = vunpack.c.h.b16 %v6273
    %v6564 = vunpack.c.l.b16 %v6274
    %v6565 = vunpack.c.h.b16 %v6274
    %v6566 = vunpack.c.l.b16 %v6275
    %v6567 = vunpack.c.h.b16 %v6275
    %v6568 = vunpack.c.l.b16 %v6276
    %v6569 = vunpack.c.h.b16 %v6276
    %v6570 = vunpack.c.l.b16 %v6277
    %v6571 = vunpack.c.h.b16 %v6277
    %v6572 = vunpack.c.l.b16 %v6278
    %v6573 = vunpack.c.h.b16 %v6278
    %v6574 = vunpack.c.l.b16 %v6279
    %v6575 = vunpack.c.h.b16 %v6279
    %v6576 = vunpack.c.l.b16 %v6280
    %v6577 = vunpack.c.h.b16 %v6280
    %v6578 = vunpack.c.l.b16 %v6281
    %v6579 = vunpack.c.h.b16 %v6281
    %v6580 = vunpack.c.l.b16 %v6282
    %v6581 = vunpack.c.h.b16 %v6282
    %v6582 = vunpack.c.l.b16 %v6283
    %v6583 = vunpack.c.h.b16 %v6283
    %v6584 = vunpack.c.l.b16 %v6284
    %v6585 = vunpack.c.h.b16 %v6284
    %v6586 = vunpack.c.l.b16 %v6285
    %v6587 = vunpack.c.h.b16 %v6285
    %v6588 = vunpack.c.l.b16 %v6286
    %v6589 = vunpack.c.h.b16 %v6286
    %v6590 = vunpack.c.l.b16 %v6287
    %v6591 = vunpack.c.h.b16 %v6287
    %v6592 = vunpack.c.l.b16 %v6288
    %v6593 = vunpack.c.h.b16 %v6288
    %v6594 = vunpack.c.l.b16 %v6289
    %v6595 = vunpack.c.h.b16 %v6289
    %v6596 = vunpack.c.l.b16 %v6290
    %v6597 = vunpack.c.h.b16 %v6290
    %v6598 = vunpack.c.l.b16 %v6291
    %v6599 = vunpack.c.h.b16 %v6291
    %v6600 = vunpack.c.l.b16 %v6292
    %v6601 = vunpack.c.h.b16 %v6292
    %v6602 = vunpack.c.l.b16 %v6293
    %v6603 = vunpack.c.h.b16 %v6293
    %v6604 = vunpack.c.l.b16 %v6294
    %v6605 = vunpack.c.h.b16 %v6294
    %v6606 = vunpack.c.l.b16 %v6295
    %v6607 = vunpack.c.h.b16 %v6295
    %v6608 = vunpack.c.l.b16 %v6296
    %v6609 = vunpack.c.h.b16 %v6296
    %v6610 = vunpack.c.l.b16 %v6297
    %v6611 = vunpack.c.h.b16 %v6297
    %v6612 = vunpack.c.l.b16 %v6298
    %v6613 = vunpack.c.h.b16 %v6298
    %v6614 = vunpack.c.l.b16 %v6299
    %v6615 = vunpack.c.h.b16 %v6299
    %v6616 = vunpack.c.l.b16 %v6300
    %v6617 = vunpack.c.h.b16 %v6300
    %v6618 = vunpack.c.l.b16 %v6301
    %v6619 = vunpack.c.h.b16 %v6301
    %v6620 = vunpack.c.l.b16 %v6302
    %v6621 = vunpack.c.h.b16 %v6302
    %v6622 = vunpack.c.l.b16 %v6303
    %v6623 = vunpack.c.h.b16 %v6303
    %v6624 = vunpack.c.l.b16 %v6304
    %v6625 = vunpack.c.h.b16 %v6304
    %v6626 = vunpack.c.l.b16 %v6305
    %v6627 = vunpack.c.h.b16 %v6305
    %v6628 = vunpack.c.l.b16 %v6306
    %v6629 = vunpack.c.h.b16 %v6306
    %v6630 = vunpack.c.l.b16 %v6307
    %v6631 = vunpack.c.h.b16 %v6307
    %v6632 = vunpack.c.l.b16 %v6308
    %v6633 = vunpack.c.h.b16 %v6308
    %v6634 = vunpack.c.l.b16 %v6309
    %v6635 = vunpack.c.h.b16 %v6309
    %v6636 = vunpack.c.l.b16 %v6310
    %v6637 = vunpack.c.h.b16 %v6310
    %v6638 = vunpack.c.l.b16 %v6311
    %v6639 = vunpack.c.h.b16 %v6311
    %v6640 = vunpack.c.l.b16 %v6312
    %v6641 = vunpack.c.h.b16 %v6312
    %v6642 = vunpack.c.l.b16 %v6313
    %v6643 = vunpack.c.h.b16 %v6313
    %v6644 = vunpack.c.l.b16 %v6314
    %v6645 = vunpack.c.h.b16 %v6314
    %v6646 = vunpack.c.l.b16 %v6315
    %v6647 = vunpack.c.h.b16 %v6315
    %v6648 = vunpack.c.l.b16 %v6316
    %v6649 = vunpack.c.h.b16 %v6316
    %v6650 = vunpack.c.l.b16 %v6317
    %v6651 = vunpack.c.h.b16 %v6317
    %v6652 = vunpack.c.l.b16 %v6318
    %v6653 = vunpack.c.h.b16 %v6318
    %v6654 = vunpack.c.l.b16 %v6319
    %v6655 = vunpack.c.h.b16 %v6319
    %v6656 = vunpack.c.l.b16 %v6320
    %v6657 = vunpack.c.h.b16 %v6320
    %v6658 = vunpack.c.l.b16 %v6321
    %v6659 = vunpack.c.h.b16 %v6321
    %v6660 = vunpack.c.l.b16 %v6322
    %v6661 = vunpack.c.h.b16 %v6322
    %v6662 = vunpack.c.l.b16 %v6323
    %v6663 = vunpack.c.h.b16 %v6323
    %v6664 = vunpack.c.l.b16 %v6324
    %v6665 = vunpack.c.h.b16 %v6324
    %v6666 = vunpack.c.l.b16 %v6325
    %v6667 = vunpack.c.h.b16 %v6325
    %v6668 = vunpack.c.l.b16 %v6326
    %v6669 = vunpack.c.h.b16 %v6326
    %v6670 = vunpack.c.l.b16 %v6327
    %v6671 = vunpack.c.h.b16 %v6327
    %v6672 = vunpack.c.l.b16 %v6328
    %v6673 = vunpack.c.h.b16 %v6328
    %v6674 = vunpack.c.l.b16 %v6329
    %v6675 = vunpack.c.h.b16 %v6329
    %v6676 = vunpack.c.l.b16 %v6330
    %v6677 = vunpack.c.h.b16 %v6330
    %v6678 = vunpack.c.l.b16 %v6331
    %v6679 = vunpack.c.h.b16 %v6331
    %v6680 = vunpack.c.l.b16 %v6332
    %v6681 = vunpack.c.h.b16 %v6332
    %v6682 = vunpack.c.l.b16 %v6333
    %v6683 = vunpack.c.h.b16 %v6333
    %v6684 = vunpack.c.l.b16 %v6334
    %v6685 = vunpack.c.h.b16 %v6334
    %v6686 = vunpack.c.l.b16 %v6335
    %v6687 = vunpack.c.h.b16 %v6335
    %v6688 = vunpack.c.l.b16 %v6336
    %v6689 = vunpack.c.h.b16 %v6336
    %v6690 = vunpack.c.l.b16 %v6337
    %v6691 = vunpack.c.h.b16 %v6337
    %v6692 = vunpack.c.l.b16 %v6338
    %v6693 = vunpack.c.h.b16 %v6338
    %v6694 = vunpack.c.l.b16 %v6339
    %v6695 = vunpack.c.h.b16 %v6339
    %v6696 = vunpack.c.l.b16 %v6340
    %v6697 = vunpack.c.h.b16 %v6340
    %v6698 = vunpack.c.l.b16 %v6341
    %v6699 = vunpack.c.h.b16 %v6341
    %v6700 = vunpack.c.l.b16 %v6342
    %v6701 = vunpack.c.h.b16 %v6342
    %v6702 = vunpack.c.l.b16 %v6343
    %v6703 = vunpack.c.h.b16 %v6343
    %v6704 = vunpack.c.l.b16 %v6344
    %v6705 = vunpack.c.h.b16 %v6344
    %v6706 = vunpack.c.l.b16 %v6345
    %v6707 = vunpack.c.h.b16 %v6345
    %v6708 = vunpack.c.l.b16 %v6346
    %v6709 = vunpack.c.h.b16 %v6346
    %v6710 = vunpack.c.l.b16 %v6347
    %v6711 = vunpack.c.h.b16 %v6347
    %v6712 = vunpack.c.l.b16 %v6348
    %v6713 = vunpack.c.h.b16 %v6348
    %v6714 = vunpack.c.l.b16 %v6349
    %v6715 = vunpack.c.h.b16 %v6349
    %v6716 = vunpack.c.l.b16 %v6350
    %v6717 = vunpack.c.h.b16 %v6350
    %v6718 = vunpack.c.l.b16 %v6351
    %v6719 = vunpack.c.h.b16 %v6351
    %v6720 = vunpack.c.l.b16 %v6352
    %v6721 = vunpack.c.h.b16 %v6352
    %v6722 = vunpack.c.l.b16 %v6353
    %v6723 = vunpack.c.h.b16 %v6353
    %v6724 = vunpack.c.l.b16 %v6354
    %v6725 = vunpack.c.h.b16 %v6354
    %v6726 = vunpack.c.l.b16 %v6355
    %v6727 = vunpack.c.h.b16 %v6355
    %v6728 = vunpack.c.l.b16 %v6356
    %v6729 = vunpack.c.h.b16 %v6356
    %v6730 = vunpack.c.l.b16 %v6357
    %v6731 = vunpack.c.h.b16 %v6357
    %v6732 = vunpack.c.l.b16 %v6358
    %v6733 = vunpack.c.h.b16 %v6358
    %v6734 = vunpack.c.l.b16 %v6359
    %v6735 = vunpack.c.h.b16 %v6359
    %v6736 = vunpack.c.l.b16 %v6360
    %v6737 = vunpack.c.h.b16 %v6360
    %v6738 = vunpack.c.l.b16 %v6361
    %v6739 = vunpack.c.h.b16 %v6361
    %v6740 = vunpack.c.l.b16 %v6362
    %v6741 = vunpack.c.h.b16 %v6362
    %v6742 = vunpack.c.l.b16 %v6363
    %v6743 = vunpack.c.h.b16 %v6363
    %v6744 = vunpack.c.l.b16 %v6364
    %v6745 = vunpack.c.h.b16 %v6364
    %v6746 = vunpack.c.l.b16 %v6365
    %v6747 = vunpack.c.h.b16 %v6365
    %v6748 = vunpack.c.l.b16 %v6366
    %v6749 = vunpack.c.h.b16 %v6366
    %v6750 = vunpack.c.l.b16 %v6367
    %v6751 = vunpack.c.h.b16 %v6367
    %v6752 = vunpack.c.l.b16 %v6368
    %v6753 = vunpack.c.h.b16 %v6368
    %v6754 = vunpack.c.l.b16 %v6369
    %v6755 = vunpack.c.h.b16 %v6369
    %v6756 = vunpack.c.l.b16 %v6370
    %v6757 = vunpack.c.h.b16 %v6370
    %v6758 = vunpack.c.l.b16 %v6371
    %v6759 = vunpack.c.h.b16 %v6371
    %v6760 = vunpack.c.l.b16 %v6372
    %v6761 = vunpack.c.h.b16 %v6372
    %v6762 = vunpack.c.l.b16 %v6373
    %v6763 = vunpack.c.h.b16 %v6373
    %v6764 = vunpack.c.l.b16 %v6374
    %v6765 = vunpack.c.h.b16 %v6374
    %v6766 = vunpack.c.l.b16 %v6375
    %v6767 = vunpack.c.h.b16 %v6375
    %v6768 = vunpack.c.l.b16 %v6376
    %v6769 = vunpack.c.h.b16 %v6376
    %v6770 = vunpack.c.l.b16 %v6377
    %v6771 = vunpack.c.h.b16 %v6377
    %v6772 = vunpack.c.l.b16 %v6378
    %v6773 = vunpack.c.h.b16 %v6378
    %v6774 = vpack.c.b16 %v6522, %v6518
    %v6775 = vpack.c.b16 %v6523, %v6519
    %v6776 = vpack.c.b16 %v6524, %v6520
    %v6777 = vpack.c.b16 %v6525, %v6521
    %v6778 = vpack.c.b16 %v6530, %v6526
    %v6779 = vpack.c.b16 %v6531, %v6527
    %v6780 = vpack.c.b16 %v6532, %v6528
    %v6781 = vpack.c.b16 %v6533, %v6529
    %v6782 = vpack.c.b16 %v6538, %v6534
    %v6783 = vpack.c.b16 %v6539, %v6535
    %v6784 = vpack.c.b16 %v6540, %v6536
    %v6785 = vpack.c.b16 %v6541, %v6537
    %v6786 = vpack.c.b16 %v6546, %v6542
    %v6787 = vpack.c.b16 %v6547, %v6543
    %v6788 = vpack.c.b16 %v6548, %v6544
    %v6789 = vpack.c.b16 %v6549, %v6545
    %v6790 = vpack.c.b16 %v6554, %v6550
    %v6791 = vpack.c.b16 %v6555, %v6551
    %v6792 = vpack.c.b16 %v6556, %v6552
    %v6793 = vpack.c.b16 %v6557, %v6553
    %v6794 = vpack.c.b16 %v6562, %v6558
    %v6795 = vpack.c.b16 %v6563, %v6559
    %v6796 = vpack.c.b16 %v6564, %v6560
    %v6797 = vpack.c.b16 %v6565, %v6561
    %v6798 = vpack.c.b16 %v6570, %v6566
    %v6799 = vpack.c.b16 %v6571, %v6567
    %v6800 = vpack.c.b16 %v6572, %v6568
    %v6801 = vpack.c.b16 %v6573, %v6569
    %v6802 = vpack.c.b16 %v6578, %v6574
    %v6803 = vpack.c.b16 %v6579, %v6575
    %v6804 = vpack.c.b16 %v6580, %v6576
    %v6805 = vpack.c.b16 %v6581, %v6577
    %v6806 = vpack.c.b16 %v6586, %v6582
    %v6807 = vpack.c.b16 %v6587, %v6583
    %v6808 = vpack.c.b16 %v6588, %v6584
    %v6809 = vpack.c.b16 %v6589, %v6585
    %v6810 = vpack.c.b16 %v6594, %v6590
    %v6811 = vpack.c.b16 %v6595, %v6591
    %v6812 = vpack.c.b16 %v6596, %v6592
    %v6813 = vpack.c.b16 %v6597, %v6593
    %v6814 = vpack.c.b16 %v6602, %v6598
    %v6815 = vpack.c.b16 %v6603, %v6599
    %v6816 = vpack.c.b16 %v6604, %v6600
    %v6817 = vpack.c.b16 %v6605, %v6601
    %v6818 = vpack.c.b16 %v6610, %v6606
    %v6819 = vpack.c.b16 %v6611, %v6607
    %v6820 = vpack.c.b16 %v6612, %v6608
    %v6821 = vpack.c.b16 %v6613, %v6609
    %v6822 = vpack.c.b16 %v6618, %v6614
    %v6823 = vpack.c.b16 %v6619, %v6615
    %v6824 = vpack.c.b16 %v6620, %v6616
    %v6825 = vpack.c.b16 %v6621, %v6617
    %v6826 = vpack.c.b16 %v6626, %v6622
    %v6827 = vpack.c.b16 %v6627, %v6623
    %v6828 = vpack.c.b16 %v6628, %v6624
    %v6829 = vpack.c.b16 %v6629, %v6625
    %v6830 = vpack.c.b16 %v6634, %v6630
    %v6831 = vpack.c.b16 %v6635, %v6631
    %v6832 = vpack.c.b16 %v6636, %v6632
    %v6833 = vpack.c.b16 %v6637, %v6633
    %v6834 = vpack.c.b16 %v6642, %v6638
    %v6835 = vpack.c.b16 %v6643, %v6639
    %v6836 = vpack.c.b16 %v6644, %v6640
    %v6837 = vpack.c.b16 %v6645, %v6641
    %v6838 = vpack.c.b16 %v6650, %v6646
    %v6839 = vpack.c.b16 %v6651, %v6647
    %v6840 = vpack.c.b16 %v6652, %v6648
    %v6841 = vpack.c.b16 %v6653, %v6649
    %v6842 = vpack.c.b16 %v6658, %v6654
    %v6843 = vpack.c.b16 %v6659, %v6655
    %v6844 = vpack.c.b16 %v6660, %v6656
    %v6845 = vpack.c.b16 %v6661, %v6657
    %v6846 = vpack.c.b16 %v6666, %v6662
    %v6847 = vpack.c.b16 %v6667, %v6663
    %v6848 = vpack.c.b16 %v6668, %v6664
    %v6849 = vpack.c.b16 %v6669, %v6665
    %v6850 = vpack.c.b16 %v6674, %v6670
    %v6851 = vpack.c.b16 %v6675, %v6671
    %v6852 = vpack.c.b16 %v6676, %v6672
    %v6853 = vpack.c.b16 %v6677, %v6673
    %v6854 = vpack.c.b16 %v6682, %v6678
    %v6855 = vpack.c.b16 %v6683, %v6679
    %v6856 = vpack.c.b16 %v6684, %v6680
    %v6857 = vpack.c.b16 %v6685, %v6681
    %v6858 = vpack.c.b16 %v6690, %v6686
    %v6859 = vpack.c.b16 %v6691, %v6687
    %v6860 = vpack.c.b16 %v6692, %v6688
    %v6861 = vpack.c.b16 %v6693, %v6689
    %v6862 = vpack.c.b16 %v6698, %v6694
    %v6863 = vpack.c.b16 %v6699, %v6695
    %v6864 = vpack.c.b16 %v6700, %v6696
    %v6865 = vpack.c.b16 %v6701, %v6697
    %v6866 = vpack.c.b16 %v6706, %v6702
    %v6867 = vpack.c.b16 %v6707, %v6703
    %v6868 = vpack.c.b16 %v6708, %v6704
    %v6869 = vpack.c.b16 %v6709, %v6705
    %v6870 = vpack.c.b16 %v6714, %v6710
    %v6871 = vpack.c.b16 %v6715, %v6711
    %v6872 = vpack.c.b16 %v6716, %v6712
    %v6873 = vpack.c.b16 %v6717, %v6713
    %v6874 = vpack.c.b16 %v6722, %v6718
    %v6875 = vpack.c.b16 %v6723, %v6719
    %v6876 = vpack.c.b16 %v6724, %v6720
    %v6877 = vpack.c.b16 %v6725, %v6721
    %v6878 = vpack.c.b16 %v6730, %v6726
    %v6879 = vpack.c.b16 %v6731, %v6727
    %v6880 = vpack.c.b16 %v6732, %v6728
    %v6881 = vpack.c.b16 %v6733, %v6729
    %v6882 = vpack.c.b16 %v6738, %v6734
    %v6883 = vpack.c.b16 %v6739, %v6735
    %v6884 = vpack.c.b16 %v6740, %v6736
    %v6885 = vpack.c.b16 %v6741, %v6737
    %v6886 = vpack.c.b16 %v6746, %v6742
    %v6887 = vpack.c.b16 %v6747, %v6743
    %v6888 = vpack.c.b16 %v6748, %v6744
    %v6889 = vpack.c.b16 %v6749, %v6745
    %v6890 = vpack.c.b16 %v6754, %v6750
    %v6891 = vpack.c.b16 %v6755, %v6751
    %v6892 = vpack.c.b16 %v6756, %v6752
    %v6893 = vpack.c.b16 %v6757, %v6753
    %v6894 = vpack.c.b16 %v6762, %v6758
    %v6895 = vpack.c.b16 %v6763, %v6759
    %v6896 = vpack.c.b16 %v6764, %v6760
    %v6897 = vpack.c.b16 %v6765, %v6761
    %v6898 = vpack.c.b16 %v6770, %v6766
    %v6899 = vpack.c.b16 %v6771, %v6767
    %v6900 = vpack.c.b16 %v6772, %v6768
    %v6901 = vpack.c.b16 %v6773, %v6769
    %7030 = vmatpush.bf16.msra.mxu0 %v6802
    %7031 = vmatpush.bf16.msra.mxu0 %v6798
    %7032 = vmatpush.bf16.msra.mxu0 %v6794
    %7033 = vmatpush.bf16.msra.mxu0 %v6790
    %7034 = vmatpush.bf16.msra.mxu0 %v6786
    %7035 = vmatpush.bf16.msra.mxu0 %v6782
    %7036 = vmatpush.bf16.msra.mxu0 %v6778
    %7037 = vmatpush.bf16.msra.mxu0 %v6774
    %7038 = vmatmul.bf16.gmra.mxu0 %v3254
    %v7039 = vpop.f32.mrf.mxu0
    %v7040 = vadd.f32 %v6382, %v7039
    %v7041 = vpop.f32.mrf.mxu0
    %7042 = vdwg.mxu0
    %7043 = vmatpush.bf16.msra.mxu0 %v6834
    %7044 = vmatpush.bf16.msra.mxu0 %v6830
    %7045 = vmatpush.bf16.msra.mxu0 %v6826
    %7046 = vmatpush.bf16.msra.mxu0 %v6822
    %7047 = vmatpush.bf16.msra.mxu0 %v6818
    %7048 = vmatpush.bf16.msra.mxu0 %v6814
    %7049 = vmatpush.bf16.msra.mxu0 %v6810
    %7050 = vmatpush.bf16.msra.mxu0 %v6806
    %7051 = vmatmul.bf16.gmra.mxu0 %v3255
    %v7052 = vpop.f32.mrf.mxu0
    %v7053 = vadd.f32 %v7040, %v7052
    %v7054 = vpop.f32.mrf.mxu0
    %7055 = vdwg.mxu0
    %7056 = vmatpush.bf16.msra.mxu0 %v6866
    %7057 = vmatpush.bf16.msra.mxu0 %v6862
    %7058 = vmatpush.bf16.msra.mxu0 %v6858
    %7059 = vmatpush.bf16.msra.mxu0 %v6854
    %7060 = vmatpush.bf16.msra.mxu0 %v6850
    %7061 = vmatpush.bf16.msra.mxu0 %v6846
    %7062 = vmatpush.bf16.msra.mxu0 %v6842
    %7063 = vmatpush.bf16.msra.mxu0 %v6838
    %7064 = vmatmul.bf16.gmra.mxu0 %v3256
    %v7065 = vpop.f32.mrf.mxu0
    %v7066 = vadd.f32 %v7053, %v7065
    %v7067 = vpop.f32.mrf.mxu0
    %7068 = vdwg.mxu0
    %7069 = vmatpush.bf16.msra.mxu0 %v6898
    %7070 = vmatpush.bf16.msra.mxu0 %v6894
    %7071 = vmatpush.bf16.msra.mxu0 %v6890
    %7072 = vmatpush.bf16.msra.mxu0 %v6886
    %7073 = vmatpush.bf16.msra.mxu0 %v6882
    %7074 = vmatpush.bf16.msra.mxu0 %v6878
    %7075 = vmatpush.bf16.msra.mxu0 %v6874
    %7076 = vmatpush.bf16.msra.mxu0 %v6870
    %7077 = vmatmul.bf16.gmra.mxu0 %v3257
    %v7078 = vpop.f32.mrf.mxu0
    %v7079 = vadd.f32 %v7066, %v7078
    %v7080 = vpop.f32.mrf.mxu0
    %7081 = vdwg.mxu0
    %7082 = vmatpush.bf16.msra.mxu0 %v6803
    %7083 = vmatpush.bf16.msra.mxu0 %v6799
    %7084 = vmatpush.bf16.msra.mxu0 %v6795
    %7085 = vmatpush.bf16.msra.mxu0 %v6791
    %7086 = vmatpush.bf16.msra.mxu0 %v6787
    %7087 = vmatpush.bf16.msra.mxu0 %v6783
    %7088 = vmatpush.bf16.msra.mxu0 %v6779
    %7089 = vmatpush.bf16.msra.mxu0 %v6775
    %7090 = vmatmul.bf16.gmra.mxu0 %v3254
    %v7091 = vpop.f32.mrf.mxu0
    %v7092 = vadd.f32 %v6383, %v7091
    %v7093 = vpop.f32.mrf.mxu0
    %7094 = vdwg.mxu0
    %7095 = vmatpush.bf16.msra.mxu0 %v6835
    %7096 = vmatpush.bf16.msra.mxu0 %v6831
    %7097 = vmatpush.bf16.msra.mxu0 %v6827
    %7098 = vmatpush.bf16.msra.mxu0 %v6823
    %7099 = vmatpush.bf16.msra.mxu0 %v6819
    %7100 = vmatpush.bf16.msra.mxu0 %v6815
    %7101 = vmatpush.bf16.msra.mxu0 %v6811
    %7102 = vmatpush.bf16.msra.mxu0 %v6807
    %7103 = vmatmul.bf16.gmra.mxu0 %v3255
    %v7104 = vpop.f32.mrf.mxu0
    %v7105 = vadd.f32 %v7092, %v7104
    %v7106 = vpop.f32.mrf.mxu0
    %7107 = vdwg.mxu0
    %7108 = vmatpush.bf16.msra.mxu0 %v6867
    %7109 = vmatpush.bf16.msra.mxu0 %v6863
    %7110 = vmatpush.bf16.msra.mxu0 %v6859
    %7111 = vmatpush.bf16.msra.mxu0 %v6855
    %7112 = vmatpush.bf16.msra.mxu0 %v6851
    %7113 = vmatpush.bf16.msra.mxu0 %v6847
    %7114 = vmatpush.bf16.msra.mxu0 %v6843
    %7115 = vmatpush.bf16.msra.mxu0 %v6839
    %7116 = vmatmul.bf16.gmra.mxu0 %v3256
    %v7117 = vpop.f32.mrf.mxu0
    %v7118 = vadd.f32 %v7105, %v7117
    %v7119 = vpop.f32.mrf.mxu0
    %7120 = vdwg.mxu0
    %7121 = vmatpush.bf16.msra.mxu0 %v6899
    %7122 = vmatpush.bf16.msra.mxu0 %v6895
    %7123 = vmatpush.bf16.msra.mxu0 %v6891
    %7124 = vmatpush.bf16.msra.mxu0 %v6887
    %7125 = vmatpush.bf16.msra.mxu0 %v6883
    %7126 = vmatpush.bf16.msra.mxu0 %v6879
    %7127 = vmatpush.bf16.msra.mxu0 %v6875
    %7128 = vmatpush.bf16.msra.mxu0 %v6871
    %7129 = vmatmul.bf16.gmra.mxu0 %v3257
    %v7130 = vpop.f32.mrf.mxu0
    %v7131 = vadd.f32 %v7118, %v7130
    %v7132 = vpop.f32.mrf.mxu0
    %7133 = vdwg.mxu0
    %7134 = vmatpush.bf16.msra.mxu0 %v6804
    %7135 = vmatpush.bf16.msra.mxu0 %v6800
    %7136 = vmatpush.bf16.msra.mxu0 %v6796
    %7137 = vmatpush.bf16.msra.mxu0 %v6792
    %7138 = vmatpush.bf16.msra.mxu0 %v6788
    %7139 = vmatpush.bf16.msra.mxu0 %v6784
    %7140 = vmatpush.bf16.msra.mxu0 %v6780
    %7141 = vmatpush.bf16.msra.mxu0 %v6776
    %7142 = vmatmul.bf16.gmra.mxu0 %v3254
    %v7143 = vpop.f32.mrf.mxu0
    %v7144 = vadd.f32 %v6384, %v7143
    %v7145 = vpop.f32.mrf.mxu0
    %7146 = vdwg.mxu0
    %7147 = vmatpush.bf16.msra.mxu0 %v6836
    %7148 = vmatpush.bf16.msra.mxu0 %v6832
    %7149 = vmatpush.bf16.msra.mxu0 %v6828
    %7150 = vmatpush.bf16.msra.mxu0 %v6824
    %7151 = vmatpush.bf16.msra.mxu0 %v6820
    %7152 = vmatpush.bf16.msra.mxu0 %v6816
    %7153 = vmatpush.bf16.msra.mxu0 %v6812
    %7154 = vmatpush.bf16.msra.mxu0 %v6808
    %7155 = vmatmul.bf16.gmra.mxu0 %v3255
    %v7156 = vpop.f32.mrf.mxu0
    %v7157 = vadd.f32 %v7144, %v7156
    %v7158 = vpop.f32.mrf.mxu0
    %7159 = vdwg.mxu0
    %7160 = vmatpush.bf16.msra.mxu0 %v6868
    %7161 = vmatpush.bf16.msra.mxu0 %v6864
    %7162 = vmatpush.bf16.msra.mxu0 %v6860
    %7163 = vmatpush.bf16.msra.mxu0 %v6856
    %7164 = vmatpush.bf16.msra.mxu0 %v6852
    %7165 = vmatpush.bf16.msra.mxu0 %v6848
    %7166 = vmatpush.bf16.msra.mxu0 %v6844
    %7167 = vmatpush.bf16.msra.mxu0 %v6840
    %7168 = vmatmul.bf16.gmra.mxu0 %v3256
    %v7169 = vpop.f32.mrf.mxu0
    %v7170 = vadd.f32 %v7157, %v7169
    %v7171 = vpop.f32.mrf.mxu0
    %7172 = vdwg.mxu0
    %7173 = vmatpush.bf16.msra.mxu0 %v6900
    %7174 = vmatpush.bf16.msra.mxu0 %v6896
    %7175 = vmatpush.bf16.msra.mxu0 %v6892
    %7176 = vmatpush.bf16.msra.mxu0 %v6888
    %7177 = vmatpush.bf16.msra.mxu0 %v6884
    %7178 = vmatpush.bf16.msra.mxu0 %v6880
    %7179 = vmatpush.bf16.msra.mxu0 %v6876
    %7180 = vmatpush.bf16.msra.mxu0 %v6872
    %7181 = vmatmul.bf16.gmra.mxu0 %v3257
    %v7182 = vpop.f32.mrf.mxu0
    %v7183 = vadd.f32 %v7170, %v7182
    %v7184 = vpop.f32.mrf.mxu0
    %7185 = vdwg.mxu0
    %7186 = vmatpush.bf16.msra.mxu0 %v6805
    %7187 = vmatpush.bf16.msra.mxu0 %v6801
    %7188 = vmatpush.bf16.msra.mxu0 %v6797
    %7189 = vmatpush.bf16.msra.mxu0 %v6793
    %7190 = vmatpush.bf16.msra.mxu0 %v6789
    %7191 = vmatpush.bf16.msra.mxu0 %v6785
    %7192 = vmatpush.bf16.msra.mxu0 %v6781
    %7193 = vmatpush.bf16.msra.mxu0 %v6777
    %7194 = vmatmul.bf16.gmra.mxu0 %v3254
    %v7195 = vpop.f32.mrf.mxu0
    %v7196 = vadd.f32 %v6385, %v7195
    %v7197 = vpop.f32.mrf.mxu0
    %7198 = vdwg.mxu0
    %7199 = vmatpush.bf16.msra.mxu0 %v6837
    %7200 = vmatpush.bf16.msra.mxu0 %v6833
    %7201 = vmatpush.bf16.msra.mxu0 %v6829
    %7202 = vmatpush.bf16.msra.mxu0 %v6825
    %7203 = vmatpush.bf16.msra.mxu0 %v6821
    %7204 = vmatpush.bf16.msra.mxu0 %v6817
    %7205 = vmatpush.bf16.msra.mxu0 %v6813
    %7206 = vmatpush.bf16.msra.mxu0 %v6809
    %7207 = vmatmul.bf16.gmra.mxu0 %v3255
    %v7208 = vpop.f32.mrf.mxu0
    %v7209 = vadd.f32 %v7196, %v7208
    %v7210 = vpop.f32.mrf.mxu0
    %7211 = vdwg.mxu0
    %7212 = vmatpush.bf16.msra.mxu0 %v6869
    %7213 = vmatpush.bf16.msra.mxu0 %v6865
    %7214 = vmatpush.bf16.msra.mxu0 %v6861
    %7215 = vmatpush.bf16.msra.mxu0 %v6857
    %7216 = vmatpush.bf16.msra.mxu0 %v6853
    %7217 = vmatpush.bf16.msra.mxu0 %v6849
    %7218 = vmatpush.bf16.msra.mxu0 %v6845
    %7219 = vmatpush.bf16.msra.mxu0 %v6841
    %7220 = vmatmul.bf16.gmra.mxu0 %v3256
    %v7221 = vpop.f32.mrf.mxu0
    %v7222 = vadd.f32 %v7209, %v7221
    %v7223 = vpop.f32.mrf.mxu0
    %7224 = vdwg.mxu0
    %7225 = vmatpush.bf16.msra.mxu0 %v6901
    %7226 = vmatpush.bf16.msra.mxu0 %v6897
    %7227 = vmatpush.bf16.msra.mxu0 %v6893
    %7228 = vmatpush.bf16.msra.mxu0 %v6889
    %7229 = vmatpush.bf16.msra.mxu0 %v6885
    %7230 = vmatpush.bf16.msra.mxu0 %v6881
    %7231 = vmatpush.bf16.msra.mxu0 %v6877
    %7232 = vmatpush.bf16.msra.mxu0 %v6873
    %7233 = vmatmul.bf16.gmra.mxu0 %v3257
    %v7234 = vpop.f32.mrf.mxu0
    %v7235 = vadd.f32 %v7222, %v7234
    %v7236 = vpop.f32.mrf.mxu0
    %7237 = vdwg.mxu0
    %v7238 = vmax.f32 %v7079, 0.0
    %v7239 = vmax.f32 %v7131, 0.0
    %v7240 = vmax.f32 %v7183, 0.0
    %v7241 = vmax.f32 %v7235, 0.0
    %v7242 = vpack.c.bf16 %v7238, %v7238
    %v7243 = vpack.c.bf16 %v7239, %v7239
    %v7244 = vpack.c.bf16 %v7240, %v7240
    %v7245 = vpack.c.bf16 %v7241, %v7241
    %s7246 = scalar_lea.vmem [#allocation11], 4096
    %v7247 = vld [vmem:[%s7246] sm:$0xff]
    %v7248 = vld [vmem:[%s7246 + $0x8] sm:$0xff]
    %v7249 = vld [vmem:[%s7246 + $0x10] sm:$0xff]
    %v7250 = vld [vmem:[%s7246 + $0x18] sm:$0xff]
    %v7251 = vld [vmem:[%s7246 + $0x20] sm:$0xff]
    %v7252 = vld [vmem:[%s7246 + $0x28] sm:$0xff]
    %v7253 = vld [vmem:[%s7246 + $0x30] sm:$0xff]
    %v7254 = vld [vmem:[%s7246 + $0x38] sm:$0xff]
    %v7255 = vld [vmem:[%s7246 + $0x40] sm:$0xff]
    %v7256 = vld [vmem:[%s7246 + $0x48] sm:$0xff]
    %v7257 = vld [vmem:[%s7246 + $0x50] sm:$0xff]
    %v7258 = vld [vmem:[%s7246 + $0x58] sm:$0xff]
    %v7259 = vld [vmem:[%s7246 + $0x60] sm:$0xff]
    %v7260 = vld [vmem:[%s7246 + $0x68] sm:$0xff]
    %v7261 = vld [vmem:[%s7246 + $0x70] sm:$0xff]
    %v7262 = vld [vmem:[%s7246 + $0x78] sm:$0xff]
    %v7263 = vld [vmem:[%s7246 + $0x80] sm:$0xff]
    %v7264 = vld [vmem:[%s7246 + $0x88] sm:$0xff]
    %v7265 = vld [vmem:[%s7246 + $0x90] sm:$0xff]
    %v7266 = vld [vmem:[%s7246 + $0x98] sm:$0xff]
    %v7267 = vld [vmem:[%s7246 + $0xa0] sm:$0xff]
    %v7268 = vld [vmem:[%s7246 + $0xa8] sm:$0xff]
    %v7269 = vld [vmem:[%s7246 + $0xb0] sm:$0xff]
    %v7270 = vld [vmem:[%s7246 + $0xb8] sm:$0xff]
    %v7271 = vld [vmem:[%s7246 + $0xc0] sm:$0xff]
    %v7272 = vld [vmem:[%s7246 + $0xc8] sm:$0xff]
    %v7273 = vld [vmem:[%s7246 + $0xd0] sm:$0xff]
    %v7274 = vld [vmem:[%s7246 + $0xd8] sm:$0xff]
    %v7275 = vld [vmem:[%s7246 + $0xe0] sm:$0xff]
    %v7276 = vld [vmem:[%s7246 + $0xe8] sm:$0xff]
    %v7277 = vld [vmem:[%s7246 + $0xf0] sm:$0xff]
    %v7278 = vld [vmem:[%s7246 + $0xf8] sm:$0xff]
    %v7279 = vld [vmem:[%s7246 + $0x100] sm:$0xff]
    %v7280 = vld [vmem:[%s7246 + $0x108] sm:$0xff]
    %v7281 = vld [vmem:[%s7246 + $0x110] sm:$0xff]
    %v7282 = vld [vmem:[%s7246 + $0x118] sm:$0xff]
    %v7283 = vld [vmem:[%s7246 + $0x120] sm:$0xff]
    %v7284 = vld [vmem:[%s7246 + $0x128] sm:$0xff]
    %v7285 = vld [vmem:[%s7246 + $0x130] sm:$0xff]
    %v7286 = vld [vmem:[%s7246 + $0x138] sm:$0xff]
    %v7287 = vld [vmem:[%s7246 + $0x140] sm:$0xff]
    %v7288 = vld [vmem:[%s7246 + $0x148] sm:$0xff]
    %v7289 = vld [vmem:[%s7246 + $0x150] sm:$0xff]
    %v7290 = vld [vmem:[%s7246 + $0x158] sm:$0xff]
    %v7291 = vld [vmem:[%s7246 + $0x160] sm:$0xff]
    %v7292 = vld [vmem:[%s7246 + $0x168] sm:$0xff]
    %v7293 = vld [vmem:[%s7246 + $0x170] sm:$0xff]
    %v7294 = vld [vmem:[%s7246 + $0x178] sm:$0xff]
    %v7295 = vld [vmem:[%s7246 + $0x180] sm:$0xff]
    %v7296 = vld [vmem:[%s7246 + $0x188] sm:$0xff]
    %v7297 = vld [vmem:[%s7246 + $0x190] sm:$0xff]
    %v7298 = vld [vmem:[%s7246 + $0x198] sm:$0xff]
    %v7299 = vld [vmem:[%s7246 + $0x1a0] sm:$0xff]
    %v7300 = vld [vmem:[%s7246 + $0x1a8] sm:$0xff]
    %v7301 = vld [vmem:[%s7246 + $0x1b0] sm:$0xff]
    %v7302 = vld [vmem:[%s7246 + $0x1b8] sm:$0xff]
    %v7303 = vld [vmem:[%s7246 + $0x1c0] sm:$0xff]
    %v7304 = vld [vmem:[%s7246 + $0x1c8] sm:$0xff]
    %v7305 = vld [vmem:[%s7246 + $0x1d0] sm:$0xff]
    %v7306 = vld [vmem:[%s7246 + $0x1d8] sm:$0xff]
    %v7307 = vld [vmem:[%s7246 + $0x1e0] sm:$0xff]
    %v7308 = vld [vmem:[%s7246 + $0x1e8] sm:$0xff]
    %v7309 = vld [vmem:[%s7246 + $0x1f0] sm:$0xff]
    %v7310 = vld [vmem:[%s7246 + $0x1f8] sm:$0xff]
    %v7311 = vld [vmem:[%s7246 + $0x200] sm:$0xff]
    %v7312 = vld [vmem:[%s7246 + $0x208] sm:$0xff]
    %v7313 = vld [vmem:[%s7246 + $0x210] sm:$0xff]
    %v7314 = vld [vmem:[%s7246 + $0x218] sm:$0xff]
    %v7315 = vld [vmem:[%s7246 + $0x220] sm:$0xff]
    %v7316 = vld [vmem:[%s7246 + $0x228] sm:$0xff]
    %v7317 = vld [vmem:[%s7246 + $0x230] sm:$0xff]
    %v7318 = vld [vmem:[%s7246 + $0x238] sm:$0xff]
    %v7319 = vld [vmem:[%s7246 + $0x240] sm:$0xff]
    %v7320 = vld [vmem:[%s7246 + $0x248] sm:$0xff]
    %v7321 = vld [vmem:[%s7246 + $0x250] sm:$0xff]
    %v7322 = vld [vmem:[%s7246 + $0x258] sm:$0xff]
    %v7323 = vld [vmem:[%s7246 + $0x260] sm:$0xff]
    %v7324 = vld [vmem:[%s7246 + $0x268] sm:$0xff]
    %v7325 = vld [vmem:[%s7246 + $0x270] sm:$0xff]
    %v7326 = vld [vmem:[%s7246 + $0x278] sm:$0xff]
    %v7327 = vld [vmem:[%s7246 + $0x280] sm:$0xff]
    %v7328 = vld [vmem:[%s7246 + $0x288] sm:$0xff]
    %v7329 = vld [vmem:[%s7246 + $0x290] sm:$0xff]
    %v7330 = vld [vmem:[%s7246 + $0x298] sm:$0xff]
    %v7331 = vld [vmem:[%s7246 + $0x2a0] sm:$0xff]
    %v7332 = vld [vmem:[%s7246 + $0x2a8] sm:$0xff]
    %v7333 = vld [vmem:[%s7246 + $0x2b0] sm:$0xff]
    %v7334 = vld [vmem:[%s7246 + $0x2b8] sm:$0xff]
    %v7335 = vld [vmem:[%s7246 + $0x2c0] sm:$0xff]
    %v7336 = vld [vmem:[%s7246 + $0x2c8] sm:$0xff]
    %v7337 = vld [vmem:[%s7246 + $0x2d0] sm:$0xff]
    %v7338 = vld [vmem:[%s7246 + $0x2d8] sm:$0xff]
    %v7339 = vld [vmem:[%s7246 + $0x2e0] sm:$0xff]
    %v7340 = vld [vmem:[%s7246 + $0x2e8] sm:$0xff]
    %v7341 = vld [vmem:[%s7246 + $0x2f0] sm:$0xff]
    %v7342 = vld [vmem:[%s7246 + $0x2f8] sm:$0xff]
    %v7343 = vld [vmem:[%s7246 + $0x300] sm:$0xff]
    %v7344 = vld [vmem:[%s7246 + $0x308] sm:$0xff]
    %v7345 = vld [vmem:[%s7246 + $0x310] sm:$0xff]
    %v7346 = vld [vmem:[%s7246 + $0x318] sm:$0xff]
    %v7347 = vld [vmem:[%s7246 + $0x320] sm:$0xff]
    %v7348 = vld [vmem:[%s7246 + $0x328] sm:$0xff]
    %v7349 = vld [vmem:[%s7246 + $0x330] sm:$0xff]
    %v7350 = vld [vmem:[%s7246 + $0x338] sm:$0xff]
    %v7351 = vld [vmem:[%s7246 + $0x340] sm:$0xff]
    %v7352 = vld [vmem:[%s7246 + $0x348] sm:$0xff]
    %v7353 = vld [vmem:[%s7246 + $0x350] sm:$0xff]
    %v7354 = vld [vmem:[%s7246 + $0x358] sm:$0xff]
    %v7355 = vld [vmem:[%s7246 + $0x360] sm:$0xff]
    %v7356 = vld [vmem:[%s7246 + $0x368] sm:$0xff]
    %v7357 = vld [vmem:[%s7246 + $0x370] sm:$0xff]
    %v7358 = vld [vmem:[%s7246 + $0x378] sm:$0xff]
    %v7359 = vld [vmem:[%s7246 + $0x380] sm:$0xff]
    %v7360 = vld [vmem:[%s7246 + $0x388] sm:$0xff]
    %v7361 = vld [vmem:[%s7246 + $0x390] sm:$0xff]
    %v7362 = vld [vmem:[%s7246 + $0x398] sm:$0xff]
    %v7363 = vld [vmem:[%s7246 + $0x3a0] sm:$0xff]
    %v7364 = vld [vmem:[%s7246 + $0x3a8] sm:$0xff]
    %v7365 = vld [vmem:[%s7246 + $0x3b0] sm:$0xff]
    %v7366 = vld [vmem:[%s7246 + $0x3b8] sm:$0xff]
    %v7367 = vld [vmem:[%s7246 + $0x3c0] sm:$0xff]
    %v7368 = vld [vmem:[%s7246 + $0x3c8] sm:$0xff]
    %v7369 = vld [vmem:[%s7246 + $0x3d0] sm:$0xff]
    %v7370 = vld [vmem:[%s7246 + $0x3d8] sm:$0xff]
    %v7371 = vld [vmem:[%s7246 + $0x3e0] sm:$0xff]
    %v7372 = vld [vmem:[%s7246 + $0x3e8] sm:$0xff]
    %v7373 = vld [vmem:[%s7246 + $0x3f0] sm:$0xff]
    %v7374 = vld [vmem:[%s7246 + $0x3f8] sm:$0xff]
    %s7375 = scalar_lea.vmem [#allocation13], 16
    %v7376 = vld [vmem:[%s7375] sm:$0xf]
    %v7378 = vperm.slane %v7376, 0
    %v7379 = vperm.slane %v7376, 1
    %v7380 = vperm.slane %v7376, 2
    %v7381 = vperm.slane %v7376, 3
    %v7514 = vunpack.c.l.b16 %v7247
    %v7515 = vunpack.c.h.b16 %v7247
    %v7516 = vunpack.c.l.b16 %v7248
    %v7517 = vunpack.c.h.b16 %v7248
    %v7518 = vunpack.c.l.b16 %v7249
    %v7519 = vunpack.c.h.b16 %v7249
    %v7520 = vunpack.c.l.b16 %v7250
    %v7521 = vunpack.c.h.b16 %v7250
    %v7522 = vunpack.c.l.b16 %v7251
    %v7523 = vunpack.c.h.b16 %v7251
    %v7524 = vunpack.c.l.b16 %v7252
    %v7525 = vunpack.c.h.b16 %v7252
    %v7526 = vunpack.c.l.b16 %v7253
    %v7527 = vunpack.c.h.b16 %v7253
    %v7528 = vunpack.c.l.b16 %v7254
    %v7529 = vunpack.c.h.b16 %v7254
    %v7530 = vunpack.c.l.b16 %v7255
    %v7531 = vunpack.c.h.b16 %v7255
    %v7532 = vunpack.c.l.b16 %v7256
    %v7533 = vunpack.c.h.b16 %v7256
    %v7534 = vunpack.c.l.b16 %v7257
    %v7535 = vunpack.c.h.b16 %v7257
    %v7536 = vunpack.c.l.b16 %v7258
    %v7537 = vunpack.c.h.b16 %v7258
    %v7538 = vunpack.c.l.b16 %v7259
    %v7539 = vunpack.c.h.b16 %v7259
    %v7540 = vunpack.c.l.b16 %v7260
    %v7541 = vunpack.c.h.b16 %v7260
    %v7542 = vunpack.c.l.b16 %v7261
    %v7543 = vunpack.c.h.b16 %v7261
    %v7544 = vunpack.c.l.b16 %v7262
    %v7545 = vunpack.c.h.b16 %v7262
    %v7546 = vunpack.c.l.b16 %v7263
    %v7547 = vunpack.c.h.b16 %v7263
    %v7548 = vunpack.c.l.b16 %v7264
    %v7549 = vunpack.c.h.b16 %v7264
    %v7550 = vunpack.c.l.b16 %v7265
    %v7551 = vunpack.c.h.b16 %v7265
    %v7552 = vunpack.c.l.b16 %v7266
    %v7553 = vunpack.c.h.b16 %v7266
    %v7554 = vunpack.c.l.b16 %v7267
    %v7555 = vunpack.c.h.b16 %v7267
    %v7556 = vunpack.c.l.b16 %v7268
    %v7557 = vunpack.c.h.b16 %v7268
    %v7558 = vunpack.c.l.b16 %v7269
    %v7559 = vunpack.c.h.b16 %v7269
    %v7560 = vunpack.c.l.b16 %v7270
    %v7561 = vunpack.c.h.b16 %v7270
    %v7562 = vunpack.c.l.b16 %v7271
    %v7563 = vunpack.c.h.b16 %v7271
    %v7564 = vunpack.c.l.b16 %v7272
    %v7565 = vunpack.c.h.b16 %v7272
    %v7566 = vunpack.c.l.b16 %v7273
    %v7567 = vunpack.c.h.b16 %v7273
    %v7568 = vunpack.c.l.b16 %v7274
    %v7569 = vunpack.c.h.b16 %v7274
    %v7570 = vunpack.c.l.b16 %v7275
    %v7571 = vunpack.c.h.b16 %v7275
    %v7572 = vunpack.c.l.b16 %v7276
    %v7573 = vunpack.c.h.b16 %v7276
    %v7574 = vunpack.c.l.b16 %v7277
    %v7575 = vunpack.c.h.b16 %v7277
    %v7576 = vunpack.c.l.b16 %v7278
    %v7577 = vunpack.c.h.b16 %v7278
    %v7578 = vunpack.c.l.b16 %v7279
    %v7579 = vunpack.c.h.b16 %v7279
    %v7580 = vunpack.c.l.b16 %v7280
    %v7581 = vunpack.c.h.b16 %v7280
    %v7582 = vunpack.c.l.b16 %v7281
    %v7583 = vunpack.c.h.b16 %v7281
    %v7584 = vunpack.c.l.b16 %v7282
    %v7585 = vunpack.c.h.b16 %v7282
    %v7586 = vunpack.c.l.b16 %v7283
    %v7587 = vunpack.c.h.b16 %v7283
    %v7588 = vunpack.c.l.b16 %v7284
    %v7589 = vunpack.c.h.b16 %v7284
    %v7590 = vunpack.c.l.b16 %v7285
    %v7591 = vunpack.c.h.b16 %v7285
    %v7592 = vunpack.c.l.b16 %v7286
    %v7593 = vunpack.c.h.b16 %v7286
    %v7594 = vunpack.c.l.b16 %v7287
    %v7595 = vunpack.c.h.b16 %v7287
    %v7596 = vunpack.c.l.b16 %v7288
    %v7597 = vunpack.c.h.b16 %v7288
    %v7598 = vunpack.c.l.b16 %v7289
    %v7599 = vunpack.c.h.b16 %v7289
    %v7600 = vunpack.c.l.b16 %v7290
    %v7601 = vunpack.c.h.b16 %v7290
    %v7602 = vunpack.c.l.b16 %v7291
    %v7603 = vunpack.c.h.b16 %v7291
    %v7604 = vunpack.c.l.b16 %v7292
    %v7605 = vunpack.c.h.b16 %v7292
    %v7606 = vunpack.c.l.b16 %v7293
    %v7607 = vunpack.c.h.b16 %v7293
    %v7608 = vunpack.c.l.b16 %v7294
    %v7609 = vunpack.c.h.b16 %v7294
    %v7610 = vunpack.c.l.b16 %v7295
    %v7611 = vunpack.c.h.b16 %v7295
    %v7612 = vunpack.c.l.b16 %v7296
    %v7613 = vunpack.c.h.b16 %v7296
    %v7614 = vunpack.c.l.b16 %v7297
    %v7615 = vunpack.c.h.b16 %v7297
    %v7616 = vunpack.c.l.b16 %v7298
    %v7617 = vunpack.c.h.b16 %v7298
    %v7618 = vunpack.c.l.b16 %v7299
    %v7619 = vunpack.c.h.b16 %v7299
    %v7620 = vunpack.c.l.b16 %v7300
    %v7621 = vunpack.c.h.b16 %v7300
    %v7622 = vunpack.c.l.b16 %v7301
    %v7623 = vunpack.c.h.b16 %v7301
    %v7624 = vunpack.c.l.b16 %v7302
    %v7625 = vunpack.c.h.b16 %v7302
    %v7626 = vunpack.c.l.b16 %v7303
    %v7627 = vunpack.c.h.b16 %v7303
    %v7628 = vunpack.c.l.b16 %v7304
    %v7629 = vunpack.c.h.b16 %v7304
    %v7630 = vunpack.c.l.b16 %v7305
    %v7631 = vunpack.c.h.b16 %v7305
    %v7632 = vunpack.c.l.b16 %v7306
    %v7633 = vunpack.c.h.b16 %v7306
    %v7634 = vunpack.c.l.b16 %v7307
    %v7635 = vunpack.c.h.b16 %v7307
    %v7636 = vunpack.c.l.b16 %v7308
    %v7637 = vunpack.c.h.b16 %v7308
    %v7638 = vunpack.c.l.b16 %v7309
    %v7639 = vunpack.c.h.b16 %v7309
    %v7640 = vunpack.c.l.b16 %v7310
    %v7641 = vunpack.c.h.b16 %v7310
    %v7642 = vunpack.c.l.b16 %v7311
    %v7643 = vunpack.c.h.b16 %v7311
    %v7644 = vunpack.c.l.b16 %v7312
    %v7645 = vunpack.c.h.b16 %v7312
    %v7646 = vunpack.c.l.b16 %v7313
    %v7647 = vunpack.c.h.b16 %v7313
    %v7648 = vunpack.c.l.b16 %v7314
    %v7649 = vunpack.c.h.b16 %v7314
    %v7650 = vunpack.c.l.b16 %v7315
    %v7651 = vunpack.c.h.b16 %v7315
    %v7652 = vunpack.c.l.b16 %v7316
    %v7653 = vunpack.c.h.b16 %v7316
    %v7654 = vunpack.c.l.b16 %v7317
    %v7655 = vunpack.c.h.b16 %v7317
    %v7656 = vunpack.c.l.b16 %v7318
    %v7657 = vunpack.c.h.b16 %v7318
    %v7658 = vunpack.c.l.b16 %v7319
    %v7659 = vunpack.c.h.b16 %v7319
    %v7660 = vunpack.c.l.b16 %v7320
    %v7661 = vunpack.c.h.b16 %v7320
    %v7662 = vunpack.c.l.b16 %v7321
    %v7663 = vunpack.c.h.b16 %v7321
    %v7664 = vunpack.c.l.b16 %v7322
    %v7665 = vunpack.c.h.b16 %v7322
    %v7666 = vunpack.c.l.b16 %v7323
    %v7667 = vunpack.c.h.b16 %v7323
    %v7668 = vunpack.c.l.b16 %v7324
    %v7669 = vunpack.c.h.b16 %v7324
    %v7670 = vunpack.c.l.b16 %v7325
    %v7671 = vunpack.c.h.b16 %v7325
    %v7672 = vunpack.c.l.b16 %v7326
    %v7673 = vunpack.c.h.b16 %v7326
    %v7674 = vunpack.c.l.b16 %v7327
    %v7675 = vunpack.c.h.b16 %v7327
    %v7676 = vunpack.c.l.b16 %v7328
    %v7677 = vunpack.c.h.b16 %v7328
    %v7678 = vunpack.c.l.b16 %v7329
    %v7679 = vunpack.c.h.b16 %v7329
    %v7680 = vunpack.c.l.b16 %v7330
    %v7681 = vunpack.c.h.b16 %v7330
    %v7682 = vunpack.c.l.b16 %v7331
    %v7683 = vunpack.c.h.b16 %v7331
    %v7684 = vunpack.c.l.b16 %v7332
    %v7685 = vunpack.c.h.b16 %v7332
    %v7686 = vunpack.c.l.b16 %v7333
    %v7687 = vunpack.c.h.b16 %v7333
    %v7688 = vunpack.c.l.b16 %v7334
    %v7689 = vunpack.c.h.b16 %v7334
    %v7690 = vunpack.c.l.b16 %v7335
    %v7691 = vunpack.c.h.b16 %v7335
    %v7692 = vunpack.c.l.b16 %v7336
    %v7693 = vunpack.c.h.b16 %v7336
    %v7694 = vunpack.c.l.b16 %v7337
    %v7695 = vunpack.c.h.b16 %v7337
    %v7696 = vunpack.c.l.b16 %v7338
    %v7697 = vunpack.c.h.b16 %v7338
    %v7698 = vunpack.c.l.b16 %v7339
    %v7699 = vunpack.c.h.b16 %v7339
    %v7700 = vunpack.c.l.b16 %v7340
    %v7701 = vunpack.c.h.b16 %v7340
    %v7702 = vunpack.c.l.b16 %v7341
    %v7703 = vunpack.c.h.b16 %v7341
    %v7704 = vunpack.c.l.b16 %v7342
    %v7705 = vunpack.c.h.b16 %v7342
    %v7706 = vunpack.c.l.b16 %v7343
    %v7707 = vunpack.c.h.b16 %v7343
    %v7708 = vunpack.c.l.b16 %v7344
    %v7709 = vunpack.c.h.b16 %v7344
    %v7710 = vunpack.c.l.b16 %v7345
    %v7711 = vunpack.c.h.b16 %v7345
    %v7712 = vunpack.c.l.b16 %v7346
    %v7713 = vunpack.c.h.b16 %v7346
    %v7714 = vunpack.c.l.b16 %v7347
    %v7715 = vunpack.c.h.b16 %v7347
    %v7716 = vunpack.c.l.b16 %v7348
    %v7717 = vunpack.c.h.b16 %v7348
    %v7718 = vunpack.c.l.b16 %v7349
    %v7719 = vunpack.c.h.b16 %v7349
    %v7720 = vunpack.c.l.b16 %v7350
    %v7721 = vunpack.c.h.b16 %v7350
    %v7722 = vunpack.c.l.b16 %v7351
    %v7723 = vunpack.c.h.b16 %v7351
    %v7724 = vunpack.c.l.b16 %v7352
    %v7725 = vunpack.c.h.b16 %v7352
    %v7726 = vunpack.c.l.b16 %v7353
    %v7727 = vunpack.c.h.b16 %v7353
    %v7728 = vunpack.c.l.b16 %v7354
    %v7729 = vunpack.c.h.b16 %v7354
    %v7730 = vunpack.c.l.b16 %v7355
    %v7731 = vunpack.c.h.b16 %v7355
    %v7732 = vunpack.c.l.b16 %v7356
    %v7733 = vunpack.c.h.b16 %v7356
    %v7734 = vunpack.c.l.b16 %v7357
    %v7735 = vunpack.c.h.b16 %v7357
    %v7736 = vunpack.c.l.b16 %v7358
    %v7737 = vunpack.c.h.b16 %v7358
    %v7738 = vunpack.c.l.b16 %v7359
    %v7739 = vunpack.c.h.b16 %v7359
    %v7740 = vunpack.c.l.b16 %v7360
    %v7741 = vunpack.c.h.b16 %v7360
    %v7742 = vunpack.c.l.b16 %v7361
    %v7743 = vunpack.c.h.b16 %v7361
    %v7744 = vunpack.c.l.b16 %v7362
    %v7745 = vunpack.c.h.b16 %v7362
    %v7746 = vunpack.c.l.b16 %v7363
    %v7747 = vunpack.c.h.b16 %v7363
    %v7748 = vunpack.c.l.b16 %v7364
    %v7749 = vunpack.c.h.b16 %v7364
    %v7750 = vunpack.c.l.b16 %v7365
    %v7751 = vunpack.c.h.b16 %v7365
    %v7752 = vunpack.c.l.b16 %v7366
    %v7753 = vunpack.c.h.b16 %v7366
    %v7754 = vunpack.c.l.b16 %v7367
    %v7755 = vunpack.c.h.b16 %v7367
    %v7756 = vunpack.c.l.b16 %v7368
    %v7757 = vunpack.c.h.b16 %v7368
    %v7758 = vunpack.c.l.b16 %v7369
    %v7759 = vunpack.c.h.b16 %v7369
    %v7760 = vunpack.c.l.b16 %v7370
    %v7761 = vunpack.c.h.b16 %v7370
    %v7762 = vunpack.c.l.b16 %v7371
    %v7763 = vunpack.c.h.b16 %v7371
    %v7764 = vunpack.c.l.b16 %v7372
    %v7765 = vunpack.c.h.b16 %v7372
    %v7766 = vunpack.c.l.b16 %v7373
    %v7767 = vunpack.c.h.b16 %v7373
    %v7768 = vunpack.c.l.b16 %v7374
    %v7769 = vunpack.c.h.b16 %v7374
    %v7770 = vpack.c.b16 %v7518, %v7514
    %v7771 = vpack.c.b16 %v7519, %v7515
    %v7772 = vpack.c.b16 %v7520, %v7516
    %v7773 = vpack.c.b16 %v7521, %v7517
    %v7774 = vpack.c.b16 %v7526, %v7522
    %v7775 = vpack.c.b16 %v7527, %v7523
    %v7776 = vpack.c.b16 %v7528, %v7524
    %v7777 = vpack.c.b16 %v7529, %v7525
    %v7778 = vpack.c.b16 %v7534, %v7530
    %v7779 = vpack.c.b16 %v7535, %v7531
    %v7780 = vpack.c.b16 %v7536, %v7532
    %v7781 = vpack.c.b16 %v7537, %v7533
    %v7782 = vpack.c.b16 %v7542, %v7538
    %v7783 = vpack.c.b16 %v7543, %v7539
    %v7784 = vpack.c.b16 %v7544, %v7540
    %v7785 = vpack.c.b16 %v7545, %v7541
    %v7786 = vpack.c.b16 %v7550, %v7546
    %v7787 = vpack.c.b16 %v7551, %v7547
    %v7788 = vpack.c.b16 %v7552, %v7548
    %v7789 = vpack.c.b16 %v7553, %v7549
    %v7790 = vpack.c.b16 %v7558, %v7554
    %v7791 = vpack.c.b16 %v7559, %v7555
    %v7792 = vpack.c.b16 %v7560, %v7556
    %v7793 = vpack.c.b16 %v7561, %v7557
    %v7794 = vpack.c.b16 %v7566, %v7562
    %v7795 = vpack.c.b16 %v7567, %v7563
    %v7796 = vpack.c.b16 %v7568, %v7564
    %v7797 = vpack.c.b16 %v7569, %v7565
    %v7798 = vpack.c.b16 %v7574, %v7570
    %v7799 = vpack.c.b16 %v7575, %v7571
    %v7800 = vpack.c.b16 %v7576, %v7572
    %v7801 = vpack.c.b16 %v7577, %v7573
    %v7802 = vpack.c.b16 %v7582, %v7578
    %v7803 = vpack.c.b16 %v7583, %v7579
    %v7804 = vpack.c.b16 %v7584, %v7580
    %v7805 = vpack.c.b16 %v7585, %v7581
    %v7806 = vpack.c.b16 %v7590, %v7586
    %v7807 = vpack.c.b16 %v7591, %v7587
    %v7808 = vpack.c.b16 %v7592, %v7588
    %v7809 = vpack.c.b16 %v7593, %v7589
    %v7810 = vpack.c.b16 %v7598, %v7594
    %v7811 = vpack.c.b16 %v7599, %v7595
    %v7812 = vpack.c.b16 %v7600, %v7596
    %v7813 = vpack.c.b16 %v7601, %v7597
    %v7814 = vpack.c.b16 %v7606, %v7602
    %v7815 = vpack.c.b16 %v7607, %v7603
    %v7816 = vpack.c.b16 %v7608, %v7604
    %v7817 = vpack.c.b16 %v7609, %v7605
    %v7818 = vpack.c.b16 %v7614, %v7610
    %v7819 = vpack.c.b16 %v7615, %v7611
    %v7820 = vpack.c.b16 %v7616, %v7612
    %v7821 = vpack.c.b16 %v7617, %v7613
    %v7822 = vpack.c.b16 %v7622, %v7618
    %v7823 = vpack.c.b16 %v7623, %v7619
    %v7824 = vpack.c.b16 %v7624, %v7620
    %v7825 = vpack.c.b16 %v7625, %v7621
    %v7826 = vpack.c.b16 %v7630, %v7626
    %v7827 = vpack.c.b16 %v7631, %v7627
    %v7828 = vpack.c.b16 %v7632, %v7628
    %v7829 = vpack.c.b16 %v7633, %v7629
    %v7830 = vpack.c.b16 %v7638, %v7634
    %v7831 = vpack.c.b16 %v7639, %v7635
    %v7832 = vpack.c.b16 %v7640, %v7636
    %v7833 = vpack.c.b16 %v7641, %v7637
    %v7834 = vpack.c.b16 %v7646, %v7642
    %v7835 = vpack.c.b16 %v7647, %v7643
    %v7836 = vpack.c.b16 %v7648, %v7644
    %v7837 = vpack.c.b16 %v7649, %v7645
    %v7838 = vpack.c.b16 %v7654, %v7650
    %v7839 = vpack.c.b16 %v7655, %v7651
    %v7840 = vpack.c.b16 %v7656, %v7652
    %v7841 = vpack.c.b16 %v7657, %v7653
    %v7842 = vpack.c.b16 %v7662, %v7658
    %v7843 = vpack.c.b16 %v7663, %v7659
    %v7844 = vpack.c.b16 %v7664, %v7660
    %v7845 = vpack.c.b16 %v7665, %v7661
    %v7846 = vpack.c.b16 %v7670, %v7666
    %v7847 = vpack.c.b16 %v7671, %v7667
    %v7848 = vpack.c.b16 %v7672, %v7668
    %v7849 = vpack.c.b16 %v7673, %v7669
    %v7850 = vpack.c.b16 %v7678, %v7674
    %v7851 = vpack.c.b16 %v7679, %v7675
    %v7852 = vpack.c.b16 %v7680, %v7676
    %v7853 = vpack.c.b16 %v7681, %v7677
    %v7854 = vpack.c.b16 %v7686, %v7682
    %v7855 = vpack.c.b16 %v7687, %v7683
    %v7856 = vpack.c.b16 %v7688, %v7684
    %v7857 = vpack.c.b16 %v7689, %v7685
    %v7858 = vpack.c.b16 %v7694, %v7690
    %v7859 = vpack.c.b16 %v7695, %v7691
    %v7860 = vpack.c.b16 %v7696, %v7692
    %v7861 = vpack.c.b16 %v7697, %v7693
    %v7862 = vpack.c.b16 %v7702, %v7698
    %v7863 = vpack.c.b16 %v7703, %v7699
    %v7864 = vpack.c.b16 %v7704, %v7700
    %v7865 = vpack.c.b16 %v7705, %v7701
    %v7866 = vpack.c.b16 %v7710, %v7706
    %v7867 = vpack.c.b16 %v7711, %v7707
    %v7868 = vpack.c.b16 %v7712, %v7708
    %v7869 = vpack.c.b16 %v7713, %v7709
    %v7870 = vpack.c.b16 %v7718, %v7714
    %v7871 = vpack.c.b16 %v7719, %v7715
    %v7872 = vpack.c.b16 %v7720, %v7716
    %v7873 = vpack.c.b16 %v7721, %v7717
    %v7874 = vpack.c.b16 %v7726, %v7722
    %v7875 = vpack.c.b16 %v7727, %v7723
    %v7876 = vpack.c.b16 %v7728, %v7724
    %v7877 = vpack.c.b16 %v7729, %v7725
    %v7878 = vpack.c.b16 %v7734, %v7730
    %v7879 = vpack.c.b16 %v7735, %v7731
    %v7880 = vpack.c.b16 %v7736, %v7732
    %v7881 = vpack.c.b16 %v7737, %v7733
    %v7882 = vpack.c.b16 %v7742, %v7738
    %v7883 = vpack.c.b16 %v7743, %v7739
    %v7884 = vpack.c.b16 %v7744, %v7740
    %v7885 = vpack.c.b16 %v7745, %v7741
    %v7886 = vpack.c.b16 %v7750, %v7746
    %v7887 = vpack.c.b16 %v7751, %v7747
    %v7888 = vpack.c.b16 %v7752, %v7748
    %v7889 = vpack.c.b16 %v7753, %v7749
    %v7890 = vpack.c.b16 %v7758, %v7754
    %v7891 = vpack.c.b16 %v7759, %v7755
    %v7892 = vpack.c.b16 %v7760, %v7756
    %v7893 = vpack.c.b16 %v7761, %v7757
    %v7894 = vpack.c.b16 %v7766, %v7762
    %v7895 = vpack.c.b16 %v7767, %v7763
    %v7896 = vpack.c.b16 %v7768, %v7764
    %v7897 = vpack.c.b16 %v7769, %v7765
    %8026 = vmatpush.bf16.msra.mxu0 %v7798
    %8027 = vmatpush.bf16.msra.mxu0 %v7794
    %8028 = vmatpush.bf16.msra.mxu0 %v7790
    %8029 = vmatpush.bf16.msra.mxu0 %v7786
    %8030 = vmatpush.bf16.msra.mxu0 %v7782
    %8031 = vmatpush.bf16.msra.mxu0 %v7778
    %8032 = vmatpush.bf16.msra.mxu0 %v7774
    %8033 = vmatpush.bf16.msra.mxu0 %v7770
    %8034 = vmatmul.bf16.gmra.mxu0 %v7242
    %v8035 = vpop.f32.mrf.mxu0
    %v8036 = vadd.f32 %v7378, %v8035
    %v8037 = vpop.f32.mrf.mxu0
    %8038 = vdwg.mxu0
    %8039 = vmatpush.bf16.msra.mxu0 %v7830
    %8040 = vmatpush.bf16.msra.mxu0 %v7826
    %8041 = vmatpush.bf16.msra.mxu0 %v7822
    %8042 = vmatpush.bf16.msra.mxu0 %v7818
    %8043 = vmatpush.bf16.msra.mxu0 %v7814
    %8044 = vmatpush.bf16.msra.mxu0 %v7810
    %8045 = vmatpush.bf16.msra.mxu0 %v7806
    %8046 = vmatpush.bf16.msra.mxu0 %v7802
    %8047 = vmatmul.bf16.gmra.mxu0 %v7243
    %v8048 = vpop.f32.mrf.mxu0
    %v8049 = vadd.f32 %v8036, %v8048
    %v8050 = vpop.f32.mrf.mxu0
    %8051 = vdwg.mxu0
    %8052 = vmatpush.bf16.msra.mxu0 %v7862
    %8053 = vmatpush.bf16.msra.mxu0 %v7858
    %8054 = vmatpush.bf16.msra.mxu0 %v7854
    %8055 = vmatpush.bf16.msra.mxu0 %v7850
    %8056 = vmatpush.bf16.msra.mxu0 %v7846
    %8057 = vmatpush.bf16.msra.mxu0 %v7842
    %8058 = vmatpush.bf16.msra.mxu0 %v7838
    %8059 = vmatpush.bf16.msra.mxu0 %v7834
    %8060 = vmatmul.bf16.gmra.mxu0 %v7244
    %v8061 = vpop.f32.mrf.mxu0
    %v8062 = vadd.f32 %v8049, %v8061
    %v8063 = vpop.f32.mrf.mxu0
    %8064 = vdwg.mxu0
    %8065 = vmatpush.bf16.msra.mxu0 %v7894
    %8066 = vmatpush.bf16.msra.mxu0 %v7890
    %8067 = vmatpush.bf16.msra.mxu0 %v7886
    %8068 = vmatpush.bf16.msra.mxu0 %v7882
    %8069 = vmatpush.bf16.msra.mxu0 %v7878
    %8070 = vmatpush.bf16.msra.mxu0 %v7874
    %8071 = vmatpush.bf16.msra.mxu0 %v7870
    %8072 = vmatpush.bf16.msra.mxu0 %v7866
    %8073 = vmatmul.bf16.gmra.mxu0 %v7245
    %v8074 = vpop.f32.mrf.mxu0
    %v8075 = vadd.f32 %v8062, %v8074
    %v8076 = vpop.f32.mrf.mxu0
    %8077 = vdwg.mxu0
    %8078 = vmatpush.bf16.msra.mxu0 %v7799
    %8079 = vmatpush.bf16.msra.mxu0 %v7795
    %8080 = vmatpush.bf16.msra.mxu0 %v7791
    %8081 = vmatpush.bf16.msra.mxu0 %v7787
    %8082 = vmatpush.bf16.msra.mxu0 %v7783
    %8083 = vmatpush.bf16.msra.mxu0 %v7779
    %8084 = vmatpush.bf16.msra.mxu0 %v7775
    %8085 = vmatpush.bf16.msra.mxu0 %v7771
    %8086 = vmatmul.bf16.gmra.mxu0 %v7242
    %v8087 = vpop.f32.mrf.mxu0
    %v8088 = vadd.f32 %v7379, %v8087
    %v8089 = vpop.f32.mrf.mxu0
    %8090 = vdwg.mxu0
    %8091 = vmatpush.bf16.msra.mxu0 %v7831
    %8092 = vmatpush.bf16.msra.mxu0 %v7827
    %8093 = vmatpush.bf16.msra.mxu0 %v7823
    %8094 = vmatpush.bf16.msra.mxu0 %v7819
    %8095 = vmatpush.bf16.msra.mxu0 %v7815
    %8096 = vmatpush.bf16.msra.mxu0 %v7811
    %8097 = vmatpush.bf16.msra.mxu0 %v7807
    %8098 = vmatpush.bf16.msra.mxu0 %v7803
    %8099 = vmatmul.bf16.gmra.mxu0 %v7243
    %v8100 = vpop.f32.mrf.mxu0
    %v8101 = vadd.f32 %v8088, %v8100
    %v8102 = vpop.f32.mrf.mxu0
    %8103 = vdwg.mxu0
    %8104 = vmatpush.bf16.msra.mxu0 %v7863
    %8105 = vmatpush.bf16.msra.mxu0 %v7859
    %8106 = vmatpush.bf16.msra.mxu0 %v7855
    %8107 = vmatpush.bf16.msra.mxu0 %v7851
    %8108 = vmatpush.bf16.msra.mxu0 %v7847
    %8109 = vmatpush.bf16.msra.mxu0 %v7843
    %8110 = vmatpush.bf16.msra.mxu0 %v7839
    %8111 = vmatpush.bf16.msra.mxu0 %v7835
    %8112 = vmatmul.bf16.gmra.mxu0 %v7244
    %v8113 = vpop.f32.mrf.mxu0
    %v8114 = vadd.f32 %v8101, %v8113
    %v8115 = vpop.f32.mrf.mxu0
    %8116 = vdwg.mxu0
    %8117 = vmatpush.bf16.msra.mxu0 %v7895
    %8118 = vmatpush.bf16.msra.mxu0 %v7891
    %8119 = vmatpush.bf16.msra.mxu0 %v7887
    %8120 = vmatpush.bf16.msra.mxu0 %v7883
    %8121 = vmatpush.bf16.msra.mxu0 %v7879
    %8122 = vmatpush.bf16.msra.mxu0 %v7875
    %8123 = vmatpush.bf16.msra.mxu0 %v7871
    %8124 = vmatpush.bf16.msra.mxu0 %v7867
    %8125 = vmatmul.bf16.gmra.mxu0 %v7245
    %v8126 = vpop.f32.mrf.mxu0
    %v8127 = vadd.f32 %v8114, %v8126
    %v8128 = vpop.f32.mrf.mxu0
    %8129 = vdwg.mxu0
    %8130 = vmatpush.bf16.msra.mxu0 %v7800
    %8131 = vmatpush.bf16.msra.mxu0 %v7796
    %8132 = vmatpush.bf16.msra.mxu0 %v7792
    %8133 = vmatpush.bf16.msra.mxu0 %v7788
    %8134 = vmatpush.bf16.msra.mxu0 %v7784
    %8135 = vmatpush.bf16.msra.mxu0 %v7780
    %8136 = vmatpush.bf16.msra.mxu0 %v7776
    %8137 = vmatpush.bf16.msra.mxu0 %v7772
    %8138 = vmatmul.bf16.gmra.mxu0 %v7242
    %v8139 = vpop.f32.mrf.mxu0
    %v8140 = vadd.f32 %v7380, %v8139
    %v8141 = vpop.f32.mrf.mxu0
    %8142 = vdwg.mxu0
    %8143 = vmatpush.bf16.msra.mxu0 %v7832
    %8144 = vmatpush.bf16.msra.mxu0 %v7828
    %8145 = vmatpush.bf16.msra.mxu0 %v7824
    %8146 = vmatpush.bf16.msra.mxu0 %v7820
    %8147 = vmatpush.bf16.msra.mxu0 %v7816
    %8148 = vmatpush.bf16.msra.mxu0 %v7812
    %8149 = vmatpush.bf16.msra.mxu0 %v7808
    %8150 = vmatpush.bf16.msra.mxu0 %v7804
    %8151 = vmatmul.bf16.gmra.mxu0 %v7243
    %v8152 = vpop.f32.mrf.mxu0
    %v8153 = vadd.f32 %v8140, %v8152
    %v8154 = vpop.f32.mrf.mxu0
    %8155 = vdwg.mxu0
    %8156 = vmatpush.bf16.msra.mxu0 %v7864
    %8157 = vmatpush.bf16.msra.mxu0 %v7860
    %8158 = vmatpush.bf16.msra.mxu0 %v7856
    %8159 = vmatpush.bf16.msra.mxu0 %v7852
    %8160 = vmatpush.bf16.msra.mxu0 %v7848
    %8161 = vmatpush.bf16.msra.mxu0 %v7844
    %8162 = vmatpush.bf16.msra.mxu0 %v7840
    %8163 = vmatpush.bf16.msra.mxu0 %v7836
    %8164 = vmatmul.bf16.gmra.mxu0 %v7244
    %v8165 = vpop.f32.mrf.mxu0
    %v8166 = vadd.f32 %v8153, %v8165
    %v8167 = vpop.f32.mrf.mxu0
    %8168 = vdwg.mxu0
    %8169 = vmatpush.bf16.msra.mxu0 %v7896
    %8170 = vmatpush.bf16.msra.mxu0 %v7892
    %8171 = vmatpush.bf16.msra.mxu0 %v7888
    %8172 = vmatpush.bf16.msra.mxu0 %v7884
    %8173 = vmatpush.bf16.msra.mxu0 %v7880
    %8174 = vmatpush.bf16.msra.mxu0 %v7876
    %8175 = vmatpush.bf16.msra.mxu0 %v7872
    %8176 = vmatpush.bf16.msra.mxu0 %v7868
    %8177 = vmatmul.bf16.gmra.mxu0 %v7245
    %v8178 = vpop.f32.mrf.mxu0
    %v8179 = vadd.f32 %v8166, %v8178
    %v8180 = vpop.f32.mrf.mxu0
    %8181 = vdwg.mxu0
    %8182 = vmatpush.bf16.msra.mxu0 %v7801
    %8183 = vmatpush.bf16.msra.mxu0 %v7797
    %8184 = vmatpush.bf16.msra.mxu0 %v7793
    %8185 = vmatpush.bf16.msra.mxu0 %v7789
    %8186 = vmatpush.bf16.msra.mxu0 %v7785
    %8187 = vmatpush.bf16.msra.mxu0 %v7781
    %8188 = vmatpush.bf16.msra.mxu0 %v7777
    %8189 = vmatpush.bf16.msra.mxu0 %v7773
    %8190 = vmatmul.bf16.gmra.mxu0 %v7242
    %v8191 = vpop.f32.mrf.mxu0
    %v8192 = vadd.f32 %v7381, %v8191
    %v8193 = vpop.f32.mrf.mxu0
    %8194 = vdwg.mxu0
    %8195 = vmatpush.bf16.msra.mxu0 %v7833
    %8196 = vmatpush.bf16.msra.mxu0 %v7829
    %8197 = vmatpush.bf16.msra.mxu0 %v7825
    %8198 = vmatpush.bf16.msra.mxu0 %v7821
    %8199 = vmatpush.bf16.msra.mxu0 %v7817
    %8200 = vmatpush.bf16.msra.mxu0 %v7813
    %8201 = vmatpush.bf16.msra.mxu0 %v7809
    %8202 = vmatpush.bf16.msra.mxu0 %v7805
    %8203 = vmatmul.bf16.gmra.mxu0 %v7243
    %v8204 = vpop.f32.mrf.mxu0
    %v8205 = vadd.f32 %v8192, %v8204
    %v8206 = vpop.f32.mrf.mxu0
    %8207 = vdwg.mxu0
    %8208 = vmatpush.bf16.msra.mxu0 %v7865
    %8209 = vmatpush.bf16.msra.mxu0 %v7861
    %8210 = vmatpush.bf16.msra.mxu0 %v7857
    %8211 = vmatpush.bf16.msra.mxu0 %v7853
    %8212 = vmatpush.bf16.msra.mxu0 %v7849
    %8213 = vmatpush.bf16.msra.mxu0 %v7845
    %8214 = vmatpush.bf16.msra.mxu0 %v7841
    %8215 = vmatpush.bf16.msra.mxu0 %v7837
    %8216 = vmatmul.bf16.gmra.mxu0 %v7244
    %v8217 = vpop.f32.mrf.mxu0
    %v8218 = vadd.f32 %v8205, %v8217
    %v8219 = vpop.f32.mrf.mxu0
    %8220 = vdwg.mxu0
    %8221 = vmatpush.bf16.msra.mxu0 %v7897
    %8222 = vmatpush.bf16.msra.mxu0 %v7893
    %8223 = vmatpush.bf16.msra.mxu0 %v7889
    %8224 = vmatpush.bf16.msra.mxu0 %v7885
    %8225 = vmatpush.bf16.msra.mxu0 %v7881
    %8226 = vmatpush.bf16.msra.mxu0 %v7877
    %8227 = vmatpush.bf16.msra.mxu0 %v7873
    %8228 = vmatpush.bf16.msra.mxu0 %v7869
    %8229 = vmatmul.bf16.gmra.mxu0 %v7245
    %v8230 = vpop.f32.mrf.mxu0
    %v8231 = vadd.f32 %v8218, %v8230
    %v8232 = vpop.f32.mrf.mxu0
    %8233 = vdwg.mxu0
    %v8234 = vmax.f32 %v8075, 0.0
    %v8235 = vmax.f32 %v8127, 0.0
    %v8236 = vmax.f32 %v8179, 0.0
    %v8237 = vmax.f32 %v8231, 0.0
    %v8238 = vpack.c.bf16 %v8234, %v8234
    %v8239 = vpack.c.bf16 %v8235, %v8235
    %v8240 = vpack.c.bf16 %v8236, %v8236
    %v8241 = vpack.c.bf16 %v8237, %v8237
    %s8242 = scalar_lea.vmem [#allocation11], 5120
    %v8243 = vld [vmem:[%s8242] sm:$0xff]
    %v8244 = vld [vmem:[%s8242 + $0x8] sm:$0xff]
    %v8245 = vld [vmem:[%s8242 + $0x10] sm:$0xff]
    %v8246 = vld [vmem:[%s8242 + $0x18] sm:$0xff]
    %v8247 = vld [vmem:[%s8242 + $0x20] sm:$0xff]
    %v8248 = vld [vmem:[%s8242 + $0x28] sm:$0xff]
    %v8249 = vld [vmem:[%s8242 + $0x30] sm:$0xff]
    %v8250 = vld [vmem:[%s8242 + $0x38] sm:$0xff]
    %v8251 = vld [vmem:[%s8242 + $0x40] sm:$0xff]
    %v8252 = vld [vmem:[%s8242 + $0x48] sm:$0xff]
    %v8253 = vld [vmem:[%s8242 + $0x50] sm:$0xff]
    %v8254 = vld [vmem:[%s8242 + $0x58] sm:$0xff]
    %v8255 = vld [vmem:[%s8242 + $0x60] sm:$0xff]
    %v8256 = vld [vmem:[%s8242 + $0x68] sm:$0xff]
    %v8257 = vld [vmem:[%s8242 + $0x70] sm:$0xff]
    %v8258 = vld [vmem:[%s8242 + $0x78] sm:$0xff]
    %v8259 = vld [vmem:[%s8242 + $0x80] sm:$0xff]
    %v8260 = vld [vmem:[%s8242 + $0x88] sm:$0xff]
    %v8261 = vld [vmem:[%s8242 + $0x90] sm:$0xff]
    %v8262 = vld [vmem:[%s8242 + $0x98] sm:$0xff]
    %v8263 = vld [vmem:[%s8242 + $0xa0] sm:$0xff]
    %v8264 = vld [vmem:[%s8242 + $0xa8] sm:$0xff]
    %v8265 = vld [vmem:[%s8242 + $0xb0] sm:$0xff]
    %v8266 = vld [vmem:[%s8242 + $0xb8] sm:$0xff]
    %v8267 = vld [vmem:[%s8242 + $0xc0] sm:$0xff]
    %v8268 = vld [vmem:[%s8242 + $0xc8] sm:$0xff]
    %v8269 = vld [vmem:[%s8242 + $0xd0] sm:$0xff]
    %v8270 = vld [vmem:[%s8242 + $0xd8] sm:$0xff]
    %v8271 = vld [vmem:[%s8242 + $0xe0] sm:$0xff]
    %v8272 = vld [vmem:[%s8242 + $0xe8] sm:$0xff]
    %v8273 = vld [vmem:[%s8242 + $0xf0] sm:$0xff]
    %v8274 = vld [vmem:[%s8242 + $0xf8] sm:$0xff]
    %v8275 = vld [vmem:[%s8242 + $0x100] sm:$0xff]
    %v8276 = vld [vmem:[%s8242 + $0x108] sm:$0xff]
    %v8277 = vld [vmem:[%s8242 + $0x110] sm:$0xff]
    %v8278 = vld [vmem:[%s8242 + $0x118] sm:$0xff]
    %v8279 = vld [vmem:[%s8242 + $0x120] sm:$0xff]
    %v8280 = vld [vmem:[%s8242 + $0x128] sm:$0xff]
    %v8281 = vld [vmem:[%s8242 + $0x130] sm:$0xff]
    %v8282 = vld [vmem:[%s8242 + $0x138] sm:$0xff]
    %v8283 = vld [vmem:[%s8242 + $0x140] sm:$0xff]
    %v8284 = vld [vmem:[%s8242 + $0x148] sm:$0xff]
    %v8285 = vld [vmem:[%s8242 + $0x150] sm:$0xff]
    %v8286 = vld [vmem:[%s8242 + $0x158] sm:$0xff]
    %v8287 = vld [vmem:[%s8242 + $0x160] sm:$0xff]
    %v8288 = vld [vmem:[%s8242 + $0x168] sm:$0xff]
    %v8289 = vld [vmem:[%s8242 + $0x170] sm:$0xff]
    %v8290 = vld [vmem:[%s8242 + $0x178] sm:$0xff]
    %v8291 = vld [vmem:[%s8242 + $0x180] sm:$0xff]
    %v8292 = vld [vmem:[%s8242 + $0x188] sm:$0xff]
    %v8293 = vld [vmem:[%s8242 + $0x190] sm:$0xff]
    %v8294 = vld [vmem:[%s8242 + $0x198] sm:$0xff]
    %v8295 = vld [vmem:[%s8242 + $0x1a0] sm:$0xff]
    %v8296 = vld [vmem:[%s8242 + $0x1a8] sm:$0xff]
    %v8297 = vld [vmem:[%s8242 + $0x1b0] sm:$0xff]
    %v8298 = vld [vmem:[%s8242 + $0x1b8] sm:$0xff]
    %v8299 = vld [vmem:[%s8242 + $0x1c0] sm:$0xff]
    %v8300 = vld [vmem:[%s8242 + $0x1c8] sm:$0xff]
    %v8301 = vld [vmem:[%s8242 + $0x1d0] sm:$0xff]
    %v8302 = vld [vmem:[%s8242 + $0x1d8] sm:$0xff]
    %v8303 = vld [vmem:[%s8242 + $0x1e0] sm:$0xff]
    %v8304 = vld [vmem:[%s8242 + $0x1e8] sm:$0xff]
    %v8305 = vld [vmem:[%s8242 + $0x1f0] sm:$0xff]
    %v8306 = vld [vmem:[%s8242 + $0x1f8] sm:$0xff]
    %v8307 = vld [vmem:[%s8242 + $0x200] sm:$0xff]
    %v8308 = vld [vmem:[%s8242 + $0x208] sm:$0xff]
    %v8309 = vld [vmem:[%s8242 + $0x210] sm:$0xff]
    %v8310 = vld [vmem:[%s8242 + $0x218] sm:$0xff]
    %v8311 = vld [vmem:[%s8242 + $0x220] sm:$0xff]
    %v8312 = vld [vmem:[%s8242 + $0x228] sm:$0xff]
    %v8313 = vld [vmem:[%s8242 + $0x230] sm:$0xff]
    %v8314 = vld [vmem:[%s8242 + $0x238] sm:$0xff]
    %v8315 = vld [vmem:[%s8242 + $0x240] sm:$0xff]
    %v8316 = vld [vmem:[%s8242 + $0x248] sm:$0xff]
    %v8317 = vld [vmem:[%s8242 + $0x250] sm:$0xff]
    %v8318 = vld [vmem:[%s8242 + $0x258] sm:$0xff]
    %v8319 = vld [vmem:[%s8242 + $0x260] sm:$0xff]
    %v8320 = vld [vmem:[%s8242 + $0x268] sm:$0xff]
    %v8321 = vld [vmem:[%s8242 + $0x270] sm:$0xff]
    %v8322 = vld [vmem:[%s8242 + $0x278] sm:$0xff]
    %v8323 = vld [vmem:[%s8242 + $0x280] sm:$0xff]
    %v8324 = vld [vmem:[%s8242 + $0x288] sm:$0xff]
    %v8325 = vld [vmem:[%s8242 + $0x290] sm:$0xff]
    %v8326 = vld [vmem:[%s8242 + $0x298] sm:$0xff]
    %v8327 = vld [vmem:[%s8242 + $0x2a0] sm:$0xff]
    %v8328 = vld [vmem:[%s8242 + $0x2a8] sm:$0xff]
    %v8329 = vld [vmem:[%s8242 + $0x2b0] sm:$0xff]
    %v8330 = vld [vmem:[%s8242 + $0x2b8] sm:$0xff]
    %v8331 = vld [vmem:[%s8242 + $0x2c0] sm:$0xff]
    %v8332 = vld [vmem:[%s8242 + $0x2c8] sm:$0xff]
    %v8333 = vld [vmem:[%s8242 + $0x2d0] sm:$0xff]
    %v8334 = vld [vmem:[%s8242 + $0x2d8] sm:$0xff]
    %v8335 = vld [vmem:[%s8242 + $0x2e0] sm:$0xff]
    %v8336 = vld [vmem:[%s8242 + $0x2e8] sm:$0xff]
    %v8337 = vld [vmem:[%s8242 + $0x2f0] sm:$0xff]
    %v8338 = vld [vmem:[%s8242 + $0x2f8] sm:$0xff]
    %v8339 = vld [vmem:[%s8242 + $0x300] sm:$0xff]
    %v8340 = vld [vmem:[%s8242 + $0x308] sm:$0xff]
    %v8341 = vld [vmem:[%s8242 + $0x310] sm:$0xff]
    %v8342 = vld [vmem:[%s8242 + $0x318] sm:$0xff]
    %v8343 = vld [vmem:[%s8242 + $0x320] sm:$0xff]
    %v8344 = vld [vmem:[%s8242 + $0x328] sm:$0xff]
    %v8345 = vld [vmem:[%s8242 + $0x330] sm:$0xff]
    %v8346 = vld [vmem:[%s8242 + $0x338] sm:$0xff]
    %v8347 = vld [vmem:[%s8242 + $0x340] sm:$0xff]
    %v8348 = vld [vmem:[%s8242 + $0x348] sm:$0xff]
    %v8349 = vld [vmem:[%s8242 + $0x350] sm:$0xff]
    %v8350 = vld [vmem:[%s8242 + $0x358] sm:$0xff]
    %v8351 = vld [vmem:[%s8242 + $0x360] sm:$0xff]
    %v8352 = vld [vmem:[%s8242 + $0x368] sm:$0xff]
    %v8353 = vld [vmem:[%s8242 + $0x370] sm:$0xff]
    %v8354 = vld [vmem:[%s8242 + $0x378] sm:$0xff]
    %v8355 = vld [vmem:[%s8242 + $0x380] sm:$0xff]
    %v8356 = vld [vmem:[%s8242 + $0x388] sm:$0xff]
    %v8357 = vld [vmem:[%s8242 + $0x390] sm:$0xff]
    %v8358 = vld [vmem:[%s8242 + $0x398] sm:$0xff]
    %v8359 = vld [vmem:[%s8242 + $0x3a0] sm:$0xff]
    %v8360 = vld [vmem:[%s8242 + $0x3a8] sm:$0xff]
    %v8361 = vld [vmem:[%s8242 + $0x3b0] sm:$0xff]
    %v8362 = vld [vmem:[%s8242 + $0x3b8] sm:$0xff]
    %v8363 = vld [vmem:[%s8242 + $0x3c0] sm:$0xff]
    %v8364 = vld [vmem:[%s8242 + $0x3c8] sm:$0xff]
    %v8365 = vld [vmem:[%s8242 + $0x3d0] sm:$0xff]
    %v8366 = vld [vmem:[%s8242 + $0x3d8] sm:$0xff]
    %v8367 = vld [vmem:[%s8242 + $0x3e0] sm:$0xff]
    %v8368 = vld [vmem:[%s8242 + $0x3e8] sm:$0xff]
    %v8369 = vld [vmem:[%s8242 + $0x3f0] sm:$0xff]
    %v8370 = vld [vmem:[%s8242 + $0x3f8] sm:$0xff]
    %s8371 = scalar_lea.vmem [#allocation13], 20
    %v8372 = vld [vmem:[%s8371] sm:$0xf]
    %v8374 = vperm.slane %v8372, 0
    %v8375 = vperm.slane %v8372, 1
    %v8376 = vperm.slane %v8372, 2
    %v8377 = vperm.slane %v8372, 3
    %v8510 = vunpack.c.l.b16 %v8243
    %v8511 = vunpack.c.h.b16 %v8243
    %v8512 = vunpack.c.l.b16 %v8244
    %v8513 = vunpack.c.h.b16 %v8244
    %v8514 = vunpack.c.l.b16 %v8245
    %v8515 = vunpack.c.h.b16 %v8245
    %v8516 = vunpack.c.l.b16 %v8246
    %v8517 = vunpack.c.h.b16 %v8246
    %v8518 = vunpack.c.l.b16 %v8247
    %v8519 = vunpack.c.h.b16 %v8247
    %v8520 = vunpack.c.l.b16 %v8248
    %v8521 = vunpack.c.h.b16 %v8248
    %v8522 = vunpack.c.l.b16 %v8249
    %v8523 = vunpack.c.h.b16 %v8249
    %v8524 = vunpack.c.l.b16 %v8250
    %v8525 = vunpack.c.h.b16 %v8250
    %v8526 = vunpack.c.l.b16 %v8251
    %v8527 = vunpack.c.h.b16 %v8251
    %v8528 = vunpack.c.l.b16 %v8252
    %v8529 = vunpack.c.h.b16 %v8252
    %v8530 = vunpack.c.l.b16 %v8253
    %v8531 = vunpack.c.h.b16 %v8253
    %v8532 = vunpack.c.l.b16 %v8254
    %v8533 = vunpack.c.h.b16 %v8254
    %v8534 = vunpack.c.l.b16 %v8255
    %v8535 = vunpack.c.h.b16 %v8255
    %v8536 = vunpack.c.l.b16 %v8256
    %v8537 = vunpack.c.h.b16 %v8256
    %v8538 = vunpack.c.l.b16 %v8257
    %v8539 = vunpack.c.h.b16 %v8257
    %v8540 = vunpack.c.l.b16 %v8258
    %v8541 = vunpack.c.h.b16 %v8258
    %v8542 = vunpack.c.l.b16 %v8259
    %v8543 = vunpack.c.h.b16 %v8259
    %v8544 = vunpack.c.l.b16 %v8260
    %v8545 = vunpack.c.h.b16 %v8260
    %v8546 = vunpack.c.l.b16 %v8261
    %v8547 = vunpack.c.h.b16 %v8261
    %v8548 = vunpack.c.l.b16 %v8262
    %v8549 = vunpack.c.h.b16 %v8262
    %v8550 = vunpack.c.l.b16 %v8263
    %v8551 = vunpack.c.h.b16 %v8263
    %v8552 = vunpack.c.l.b16 %v8264
    %v8553 = vunpack.c.h.b16 %v8264
    %v8554 = vunpack.c.l.b16 %v8265
    %v8555 = vunpack.c.h.b16 %v8265
    %v8556 = vunpack.c.l.b16 %v8266
    %v8557 = vunpack.c.h.b16 %v8266
    %v8558 = vunpack.c.l.b16 %v8267
    %v8559 = vunpack.c.h.b16 %v8267
    %v8560 = vunpack.c.l.b16 %v8268
    %v8561 = vunpack.c.h.b16 %v8268
    %v8562 = vunpack.c.l.b16 %v8269
    %v8563 = vunpack.c.h.b16 %v8269
    %v8564 = vunpack.c.l.b16 %v8270
    %v8565 = vunpack.c.h.b16 %v8270
    %v8566 = vunpack.c.l.b16 %v8271
    %v8567 = vunpack.c.h.b16 %v8271
    %v8568 = vunpack.c.l.b16 %v8272
    %v8569 = vunpack.c.h.b16 %v8272
    %v8570 = vunpack.c.l.b16 %v8273
    %v8571 = vunpack.c.h.b16 %v8273
    %v8572 = vunpack.c.l.b16 %v8274
    %v8573 = vunpack.c.h.b16 %v8274
    %v8574 = vunpack.c.l.b16 %v8275
    %v8575 = vunpack.c.h.b16 %v8275
    %v8576 = vunpack.c.l.b16 %v8276
    %v8577 = vunpack.c.h.b16 %v8276
    %v8578 = vunpack.c.l.b16 %v8277
    %v8579 = vunpack.c.h.b16 %v8277
    %v8580 = vunpack.c.l.b16 %v8278
    %v8581 = vunpack.c.h.b16 %v8278
    %v8582 = vunpack.c.l.b16 %v8279
    %v8583 = vunpack.c.h.b16 %v8279
    %v8584 = vunpack.c.l.b16 %v8280
    %v8585 = vunpack.c.h.b16 %v8280
    %v8586 = vunpack.c.l.b16 %v8281
    %v8587 = vunpack.c.h.b16 %v8281
    %v8588 = vunpack.c.l.b16 %v8282
    %v8589 = vunpack.c.h.b16 %v8282
    %v8590 = vunpack.c.l.b16 %v8283
    %v8591 = vunpack.c.h.b16 %v8283
    %v8592 = vunpack.c.l.b16 %v8284
    %v8593 = vunpack.c.h.b16 %v8284
    %v8594 = vunpack.c.l.b16 %v8285
    %v8595 = vunpack.c.h.b16 %v8285
    %v8596 = vunpack.c.l.b16 %v8286
    %v8597 = vunpack.c.h.b16 %v8286
    %v8598 = vunpack.c.l.b16 %v8287
    %v8599 = vunpack.c.h.b16 %v8287
    %v8600 = vunpack.c.l.b16 %v8288
    %v8601 = vunpack.c.h.b16 %v8288
    %v8602 = vunpack.c.l.b16 %v8289
    %v8603 = vunpack.c.h.b16 %v8289
    %v8604 = vunpack.c.l.b16 %v8290
    %v8605 = vunpack.c.h.b16 %v8290
    %v8606 = vunpack.c.l.b16 %v8291
    %v8607 = vunpack.c.h.b16 %v8291
    %v8608 = vunpack.c.l.b16 %v8292
    %v8609 = vunpack.c.h.b16 %v8292
    %v8610 = vunpack.c.l.b16 %v8293
    %v8611 = vunpack.c.h.b16 %v8293
    %v8612 = vunpack.c.l.b16 %v8294
    %v8613 = vunpack.c.h.b16 %v8294
    %v8614 = vunpack.c.l.b16 %v8295
    %v8615 = vunpack.c.h.b16 %v8295
    %v8616 = vunpack.c.l.b16 %v8296
    %v8617 = vunpack.c.h.b16 %v8296
    %v8618 = vunpack.c.l.b16 %v8297
    %v8619 = vunpack.c.h.b16 %v8297
    %v8620 = vunpack.c.l.b16 %v8298
    %v8621 = vunpack.c.h.b16 %v8298
    %v8622 = vunpack.c.l.b16 %v8299
    %v8623 = vunpack.c.h.b16 %v8299
    %v8624 = vunpack.c.l.b16 %v8300
    %v8625 = vunpack.c.h.b16 %v8300
    %v8626 = vunpack.c.l.b16 %v8301
    %v8627 = vunpack.c.h.b16 %v8301
    %v8628 = vunpack.c.l.b16 %v8302
    %v8629 = vunpack.c.h.b16 %v8302
    %v8630 = vunpack.c.l.b16 %v8303
    %v8631 = vunpack.c.h.b16 %v8303
    %v8632 = vunpack.c.l.b16 %v8304
    %v8633 = vunpack.c.h.b16 %v8304
    %v8634 = vunpack.c.l.b16 %v8305
    %v8635 = vunpack.c.h.b16 %v8305
    %v8636 = vunpack.c.l.b16 %v8306
    %v8637 = vunpack.c.h.b16 %v8306
    %v8638 = vunpack.c.l.b16 %v8307
    %v8639 = vunpack.c.h.b16 %v8307
    %v8640 = vunpack.c.l.b16 %v8308
    %v8641 = vunpack.c.h.b16 %v8308
    %v8642 = vunpack.c.l.b16 %v8309
    %v8643 = vunpack.c.h.b16 %v8309
    %v8644 = vunpack.c.l.b16 %v8310
    %v8645 = vunpack.c.h.b16 %v8310
    %v8646 = vunpack.c.l.b16 %v8311
    %v8647 = vunpack.c.h.b16 %v8311
    %v8648 = vunpack.c.l.b16 %v8312
    %v8649 = vunpack.c.h.b16 %v8312
    %v8650 = vunpack.c.l.b16 %v8313
    %v8651 = vunpack.c.h.b16 %v8313
    %v8652 = vunpack.c.l.b16 %v8314
    %v8653 = vunpack.c.h.b16 %v8314
    %v8654 = vunpack.c.l.b16 %v8315
    %v8655 = vunpack.c.h.b16 %v8315
    %v8656 = vunpack.c.l.b16 %v8316
    %v8657 = vunpack.c.h.b16 %v8316
    %v8658 = vunpack.c.l.b16 %v8317
    %v8659 = vunpack.c.h.b16 %v8317
    %v8660 = vunpack.c.l.b16 %v8318
    %v8661 = vunpack.c.h.b16 %v8318
    %v8662 = vunpack.c.l.b16 %v8319
    %v8663 = vunpack.c.h.b16 %v8319
    %v8664 = vunpack.c.l.b16 %v8320
    %v8665 = vunpack.c.h.b16 %v8320
    %v8666 = vunpack.c.l.b16 %v8321
    %v8667 = vunpack.c.h.b16 %v8321
    %v8668 = vunpack.c.l.b16 %v8322
    %v8669 = vunpack.c.h.b16 %v8322
    %v8670 = vunpack.c.l.b16 %v8323
    %v8671 = vunpack.c.h.b16 %v8323
    %v8672 = vunpack.c.l.b16 %v8324
    %v8673 = vunpack.c.h.b16 %v8324
    %v8674 = vunpack.c.l.b16 %v8325
    %v8675 = vunpack.c.h.b16 %v8325
    %v8676 = vunpack.c.l.b16 %v8326
    %v8677 = vunpack.c.h.b16 %v8326
    %v8678 = vunpack.c.l.b16 %v8327
    %v8679 = vunpack.c.h.b16 %v8327
    %v8680 = vunpack.c.l.b16 %v8328
    %v8681 = vunpack.c.h.b16 %v8328
    %v8682 = vunpack.c.l.b16 %v8329
    %v8683 = vunpack.c.h.b16 %v8329
    %v8684 = vunpack.c.l.b16 %v8330
    %v8685 = vunpack.c.h.b16 %v8330
    %v8686 = vunpack.c.l.b16 %v8331
    %v8687 = vunpack.c.h.b16 %v8331
    %v8688 = vunpack.c.l.b16 %v8332
    %v8689 = vunpack.c.h.b16 %v8332
    %v8690 = vunpack.c.l.b16 %v8333
    %v8691 = vunpack.c.h.b16 %v8333
    %v8692 = vunpack.c.l.b16 %v8334
    %v8693 = vunpack.c.h.b16 %v8334
    %v8694 = vunpack.c.l.b16 %v8335
    %v8695 = vunpack.c.h.b16 %v8335
    %v8696 = vunpack.c.l.b16 %v8336
    %v8697 = vunpack.c.h.b16 %v8336
    %v8698 = vunpack.c.l.b16 %v8337
    %v8699 = vunpack.c.h.b16 %v8337
    %v8700 = vunpack.c.l.b16 %v8338
    %v8701 = vunpack.c.h.b16 %v8338
    %v8702 = vunpack.c.l.b16 %v8339
    %v8703 = vunpack.c.h.b16 %v8339
    %v8704 = vunpack.c.l.b16 %v8340
    %v8705 = vunpack.c.h.b16 %v8340
    %v8706 = vunpack.c.l.b16 %v8341
    %v8707 = vunpack.c.h.b16 %v8341
    %v8708 = vunpack.c.l.b16 %v8342
    %v8709 = vunpack.c.h.b16 %v8342
    %v8710 = vunpack.c.l.b16 %v8343
    %v8711 = vunpack.c.h.b16 %v8343
    %v8712 = vunpack.c.l.b16 %v8344
    %v8713 = vunpack.c.h.b16 %v8344
    %v8714 = vunpack.c.l.b16 %v8345
    %v8715 = vunpack.c.h.b16 %v8345
    %v8716 = vunpack.c.l.b16 %v8346
    %v8717 = vunpack.c.h.b16 %v8346
    %v8718 = vunpack.c.l.b16 %v8347
    %v8719 = vunpack.c.h.b16 %v8347
    %v8720 = vunpack.c.l.b16 %v8348
    %v8721 = vunpack.c.h.b16 %v8348
    %v8722 = vunpack.c.l.b16 %v8349
    %v8723 = vunpack.c.h.b16 %v8349
    %v8724 = vunpack.c.l.b16 %v8350
    %v8725 = vunpack.c.h.b16 %v8350
    %v8726 = vunpack.c.l.b16 %v8351
    %v8727 = vunpack.c.h.b16 %v8351
    %v8728 = vunpack.c.l.b16 %v8352
    %v8729 = vunpack.c.h.b16 %v8352
    %v8730 = vunpack.c.l.b16 %v8353
    %v8731 = vunpack.c.h.b16 %v8353
    %v8732 = vunpack.c.l.b16 %v8354
    %v8733 = vunpack.c.h.b16 %v8354
    %v8734 = vunpack.c.l.b16 %v8355
    %v8735 = vunpack.c.h.b16 %v8355
    %v8736 = vunpack.c.l.b16 %v8356
    %v8737 = vunpack.c.h.b16 %v8356
    %v8738 = vunpack.c.l.b16 %v8357
    %v8739 = vunpack.c.h.b16 %v8357
    %v8740 = vunpack.c.l.b16 %v8358
    %v8741 = vunpack.c.h.b16 %v8358
    %v8742 = vunpack.c.l.b16 %v8359
    %v8743 = vunpack.c.h.b16 %v8359
    %v8744 = vunpack.c.l.b16 %v8360
    %v8745 = vunpack.c.h.b16 %v8360
    %v8746 = vunpack.c.l.b16 %v8361
    %v8747 = vunpack.c.h.b16 %v8361
    %v8748 = vunpack.c.l.b16 %v8362
    %v8749 = vunpack.c.h.b16 %v8362
    %v8750 = vunpack.c.l.b16 %v8363
    %v8751 = vunpack.c.h.b16 %v8363
    %v8752 = vunpack.c.l.b16 %v8364
    %v8753 = vunpack.c.h.b16 %v8364
    %v8754 = vunpack.c.l.b16 %v8365
    %v8755 = vunpack.c.h.b16 %v8365
    %v8756 = vunpack.c.l.b16 %v8366
    %v8757 = vunpack.c.h.b16 %v8366
    %v8758 = vunpack.c.l.b16 %v8367
    %v8759 = vunpack.c.h.b16 %v8367
    %v8760 = vunpack.c.l.b16 %v8368
    %v8761 = vunpack.c.h.b16 %v8368
    %v8762 = vunpack.c.l.b16 %v8369
    %v8763 = vunpack.c.h.b16 %v8369
    %v8764 = vunpack.c.l.b16 %v8370
    %v8765 = vunpack.c.h.b16 %v8370
    %v8766 = vpack.c.b16 %v8514, %v8510
    %v8767 = vpack.c.b16 %v8515, %v8511
    %v8768 = vpack.c.b16 %v8516, %v8512
    %v8769 = vpack.c.b16 %v8517, %v8513
    %v8770 = vpack.c.b16 %v8522, %v8518
    %v8771 = vpack.c.b16 %v8523, %v8519
    %v8772 = vpack.c.b16 %v8524, %v8520
    %v8773 = vpack.c.b16 %v8525, %v8521
    %v8774 = vpack.c.b16 %v8530, %v8526
    %v8775 = vpack.c.b16 %v8531, %v8527
    %v8776 = vpack.c.b16 %v8532, %v8528
    %v8777 = vpack.c.b16 %v8533, %v8529
    %v8778 = vpack.c.b16 %v8538, %v8534
    %v8779 = vpack.c.b16 %v8539, %v8535
    %v8780 = vpack.c.b16 %v8540, %v8536
    %v8781 = vpack.c.b16 %v8541, %v8537
    %v8782 = vpack.c.b16 %v8546, %v8542
    %v8783 = vpack.c.b16 %v8547, %v8543
    %v8784 = vpack.c.b16 %v8548, %v8544
    %v8785 = vpack.c.b16 %v8549, %v8545
    %v8786 = vpack.c.b16 %v8554, %v8550
    %v8787 = vpack.c.b16 %v8555, %v8551
    %v8788 = vpack.c.b16 %v8556, %v8552
    %v8789 = vpack.c.b16 %v8557, %v8553
    %v8790 = vpack.c.b16 %v8562, %v8558
    %v8791 = vpack.c.b16 %v8563, %v8559
    %v8792 = vpack.c.b16 %v8564, %v8560
    %v8793 = vpack.c.b16 %v8565, %v8561
    %v8794 = vpack.c.b16 %v8570, %v8566
    %v8795 = vpack.c.b16 %v8571, %v8567
    %v8796 = vpack.c.b16 %v8572, %v8568
    %v8797 = vpack.c.b16 %v8573, %v8569
    %v8798 = vpack.c.b16 %v8578, %v8574
    %v8799 = vpack.c.b16 %v8579, %v8575
    %v8800 = vpack.c.b16 %v8580, %v8576
    %v8801 = vpack.c.b16 %v8581, %v8577
    %v8802 = vpack.c.b16 %v8586, %v8582
    %v8803 = vpack.c.b16 %v8587, %v8583
    %v8804 = vpack.c.b16 %v8588, %v8584
    %v8805 = vpack.c.b16 %v8589, %v8585
    %v8806 = vpack.c.b16 %v8594, %v8590
    %v8807 = vpack.c.b16 %v8595, %v8591
    %v8808 = vpack.c.b16 %v8596, %v8592
    %v8809 = vpack.c.b16 %v8597, %v8593
    %v8810 = vpack.c.b16 %v8602, %v8598
    %v8811 = vpack.c.b16 %v8603, %v8599
    %v8812 = vpack.c.b16 %v8604, %v8600
    %v8813 = vpack.c.b16 %v8605, %v8601
    %v8814 = vpack.c.b16 %v8610, %v8606
    %v8815 = vpack.c.b16 %v8611, %v8607
    %v8816 = vpack.c.b16 %v8612, %v8608
    %v8817 = vpack.c.b16 %v8613, %v8609
    %v8818 = vpack.c.b16 %v8618, %v8614
    %v8819 = vpack.c.b16 %v8619, %v8615
    %v8820 = vpack.c.b16 %v8620, %v8616
    %v8821 = vpack.c.b16 %v8621, %v8617
    %v8822 = vpack.c.b16 %v8626, %v8622
    %v8823 = vpack.c.b16 %v8627, %v8623
    %v8824 = vpack.c.b16 %v8628, %v8624
    %v8825 = vpack.c.b16 %v8629, %v8625
    %v8826 = vpack.c.b16 %v8634, %v8630
    %v8827 = vpack.c.b16 %v8635, %v8631
    %v8828 = vpack.c.b16 %v8636, %v8632
    %v8829 = vpack.c.b16 %v8637, %v8633
    %v8830 = vpack.c.b16 %v8642, %v8638
    %v8831 = vpack.c.b16 %v8643, %v8639
    %v8832 = vpack.c.b16 %v8644, %v8640
    %v8833 = vpack.c.b16 %v8645, %v8641
    %v8834 = vpack.c.b16 %v8650, %v8646
    %v8835 = vpack.c.b16 %v8651, %v8647
    %v8836 = vpack.c.b16 %v8652, %v8648
    %v8837 = vpack.c.b16 %v8653, %v8649
    %v8838 = vpack.c.b16 %v8658, %v8654
    %v8839 = vpack.c.b16 %v8659, %v8655
    %v8840 = vpack.c.b16 %v8660, %v8656
    %v8841 = vpack.c.b16 %v8661, %v8657
    %v8842 = vpack.c.b16 %v8666, %v8662
    %v8843 = vpack.c.b16 %v8667, %v8663
    %v8844 = vpack.c.b16 %v8668, %v8664
    %v8845 = vpack.c.b16 %v8669, %v8665
    %v8846 = vpack.c.b16 %v8674, %v8670
    %v8847 = vpack.c.b16 %v8675, %v8671
    %v8848 = vpack.c.b16 %v8676, %v8672
    %v8849 = vpack.c.b16 %v8677, %v8673
    %v8850 = vpack.c.b16 %v8682, %v8678
    %v8851 = vpack.c.b16 %v8683, %v8679
    %v8852 = vpack.c.b16 %v8684, %v8680
    %v8853 = vpack.c.b16 %v8685, %v8681
    %v8854 = vpack.c.b16 %v8690, %v8686
    %v8855 = vpack.c.b16 %v8691, %v8687
    %v8856 = vpack.c.b16 %v8692, %v8688
    %v8857 = vpack.c.b16 %v8693, %v8689
    %v8858 = vpack.c.b16 %v8698, %v8694
    %v8859 = vpack.c.b16 %v8699, %v8695
    %v8860 = vpack.c.b16 %v8700, %v8696
    %v8861 = vpack.c.b16 %v8701, %v8697
    %v8862 = vpack.c.b16 %v8706, %v8702
    %v8863 = vpack.c.b16 %v8707, %v8703
    %v8864 = vpack.c.b16 %v8708, %v8704
    %v8865 = vpack.c.b16 %v8709, %v8705
    %v8866 = vpack.c.b16 %v8714, %v8710
    %v8867 = vpack.c.b16 %v8715, %v8711
    %v8868 = vpack.c.b16 %v8716, %v8712
    %v8869 = vpack.c.b16 %v8717, %v8713
    %v8870 = vpack.c.b16 %v8722, %v8718
    %v8871 = vpack.c.b16 %v8723, %v8719
    %v8872 = vpack.c.b16 %v8724, %v8720
    %v8873 = vpack.c.b16 %v8725, %v8721
    %v8874 = vpack.c.b16 %v8730, %v8726
    %v8875 = vpack.c.b16 %v8731, %v8727
    %v8876 = vpack.c.b16 %v8732, %v8728
    %v8877 = vpack.c.b16 %v8733, %v8729
    %v8878 = vpack.c.b16 %v8738, %v8734
    %v8879 = vpack.c.b16 %v8739, %v8735
    %v8880 = vpack.c.b16 %v8740, %v8736
    %v8881 = vpack.c.b16 %v8741, %v8737
    %v8882 = vpack.c.b16 %v8746, %v8742
    %v8883 = vpack.c.b16 %v8747, %v8743
    %v8884 = vpack.c.b16 %v8748, %v8744
    %v8885 = vpack.c.b16 %v8749, %v8745
    %v8886 = vpack.c.b16 %v8754, %v8750
    %v8887 = vpack.c.b16 %v8755, %v8751
    %v8888 = vpack.c.b16 %v8756, %v8752
    %v8889 = vpack.c.b16 %v8757, %v8753
    %v8890 = vpack.c.b16 %v8762, %v8758
    %v8891 = vpack.c.b16 %v8763, %v8759
    %v8892 = vpack.c.b16 %v8764, %v8760
    %v8893 = vpack.c.b16 %v8765, %v8761
    %9022 = vmatpush.bf16.msra.mxu0 %v8794
    %9023 = vmatpush.bf16.msra.mxu0 %v8790
    %9024 = vmatpush.bf16.msra.mxu0 %v8786
    %9025 = vmatpush.bf16.msra.mxu0 %v8782
    %9026 = vmatpush.bf16.msra.mxu0 %v8778
    %9027 = vmatpush.bf16.msra.mxu0 %v8774
    %9028 = vmatpush.bf16.msra.mxu0 %v8770
    %9029 = vmatpush.bf16.msra.mxu0 %v8766
    %9030 = vmatmul.bf16.gmra.mxu0 %v8238
    %v9031 = vpop.f32.mrf.mxu0
    %v9032 = vadd.f32 %v8374, %v9031
    %v9033 = vpop.f32.mrf.mxu0
    %9034 = vdwg.mxu0
    %9035 = vmatpush.bf16.msra.mxu0 %v8826
    %9036 = vmatpush.bf16.msra.mxu0 %v8822
    %9037 = vmatpush.bf16.msra.mxu0 %v8818
    %9038 = vmatpush.bf16.msra.mxu0 %v8814
    %9039 = vmatpush.bf16.msra.mxu0 %v8810
    %9040 = vmatpush.bf16.msra.mxu0 %v8806
    %9041 = vmatpush.bf16.msra.mxu0 %v8802
    %9042 = vmatpush.bf16.msra.mxu0 %v8798
    %9043 = vmatmul.bf16.gmra.mxu0 %v8239
    %v9044 = vpop.f32.mrf.mxu0
    %v9045 = vadd.f32 %v9032, %v9044
    %v9046 = vpop.f32.mrf.mxu0
    %9047 = vdwg.mxu0
    %9048 = vmatpush.bf16.msra.mxu0 %v8858
    %9049 = vmatpush.bf16.msra.mxu0 %v8854
    %9050 = vmatpush.bf16.msra.mxu0 %v8850
    %9051 = vmatpush.bf16.msra.mxu0 %v8846
    %9052 = vmatpush.bf16.msra.mxu0 %v8842
    %9053 = vmatpush.bf16.msra.mxu0 %v8838
    %9054 = vmatpush.bf16.msra.mxu0 %v8834
    %9055 = vmatpush.bf16.msra.mxu0 %v8830
    %9056 = vmatmul.bf16.gmra.mxu0 %v8240
    %v9057 = vpop.f32.mrf.mxu0
    %v9058 = vadd.f32 %v9045, %v9057
    %v9059 = vpop.f32.mrf.mxu0
    %9060 = vdwg.mxu0
    %9061 = vmatpush.bf16.msra.mxu0 %v8890
    %9062 = vmatpush.bf16.msra.mxu0 %v8886
    %9063 = vmatpush.bf16.msra.mxu0 %v8882
    %9064 = vmatpush.bf16.msra.mxu0 %v8878
    %9065 = vmatpush.bf16.msra.mxu0 %v8874
    %9066 = vmatpush.bf16.msra.mxu0 %v8870
    %9067 = vmatpush.bf16.msra.mxu0 %v8866
    %9068 = vmatpush.bf16.msra.mxu0 %v8862
    %9069 = vmatmul.bf16.gmra.mxu0 %v8241
    %v9070 = vpop.f32.mrf.mxu0
    %v9071 = vadd.f32 %v9058, %v9070
    %v9072 = vpop.f32.mrf.mxu0
    %9073 = vdwg.mxu0
    %9074 = vmatpush.bf16.msra.mxu0 %v8795
    %9075 = vmatpush.bf16.msra.mxu0 %v8791
    %9076 = vmatpush.bf16.msra.mxu0 %v8787
    %9077 = vmatpush.bf16.msra.mxu0 %v8783
    %9078 = vmatpush.bf16.msra.mxu0 %v8779
    %9079 = vmatpush.bf16.msra.mxu0 %v8775
    %9080 = vmatpush.bf16.msra.mxu0 %v8771
    %9081 = vmatpush.bf16.msra.mxu0 %v8767
    %9082 = vmatmul.bf16.gmra.mxu0 %v8238
    %v9083 = vpop.f32.mrf.mxu0
    %v9084 = vadd.f32 %v8375, %v9083
    %v9085 = vpop.f32.mrf.mxu0
    %9086 = vdwg.mxu0
    %9087 = vmatpush.bf16.msra.mxu0 %v8827
    %9088 = vmatpush.bf16.msra.mxu0 %v8823
    %9089 = vmatpush.bf16.msra.mxu0 %v8819
    %9090 = vmatpush.bf16.msra.mxu0 %v8815
    %9091 = vmatpush.bf16.msra.mxu0 %v8811
    %9092 = vmatpush.bf16.msra.mxu0 %v8807
    %9093 = vmatpush.bf16.msra.mxu0 %v8803
    %9094 = vmatpush.bf16.msra.mxu0 %v8799
    %9095 = vmatmul.bf16.gmra.mxu0 %v8239
    %v9096 = vpop.f32.mrf.mxu0
    %v9097 = vadd.f32 %v9084, %v9096
    %v9098 = vpop.f32.mrf.mxu0
    %9099 = vdwg.mxu0
    %9100 = vmatpush.bf16.msra.mxu0 %v8859
    %9101 = vmatpush.bf16.msra.mxu0 %v8855
    %9102 = vmatpush.bf16.msra.mxu0 %v8851
    %9103 = vmatpush.bf16.msra.mxu0 %v8847
    %9104 = vmatpush.bf16.msra.mxu0 %v8843
    %9105 = vmatpush.bf16.msra.mxu0 %v8839
    %9106 = vmatpush.bf16.msra.mxu0 %v8835
    %9107 = vmatpush.bf16.msra.mxu0 %v8831
    %9108 = vmatmul.bf16.gmra.mxu0 %v8240
    %v9109 = vpop.f32.mrf.mxu0
    %v9110 = vadd.f32 %v9097, %v9109
    %v9111 = vpop.f32.mrf.mxu0
    %9112 = vdwg.mxu0
    %9113 = vmatpush.bf16.msra.mxu0 %v8891
    %9114 = vmatpush.bf16.msra.mxu0 %v8887
    %9115 = vmatpush.bf16.msra.mxu0 %v8883
    %9116 = vmatpush.bf16.msra.mxu0 %v8879
    %9117 = vmatpush.bf16.msra.mxu0 %v8875
    %9118 = vmatpush.bf16.msra.mxu0 %v8871
    %9119 = vmatpush.bf16.msra.mxu0 %v8867
    %9120 = vmatpush.bf16.msra.mxu0 %v8863
    %9121 = vmatmul.bf16.gmra.mxu0 %v8241
    %v9122 = vpop.f32.mrf.mxu0
    %v9123 = vadd.f32 %v9110, %v9122
    %v9124 = vpop.f32.mrf.mxu0
    %9125 = vdwg.mxu0
    %9126 = vmatpush.bf16.msra.mxu0 %v8796
    %9127 = vmatpush.bf16.msra.mxu0 %v8792
    %9128 = vmatpush.bf16.msra.mxu0 %v8788
    %9129 = vmatpush.bf16.msra.mxu0 %v8784
    %9130 = vmatpush.bf16.msra.mxu0 %v8780
    %9131 = vmatpush.bf16.msra.mxu0 %v8776
    %9132 = vmatpush.bf16.msra.mxu0 %v8772
    %9133 = vmatpush.bf16.msra.mxu0 %v8768
    %9134 = vmatmul.bf16.gmra.mxu0 %v8238
    %v9135 = vpop.f32.mrf.mxu0
    %v9136 = vadd.f32 %v8376, %v9135
    %v9137 = vpop.f32.mrf.mxu0
    %9138 = vdwg.mxu0
    %9139 = vmatpush.bf16.msra.mxu0 %v8828
    %9140 = vmatpush.bf16.msra.mxu0 %v8824
    %9141 = vmatpush.bf16.msra.mxu0 %v8820
    %9142 = vmatpush.bf16.msra.mxu0 %v8816
    %9143 = vmatpush.bf16.msra.mxu0 %v8812
    %9144 = vmatpush.bf16.msra.mxu0 %v8808
    %9145 = vmatpush.bf16.msra.mxu0 %v8804
    %9146 = vmatpush.bf16.msra.mxu0 %v8800
    %9147 = vmatmul.bf16.gmra.mxu0 %v8239
    %v9148 = vpop.f32.mrf.mxu0
    %v9149 = vadd.f32 %v9136, %v9148
    %v9150 = vpop.f32.mrf.mxu0
    %9151 = vdwg.mxu0
    %9152 = vmatpush.bf16.msra.mxu0 %v8860
    %9153 = vmatpush.bf16.msra.mxu0 %v8856
    %9154 = vmatpush.bf16.msra.mxu0 %v8852
    %9155 = vmatpush.bf16.msra.mxu0 %v8848
    %9156 = vmatpush.bf16.msra.mxu0 %v8844
    %9157 = vmatpush.bf16.msra.mxu0 %v8840
    %9158 = vmatpush.bf16.msra.mxu0 %v8836
    %9159 = vmatpush.bf16.msra.mxu0 %v8832
    %9160 = vmatmul.bf16.gmra.mxu0 %v8240
    %v9161 = vpop.f32.mrf.mxu0
    %v9162 = vadd.f32 %v9149, %v9161
    %v9163 = vpop.f32.mrf.mxu0
    %9164 = vdwg.mxu0
    %9165 = vmatpush.bf16.msra.mxu0 %v8892
    %9166 = vmatpush.bf16.msra.mxu0 %v8888
    %9167 = vmatpush.bf16.msra.mxu0 %v8884
    %9168 = vmatpush.bf16.msra.mxu0 %v8880
    %9169 = vmatpush.bf16.msra.mxu0 %v8876
    %9170 = vmatpush.bf16.msra.mxu0 %v8872
    %9171 = vmatpush.bf16.msra.mxu0 %v8868
    %9172 = vmatpush.bf16.msra.mxu0 %v8864
    %9173 = vmatmul.bf16.gmra.mxu0 %v8241
    %v9174 = vpop.f32.mrf.mxu0
    %v9175 = vadd.f32 %v9162, %v9174
    %v9176 = vpop.f32.mrf.mxu0
    %9177 = vdwg.mxu0
    %9178 = vmatpush.bf16.msra.mxu0 %v8797
    %9179 = vmatpush.bf16.msra.mxu0 %v8793
    %9180 = vmatpush.bf16.msra.mxu0 %v8789
    %9181 = vmatpush.bf16.msra.mxu0 %v8785
    %9182 = vmatpush.bf16.msra.mxu0 %v8781
    %9183 = vmatpush.bf16.msra.mxu0 %v8777
    %9184 = vmatpush.bf16.msra.mxu0 %v8773
    %9185 = vmatpush.bf16.msra.mxu0 %v8769
    %9186 = vmatmul.bf16.gmra.mxu0 %v8238
    %v9187 = vpop.f32.mrf.mxu0
    %v9188 = vadd.f32 %v8377, %v9187
    %v9189 = vpop.f32.mrf.mxu0
    %9190 = vdwg.mxu0
    %9191 = vmatpush.bf16.msra.mxu0 %v8829
    %9192 = vmatpush.bf16.msra.mxu0 %v8825
    %9193 = vmatpush.bf16.msra.mxu0 %v8821
    %9194 = vmatpush.bf16.msra.mxu0 %v8817
    %9195 = vmatpush.bf16.msra.mxu0 %v8813
    %9196 = vmatpush.bf16.msra.mxu0 %v8809
    %9197 = vmatpush.bf16.msra.mxu0 %v8805
    %9198 = vmatpush.bf16.msra.mxu0 %v8801
    %9199 = vmatmul.bf16.gmra.mxu0 %v8239
    %v9200 = vpop.f32.mrf.mxu0
    %v9201 = vadd.f32 %v9188, %v9200
    %v9202 = vpop.f32.mrf.mxu0
    %9203 = vdwg.mxu0
    %9204 = vmatpush.bf16.msra.mxu0 %v8861
    %9205 = vmatpush.bf16.msra.mxu0 %v8857
    %9206 = vmatpush.bf16.msra.mxu0 %v8853
    %9207 = vmatpush.bf16.msra.mxu0 %v8849
    %9208 = vmatpush.bf16.msra.mxu0 %v8845
    %9209 = vmatpush.bf16.msra.mxu0 %v8841
    %9210 = vmatpush.bf16.msra.mxu0 %v8837
    %9211 = vmatpush.bf16.msra.mxu0 %v8833
    %9212 = vmatmul.bf16.gmra.mxu0 %v8240
    %v9213 = vpop.f32.mrf.mxu0
    %v9214 = vadd.f32 %v9201, %v9213
    %v9215 = vpop.f32.mrf.mxu0
    %9216 = vdwg.mxu0
    %9217 = vmatpush.bf16.msra.mxu0 %v8893
    %9218 = vmatpush.bf16.msra.mxu0 %v8889
    %9219 = vmatpush.bf16.msra.mxu0 %v8885
    %9220 = vmatpush.bf16.msra.mxu0 %v8881
    %9221 = vmatpush.bf16.msra.mxu0 %v8877
    %9222 = vmatpush.bf16.msra.mxu0 %v8873
    %9223 = vmatpush.bf16.msra.mxu0 %v8869
    %9224 = vmatpush.bf16.msra.mxu0 %v8865
    %9225 = vmatmul.bf16.gmra.mxu0 %v8241
    %v9226 = vpop.f32.mrf.mxu0
    %v9227 = vadd.f32 %v9214, %v9226
    %v9228 = vpop.f32.mrf.mxu0
    %9229 = vdwg.mxu0
    %v9230 = vmax.f32 %v9071, 0.0
    %v9231 = vmax.f32 %v9123, 0.0
    %v9232 = vmax.f32 %v9175, 0.0
    %v9233 = vmax.f32 %v9227, 0.0
    %vm9234 = vcmp.eq.s32.totalorder %v3253, 1
    %v9235 = vsel %vm9234, 1, 0
    %9236 = vset.pattern.permute.xlu0 0
    %9237 = vperm.xlu0 %9236, %v9235
    %v9238 = vpop.permute.xlu0 %9237
    %vm9239 = vcmp.eq.s32.totalorder %v9238, 1
    %v9240 = vsel %vm9239, %v9230, %v6246
    %v9241 = vsel %vm9239, %v9231, %v6247
    %v9242 = vsel %vm9239, %v9232, %v6248
    %v9243 = vsel %vm9239, %v9233, %v6249
    %v9244 = vpack.c.bf16 %v9240, %v9240
    %v9245 = vpack.c.bf16 %v9241, %v9241
    %v9246 = vpack.c.bf16 %v9242, %v9242
    %v9247 = vpack.c.bf16 %v9243, %v9243
    %v9248 = vld [vmem:[#allocation14] sm:$0xf]
    %v9249 = vld [vmem:[#allocation14 + $0x4] sm:$0xf]
    %v9250 = vld [vmem:[#allocation14 + $0x8] sm:$0xf]
    %v9251 = vld [vmem:[#allocation14 + $0xc] sm:$0xf]
    %v9252 = vld [vmem:[#allocation14 + $0x10] sm:$0xf]
    %v9253 = vld [vmem:[#allocation14 + $0x14] sm:$0xf]
    %v9254 = vld [vmem:[#allocation14 + $0x18] sm:$0xf]
    %v9255 = vld [vmem:[#allocation14 + $0x1c] sm:$0xf]
    %v9256 = vld [vmem:[#allocation14 + $0x20] sm:$0xf]
    %v9257 = vld [vmem:[#allocation14 + $0x24] sm:$0xf]
    %v9258 = vld [vmem:[#allocation14 + $0x28] sm:$0xf]
    %v9259 = vld [vmem:[#allocation14 + $0x2c] sm:$0xf]
    %v9260 = vld [vmem:[#allocation14 + $0x30] sm:$0xf]
    %v9261 = vld [vmem:[#allocation14 + $0x34] sm:$0xf]
    %v9262 = vld [vmem:[#allocation14 + $0x38] sm:$0xf]
    %v9263 = vld [vmem:[#allocation14 + $0x3c] sm:$0xf]
    %v9264 = vld [vmem:[#allocation14 + $0x40] sm:$0xf]
    %v9265 = vld [vmem:[#allocation14 + $0x44] sm:$0xf]
    %v9266 = vld [vmem:[#allocation14 + $0x48] sm:$0xf]
    %v9267 = vld [vmem:[#allocation14 + $0x4c] sm:$0xf]
    %v9268 = vld [vmem:[#allocation14 + $0x50] sm:$0xf]
    %v9269 = vld [vmem:[#allocation14 + $0x54] sm:$0xf]
    %v9270 = vld [vmem:[#allocation14 + $0x58] sm:$0xf]
    %v9271 = vld [vmem:[#allocation14 + $0x5c] sm:$0xf]
    %v9272 = vld [vmem:[#allocation14 + $0x60] sm:$0xf]
    %v9273 = vld [vmem:[#allocation14 + $0x64] sm:$0xf]
    %v9274 = vld [vmem:[#allocation14 + $0x68] sm:$0xf]
    %v9275 = vld [vmem:[#allocation14 + $0x6c] sm:$0xf]
    %v9276 = vld [vmem:[#allocation14 + $0x70] sm:$0xf]
    %v9277 = vld [vmem:[#allocation14 + $0x74] sm:$0xf]
    %v9278 = vld [vmem:[#allocation14 + $0x78] sm:$0xf]
    %v9279 = vld [vmem:[#allocation14 + $0x7c] sm:$0xf]
    %v9280 = vld [vmem:[#allocation14 + $0x80] sm:$0xf]
    %v9281 = vld [vmem:[#allocation14 + $0x84] sm:$0xf]
    %v9282 = vld [vmem:[#allocation14 + $0x88] sm:$0xf]
    %v9283 = vld [vmem:[#allocation14 + $0x8c] sm:$0xf]
    %v9284 = vld [vmem:[#allocation14 + $0x90] sm:$0xf]
    %v9285 = vld [vmem:[#allocation14 + $0x94] sm:$0xf]
    %v9286 = vld [vmem:[#allocation14 + $0x98] sm:$0xf]
    %v9287 = vld [vmem:[#allocation14 + $0x9c] sm:$0xf]
    %v9288 = vld [vmem:[#allocation14 + $0xa0] sm:$0xf]
    %v9289 = vld [vmem:[#allocation14 + $0xa4] sm:$0xf]
    %v9290 = vld [vmem:[#allocation14 + $0xa8] sm:$0xf]
    %v9291 = vld [vmem:[#allocation14 + $0xac] sm:$0xf]
    %v9292 = vld [vmem:[#allocation14 + $0xb0] sm:$0xf]
    %v9293 = vld [vmem:[#allocation14 + $0xb4] sm:$0xf]
    %v9294 = vld [vmem:[#allocation14 + $0xb8] sm:$0xf]
    %v9295 = vld [vmem:[#allocation14 + $0xbc] sm:$0xf]
    %v9296 = vld [vmem:[#allocation14 + $0xc0] sm:$0xf]
    %v9297 = vld [vmem:[#allocation14 + $0xc4] sm:$0xf]
    %v9298 = vld [vmem:[#allocation14 + $0xc8] sm:$0xf]
    %v9299 = vld [vmem:[#allocation14 + $0xcc] sm:$0xf]
    %v9300 = vld [vmem:[#allocation14 + $0xd0] sm:$0xf]
    %v9301 = vld [vmem:[#allocation14 + $0xd4] sm:$0xf]
    %v9302 = vld [vmem:[#allocation14 + $0xd8] sm:$0xf]
    %v9303 = vld [vmem:[#allocation14 + $0xdc] sm:$0xf]
    %v9304 = vld [vmem:[#allocation14 + $0xe0] sm:$0xf]
    %v9305 = vld [vmem:[#allocation14 + $0xe4] sm:$0xf]
    %v9306 = vld [vmem:[#allocation14 + $0xe8] sm:$0xf]
    %v9307 = vld [vmem:[#allocation14 + $0xec] sm:$0xf]
    %v9308 = vld [vmem:[#allocation14 + $0xf0] sm:$0xf]
    %v9309 = vld [vmem:[#allocation14 + $0xf4] sm:$0xf]
    %v9310 = vld [vmem:[#allocation14 + $0xf8] sm:$0xf]
    %v9311 = vld [vmem:[#allocation14 + $0xfc] sm:$0xf]
    %v9312 = vld [vmem:[#allocation16] sm:$0x1]
    %v9314 = vperm.slane %v9312, 0
    %v9380 = vunpack.c.l.b16 %v9248
    %v9381 = vunpack.c.l.b16 %v9249
    %v9382 = vunpack.c.l.b16 %v9250
    %v9383 = vunpack.c.l.b16 %v9251
    %v9384 = vunpack.c.l.b16 %v9252
    %v9385 = vunpack.c.l.b16 %v9253
    %v9386 = vunpack.c.l.b16 %v9254
    %v9387 = vunpack.c.l.b16 %v9255
    %v9388 = vunpack.c.l.b16 %v9256
    %v9389 = vunpack.c.l.b16 %v9257
    %v9390 = vunpack.c.l.b16 %v9258
    %v9391 = vunpack.c.l.b16 %v9259
    %v9392 = vunpack.c.l.b16 %v9260
    %v9393 = vunpack.c.l.b16 %v9261
    %v9394 = vunpack.c.l.b16 %v9262
    %v9395 = vunpack.c.l.b16 %v9263
    %v9396 = vunpack.c.l.b16 %v9264
    %v9397 = vunpack.c.l.b16 %v9265
    %v9398 = vunpack.c.l.b16 %v9266
    %v9399 = vunpack.c.l.b16 %v9267
    %v9400 = vunpack.c.l.b16 %v9268
    %v9401 = vunpack.c.l.b16 %v9269
    %v9402 = vunpack.c.l.b16 %v9270
    %v9403 = vunpack.c.l.b16 %v9271
    %v9404 = vunpack.c.l.b16 %v9272
    %v9405 = vunpack.c.l.b16 %v9273
    %v9406 = vunpack.c.l.b16 %v9274
    %v9407 = vunpack.c.l.b16 %v9275
    %v9408 = vunpack.c.l.b16 %v9276
    %v9409 = vunpack.c.l.b16 %v9277
    %v9410 = vunpack.c.l.b16 %v9278
    %v9411 = vunpack.c.l.b16 %v9279
    %v9412 = vunpack.c.l.b16 %v9280
    %v9413 = vunpack.c.l.b16 %v9281
    %v9414 = vunpack.c.l.b16 %v9282
    %v9415 = vunpack.c.l.b16 %v9283
    %v9416 = vunpack.c.l.b16 %v9284
    %v9417 = vunpack.c.l.b16 %v9285
    %v9418 = vunpack.c.l.b16 %v9286
    %v9419 = vunpack.c.l.b16 %v9287
    %v9420 = vunpack.c.l.b16 %v9288
    %v9421 = vunpack.c.l.b16 %v9289
    %v9422 = vunpack.c.l.b16 %v9290
    %v9423 = vunpack.c.l.b16 %v9291
    %v9424 = vunpack.c.l.b16 %v9292
    %v9425 = vunpack.c.l.b16 %v9293
    %v9426 = vunpack.c.l.b16 %v9294
    %v9427 = vunpack.c.l.b16 %v9295
    %v9428 = vunpack.c.l.b16 %v9296
    %v9429 = vunpack.c.l.b16 %v9297
    %v9430 = vunpack.c.l.b16 %v9298
    %v9431 = vunpack.c.l.b16 %v9299
    %v9432 = vunpack.c.l.b16 %v9300
    %v9433 = vunpack.c.l.b16 %v9301
    %v9434 = vunpack.c.l.b16 %v9302
    %v9435 = vunpack.c.l.b16 %v9303
    %v9436 = vunpack.c.l.b16 %v9304
    %v9437 = vunpack.c.l.b16 %v9305
    %v9438 = vunpack.c.l.b16 %v9306
    %v9439 = vunpack.c.l.b16 %v9307
    %v9440 = vunpack.c.l.b16 %v9308
    %v9441 = vunpack.c.l.b16 %v9309
    %v9442 = vunpack.c.l.b16 %v9310
    %v9443 = vunpack.c.l.b16 %v9311
    %v9444 = vpack.c.b16 %v9381, %v9380
    %v9445 = vpack.c.b16 %v9383, %v9382
    %v9446 = vpack.c.b16 %v9385, %v9384
    %v9447 = vpack.c.b16 %v9387, %v9386
    %v9448 = vpack.c.b16 %v9389, %v9388
    %v9449 = vpack.c.b16 %v9391, %v9390
    %v9450 = vpack.c.b16 %v9393, %v9392
    %v9451 = vpack.c.b16 %v9395, %v9394
    %v9452 = vpack.c.b16 %v9397, %v9396
    %v9453 = vpack.c.b16 %v9399, %v9398
    %v9454 = vpack.c.b16 %v9401, %v9400
    %v9455 = vpack.c.b16 %v9403, %v9402
    %v9456 = vpack.c.b16 %v9405, %v9404
    %v9457 = vpack.c.b16 %v9407, %v9406
    %v9458 = vpack.c.b16 %v9409, %v9408
    %v9459 = vpack.c.b16 %v9411, %v9410
    %v9460 = vpack.c.b16 %v9413, %v9412
    %v9461 = vpack.c.b16 %v9415, %v9414
    %v9462 = vpack.c.b16 %v9417, %v9416
    %v9463 = vpack.c.b16 %v9419, %v9418
    %v9464 = vpack.c.b16 %v9421, %v9420
    %v9465 = vpack.c.b16 %v9423, %v9422
    %v9466 = vpack.c.b16 %v9425, %v9424
    %v9467 = vpack.c.b16 %v9427, %v9426
    %v9468 = vpack.c.b16 %v9429, %v9428
    %v9469 = vpack.c.b16 %v9431, %v9430
    %v9470 = vpack.c.b16 %v9433, %v9432
    %v9471 = vpack.c.b16 %v9435, %v9434
    %v9472 = vpack.c.b16 %v9437, %v9436
    %v9473 = vpack.c.b16 %v9439, %v9438
    %v9474 = vpack.c.b16 %v9441, %v9440
    %v9475 = vpack.c.b16 %v9443, %v9442
    %9508 = vmatpush.bf16.msra.mxu0 %v9451
    %9509 = vmatpush.bf16.msra.mxu0 %v9450
    %9510 = vmatpush.bf16.msra.mxu0 %v9449
    %9511 = vmatpush.bf16.msra.mxu0 %v9448
    %9512 = vmatpush.bf16.msra.mxu0 %v9447
    %9513 = vmatpush.bf16.msra.mxu0 %v9446
    %9514 = vmatpush.bf16.msra.mxu0 %v9445
    %9515 = vmatpush.bf16.msra.mxu0 %v9444
    %9516 = vmatmul.bf16.gmra.mxu0 %v9244
    %v9517 = vpop.f32.mrf.mxu0
    %v9518 = vadd.f32 %v9314, %v9517
    %v9519 = vpop.f32.mrf.mxu0
    %9520 = vdwg.mxu0
    %9521 = vmatpush.bf16.msra.mxu0 %v9459
    %9522 = vmatpush.bf16.msra.mxu0 %v9458
    %9523 = vmatpush.bf16.msra.mxu0 %v9457
    %9524 = vmatpush.bf16.msra.mxu0 %v9456
    %9525 = vmatpush.bf16.msra.mxu0 %v9455
    %9526 = vmatpush.bf16.msra.mxu0 %v9454
    %9527 = vmatpush.bf16.msra.mxu0 %v9453
    %9528 = vmatpush.bf16.msra.mxu0 %v9452
    %9529 = vmatmul.bf16.gmra.mxu0 %v9245
    %v9530 = vpop.f32.mrf.mxu0
    %v9531 = vadd.f32 %v9518, %v9530
    %v9532 = vpop.f32.mrf.mxu0
    %9533 = vdwg.mxu0
    %9534 = vmatpush.bf16.msra.mxu0 %v9467
    %9535 = vmatpush.bf16.msra.mxu0 %v9466
    %9536 = vmatpush.bf16.msra.mxu0 %v9465
    %9537 = vmatpush.bf16.msra.mxu0 %v9464
    %9538 = vmatpush.bf16.msra.mxu0 %v9463
    %9539 = vmatpush.bf16.msra.mxu0 %v9462
    %9540 = vmatpush.bf16.msra.mxu0 %v9461
    %9541 = vmatpush.bf16.msra.mxu0 %v9460
    %9542 = vmatmul.bf16.gmra.mxu0 %v9246
    %v9543 = vpop.f32.mrf.mxu0
    %v9544 = vadd.f32 %v9531, %v9543
    %v9545 = vpop.f32.mrf.mxu0
    %9546 = vdwg.mxu0
    %9547 = vmatpush.bf16.msra.mxu0 %v9475
    %9548 = vmatpush.bf16.msra.mxu0 %v9474
    %9549 = vmatpush.bf16.msra.mxu0 %v9473
    %9550 = vmatpush.bf16.msra.mxu0 %v9472
    %9551 = vmatpush.bf16.msra.mxu0 %v9471
    %9552 = vmatpush.bf16.msra.mxu0 %v9470
    %9553 = vmatpush.bf16.msra.mxu0 %v9469
    %9554 = vmatpush.bf16.msra.mxu0 %v9468
    %9555 = vmatmul.bf16.gmra.mxu0 %v9247
    %v9556 = vpop.f32.mrf.mxu0
    %v9557 = vadd.f32 %v9544, %v9556
    %v9558 = vpop.f32.mrf.mxu0
    %9559 = vdwg.mxu0
    %9560 = vst [vmem:[#allocation17] sm:$0xff] %v9557
    // Predicated region
    $region78: #{tpu_custom_call.1} parent=1 // pred_check
      _
    $region79: #{tpu_custom_call.1} parent=1 // pred_check_branch
      %9562 = sbr.rel (0) target = $region81
    $region80: #{tpu_custom_call.1} parent=1 // pred_region
      %9564 = vsyncadd [#allocation4], 0
      %s9566 = sshll.u32 [#allocation17], 4
      %s9567 = int_to_ptr.vmem [resolvable:$true] %s9566
      %s9568 = sshll.u32 %s10, 4
      %s9569 = int_to_ptr.hbm [resolvable:$true] %s9568
      %9571 = dma.vmem_to_hbm [thread:$0]  %s9567, 128, %s9569, [#allocation4]
    $region81: #{tpu_custom_call.1} parent=1 // pred_fallthru
      _
    // Predicated region
    $region82: #{tpu_custom_call.1} parent=1 // pred_check
      _
    $region83: #{tpu_custom_call.1} parent=1 // pred_check_branch
      %9573 = sbr.rel (0) target = $region85
    $region84: #{tpu_custom_call.1} parent=1 // pred_region
      %9575 = dma.done [#allocation4], 128
    $region85: #{tpu_custom_call.1} parent=1 // pred_fallthru
      _
    %9576 = vsyncpa [#allocation3], 1
    %9577 = vsyncpa [#allocation6], 1
    %9578 = vsyncpa [#allocation9], 1
    %9579 = vsyncpa [#allocation12], 1
    %9580 = vsyncpa [#allocation15], 1
    %9581 = vsyncpa [#allocation4], 1

</llo_original>
